<compile_context>
chip_gen: v7x
topology: tpu7x:2x2x1
jax: 0.10.0
libtpu: 0.0.40
codegen_flags: <defaults>
</compile_context>

<pallas_src>
import functools

import jax
import jax.numpy as jnp
from jax.experimental import pallas as pl
from jax.experimental.pallas import tpu as pltpu

EPS = 1e-5          # nn.BatchNorm2d default
LANE = 128
_VMEM_LIMIT = 32 * 1024 * 1024   # safe on v5e/v6e/v7x; tiles are far smaller


# ---------------------------------------------------------------------------
# small helpers
# ---------------------------------------------------------------------------
def _rup(x, m):
    return (x + m - 1) // m * m


def _pick_block_m(M, target=256):
    """Largest multiple-of-8 divisor of M that is <= target (falls back to M)."""
    if M <= target:
        return M
    bm = target - (target % 8)
    while bm >= 8:
        if M % bm == 0:
            return bm
        bm -= 8
    return M


def _cparams():
    return pltpu.CompilerParams(
        dimension_semantics=("parallel",),
        vmem_limit_bytes=_VMEM_LIMIT,
    )


# ---------------------------------------------------------------------------
# Pallas kernels
# ---------------------------------------------------------------------------
def _mm_stats_kernel(x_ref, sc_ref, sh_ref, w_ref, y_ref, st_ref, *, act):
    """y = (relu(x*sc+sh) if act else x) @ w  (bf16 MXU, f32 acc)
       + per-tile sum / sum-of-squares epilogue for BatchNorm batch stats."""
    x = x_ref[...]
    if act:                                   # fused bn+relu prologue (f32)
        x = jnp.maximum(x * sc_ref[...] + sh_ref[...], 0.0)
    acc = jnp.dot(x.astype(jnp.bfloat16), w_ref[...],
                  preferred_element_type=jnp.float32)
    y_ref[...] = acc
    st_ref[...] = jnp.zeros_like(st_ref)
    st_ref[0, 0:1, :] = jnp.sum(acc, axis=0, keepdims=True)
    st_ref[0, 1:2, :] = jnp.sum(acc * acc, axis=0, keepdims=True)


def _conv3x3_stats_kernel(x_ref, w_ref, y_ref, st_ref, *,
                          stride, Ho, Wo, Cin, Cout):
    """3x3 / pad=1 / stride-s conv as 9 accumulated in-kernel tap matmuls.

    x_ref block: (1, Hs, Ws, stride*stride*Cin)  -- spatially padded and
    space-to-depth packed (stride>1) so every tap is a unit-stride window.
    """
    y_ref[...] = jnp.zeros_like(y_ref)
    for kh in range(3):
        for kw in range(3):
            c0 = ((kh % stride) * stride + (kw % stride)) * Cin
            tap = x_ref[0,
                        kh // stride: kh // stride + Ho,
                        kw // stride: kw // stride + Wo,
                        c0: c0 + Cin]
            tap = tap.reshape(Ho * Wo, Cin).astype(jnp.bfloat16)
            y_ref[...] += jnp.dot(tap, w_ref[kh, kw],
                                  preferred_element_type=jnp.float32)
    acc = y_ref[...]
    st_ref[...] = jnp.zeros_like(st_ref)
    st_ref[0, 0:1, :] = jnp.sum(acc, axis=0, keepdims=True)
    st_ref[0, 1:2, :] = jnp.sum(acc * acc, axis=0, keepdims=True)


def _bn_act_kernel(y_ref, sc_ref, sh_ref, o_ref):
    """out = relu(y*scale + shift)   (per-channel affine = train-mode BN)."""
    o_ref[...] = jnp.maximum(y_ref[...] * sc_ref[...] + sh_ref[...], 0.0)


def _bn_add_relu_kernel(y_ref, r_ref, sc_ref, sh_ref, scr_ref, shr_ref, o_ref):
    """out = relu( BN3(y) + BN_sc(residual) )  -- both BNs pre-reduced to
    per-channel (scale, shift); identity shortcut uses scale=1, shift=0."""
    out = (y_ref[...] * sc_ref[...] + sh_ref[...]
           + r_ref[...] * scr_ref[...] + shr_ref[...])
    o_ref[...] = jnp.maximum(out, 0.0)


# ---------------------------------------------------------------------------
# pallas_call wrappers (tiled over M, double-buffered by BlockSpec)
# ---------------------------------------------------------------------------
def conv1x1_stats(x2d, scale, shift, w, *, act):
    M, K = x2d.shape
    C = w.shape[1]
    bm = _pick_block_m(M)
    nt = M // bm
    kernel = functools.partial(_mm_stats_kernel, act=act)
    vec = pl.BlockSpec((1, K), lambda i: (0, 0))        # resident per grid
    return pl.pallas_call(
        kernel,
        grid=(nt,),
        in_specs=[
            pl.BlockSpec((bm, K), lambda i: (i, 0)),
            vec,
            vec,
            pl.BlockSpec((K, C), lambda i: (0, 0)),     # weights resident
        ],
        out_specs=[
            pl.BlockSpec((bm, C), lambda i: (i, 0)),
            pl.BlockSpec((1, 8, C), lambda i: (i, 0, 0)),
        ],
        out_shape=[
            jax.ShapeDtypeStruct((M, C), jnp.float32),
            jax.ShapeDtypeStruct((nt, 8, C), jnp.float32),
        ],
        compiler_params=_cparams(),
    )(x2d, scale, shift, w)


def conv3x3_stats(a_nhwc, w2p, *, stride):
    N, H, W, Cp = a_nhwc.shape
    Cout = w2p.shape[3]
    Ho = (H - 1) // stride + 1
    Wo = (W - 1) // stride + 1
    Hp = _rup(H + 2, stride)
    Wp = _rup(W + 2, stride)
    # spatial zero-pad (conv padding=1) -- glue over a 1x-sized tensor
    xp = jnp.pad(a_nhwc, ((0, 0), (1, Hp - H - 1), (1, Wp - W - 1), (0, 0)))
    if stride > 1:
        # space-to-depth so that every (kh, kw) tap is a unit-stride window
        Hs, Ws = Hp // stride, Wp // stride
        xp = xp.reshape(N, Hs, stride, Ws, stride, Cp)
        xp = jnp.transpose(xp, (0, 1, 3, 2, 4, 5))
        xp = xp.reshape(N, Hs, Ws, stride * stride * Cp)
    else:
        Hs, Ws = Hp, Wp
    M = N * Ho * Wo
    kernel = functools.partial(_conv3x3_stats_kernel, stride=stride,
                               Ho=Ho, Wo=Wo, Cin=Cp, Cout=Cout)
    return pl.pallas_call(
        kernel,
        grid=(N,),
        in_specs=[
            pl.BlockSpec((1, Hs, Ws, stride * stride * Cp),
                         lambda n: (n, 0, 0, 0)),
            pl.BlockSpec((3, 3, Cp, Cout), lambda n: (0, 0, 0, 0)),
        ],
        out_specs=[
            pl.BlockSpec((Ho * Wo, Cout), lambda n: (n, 0)),
            pl.BlockSpec((1, 8, Cout), lambda n: (n, 0, 0)),
        ],
        out_shape=[
            jax.ShapeDtypeStruct((M, Cout), jnp.float32),
            jax.ShapeDtypeStruct((N, 8, Cout), jnp.float32),
        ],
        compiler_params=_cparams(),
    )(xp, w2p)


def bn_act(y, scale, shift):
    M, C = y.shape
    bm = _pick_block_m(M)
    tile = pl.BlockSpec((bm, C), lambda i: (i, 0))
    vec = pl.BlockSpec((1, C), lambda i: (0, 0))
    return pl.pallas_call(
        _bn_act_kernel,
        grid=(M // bm,),
        in_specs=[tile, vec, vec],
        out_specs=tile,
        out_shape=jax.ShapeDtypeStruct((M, C), jnp.float32),
        compiler_params=_cparams(),
    )(y, scale, shift)


def bn_add_relu(y, resid, sc_y, sh_y, sc_r, sh_r):
    M, C = y.shape
    bm = _pick_block_m(M)
    tile = pl.BlockSpec((bm, C), lambda i: (i, 0))
    vec = pl.BlockSpec((1, C), lambda i: (0, 0))
    return pl.pallas_call(
        _bn_add_relu_kernel,
        grid=(M // bm,),
        in_specs=[tile, tile, vec, vec, vec, vec],
        out_specs=tile,
        out_shape=jax.ShapeDtypeStruct((M, C), jnp.float32),
        compiler_params=_cparams(),
    )(y, resid, sc_y, sh_y, sc_r, sh_r)


# ---------------------------------------------------------------------------
# glue: combine per-tile partial stats into BN (scale, shift)
# ---------------------------------------------------------------------------
def _bn_coeffs(st, count, gamma_p, beta_p):
    s = jnp.sum(st[:, 0, :], axis=0)
    q = jnp.sum(st[:, 1, :], axis=0)
    mean = s / count
    var = jnp.maximum(q / count - mean * mean, 0.0)      # biased variance
    scale = gamma_p.reshape(-1) * jax.lax.rsqrt(var + EPS)
    shift = beta_p.reshape(-1) - mean * scale
    return scale.reshape(1, -1), shift.reshape(1, -1)


# ---------------------------------------------------------------------------
# Bottleneck forward (NCHW in / NCHW out, matching PyTorch)
# ---------------------------------------------------------------------------
def bottleneck_forward(x_nchw, p, stride):
    N, Cin, H, W = x_nchw.shape
    planes = p["w1"].shape[0]
    exp = p["w3"].shape[0]

    cin_p = _rup(Cin, LANE)
    pln_p = _rup(planes, LANE)
    exp_p = _rup(exp, LANE)

    # ---- boundary glue: NCHW -> NHWC once, pad channels to 128 lanes ----
    x_nhwc = jnp.transpose(x_nchw, (0, 2, 3, 1)).astype(jnp.float32)
    x2d = jnp.pad(x_nhwc, ((0, 0), (0, 0), (0, 0), (0, cin_p - Cin)))
    x2d = x2d.reshape(N * H * W, cin_p)

    # ---- weights: reshape/pad once, cast to bf16 (MXU operands) ----
    w1 = p["w1"].reshape(planes, Cin).T
    w1p = jnp.pad(w1, ((0, cin_p - Cin), (0, pln_p - planes))).astype(jnp.bfloat16)
    w2 = jnp.transpose(p["w2"], (2, 3, 1, 0))            # (3,3,Cin,Cout)
    w2p = jnp.pad(w2, ((0, 0), (0, 0),
                       (0, pln_p - planes), (0, pln_p - planes))).astype(jnp.bfloat16)
    w3 = p["w3"].reshape(exp, planes).T
    w3p = jnp.pad(w3, ((0, pln_p - planes), (0, exp_p - exp))).astype(jnp.bfloat16)

    def pad_gb(g, b, c, cp):
        gp = jnp.pad(g.reshape(1, c), ((0, 0), (0, cp - c)), constant_values=1.0)
        bp = jnp.pad(b.reshape(1, c), ((0, 0), (0, cp - c)))
        return gp.astype(jnp.float32), bp.astype(jnp.float32)

    g1p, b1p = pad_gb(p["g1"], p["b1"], planes, pln_p)
    g2p, b2p = pad_gb(p["g2"], p["b2"], planes, pln_p)
    g3p, b3p = pad_gb(p["g3"], p["b3"], exp, exp_p)

    ones_in = jnp.ones((1, cin_p), jnp.float32)          # dummy prologue affine
    zeros_in = jnp.zeros((1, cin_p), jnp.float32)

    # ---- conv1 (1x1): tiled matmul + batch-stat partials ----
    M1 = N * H * W
    y1, st1 = conv1x1_stats(x2d, ones_in, zeros_in, w1p, act=False)
    sc1, sh1 = _bn_coeffs(st1, M1, g1p, b1p)

    # bn1 + relu (tiled elementwise pass)
    a1 = bn_act(y1, sc1, sh1)

    # ---- conv2 (3x3, stride, pad=1): taps accumulated in-kernel ----
    a1_nhwc = a1.reshape(N, H, W, pln_p)
    y2, st2 = conv3x3_stats(a1_nhwc, w2p, stride=stride)
    Ho = (H - 1) // stride + 1
    Wo = (W - 1) // stride + 1
    M2 = N * Ho * Wo
    sc2, sh2 = _bn_coeffs(st2, M2, g2p, b2p)

    # ---- conv3 (1x1) with fused bn2+relu prologue ----
    y3, st3 = conv1x1_stats(y2, sc2, sh2, w3p, act=True)
    sc3, sh3 = _bn_coeffs(st3, M2, g3p, b3p)

    # ---- shortcut branch ----
    if stride != 1 or Cin != exp:
        x_s = x_nhwc[:, ::stride, ::stride, :]
        x_s = jnp.pad(x_s, ((0, 0), (0, 0), (0, 0), (0, cin_p - Cin)))
        x_s = x_s.reshape(M2, cin_p)
        w_sc = p["w_sc"].reshape(exp, Cin).T
        w_scp = jnp.pad(w_sc, ((0, cin_p - Cin),
                               (0, exp_p - exp))).astype(jnp.bfloat16)
        g_scp, b_scp = pad_gb(p["g_sc"], p["b_sc"], exp, exp_p)
        y_sc, st_sc = conv1x1_stats(x_s, ones_in, zeros_in, w_scp, act=False)
        sc_r, sh_r = _bn_coeffs(st_sc, M2, g_scp, b_scp)
        resid = y_sc                                    # raw conv; BN fused below
    else:
        resid = x2d                                     # identity (cin_p == exp_p)
        sc_r = jnp.ones((1, exp_p), jnp.float32)
        sh_r = jnp.zeros((1, exp_p), jnp.float32)

    # ---- bn3 + shortcut-BN + residual add + relu, fully fused ----
    out2d = bn_add_relu(y3, resid, sc3, sh3, sc_r, sh_r)

    out = out2d.reshape(N, Ho, Wo, exp_p)[..., :exp]
    return jnp.transpose(out, (0, 3, 1, 2))              # back to NCHW


# ---------------------------------------------------------------------------
# Deterministic parameter init (shapes from Bottleneck.__init__)
# ---------------------------------------------------------------------------
def init_params(key, in_planes, planes):
    exp = 4 * planes
    ks = jax.random.split(key, 12)

    def conv_w(k, cout, cin, kh, kw):
        bound = 1.0 / float(jnp.sqrt(cin * kh * kw))
        return jax.random.uniform(k, (cout, cin, kh, kw), jnp.float32, -bound, bound)

    def bn(kg, kb, c):
        g = 1.0 + 0.1 * jax.random.normal(kg, (1, c), jnp.float32)
        b = 0.1 * jax.random.normal(kb, (1, c), jnp.float32)
        return g, b

    g1, b1 = bn(ks[1], ks[2], planes)
    g2, b2 = bn(ks[4], ks[5], planes)
    g3, b3 = bn(ks[7], ks[8], exp)
    g_sc, b_sc = bn(ks[10], ks[11], exp)
    return {
        "w1": conv_w(ks[0], planes, in_planes, 1, 1), "g1": g1, "b1": b1,
        "w2": conv_w(ks[3], planes, planes, 3, 3),    "g2": g2, "b2": b2,
        "w3": conv_w(ks[6], exp, planes, 1, 1),       "g3": g3, "b3": b3,
        "w_sc": conv_w(ks[9], exp, in_planes, 1, 1),  "g_sc": g_sc, "b_sc": b_sc,
    }


# ---------------------------------------------------------------------------
# Pure-JAX reference.  Convolutions use the same bf16-operand / f32-accumulate
# policy as the Pallas kernels (standard TPU MXU numerics); BatchNorm (training
# mode, biased var), ReLU, residual add are all f32 — i.e. the PyTorch forward
# evaluated in TPU mixed precision.
# ---------------------------------------------------------------------------
def reference_forward(x, p, stride):
    def conv(x, w, s=1, pad=0):
        return jax.lax.conv_general_dilated(
            x.astype(jnp.bfloat16), w.astype(jnp.bfloat16), (s, s),
            [(pad, pad), (pad, pad)],
            dimension_numbers=("NCHW", "OIHW", "NCHW"),
            preferred_element_type=jnp.float32)

    def bn(y, g, b):
        m = jnp.mean(y, axis=(0, 2, 3), keepdims=True)
        v = jnp.mean((y - m) ** 2, axis=(0, 2, 3), keepdims=True)
        return (y - m) * jax.lax.rsqrt(v + EPS) * g.reshape(1, -1, 1, 1) \
               + b.reshape(1, -1, 1, 1)

    out = jax.nn.relu(bn(conv(x, p["w1"]), p["g1"], p["b1"]))
    out = jax.nn.relu(bn(conv(out, p["w2"], s=stride, pad=1), p["g2"], p["b2"]))
    out = bn(conv(out, p["w3"]), p["g3"], p["b3"])
    in_planes, exp = x.shape[1], p["w3"].shape[0]
    if stride != 1 or in_planes != exp:
        sc = bn(conv(x, p["w_sc"], s=stride), p["g_sc"], p["b_sc"])
    else:
        sc = x
    return jax.nn.relu(out + sc)


# ---------------------------------------------------------------------------
if __name__ == "__main__":
    key = jax.random.PRNGKey(0)

    configs = [
        # (in_planes, planes, stride, N, H, W)
        (4, 4, 1, 2, 16, 16),   # projection shortcut (channel expansion)
        (8, 4, 2, 2, 16, 16),   # strided 3x3 + strided shortcut conv
        (16, 4, 1, 2, 16, 16),  # identity shortcut
    ]

    fwd = jax.jit(bottleneck_forward, static_argnums=2)
    ref_fn = jax.jit(reference_forward, static_argnums=2)

    for in_planes, planes, stride, N, H, W in configs:
        key, kx, kp = jax.random.split(key, 3)
        x = jax.random.normal(kx, (N, in_planes, H, W), jnp.float32)
        params = init_params(kp, in_planes, planes)

        out = jax.block_until_ready(fwd(x, params, stride))
        ref = jax.block_until_ready(ref_fn(x, params, stride))

        assert out.shape == ref.shape, (out.shape, ref.shape)
        max_err = float(jnp.max(jnp.abs(out - ref)))
        assert jnp.allclose(out, ref, rtol=2e-2, atol=2e-2), \
            f"mismatch: max abs err {max_err}"

    print("KERNEL_OK")
</pallas_src>

<mosaic_0001>
module attributes {stable_mosaic.version = 11 : i64} {
  func.func @_mm_stats_kernel(%arg0: i32, %arg1: memref<256x128xf32, #tpu.memory_space<vmem>>, %arg2: memref<1x128xf32, #tpu.memory_space<vmem>>, %arg3: memref<1x128xf32, #tpu.memory_space<vmem>>, %arg4: memref<128x128xbf16, #tpu.memory_space<vmem>>, %arg5: memref<256x128xf32, #tpu.memory_space<vmem>>, %arg6: memref<1x8x128xf32, #tpu.memory_space<vmem>>) attributes {dimension_semantics = [#tpu.dimension_semantics<parallel>], iteration_bounds = array<i64: 2>, scalar_prefetch = 0 : i64, scratch_operands = 0 : i64, tpu.core_type = #tpu.core_type<tc>, window_params = [{transform_indices = @transform_0, window_bounds = array<i64: 256, 128>}, {pipeline_mode = #tpu.pipeline_mode<synchronous>, transform_indices = @transform_1, window_bounds = array<i64: 1, 128>}, {pipeline_mode = #tpu.pipeline_mode<synchronous>, transform_indices = @transform_2, window_bounds = array<i64: 1, 128>}, {pipeline_mode = #tpu.pipeline_mode<synchronous>, transform_indices = @transform_3, window_bounds = array<i64: 128, 128>}, {transform_indices = @transform_4, window_bounds = array<i64: 256, 128>}, {transform_indices = @transform_5, window_bounds = array<i64: 1, 8, 128>}]} {
    %c0 = arith.constant 0 : index
    %c0_0 = arith.constant 0 : index
    %0 = vector.load %arg1[%c0, %c0_0] : memref<256x128xf32, #tpu.memory_space<vmem>>, vector<256x128xf32>
    %1 = arith.truncf %0 : vector<256x128xf32> to vector<256x128xbf16>
    %c0_1 = arith.constant 0 : index
    %c0_2 = arith.constant 0 : index
    %2 = vector.load %arg4[%c0_1, %c0_2] : memref<128x128xbf16, #tpu.memory_space<vmem>>, vector<128x128xbf16>
    %cst = arith.constant dense<0.000000e+00> : vector<256x128xf32>
    %3 = tpu.matmul %1, %2, %cst {dimension_numbers = #tpu.dot_dimension_numbers<[1], [0], [0], [1], [0, 0, 1, 1], [], []>} : vector<256x128xbf16>, vector<128x128xbf16>, vector<256x128xf32> -> vector<256x128xf32>
    %c0_3 = arith.constant 0 : index
    %c0_4 = arith.constant 0 : index
    %4 = vector.load %arg5[%c0_3, %c0_4] : memref<256x128xf32, #tpu.memory_space<vmem>>, vector<256x128xf32>
    tpu.vector_store %arg5[%c0_3, %c0_4], %3 {strides = array<i32>} : memref<256x128xf32, #tpu.memory_space<vmem>>, vector<256x128xf32>,
    %cst_5 = arith.constant 0.000000e+00 : f32
    %5 = vector.broadcast %cst_5 : f32 to vector<1x8x128xf32>
    %c0_6 = arith.constant 0 : index
    %c0_7 = arith.constant 0 : index
    %c0_8 = arith.constant 0 : index
    %6 = vector.load %arg6[%c0_6, %c0_7, %c0_8] : memref<1x8x128xf32, #tpu.memory_space<vmem>>, vector<1x8x128xf32>
    tpu.vector_store %arg6[%c0_6, %c0_7, %c0_8], %5 {strides = array<i32>} : memref<1x8x128xf32, #tpu.memory_space<vmem>>, vector<1x8x128xf32>,
    %cst_9 = arith.constant dense<0.000000e+00> : vector<128xf32>
    %7 = vector.multi_reduction <add>, %3, %cst_9 [0] : vector<256x128xf32> to vector<128xf32>
    %8 = vector.shape_cast %7 : vector<128xf32> to vector<1x128xf32>
    %c0_10 = arith.constant 0 : index
    %c0_11 = arith.constant 0 : index
    %c0_12 = arith.constant 0 : index
    %9 = vector.load %arg6[%c0_10, %c0_11, %c0_12] : memref<1x8x128xf32, #tpu.memory_space<vmem>>, vector<1x1x128xf32>
    %10 = vector.shape_cast %9 : vector<1x1x128xf32> to vector<1x128xf32>
    %11 = vector.shape_cast %8 : vector<1x128xf32> to vector<1x1x128xf32>
    tpu.vector_store %arg6[%c0_10, %c0_11, %c0_12], %11 {strides = array<i32>} : memref<1x8x128xf32, #tpu.memory_space<vmem>>, vector<1x1x128xf32>,
    %12 = arith.mulf %3, %3 : vector<256x128xf32>
    %cst_13 = arith.constant dense<0.000000e+00> : vector<128xf32>
    %13 = vector.multi_reduction <add>, %12, %cst_13 [0] : vector<256x128xf32> to vector<128xf32>
    %14 = vector.shape_cast %13 : vector<128xf32> to vector<1x128xf32>
    %c0_14 = arith.constant 0 : index
    %c1 = arith.constant 1 : index
    %c0_15 = arith.constant 0 : index
    %15 = vector.load %arg6[%c0_14, %c1, %c0_15] : memref<1x8x128xf32, #tpu.memory_space<vmem>>, vector<1x1x128xf32>
    %16 = vector.shape_cast %15 : vector<1x1x128xf32> to vector<1x128xf32>
    %17 = vector.shape_cast %14 : vector<1x128xf32> to vector<1x1x128xf32>
    tpu.vector_store %arg6[%c0_14, %c1, %c0_15], %17 {strides = array<i32>} : memref<1x8x128xf32, #tpu.memory_space<vmem>>, vector<1x1x128xf32>,
    return
  }
  func.func @transform_0(%arg0: i32) -> (i32, i32) {
    %c0_i32 = arith.constant 0 : i32
    %c0_i32_0 = arith.constant 0 : i32
    return %arg0, %c0_i32 : i32, i32
  }
  func.func @transform_1(%arg0: i32) -> (i32, i32) {
    %c0_i32 = arith.constant 0 : i32
    %c0_i32_0 = arith.constant 0 : i32
    %c0_i32_1 = arith.constant 0 : i32
    return %c0_i32, %c0_i32_0 : i32, i32
  }
  func.func @transform_2(%arg0: i32) -> (i32, i32) {
    %c0_i32 = arith.constant 0 : i32
    %c0_i32_0 = arith.constant 0 : i32
    %c0_i32_1 = arith.constant 0 : i32
    return %c0_i32, %c0_i32_0 : i32, i32
  }
  func.func @transform_3(%arg0: i32) -> (i32, i32) {
    %c0_i32 = arith.constant 0 : i32
    %c0_i32_0 = arith.constant 0 : i32
    %c0_i32_1 = arith.constant 0 : i32
    return %c0_i32, %c0_i32_0 : i32, i32
  }
  func.func @transform_4(%arg0: i32) -> (i32, i32) {
    %c0_i32 = arith.constant 0 : i32
    %c0_i32_0 = arith.constant 0 : i32
    return %arg0, %c0_i32 : i32, i32
  }
  func.func @transform_5(%arg0: i32) -> (i32, i32, i32) {
    %c0_i32 = arith.constant 0 : i32
    %c0_i32_0 = arith.constant 0 : i32
    %c0_i32_1 = arith.constant 0 : i32
    return %arg0, %c0_i32, %c0_i32_0 : i32, i32, i32
  }
}

module attributes {stable_mosaic.version = 11 : i64} {
  func.func @_bn_act_kernel(%arg0: i32, %arg1: memref<256x128xf32, #tpu.memory_space<vmem>>, %arg2: memref<1x128xf32, #tpu.memory_space<vmem>>, %arg3: memref<1x128xf32, #tpu.memory_space<vmem>>, %arg4: memref<256x128xf32, #tpu.memory_space<vmem>>) attributes {dimension_semantics = [#tpu.dimension_semantics<parallel>], iteration_bounds = array<i64: 2>, scalar_prefetch = 0 : i64, scratch_operands = 0 : i64, tpu.core_type = #tpu.core_type<tc>, window_params = [{transform_indices = @transform_0, window_bounds = array<i64: 256, 128>}, {pipeline_mode = #tpu.pipeline_mode<synchronous>, transform_indices = @transform_1, window_bounds = array<i64: 1, 128>}, {pipeline_mode = #tpu.pipeline_mode<synchronous>, transform_indices = @transform_2, window_bounds = array<i64: 1, 128>}, {transform_indices = @transform_3, window_bounds = array<i64: 256, 128>}]} {
    %c0 = arith.constant 0 : index
    %c0_0 = arith.constant 0 : index
    %0 = vector.load %arg1[%c0, %c0_0] : memref<256x128xf32, #tpu.memory_space<vmem>>, vector<256x128xf32>
    %c0_1 = arith.constant 0 : index
    %c0_2 = arith.constant 0 : index
    %1 = vector.load %arg2[%c0_1, %c0_2] : memref<1x128xf32, #tpu.memory_space<vmem>>, vector<1x128xf32>
    %2 = vector.broadcast %1 : vector<1x128xf32> to vector<256x128xf32>
    %3 = arith.mulf %0, %2 : vector<256x128xf32>
    %c0_3 = arith.constant 0 : index
    %c0_4 = arith.constant 0 : index
    %4 = vector.load %arg3[%c0_3, %c0_4] : memref<1x128xf32, #tpu.memory_space<vmem>>, vector<1x128xf32>
    %5 = vector.broadcast %4 : vector<1x128xf32> to vector<256x128xf32>
    %6 = arith.addf %3, %5 : vector<256x128xf32>
    %cst = arith.constant 0.000000e+00 : f32
    %7 = vector.broadcast %cst : f32 to vector<256x128xf32>
    %8 = arith.maximumf %6, %7 : vector<256x128xf32>
    %c0_5 = arith.constant 0 : index
    %c0_6 = arith.constant 0 : index
    %9 = vector.load %arg4[%c0_5, %c0_6] : memref<256x128xf32, #tpu.memory_space<vmem>>, vector<256x128xf32>
    tpu.vector_store %arg4[%c0_5, %c0_6], %8 {strides = array<i32>} : memref<256x128xf32, #tpu.memory_space<vmem>>, vector<256x128xf32>,
    return
  }
  func.func @transform_0(%arg0: i32) -> (i32, i32) {
    %c0_i32 = arith.constant 0 : i32
    %c0_i32_0 = arith.constant 0 : i32
    return %arg0, %c0_i32 : i32, i32
  }
  func.func @transform_1(%arg0: i32) -> (i32, i32) {
    %c0_i32 = arith.constant 0 : i32
    %c0_i32_0 = arith.constant 0 : i32
    %c0_i32_1 = arith.constant 0 : i32
    return %c0_i32, %c0_i32_0 : i32, i32
  }
  func.func @transform_2(%arg0: i32) -> (i32, i32) {
    %c0_i32 = arith.constant 0 : i32
    %c0_i32_0 = arith.constant 0 : i32
    %c0_i32_1 = arith.constant 0 : i32
    return %c0_i32, %c0_i32_0 : i32, i32
  }
  func.func @transform_3(%arg0: i32) -> (i32, i32) {
    %c0_i32 = arith.constant 0 : i32
    %c0_i32_0 = arith.constant 0 : i32
    return %arg0, %c0_i32 : i32, i32
  }
}

module attributes {stable_mosaic.version = 11 : i64} {
  func.func @_conv3x3_stats_kernel(%arg0: i32, %arg1: memref<1x18x18x128xf32, #tpu.memory_space<vmem>>, %arg2: memref<3x3x128x128xbf16, #tpu.memory_space<vmem>>, %arg3: memref<256x128xf32, #tpu.memory_space<vmem>>, %arg4: memref<1x8x128xf32, #tpu.memory_space<vmem>>) attributes {dimension_semantics = [#tpu.dimension_semantics<parallel>], iteration_bounds = array<i64: 2>, scalar_prefetch = 0 : i64, scratch_operands = 0 : i64, tpu.core_type = #tpu.core_type<tc>, window_params = [{transform_indices = @transform_0, window_bounds = array<i64: 1, 18, 18, 128>}, {pipeline_mode = #tpu.pipeline_mode<synchronous>, transform_indices = @transform_1, window_bounds = array<i64: 3, 3, 128, 128>}, {transform_indices = @transform_2, window_bounds = array<i64: 256, 128>}, {transform_indices = @transform_3, window_bounds = array<i64: 1, 8, 128>}]} {
    %cst = arith.constant 0.000000e+00 : f32
    %0 = vector.broadcast %cst : f32 to vector<256x128xf32>
    %c0 = arith.constant 0 : index
    %c0_0 = arith.constant 0 : index
    %1 = vector.load %arg3[%c0, %c0_0] : memref<256x128xf32, #tpu.memory_space<vmem>>, vector<256x128xf32>
    tpu.vector_store %arg3[%c0, %c0_0], %0 {strides = array<i32>} : memref<256x128xf32, #tpu.memory_space<vmem>>, vector<256x128xf32>,
    %c0_1 = arith.constant 0 : index
    %c0_2 = arith.constant 0 : index
    %c0_3 = arith.constant 0 : index
    %c0_4 = arith.constant 0 : index
    %2 = vector.load %arg1[%c0_1, %c0_2, %c0_3, %c0_4] : memref<1x18x18x128xf32, #tpu.memory_space<vmem>>, vector<1x16x16x128xf32>
    %3 = vector.shape_cast %2 : vector<1x16x16x128xf32> to vector<16x16x128xf32>
    %4 = vector.shape_cast %3 : vector<16x16x128xf32> to vector<256x128xf32>
    %5 = arith.truncf %4 : vector<256x128xf32> to vector<256x128xbf16>
    %c0_5 = arith.constant 0 : index
    %c0_6 = arith.constant 0 : index
    %6 = vector.load %arg3[%c0_5, %c0_6] : memref<256x128xf32, #tpu.memory_space<vmem>>, vector<256x128xf32>
    %c0_7 = arith.constant 0 : index
    %c0_8 = arith.constant 0 : index
    %c0_9 = arith.constant 0 : index
    %c0_10 = arith.constant 0 : index
    %7 = vector.load %arg2[%c0_7, %c0_8, %c0_9, %c0_10] : memref<3x3x128x128xbf16, #tpu.memory_space<vmem>>, vector<1x1x128x128xbf16>
    %8 = vector.shape_cast %7 : vector<1x1x128x128xbf16> to vector<128x128xbf16>
    %cst_11 = arith.constant dense<0.000000e+00> : vector<256x128xf32>
    %9 = tpu.matmul %5, %8, %cst_11 {dimension_numbers = #tpu.dot_dimension_numbers<[1], [0], [0], [1], [0, 0, 1, 1], [], []>} : vector<256x128xbf16>, vector<128x128xbf16>, vector<256x128xf32> -> vector<256x128xf32>
    %10 = arith.addf %6, %9 : vector<256x128xf32>
    %c0_12 = arith.constant 0 : index
    %c0_13 = arith.constant 0 : index
    %11 = vector.load %arg3[%c0_12, %c0_13] : memref<256x128xf32, #tpu.memory_space<vmem>>, vector<256x128xf32>
    tpu.vector_store %arg3[%c0_12, %c0_13], %10 {strides = array<i32>} : memref<256x128xf32, #tpu.memory_space<vmem>>, vector<256x128xf32>,
    %c0_14 = arith.constant 0 : index
    %c0_15 = arith.constant 0 : index
    %c1 = arith.constant 1 : index
    %c0_16 = arith.constant 0 : index
    %12 = vector.load %arg1[%c0_14, %c0_15, %c1, %c0_16] : memref<1x18x18x128xf32, #tpu.memory_space<vmem>>, vector<1x16x16x128xf32>
    %13 = vector.shape_cast %12 : vector<1x16x16x128xf32> to vector<16x16x128xf32>
    %14 = vector.shape_cast %13 : vector<16x16x128xf32> to vector<256x128xf32>
    %15 = arith.truncf %14 : vector<256x128xf32> to vector<256x128xbf16>
    %c0_17 = arith.constant 0 : index
    %c0_18 = arith.constant 0 : index
    %16 = vector.load %arg3[%c0_17, %c0_18] : memref<256x128xf32, #tpu.memory_space<vmem>>, vector<256x128xf32>
    %c0_19 = arith.constant 0 : index
    %c1_20 = arith.constant 1 : index
    %c0_21 = arith.constant 0 : index
    %c0_22 = arith.constant 0 : index
    %17 = vector.load %arg2[%c0_19, %c1_20, %c0_21, %c0_22] : memref<3x3x128x128xbf16, #tpu.memory_space<vmem>>, vector<1x1x128x128xbf16>
    %18 = vector.shape_cast %17 : vector<1x1x128x128xbf16> to vector<128x128xbf16>
    %cst_23 = arith.constant dense<0.000000e+00> : vector<256x128xf32>
    %19 = tpu.matmul %15, %18, %cst_23 {dimension_numbers = #tpu.dot_dimension_numbers<[1], [0], [0], [1], [0, 0, 1, 1], [], []>} : vector<256x128xbf16>, vector<128x128xbf16>, vector<256x128xf32> -> vector<256x128xf32>
    %20 = arith.addf %16, %19 : vector<256x128xf32>
    %c0_24 = arith.constant 0 : index
    %c0_25 = arith.constant 0 : index
    %21 = vector.load %arg3[%c0_24, %c0_25] : memref<256x128xf32, #tpu.memory_space<vmem>>, vector<256x128xf32>
    tpu.vector_store %arg3[%c0_24, %c0_25], %20 {strides = array<i32>} : memref<256x128xf32, #tpu.memory_space<vmem>>, vector<256x128xf32>,
    %c0_26 = arith.constant 0 : index
    %c0_27 = arith.constant 0 : index
    %c2 = arith.constant 2 : index
    %c0_28 = arith.constant 0 : index
    %22 = vector.load %arg1[%c0_26, %c0_27, %c2, %c0_28] : memref<1x18x18x128xf32, #tpu.memory_space<vmem>>, vector<1x16x16x128xf32>
    %23 = vector.shape_cast %22 : vector<1x16x16x128xf32> to vector<16x16x128xf32>
    %24 = vector.shape_cast %23 : vector<16x16x128xf32> to vector<256x128xf32>
    %25 = arith.truncf %24 : vector<256x128xf32> to vector<256x128xbf16>
    %c0_29 = arith.constant 0 : index
    %c0_30 = arith.constant 0 : index
    %26 = vector.load %arg3[%c0_29, %c0_30] : memref<256x128xf32, #tpu.memory_space<vmem>>, vector<256x128xf32>
    %c0_31 = arith.constant 0 : index
    %c2_32 = arith.constant 2 : index
    %c0_33 = arith.constant 0 : index
    %c0_34 = arith.constant 0 : index
    %27 = vector.load %arg2[%c0_31, %c2_32, %c0_33, %c0_34] : memref<3x3x128x128xbf16, #tpu.memory_space<vmem>>, vector<1x1x128x128xbf16>
    %28 = vector.shape_cast %27 : vector<1x1x128x128xbf16> to vector<128x128xbf16>
    %cst_35 = arith.constant dense<0.000000e+00> : vector<256x128xf32>
    %29 = tpu.matmul %25, %28, %cst_35 {dimension_numbers = #tpu.dot_dimension_numbers<[1], [0], [0], [1], [0, 0, 1, 1], [], []>} : vector<256x128xbf16>, vector<128x128xbf16>, vector<256x128xf32> -> vector<256x128xf32>
    %30 = arith.addf %26, %29 : vector<256x128xf32>
    %c0_36 = arith.constant 0 : index
    %c0_37 = arith.constant 0 : index
    %31 = vector.load %arg3[%c0_36, %c0_37] : memref<256x128xf32, #tpu.memory_space<vmem>>, vector<256x128xf32>
    tpu.vector_store %arg3[%c0_36, %c0_37], %30 {strides = array<i32>} : memref<256x128xf32, #tpu.memory_space<vmem>>, vector<256x128xf32>,
    %c0_38 = arith.constant 0 : index
    %c1_39 = arith.constant 1 : index
    %c0_40 = arith.constant 0 : index
    %c0_41 = arith.constant 0 : index
    %32 = vector.load %arg1[%c0_38, %c1_39, %c0_40, %c0_41] : memref<1x18x18x128xf32, #tpu.memory_space<vmem>>, vector<1x16x16x128xf32>
    %33 = vector.shape_cast %32 : vector<1x16x16x128xf32> to vector<16x16x128xf32>
    %34 = vector.shape_cast %33 : vector<16x16x128xf32> to vector<256x128xf32>
    %35 = arith.truncf %34 : vector<256x128xf32> to vector<256x128xbf16>
    %c0_42 = arith.constant 0 : index
    %c0_43 = arith.constant 0 : index
    %36 = vector.load %arg3[%c0_42, %c0_43] : memref<256x128xf32, #tpu.memory_space<vmem>>, vector<256x128xf32>
    %c1_44 = arith.constant 1 : index
    %c0_45 = arith.constant 0 : index
    %c0_46 = arith.constant 0 : index
    %c0_47 = arith.constant 0 : index
    %37 = vector.load %arg2[%c1_44, %c0_45, %c0_46, %c0_47] : memref<3x3x128x128xbf16, #tpu.memory_space<vmem>>, vector<1x1x128x128xbf16>
    %38 = vector.shape_cast %37 : vector<1x1x128x128xbf16> to vector<128x128xbf16>
    %cst_48 = arith.constant dense<0.000000e+00> : vector<256x128xf32>
    %39 = tpu.matmul %35, %38, %cst_48 {dimension_numbers = #tpu.dot_dimension_numbers<[1], [0], [0], [1], [0, 0, 1, 1], [], []>} : vector<256x128xbf16>, vector<128x128xbf16>, vector<256x128xf32> -> vector<256x128xf32>
    %40 = arith.addf %36, %39 : vector<256x128xf32>
    %c0_49 = arith.constant 0 : index
    %c0_50 = arith.constant 0 : index
    %41 = vector.load %arg3[%c0_49, %c0_50] : memref<256x128xf32, #tpu.memory_space<vmem>>, vector<256x128xf32>
    tpu.vector_store %arg3[%c0_49, %c0_50], %40 {strides = array<i32>} : memref<256x128xf32, #tpu.memory_space<vmem>>, vector<256x128xf32>,
    %c0_51 = arith.constant 0 : index
    %c1_52 = arith.constant 1 : index
    %c1_53 = arith.constant 1 : index
    %c0_54 = arith.constant 0 : index
    %42 = vector.load %arg1[%c0_51, %c1_52, %c1_53, %c0_54] : memref<1x18x18x128xf32, #tpu.memory_space<vmem>>, vector<1x16x16x128xf32>
    %43 = vector.shape_cast %42 : vector<1x16x16x128xf32> to vector<16x16x128xf32>
    %44 = vector.shape_cast %43 : vector<16x16x128xf32> to vector<256x128xf32>
    %45 = arith.truncf %44 : vector<256x128xf32> to vector<256x128xbf16>
    %c0_55 = arith.constant 0 : index
    %c0_56 = arith.constant 0 : index
    %46 = vector.load %arg3[%c0_55, %c0_56] : memref<256x128xf32, #tpu.memory_space<vmem>>, vector<256x128xf32>
    %c1_57 = arith.constant 1 : index
    %c1_58 = arith.constant 1 : index
    %c0_59 = arith.constant 0 : index
    %c0_60 = arith.constant 0 : index
    %47 = vector.load %arg2[%c1_57, %c1_58, %c0_59, %c0_60] : memref<3x3x128x128xbf16, #tpu.memory_space<vmem>>, vector<1x1x128x128xbf16>
    %48 = vector.shape_cast %47 : vector<1x1x128x128xbf16> to vector<128x128xbf16>
    %cst_61 = arith.constant dense<0.000000e+00> : vector<256x128xf32>
    %49 = tpu.matmul %45, %48, %cst_61 {dimension_numbers = #tpu.dot_dimension_numbers<[1], [0], [0], [1], [0, 0, 1, 1], [], []>} : vector<256x128xbf16>, vector<128x128xbf16>, vector<256x128xf32> -> vector<256x128xf32>
    %50 = arith.addf %46, %49 : vector<256x128xf32>
    %c0_62 = arith.constant 0 : index
    %c0_63 = arith.constant 0 : index
    %51 = vector.load %arg3[%c0_62, %c0_63] : memref<256x128xf32, #tpu.memory_space<vmem>>, vector<256x128xf32>
    tpu.vector_store %arg3[%c0_62, %c0_63], %50 {strides = array<i32>} : memref<256x128xf32, #tpu.memory_space<vmem>>, vector<256x128xf32>,
    %c0_64 = arith.constant 0 : index
    %c1_65 = arith.constant 1 : index
    %c2_66 = arith.constant 2 : index
    %c0_67 = arith.constant 0 : index
    %52 = vector.load %arg1[%c0_64, %c1_65, %c2_66, %c0_67] : memref<1x18x18x128xf32, #tpu.memory_space<vmem>>, vector<1x16x16x128xf32>
    %53 = vector.shape_cast %52 : vector<1x16x16x128xf32> to vector<16x16x128xf32>
    %54 = vector.shape_cast %53 : vector<16x16x128xf32> to vector<256x128xf32>
    %55 = arith.truncf %54 : vector<256x128xf32> to vector<256x128xbf16>
    %c0_68 = arith.constant 0 : index
    %c0_69 = arith.constant 0 : index
    %56 = vector.load %arg3[%c0_68, %c0_69] : memref<256x128xf32, #tpu.memory_space<vmem>>, vector<256x128xf32>
    %c1_70 = arith.constant 1 : index
    %c2_71 = arith.constant 2 : index
    %c0_72 = arith.constant 0 : index
    %c0_73 = arith.constant 0 : index
    %57 = vector.load %arg2[%c1_70, %c2_71, %c0_72, %c0_73] : memref<3x3x128x128xbf16, #tpu.memory_space<vmem>>, vector<1x1x128x128xbf16>
    %58 = vector.shape_cast %57 : vector<1x1x128x128xbf16> to vector<128x128xbf16>
    %cst_74 = arith.constant dense<0.000000e+00> : vector<256x128xf32>
    %59 = tpu.matmul %55, %58, %cst_74 {dimension_numbers = #tpu.dot_dimension_numbers<[1], [0], [0], [1], [0, 0, 1, 1], [], []>} : vector<256x128xbf16>, vector<128x128xbf16>, vector<256x128xf32> -> vector<256x128xf32>
    %60 = arith.addf %56, %59 : vector<256x128xf32>
    %c0_75 = arith.constant 0 : index
    %c0_76 = arith.constant 0 : index
    %61 = vector.load %arg3[%c0_75, %c0_76] : memref<256x128xf32, #tpu.memory_space<vmem>>, vector<256x128xf32>
    tpu.vector_store %arg3[%c0_75, %c0_76], %60 {strides = array<i32>} : memref<256x128xf32, #tpu.memory_space<vmem>>, vector<256x128xf32>,
    %c0_77 = arith.constant 0 : index
    %c2_78 = arith.constant 2 : index
    %c0_79 = arith.constant 0 : index
    %c0_80 = arith.constant 0 : index
    %62 = vector.load %arg1[%c0_77, %c2_78, %c0_79, %c0_80] : memref<1x18x18x128xf32, #tpu.memory_space<vmem>>, vector<1x16x16x128xf32>
    %63 = vector.shape_cast %62 : vector<1x16x16x128xf32> to vector<16x16x128xf32>
    %64 = vector.shape_cast %63 : vector<16x16x128xf32> to vector<256x128xf32>
    %65 = arith.truncf %64 : vector<256x128xf32> to vector<256x128xbf16>
    %c0_81 = arith.constant 0 : index
    %c0_82 = arith.constant 0 : index
    %66 = vector.load %arg3[%c0_81, %c0_82] : memref<256x128xf32, #tpu.memory_space<vmem>>, vector<256x128xf32>
    %c2_83 = arith.constant 2 : index
    %c0_84 = arith.constant 0 : index
    %c0_85 = arith.constant 0 : index
    %c0_86 = arith.constant 0 : index
    %67 = vector.load %arg2[%c2_83, %c0_84, %c0_85, %c0_86] : memref<3x3x128x128xbf16, #tpu.memory_space<vmem>>, vector<1x1x128x128xbf16>
    %68 = vector.shape_cast %67 : vector<1x1x128x128xbf16> to vector<128x128xbf16>
    %cst_87 = arith.constant dense<0.000000e+00> : vector<256x128xf32>
    %69 = tpu.matmul %65, %68, %cst_87 {dimension_numbers = #tpu.dot_dimension_numbers<[1], [0], [0], [1], [0, 0, 1, 1], [], []>} : vector<256x128xbf16>, vector<128x128xbf16>, vector<256x128xf32> -> vector<256x128xf32>
    %70 = arith.addf %66, %69 : vector<256x128xf32>
    %c0_88 = arith.constant 0 : index
    %c0_89 = arith.constant 0 : index
    %71 = vector.load %arg3[%c0_88, %c0_89] : memref<256x128xf32, #tpu.memory_space<vmem>>, vector<256x128xf32>
    tpu.vector_store %arg3[%c0_88, %c0_89], %70 {strides = array<i32>} : memref<256x128xf32, #tpu.memory_space<vmem>>, vector<256x128xf32>,
    %c0_90 = arith.constant 0 : index
    %c2_91 = arith.constant 2 : index
    %c1_92 = arith.constant 1 : index
    %c0_93 = arith.constant 0 : index
    %72 = vector.load %arg1[%c0_90, %c2_91, %c1_92, %c0_93] : memref<1x18x18x128xf32, #tpu.memory_space<vmem>>, vector<1x16x16x128xf32>
    %73 = vector.shape_cast %72 : vector<1x16x16x128xf32> to vector<16x16x128xf32>
    %74 = vector.shape_cast %73 : vector<16x16x128xf32> to vector<256x128xf32>
    %75 = arith.truncf %74 : vector<256x128xf32> to vector<256x128xbf16>
    %c0_94 = arith.constant 0 : index
    %c0_95 = arith.constant 0 : index
    %76 = vector.load %arg3[%c0_94, %c0_95] : memref<256x128xf32, #tpu.memory_space<vmem>>, vector<256x128xf32>
    %c2_96 = arith.constant 2 : index
    %c1_97 = arith.constant 1 : index
    %c0_98 = arith.constant 0 : index
    %c0_99 = arith.constant 0 : index
    %77 = vector.load %arg2[%c2_96, %c1_97, %c0_98, %c0_99] : memref<3x3x128x128xbf16, #tpu.memory_space<vmem>>, vector<1x1x128x128xbf16>
    %78 = vector.shape_cast %77 : vector<1x1x128x128xbf16> to vector<128x128xbf16>
    %cst_100 = arith.constant dense<0.000000e+00> : vector<256x128xf32>
    %79 = tpu.matmul %75, %78, %cst_100 {dimension_numbers = #tpu.dot_dimension_numbers<[1], [0], [0], [1], [0, 0, 1, 1], [], []>} : vector<256x128xbf16>, vector<128x128xbf16>, vector<256x128xf32> -> vector<256x128xf32>
    %80 = arith.addf %76, %79 : vector<256x128xf32>
    %c0_101 = arith.constant 0 : index
    %c0_102 = arith.constant 0 : index
    %81 = vector.load %arg3[%c0_101, %c0_102] : memref<256x128xf32, #tpu.memory_space<vmem>>, vector<256x128xf32>
    tpu.vector_store %arg3[%c0_101, %c0_102], %80 {strides = array<i32>} : memref<256x128xf32, #tpu.memory_space<vmem>>, vector<256x128xf32>,
    %c0_103 = arith.constant 0 : index
    %c2_104 = arith.constant 2 : index
    %c2_105 = arith.constant 2 : index
    %c0_106 = arith.constant 0 : index
    %82 = vector.load %arg1[%c0_103, %c2_104, %c2_105, %c0_106] : memref<1x18x18x128xf32, #tpu.memory_space<vmem>>, vector<1x16x16x128xf32>
    %83 = vector.shape_cast %82 : vector<1x16x16x128xf32> to vector<16x16x128xf32>
    %84 = vector.shape_cast %83 : vector<16x16x128xf32> to vector<256x128xf32>
    %85 = arith.truncf %84 : vector<256x128xf32> to vector<256x128xbf16>
    %c0_107 = arith.constant 0 : index
    %c0_108 = arith.constant 0 : index
    %86 = vector.load %arg3[%c0_107, %c0_108] : memref<256x128xf32, #tpu.memory_space<vmem>>, vector<256x128xf32>
    %c2_109 = arith.constant 2 : index
    %c2_110 = arith.constant 2 : index
    %c0_111 = arith.constant 0 : index
    %c0_112 = arith.constant 0 : index
    %87 = vector.load %arg2[%c2_109, %c2_110, %c0_111, %c0_112] : memref<3x3x128x128xbf16, #tpu.memory_space<vmem>>, vector<1x1x128x128xbf16>
    %88 = vector.shape_cast %87 : vector<1x1x128x128xbf16> to vector<128x128xbf16>
    %cst_113 = arith.constant dense<0.000000e+00> : vector<256x128xf32>
    %89 = tpu.matmul %85, %88, %cst_113 {dimension_numbers = #tpu.dot_dimension_numbers<[1], [0], [0], [1], [0, 0, 1, 1], [], []>} : vector<256x128xbf16>, vector<128x128xbf16>, vector<256x128xf32> -> vector<256x128xf32>
    %90 = arith.addf %86, %89 : vector<256x128xf32>
    %c0_114 = arith.constant 0 : index
    %c0_115 = arith.constant 0 : index
    %91 = vector.load %arg3[%c0_114, %c0_115] : memref<256x128xf32, #tpu.memory_space<vmem>>, vector<256x128xf32>
    tpu.vector_store %arg3[%c0_114, %c0_115], %90 {strides = array<i32>} : memref<256x128xf32, #tpu.memory_space<vmem>>, vector<256x128xf32>,
    %c0_116 = arith.constant 0 : index
    %c0_117 = arith.constant 0 : index
    %92 = vector.load %arg3[%c0_116, %c0_117] : memref<256x128xf32, #tpu.memory_space<vmem>>, vector<256x128xf32>
    %cst_118 = arith.constant 0.000000e+00 : f32
    %93 = vector.broadcast %cst_118 : f32 to vector<1x8x128xf32>
    %c0_119 = arith.constant 0 : index
    %c0_120 = arith.constant 0 : index
    %c0_121 = arith.constant 0 : index
    %94 = vector.load %arg4[%c0_119, %c0_120, %c0_121] : memref<1x8x128xf32, #tpu.memory_space<vmem>>, vector<1x8x128xf32>
    tpu.vector_store %arg4[%c0_119, %c0_120, %c0_121], %93 {strides = array<i32>} : memref<1x8x128xf32, #tpu.memory_space<vmem>>, vector<1x8x128xf32>,
    %cst_122 = arith.constant dense<0.000000e+00> : vector<128xf32>
    %95 = vector.multi_reduction <add>, %92, %cst_122 [0] : vector<256x128xf32> to vector<128xf32>
    %96 = vector.shape_cast %95 : vector<128xf32> to vector<1x128xf32>
    %c0_123 = arith.constant 0 : index
    %c0_124 = arith.constant 0 : index
    %c0_125 = arith.constant 0 : index
    %97 = vector.load %arg4[%c0_123, %c0_124, %c0_125] : memref<1x8x128xf32, #tpu.memory_space<vmem>>, vector<1x1x128xf32>
    %98 = vector.shape_cast %97 : vector<1x1x128xf32> to vector<1x128xf32>
    %99 = vector.shape_cast %96 : vector<1x128xf32> to vector<1x1x128xf32>
    tpu.vector_store %arg4[%c0_123, %c0_124, %c0_125], %99 {strides = array<i32>} : memref<1x8x128xf32, #tpu.memory_space<vmem>>, vector<1x1x128xf32>,
    %100 = arith.mulf %92, %92 : vector<256x128xf32>
    %cst_126 = arith.constant dense<0.000000e+00> : vector<128xf32>
    %101 = vector.multi_reduction <add>, %100, %cst_126 [0] : vector<256x128xf32> to vector<128xf32>
    %102 = vector.shape_cast %101 : vector<128xf32> to vector<1x128xf32>
    %c0_127 = arith.constant 0 : index
    %c1_128 = arith.constant 1 : index
    %c0_129 = arith.constant 0 : index
    %103 = vector.load %arg4[%c0_127, %c1_128, %c0_129] : memref<1x8x128xf32, #tpu.memory_space<vmem>>, vector<1x1x128xf32>
    %104 = vector.shape_cast %103 : vector<1x1x128xf32> to vector<1x128xf32>
    %105 = vector.shape_cast %102 : vector<1x128xf32> to vector<1x1x128xf32>
    tpu.vector_store %arg4[%c0_127, %c1_128, %c0_129], %105 {strides = array<i32>} : memref<1x8x128xf32, #tpu.memory_space<vmem>>, vector<1x1x128xf32>,
    return
  }
  func.func @transform_0(%arg0: i32) -> (i32, i32, i32, i32) {
    %c0_i32 = arith.constant 0 : i32
    %c0_i32_0 = arith.constant 0 : i32
    %c0_i32_1 = arith.constant 0 : i32
    %c0_i32_2 = arith.constant 0 : i32
    return %arg0, %c0_i32, %c0_i32_0, %c0_i32_1 : i32, i32, i32, i32
  }
  func.func @transform_1(%arg0: i32) -> (i32, i32, i32, i32) {
    %c0_i32 = arith.constant 0 : i32
    %c0_i32_0 = arith.constant 0 : i32
    %c0_i32_1 = arith.constant 0 : i32
    %c0_i32_2 = arith.constant 0 : i32
    %c0_i32_3 = arith.constant 0 : i32
    return %c0_i32, %c0_i32_0, %c0_i32_1, %c0_i32_2 : i32, i32, i32, i32
  }
  func.func @transform_2(%arg0: i32) -> (i32, i32) {
    %c0_i32 = arith.constant 0 : i32
    %c0_i32_0 = arith.constant 0 : i32
    return %arg0, %c0_i32 : i32, i32
  }
  func.func @transform_3(%arg0: i32) -> (i32, i32, i32) {
    %c0_i32 = arith.constant 0 : i32
    %c0_i32_0 = arith.constant 0 : i32
    %c0_i32_1 = arith.constant 0 : i32
    return %arg0, %c0_i32, %c0_i32_0 : i32, i32, i32
  }
}

module attributes {stable_mosaic.version = 11 : i64} {
  func.func @_mm_stats_kernel(%arg0: i32, %arg1: memref<256x128xf32, #tpu.memory_space<vmem>>, %arg2: memref<1x128xf32, #tpu.memory_space<vmem>>, %arg3: memref<1x128xf32, #tpu.memory_space<vmem>>, %arg4: memref<128x128xbf16, #tpu.memory_space<vmem>>, %arg5: memref<256x128xf32, #tpu.memory_space<vmem>>, %arg6: memref<1x8x128xf32, #tpu.memory_space<vmem>>) attributes {dimension_semantics = [#tpu.dimension_semantics<parallel>], iteration_bounds = array<i64: 2>, scalar_prefetch = 0 : i64, scratch_operands = 0 : i64, tpu.core_type = #tpu.core_type<tc>, window_params = [{transform_indices = @transform_0, window_bounds = array<i64: 256, 128>}, {pipeline_mode = #tpu.pipeline_mode<synchronous>, transform_indices = @transform_1, window_bounds = array<i64: 1, 128>}, {pipeline_mode = #tpu.pipeline_mode<synchronous>, transform_indices = @transform_2, window_bounds = array<i64: 1, 128>}, {pipeline_mode = #tpu.pipeline_mode<synchronous>, transform_indices = @transform_3, window_bounds = array<i64: 128, 128>}, {transform_indices = @transform_4, window_bounds = array<i64: 256, 128>}, {transform_indices = @transform_5, window_bounds = array<i64: 1, 8, 128>}]} {
    %c0 = arith.constant 0 : index
    %c0_0 = arith.constant 0 : index
    %0 = vector.load %arg1[%c0, %c0_0] : memref<256x128xf32, #tpu.memory_space<vmem>>, vector<256x128xf32>
    %c0_1 = arith.constant 0 : index
    %c0_2 = arith.constant 0 : index
    %1 = vector.load %arg2[%c0_1, %c0_2] : memref<1x128xf32, #tpu.memory_space<vmem>>, vector<1x128xf32>
    %2 = vector.broadcast %1 : vector<1x128xf32> to vector<256x128xf32>
    %3 = arith.mulf %0, %2 : vector<256x128xf32>
    %c0_3 = arith.constant 0 : index
    %c0_4 = arith.constant 0 : index
    %4 = vector.load %arg3[%c0_3, %c0_4] : memref<1x128xf32, #tpu.memory_space<vmem>>, vector<1x128xf32>
    %5 = vector.broadcast %4 : vector<1x128xf32> to vector<256x128xf32>
    %6 = arith.addf %3, %5 : vector<256x128xf32>
    %cst = arith.constant 0.000000e+00 : f32
    %7 = vector.broadcast %cst : f32 to vector<256x128xf32>
    %8 = arith.maximumf %6, %7 : vector<256x128xf32>
    %9 = arith.truncf %8 : vector<256x128xf32> to vector<256x128xbf16>
    %c0_5 = arith.constant 0 : index
    %c0_6 = arith.constant 0 : index
    %10 = vector.load %arg4[%c0_5, %c0_6] : memref<128x128xbf16, #tpu.memory_space<vmem>>, vector<128x128xbf16>
    %cst_7 = arith.constant dense<0.000000e+00> : vector<256x128xf32>
    %11 = tpu.matmul %9, %10, %cst_7 {dimension_numbers = #tpu.dot_dimension_numbers<[1], [0], [0], [1], [0, 0, 1, 1], [], []>} : vector<256x128xbf16>, vector<128x128xbf16>, vector<256x128xf32> -> vector<256x128xf32>
    %c0_8 = arith.constant 0 : index
    %c0_9 = arith.constant 0 : index
    %12 = vector.load %arg5[%c0_8, %c0_9] : memref<256x128xf32, #tpu.memory_space<vmem>>, vector<256x128xf32>
    tpu.vector_store %arg5[%c0_8, %c0_9], %11 {strides = array<i32>} : memref<256x128xf32, #tpu.memory_space<vmem>>, vector<256x128xf32>,
    %cst_10 = arith.constant 0.000000e+00 : f32
    %13 = vector.broadcast %cst_10 : f32 to vector<1x8x128xf32>
    %c0_11 = arith.constant 0 : index
    %c0_12 = arith.constant 0 : index
    %c0_13 = arith.constant 0 : index
    %14 = vector.load %arg6[%c0_11, %c0_12, %c0_13] : memref<1x8x128xf32, #tpu.memory_space<vmem>>, vector<1x8x128xf32>
    tpu.vector_store %arg6[%c0_11, %c0_12, %c0_13], %13 {strides = array<i32>} : memref<1x8x128xf32, #tpu.memory_space<vmem>>, vector<1x8x128xf32>,
    %cst_14 = arith.constant dense<0.000000e+00> : vector<128xf32>
    %15 = vector.multi_reduction <add>, %11, %cst_14 [0] : vector<256x128xf32> to vector<128xf32>
    %16 = vector.shape_cast %15 : vector<128xf32> to vector<1x128xf32>
    %c0_15 = arith.constant 0 : index
    %c0_16 = arith.constant 0 : index
    %c0_17 = arith.constant 0 : index
    %17 = vector.load %arg6[%c0_15, %c0_16, %c0_17] : memref<1x8x128xf32, #tpu.memory_space<vmem>>, vector<1x1x128xf32>
    %18 = vector.shape_cast %17 : vector<1x1x128xf32> to vector<1x128xf32>
    %19 = vector.shape_cast %16 : vector<1x128xf32> to vector<1x1x128xf32>
    tpu.vector_store %arg6[%c0_15, %c0_16, %c0_17], %19 {strides = array<i32>} : memref<1x8x128xf32, #tpu.memory_space<vmem>>, vector<1x1x128xf32>,
    %20 = arith.mulf %11, %11 : vector<256x128xf32>
    %cst_18 = arith.constant dense<0.000000e+00> : vector<128xf32>
    %21 = vector.multi_reduction <add>, %20, %cst_18 [0] : vector<256x128xf32> to vector<128xf32>
    %22 = vector.shape_cast %21 : vector<128xf32> to vector<1x128xf32>
    %c0_19 = arith.constant 0 : index
    %c1 = arith.constant 1 : index
    %c0_20 = arith.constant 0 : index
    %23 = vector.load %arg6[%c0_19, %c1, %c0_20] : memref<1x8x128xf32, #tpu.memory_space<vmem>>, vector<1x1x128xf32>
    %24 = vector.shape_cast %23 : vector<1x1x128xf32> to vector<1x128xf32>
    %25 = vector.shape_cast %22 : vector<1x128xf32> to vector<1x1x128xf32>
    tpu.vector_store %arg6[%c0_19, %c1, %c0_20], %25 {strides = array<i32>} : memref<1x8x128xf32, #tpu.memory_space<vmem>>, vector<1x1x128xf32>,
    return
  }
  func.func @transform_0(%arg0: i32) -> (i32, i32) {
    %c0_i32 = arith.constant 0 : i32
    %c0_i32_0 = arith.constant 0 : i32
    return %arg0, %c0_i32 : i32, i32
  }
  func.func @transform_1(%arg0: i32) -> (i32, i32) {
    %c0_i32 = arith.constant 0 : i32
    %c0_i32_0 = arith.constant 0 : i32
    %c0_i32_1 = arith.constant 0 : i32
    return %c0_i32, %c0_i32_0 : i32, i32
  }
  func.func @transform_2(%arg0: i32) -> (i32, i32) {
    %c0_i32 = arith.constant 0 : i32
    %c0_i32_0 = arith.constant 0 : i32
    %c0_i32_1 = arith.constant 0 : i32
    return %c0_i32, %c0_i32_0 : i32, i32
  }
  func.func @transform_3(%arg0: i32) -> (i32, i32) {
    %c0_i32 = arith.constant 0 : i32
    %c0_i32_0 = arith.constant 0 : i32
    %c0_i32_1 = arith.constant 0 : i32
    return %c0_i32, %c0_i32_0 : i32, i32
  }
  func.func @transform_4(%arg0: i32) -> (i32, i32) {
    %c0_i32 = arith.constant 0 : i32
    %c0_i32_0 = arith.constant 0 : i32
    return %arg0, %c0_i32 : i32, i32
  }
  func.func @transform_5(%arg0: i32) -> (i32, i32, i32) {
    %c0_i32 = arith.constant 0 : i32
    %c0_i32_0 = arith.constant 0 : i32
    %c0_i32_1 = arith.constant 0 : i32
    return %arg0, %c0_i32, %c0_i32_0 : i32, i32, i32
  }
}

module attributes {stable_mosaic.version = 11 : i64} {
  func.func @_bn_add_relu_kernel(%arg0: i32, %arg1: memref<256x128xf32, #tpu.memory_space<vmem>>, %arg2: memref<256x128xf32, #tpu.memory_space<vmem>>, %arg3: memref<1x128xf32, #tpu.memory_space<vmem>>, %arg4: memref<1x128xf32, #tpu.memory_space<vmem>>, %arg5: memref<1x128xf32, #tpu.memory_space<vmem>>, %arg6: memref<1x128xf32, #tpu.memory_space<vmem>>, %arg7: memref<256x128xf32, #tpu.memory_space<vmem>>) attributes {dimension_semantics = [#tpu.dimension_semantics<parallel>], iteration_bounds = array<i64: 2>, scalar_prefetch = 0 : i64, scratch_operands = 0 : i64, tpu.core_type = #tpu.core_type<tc>, window_params = [{transform_indices = @transform_0, window_bounds = array<i64: 256, 128>}, {transform_indices = @transform_1, window_bounds = array<i64: 256, 128>}, {pipeline_mode = #tpu.pipeline_mode<synchronous>, transform_indices = @transform_2, window_bounds = array<i64: 1, 128>}, {pipeline_mode = #tpu.pipeline_mode<synchronous>, transform_indices = @transform_3, window_bounds = array<i64: 1, 128>}, {pipeline_mode = #tpu.pipeline_mode<synchronous>, transform_indices = @transform_4, window_bounds = array<i64: 1, 128>}, {pipeline_mode = #tpu.pipeline_mode<synchronous>, transform_indices = @transform_5, window_bounds = array<i64: 1, 128>}, {transform_indices = @transform_6, window_bounds = array<i64: 256, 128>}]} {
    %c0 = arith.constant 0 : index
    %c0_0 = arith.constant 0 : index
    %0 = vector.load %arg1[%c0, %c0_0] : memref<256x128xf32, #tpu.memory_space<vmem>>, vector<256x128xf32>
    %c0_1 = arith.constant 0 : index
    %c0_2 = arith.constant 0 : index
    %1 = vector.load %arg3[%c0_1, %c0_2] : memref<1x128xf32, #tpu.memory_space<vmem>>, vector<1x128xf32>
    %2 = vector.broadcast %1 : vector<1x128xf32> to vector<256x128xf32>
    %3 = arith.mulf %0, %2 : vector<256x128xf32>
    %c0_3 = arith.constant 0 : index
    %c0_4 = arith.constant 0 : index
    %4 = vector.load %arg4[%c0_3, %c0_4] : memref<1x128xf32, #tpu.memory_space<vmem>>, vector<1x128xf32>
    %5 = vector.broadcast %4 : vector<1x128xf32> to vector<256x128xf32>
    %6 = arith.addf %3, %5 : vector<256x128xf32>
    %c0_5 = arith.constant 0 : index
    %c0_6 = arith.constant 0 : index
    %7 = vector.load %arg2[%c0_5, %c0_6] : memref<256x128xf32, #tpu.memory_space<vmem>>, vector<256x128xf32>
    %c0_7 = arith.constant 0 : index
    %c0_8 = arith.constant 0 : index
    %8 = vector.load %arg5[%c0_7, %c0_8] : memref<1x128xf32, #tpu.memory_space<vmem>>, vector<1x128xf32>
    %9 = vector.broadcast %8 : vector<1x128xf32> to vector<256x128xf32>
    %10 = arith.mulf %7, %9 : vector<256x128xf32>
    %11 = arith.addf %6, %10 : vector<256x128xf32>
    %c0_9 = arith.constant 0 : index
    %c0_10 = arith.constant 0 : index
    %12 = vector.load %arg6[%c0_9, %c0_10] : memref<1x128xf32, #tpu.memory_space<vmem>>, vector<1x128xf32>
    %13 = vector.broadcast %12 : vector<1x128xf32> to vector<256x128xf32>
    %14 = arith.addf %11, %13 : vector<256x128xf32>
    %cst = arith.constant 0.000000e+00 : f32
    %15 = vector.broadcast %cst : f32 to vector<256x128xf32>
    %16 = arith.maximumf %14, %15 : vector<256x128xf32>
    %c0_11 = arith.constant 0 : index
    %c0_12 = arith.constant 0 : index
    %17 = vector.load %arg7[%c0_11, %c0_12] : memref<256x128xf32, #tpu.memory_space<vmem>>, vector<256x128xf32>
    tpu.vector_store %arg7[%c0_11, %c0_12], %16 {strides = array<i32>} : memref<256x128xf32, #tpu.memory_space<vmem>>, vector<256x128xf32>,
    return
  }
  func.func @transform_0(%arg0: i32) -> (i32, i32) {
    %c0_i32 = arith.constant 0 : i32
    %c0_i32_0 = arith.constant 0 : i32
    return %arg0, %c0_i32 : i32, i32
  }
  func.func @transform_1(%arg0: i32) -> (i32, i32) {
    %c0_i32 = arith.constant 0 : i32
    %c0_i32_0 = arith.constant 0 : i32
    return %arg0, %c0_i32 : i32, i32
  }
  func.func @transform_2(%arg0: i32) -> (i32, i32) {
    %c0_i32 = arith.constant 0 : i32
    %c0_i32_0 = arith.constant 0 : i32
    %c0_i32_1 = arith.constant 0 : i32
    return %c0_i32, %c0_i32_0 : i32, i32
  }
  func.func @transform_3(%arg0: i32) -> (i32, i32) {
    %c0_i32 = arith.constant 0 : i32
    %c0_i32_0 = arith.constant 0 : i32
    %c0_i32_1 = arith.constant 0 : i32
    return %c0_i32, %c0_i32_0 : i32, i32
  }
  func.func @transform_4(%arg0: i32) -> (i32, i32) {
    %c0_i32 = arith.constant 0 : i32
    %c0_i32_0 = arith.constant 0 : i32
    %c0_i32_1 = arith.constant 0 : i32
    return %c0_i32, %c0_i32_0 : i32, i32
  }
  func.func @transform_5(%arg0: i32) -> (i32, i32) {
    %c0_i32 = arith.constant 0 : i32
    %c0_i32_0 = arith.constant 0 : i32
    %c0_i32_1 = arith.constant 0 : i32
    return %c0_i32, %c0_i32_0 : i32, i32
  }
  func.func @transform_6(%arg0: i32) -> (i32, i32) {
    %c0_i32 = arith.constant 0 : i32
    %c0_i32_0 = arith.constant 0 : i32
    return %arg0, %c0_i32 : i32, i32
  }
}

</mosaic_0001>

<llo_original>
// kernel: bottleneck_forward.7
$region0: #{bottleneck_forward.7}
  #allocation0 [shape = 'u32[]', space=smem, size = 0x4, offset = 0x4, fixed_abs, tag = 'smem constant byte address 0x4 - core index']
  #allocation1 [shape = 'u32[144,128]{1,0:T(1,128)}', space=vmem, size = 0x12000, scoped, tag = 'internal scratch']
  %s0 = inlined_call_operand.vmem [shape: f32[512,128], index: 0, kind: input, shape index: {}]
  %s1 = inlined_call_operand.vmem [shape: f32[1,128], index: 1, kind: input, shape index: {}]
  %s2 = inlined_call_operand.vmem [shape: f32[1,128], index: 2, kind: input, shape index: {}]
  %s3 = inlined_call_operand.vmem [shape: f32[512,128], index: 3, kind: output, shape index: {}]
  %s4 = sld [smem:[#allocation0]]
  $region45: #{bottleneck_forward.7} parent=0
    _
  %s6 = ssub.s32 1, %s4
  %s7 = scalar_select 0, %s6, %s4
  loop: start=0, step=1, limit=4
  $region2: #{bottleneck_forward.7} parent=0 // loop_pre_header
    _
  $region3: #{bottleneck_forward.7} parent=0 // loop_header
    %s9 = sphi 0, %s13
    %p10 = scmp.ge.s32.totalorder %s9, 4
    %s19 = sphi 0, %s21
    %s22 = sphi 0, %s19
    %s23 = sphi 0, %s22
    %s39 = sphi 0, %s23
    %s43 = sphi 0, %s43
    %s45 = sphi 0, %s43
    %s46 = sphi 0, %s45
    %s60 = sphi 0, %s46
    %s64 = sphi 0, %s64
    %s66 = sphi 0, %s64
    %s67 = sphi 0, %s66
    %s81 = sphi 0, %s67
    %s87 = sphi 0, %s89
    %s90 = sphi 0, %s87
    %s91 = sphi 0, %s90
    %s107 = sphi 0, %s91
  $region4: #{bottleneck_forward.7} parent=0 // loop_header_branch
    %12 = sbr.rel (%p10) target = $region8
  $region5: #{bottleneck_forward.7} parent=0 // loop_body
    %s14 = ssub.s32 %s9, 1
    %s15 = ssub.s32 %s9, 2
    %s16 = sadd.s32 %s9, 1
    %s17 = ssub.s32 %s9, %s16
    %p18 = scmp.eq.s32.totalorder %s17, 0
    %s20 = sadd.s32 %s19, 1
    %s21 = scalar_select %p18, %s19, %s20
    %p24 = pneg %p18
    %p25 = scmp.eq.s32.totalorder %s9, 1
    %p26 = por %p24, %p25
    %p27 = scmp.ne.s32.totalorder %s19, %s22
    %p28 = scmp.eq.s32.totalorder %s9, 0
    %p29 = por %p27, %p28
    %p30 = scmp.ne.s32.totalorder %s19, %s22
    %p31 = scmp.eq.s32.totalorder %s14, 1
    %p32 = por %p30, %p31
    %p33 = scmp.ne.s32.totalorder %s22, %s23
    %p34 = scmp.eq.s32.totalorder %s14, 0
    %p35 = por %p33, %p34
    %p36 = scmp.ne.s32.totalorder %s22, %s23
    %p37 = scmp.eq.s32.totalorder %s15, 1
    %p38 = por %p36, %p37
    %p40 = scmp.ne.s32.totalorder %s23, %s39
    %p41 = scmp.eq.s32.totalorder %s15, 0
    %p42 = por %p40, %p41
    %s44 = sadd.s32 %s43, 1
    %p47 = scmp.eq.s32.totalorder %s9, 1
    %p48 = scmp.ne.s32.totalorder %s43, %s45
    %p49 = scmp.eq.s32.totalorder %s9, 0
    %p50 = por %p48, %p49
    %p51 = scmp.ne.s32.totalorder %s43, %s45
    %p52 = scmp.eq.s32.totalorder %s14, 1
    %p53 = por %p51, %p52
    %p54 = scmp.ne.s32.totalorder %s45, %s46
    %p55 = scmp.eq.s32.totalorder %s14, 0
    %p56 = por %p54, %p55
    %p57 = scmp.ne.s32.totalorder %s45, %s46
    %p58 = scmp.eq.s32.totalorder %s15, 1
    %p59 = por %p57, %p58
    %p61 = scmp.ne.s32.totalorder %s46, %s60
    %p62 = scmp.eq.s32.totalorder %s15, 0
    %p63 = por %p61, %p62
    %s65 = sadd.s32 %s64, 1
    %p68 = scmp.eq.s32.totalorder %s9, 1
    %p69 = scmp.ne.s32.totalorder %s64, %s66
    %p70 = scmp.eq.s32.totalorder %s9, 0
    %p71 = por %p69, %p70
    %p72 = scmp.ne.s32.totalorder %s64, %s66
    %p73 = scmp.eq.s32.totalorder %s14, 1
    %p74 = por %p72, %p73
    %p75 = scmp.ne.s32.totalorder %s66, %s67
    %p76 = scmp.eq.s32.totalorder %s14, 0
    %p77 = por %p75, %p76
    %p78 = scmp.ne.s32.totalorder %s66, %s67
    %p79 = scmp.eq.s32.totalorder %s15, 1
    %p80 = por %p78, %p79
    %p82 = scmp.ne.s32.totalorder %s67, %s81
    %p83 = scmp.eq.s32.totalorder %s15, 0
    %p84 = por %p82, %p83
    %s85 = ssub.s32 %s9, %s16
    %p86 = scmp.eq.s32.totalorder %s85, 0
    %s88 = sadd.s32 %s87, 1
    %s89 = scalar_select %p86, %s87, %s88
    %p92 = pneg %p86
    %p93 = scmp.eq.s32.totalorder %s9, 1
    %p94 = por %p92, %p93
    %p95 = scmp.ne.s32.totalorder %s87, %s90
    %p96 = scmp.eq.s32.totalorder %s9, 0
    %p97 = por %p95, %p96
    %p98 = scmp.ne.s32.totalorder %s87, %s90
    %p99 = scmp.eq.s32.totalorder %s14, 1
    %p100 = por %p98, %p99
    %p101 = scmp.ne.s32.totalorder %s90, %s91
    %p102 = scmp.eq.s32.totalorder %s14, 0
    %p103 = por %p101, %p102
    %p104 = scmp.ne.s32.totalorder %s90, %s91
    %p105 = scmp.eq.s32.totalorder %s15, 1
    %p106 = por %p104, %p105
    %p108 = scmp.ne.s32.totalorder %s91, %s107
    %p109 = scmp.eq.s32.totalorder %s15, 0
    %p110 = por %p108, %p109
    %p111 = scmp.le.s32.totalorder 1, %s9
    %p112 = scmp.lt.s32.totalorder %s9, 3
    %p113 = pnand %p111, %p112
    %p114 = pneg %p113
    // Predicated region
    $region9: #{bottleneck_forward.7} parent=5 // pred_check
      _
    $region10: #{bottleneck_forward.7} parent=5 // pred_check_branch
      %116 = sbr.rel (%p113) target = $region12
    $region11: #{bottleneck_forward.7} parent=5 // pred_region
      %s117 = ssub.s32 %s9, 1
      // Predicated region
      $region13: #{bottleneck_forward.7} parent=11 // pred_check
        %p118 = pneg %p56
      $region14: #{bottleneck_forward.7} parent=11 // pred_check_branch
        %120 = sbr.rel (%p118) target = $region16
      $region15: #{bottleneck_forward.7} parent=11 // pred_region
        _
      $region16: #{bottleneck_forward.7} parent=11 // pred_fallthru
        _
      // Predicated region
      $region17: #{bottleneck_forward.7} parent=11 // pred_check
        %p121 = pneg %p77
      $region18: #{bottleneck_forward.7} parent=11 // pred_check_branch
        %123 = sbr.rel (%p121) target = $region20
      $region19: #{bottleneck_forward.7} parent=11 // pred_region
        _
      $region20: #{bottleneck_forward.7} parent=11 // pred_fallthru
        _
    $region12: #{bottleneck_forward.7} parent=5 // pred_fallthru
      _
    %p124 = scmp.lt.s32.totalorder %s9, 2
    // Predicated region
    $region21: #{bottleneck_forward.7} parent=5 // pred_check
      %p125 = pneg %p124
    $region22: #{bottleneck_forward.7} parent=5 // pred_check_branch
      %127 = sbr.rel (%p125) target = $region24
    $region23: #{bottleneck_forward.7} parent=5 // pred_region
      // Predicated region
      $region25: #{bottleneck_forward.7} parent=23 // pred_check
        %p128 = pneg %p29
      $region26: #{bottleneck_forward.7} parent=23 // pred_check_branch
        %130 = sbr.rel (%p128) target = $region28
      $region27: #{bottleneck_forward.7} parent=23 // pred_region
        %s131 = smul.u32 32, %s9
        %p132 = scmp.lt.s32.totalorder %s131, 63
        %s133 = scalar_select %p132, %s131, 63
        %s134 = smul.addr %s133, 8
        %s135 = scalar_lea.vmem %s0, %s134
        %s136 = smul.u32 32, %s9
      $region28: #{bottleneck_forward.7} parent=23 // pred_fallthru
        _
    $region24: #{bottleneck_forward.7} parent=5 // pred_fallthru
      _
    %p137 = scmp.le.s32.totalorder 1, %s9
    %p138 = scmp.lt.s32.totalorder %s9, 3
    %p139 = pnand %p137, %p138
    %p140 = pneg %p139
    // Predicated region
    $region29: #{bottleneck_forward.7} parent=5 // pred_check
      _
    $region30: #{bottleneck_forward.7} parent=5 // pred_check_branch
      %142 = sbr.rel (%p139) target = $region32
    $region31: #{bottleneck_forward.7} parent=5 // pred_region
      %s143 = ssub.s32 %s9, 1
      %s144 = smul.u32 32, %s14
      %p145 = scmp.lt.s32.totalorder %s144, 63
      %s146 = scalar_select %p145, %s144, 63
      %s147 = smul.addr %s146, 8
      %s148 = scalar_lea.vmem %s0, %s147
      %p149 = pneg %p35
      %p150 = pneg %p32
      %p151 = pneg %p56
      %p152 = pneg %p53
      %p153 = pneg %p77
      %p154 = pneg %p74
      %p155 = pneg %p103
      %p156 = pneg %p100
      %s157 = smul.u32 32, %s14
      %p158 = scmp.lt.s32.totalorder %s157, 63
      %s159 = scalar_select %p158, %s157, 63
      %s160 = smul.addr %s159, 8
      %s161 = scalar_lea.vmem %s3, %s160
      %s162 = smul.u32 32, %s14
      %p163 = scmp.lt.s32.totalorder %s162, 63
      %s164 = scalar_select %p163, %s162, 63
      %s165 = smul.addr %s164, 8
      %s166 = scalar_lea.vmem %s0, %s165
      %s167 = smul.u32 32, %s14
      %s168 = smul.u32 32, %s14
      %p169 = scmp.lt.s32.totalorder %s168, 63
      %s170 = scalar_select %p169, %s168, 63
      %s171 = smul.addr %s170, 8
      %s172 = scalar_lea.vmem %s3, %s171
      %s173 = smul.u32 32, %s14
      %v174 = vld [vmem:[%s166] sm:$0xff]
      %v175 = vld [vmem:[%s166 + $0x8] sm:$0xff]
      %v176 = vld [vmem:[%s166 + $0x10] sm:$0xff]
      %v177 = vld [vmem:[%s166 + $0x18] sm:$0xff]
      %v178 = vld [vmem:[%s166 + $0x20] sm:$0xff]
      %v179 = vld [vmem:[%s166 + $0x28] sm:$0xff]
      %v180 = vld [vmem:[%s166 + $0x30] sm:$0xff]
      %v181 = vld [vmem:[%s166 + $0x38] sm:$0xff]
      %v182 = vld [vmem:[%s166 + $0x40] sm:$0xff]
      %v183 = vld [vmem:[%s166 + $0x48] sm:$0xff]
      %v184 = vld [vmem:[%s166 + $0x50] sm:$0xff]
      %v185 = vld [vmem:[%s166 + $0x58] sm:$0xff]
      %v186 = vld [vmem:[%s166 + $0x60] sm:$0xff]
      %v187 = vld [vmem:[%s166 + $0x68] sm:$0xff]
      %v188 = vld [vmem:[%s166 + $0x70] sm:$0xff]
      %v189 = vld [vmem:[%s166 + $0x78] sm:$0xff]
      %v190 = vld [vmem:[%s166 + $0x80] sm:$0xff]
      %v191 = vld [vmem:[%s166 + $0x88] sm:$0xff]
      %v192 = vld [vmem:[%s166 + $0x90] sm:$0xff]
      %v193 = vld [vmem:[%s166 + $0x98] sm:$0xff]
      %v194 = vld [vmem:[%s166 + $0xa0] sm:$0xff]
      %v195 = vld [vmem:[%s166 + $0xa8] sm:$0xff]
      %v196 = vld [vmem:[%s166 + $0xb0] sm:$0xff]
      %v197 = vld [vmem:[%s166 + $0xb8] sm:$0xff]
      %v198 = vld [vmem:[%s166 + $0xc0] sm:$0xff]
      %v199 = vld [vmem:[%s166 + $0xc8] sm:$0xff]
      %v200 = vld [vmem:[%s166 + $0xd0] sm:$0xff]
      %v201 = vld [vmem:[%s166 + $0xd8] sm:$0xff]
      %v202 = vld [vmem:[%s166 + $0xe0] sm:$0xff]
      %v203 = vld [vmem:[%s166 + $0xe8] sm:$0xff]
      %v204 = vld [vmem:[%s166 + $0xf0] sm:$0xff]
      %v205 = vld [vmem:[%s166 + $0xf8] sm:$0xff]
      %v206 = vld [vmem:[%s1] sm:$0x1]
      %v208 = vlaneseq
      %v209 = vshrl.u32 %v208, 7
      %v210 = vsub.s32 0, %v209
      %v211 = vrot.slane %v206, %v210
      %v213 = vmul.f32 %v174, %v211
      %v214 = vmul.f32 %v175, %v211
      %v215 = vmul.f32 %v176, %v211
      %v216 = vmul.f32 %v177, %v211
      %v217 = vmul.f32 %v178, %v211
      %v218 = vmul.f32 %v179, %v211
      %v219 = vmul.f32 %v180, %v211
      %v220 = vmul.f32 %v181, %v211
      %v221 = vmul.f32 %v182, %v211
      %v222 = vmul.f32 %v183, %v211
      %v223 = vmul.f32 %v184, %v211
      %v224 = vmul.f32 %v185, %v211
      %v225 = vmul.f32 %v186, %v211
      %v226 = vmul.f32 %v187, %v211
      %v227 = vmul.f32 %v188, %v211
      %v228 = vmul.f32 %v189, %v211
      %v229 = vmul.f32 %v190, %v211
      %v230 = vmul.f32 %v191, %v211
      %v231 = vmul.f32 %v192, %v211
      %v232 = vmul.f32 %v193, %v211
      %v233 = vmul.f32 %v194, %v211
      %v234 = vmul.f32 %v195, %v211
      %v235 = vmul.f32 %v196, %v211
      %v236 = vmul.f32 %v197, %v211
      %v237 = vmul.f32 %v198, %v211
      %v238 = vmul.f32 %v199, %v211
      %v239 = vmul.f32 %v200, %v211
      %v240 = vmul.f32 %v201, %v211
      %v241 = vmul.f32 %v202, %v211
      %v242 = vmul.f32 %v203, %v211
      %v243 = vmul.f32 %v204, %v211
      %v244 = vmul.f32 %v205, %v211
      %v245 = vld [vmem:[%s2] sm:$0x1]
      %v247 = vlaneseq
      %v248 = vshrl.u32 %v247, 7
      %v249 = vsub.s32 0, %v248
      %v250 = vrot.slane %v245, %v249
      %v252 = vadd.f32 %v213, %v250
      %v253 = vadd.f32 %v214, %v250
      %v254 = vadd.f32 %v215, %v250
      %v255 = vadd.f32 %v216, %v250
      %v256 = vadd.f32 %v217, %v250
      %v257 = vadd.f32 %v218, %v250
      %v258 = vadd.f32 %v219, %v250
      %v259 = vadd.f32 %v220, %v250
      %v260 = vadd.f32 %v221, %v250
      %v261 = vadd.f32 %v222, %v250
      %v262 = vadd.f32 %v223, %v250
      %v263 = vadd.f32 %v224, %v250
      %v264 = vadd.f32 %v225, %v250
      %v265 = vadd.f32 %v226, %v250
      %v266 = vadd.f32 %v227, %v250
      %v267 = vadd.f32 %v228, %v250
      %v268 = vadd.f32 %v229, %v250
      %v269 = vadd.f32 %v230, %v250
      %v270 = vadd.f32 %v231, %v250
      %v271 = vadd.f32 %v232, %v250
      %v272 = vadd.f32 %v233, %v250
      %v273 = vadd.f32 %v234, %v250
      %v274 = vadd.f32 %v235, %v250
      %v275 = vadd.f32 %v236, %v250
      %v276 = vadd.f32 %v237, %v250
      %v277 = vadd.f32 %v238, %v250
      %v278 = vadd.f32 %v239, %v250
      %v279 = vadd.f32 %v240, %v250
      %v280 = vadd.f32 %v241, %v250
      %v281 = vadd.f32 %v242, %v250
      %v282 = vadd.f32 %v243, %v250
      %v283 = vadd.f32 %v244, %v250
      %v284 = vmax.f32 %v252, 0.0
      %v285 = vmax.f32 %v253, 0.0
      %v286 = vmax.f32 %v254, 0.0
      %v287 = vmax.f32 %v255, 0.0
      %v288 = vmax.f32 %v256, 0.0
      %v289 = vmax.f32 %v257, 0.0
      %v290 = vmax.f32 %v258, 0.0
      %v291 = vmax.f32 %v259, 0.0
      %v292 = vmax.f32 %v260, 0.0
      %v293 = vmax.f32 %v261, 0.0
      %v294 = vmax.f32 %v262, 0.0
      %v295 = vmax.f32 %v263, 0.0
      %v296 = vmax.f32 %v264, 0.0
      %v297 = vmax.f32 %v265, 0.0
      %v298 = vmax.f32 %v266, 0.0
      %v299 = vmax.f32 %v267, 0.0
      %v300 = vmax.f32 %v268, 0.0
      %v301 = vmax.f32 %v269, 0.0
      %v302 = vmax.f32 %v270, 0.0
      %v303 = vmax.f32 %v271, 0.0
      %v304 = vmax.f32 %v272, 0.0
      %v305 = vmax.f32 %v273, 0.0
      %v306 = vmax.f32 %v274, 0.0
      %v307 = vmax.f32 %v275, 0.0
      %v308 = vmax.f32 %v276, 0.0
      %v309 = vmax.f32 %v277, 0.0
      %v310 = vmax.f32 %v278, 0.0
      %v311 = vmax.f32 %v279, 0.0
      %v312 = vmax.f32 %v280, 0.0
      %v313 = vmax.f32 %v281, 0.0
      %v314 = vmax.f32 %v282, 0.0
      %v315 = vmax.f32 %v283, 0.0
      %316 = vst [vmem:[%s172] sm:$0xff] %v284
      %317 = vst [vmem:[%s172 + $0x8] sm:$0xff] %v285
      %318 = vst [vmem:[%s172 + $0x10] sm:$0xff] %v286
      %319 = vst [vmem:[%s172 + $0x18] sm:$0xff] %v287
      %320 = vst [vmem:[%s172 + $0x20] sm:$0xff] %v288
      %321 = vst [vmem:[%s172 + $0x28] sm:$0xff] %v289
      %322 = vst [vmem:[%s172 + $0x30] sm:$0xff] %v290
      %323 = vst [vmem:[%s172 + $0x38] sm:$0xff] %v291
      %324 = vst [vmem:[%s172 + $0x40] sm:$0xff] %v292
      %325 = vst [vmem:[%s172 + $0x48] sm:$0xff] %v293
      %326 = vst [vmem:[%s172 + $0x50] sm:$0xff] %v294
      %327 = vst [vmem:[%s172 + $0x58] sm:$0xff] %v295
      %328 = vst [vmem:[%s172 + $0x60] sm:$0xff] %v296
      %329 = vst [vmem:[%s172 + $0x68] sm:$0xff] %v297
      %330 = vst [vmem:[%s172 + $0x70] sm:$0xff] %v298
      %331 = vst [vmem:[%s172 + $0x78] sm:$0xff] %v299
      %332 = vst [vmem:[%s172 + $0x80] sm:$0xff] %v300
      %333 = vst [vmem:[%s172 + $0x88] sm:$0xff] %v301
      %334 = vst [vmem:[%s172 + $0x90] sm:$0xff] %v302
      %335 = vst [vmem:[%s172 + $0x98] sm:$0xff] %v303
      %336 = vst [vmem:[%s172 + $0xa0] sm:$0xff] %v304
      %337 = vst [vmem:[%s172 + $0xa8] sm:$0xff] %v305
      %338 = vst [vmem:[%s172 + $0xb0] sm:$0xff] %v306
      %339 = vst [vmem:[%s172 + $0xb8] sm:$0xff] %v307
      %340 = vst [vmem:[%s172 + $0xc0] sm:$0xff] %v308
      %341 = vst [vmem:[%s172 + $0xc8] sm:$0xff] %v309
      %342 = vst [vmem:[%s172 + $0xd0] sm:$0xff] %v310
      %343 = vst [vmem:[%s172 + $0xd8] sm:$0xff] %v311
      %344 = vst [vmem:[%s172 + $0xe0] sm:$0xff] %v312
      %345 = vst [vmem:[%s172 + $0xe8] sm:$0xff] %v313
      %346 = vst [vmem:[%s172 + $0xf0] sm:$0xff] %v314
      %347 = vst [vmem:[%s172 + $0xf8] sm:$0xff] %v315
      %s348 = smul.u32 32, %s14
      %p349 = scmp.lt.s32.totalorder %s348, 63
      %s350 = scalar_select %p349, %s348, 63
      %s351 = smul.addr %s350, 8
      %s352 = scalar_lea.vmem %s3, %s351
      // Predicated region
      $region33: #{bottleneck_forward.7} parent=31 // pred_check
        %p353 = pneg %p100
      $region34: #{bottleneck_forward.7} parent=31 // pred_check_branch
        %355 = sbr.rel (%p353) target = $region36
      $region35: #{bottleneck_forward.7} parent=31 // pred_region
        %s356 = smul.u32 32, %s14
      $region36: #{bottleneck_forward.7} parent=31 // pred_fallthru
        _
    $region32: #{bottleneck_forward.7} parent=5 // pred_fallthru
      _
    %p357 = scmp.le.s32.totalorder 2, %s9
    // Predicated region
    $region37: #{bottleneck_forward.7} parent=5 // pred_check
      %p358 = pneg %p357
    $region38: #{bottleneck_forward.7} parent=5 // pred_check_branch
      %360 = sbr.rel (%p358) target = $region40
    $region39: #{bottleneck_forward.7} parent=5 // pred_region
      %s361 = ssub.s32 %s9, 2
      // Predicated region
      $region41: #{bottleneck_forward.7} parent=39 // pred_check
        %p362 = pneg %p106
      $region42: #{bottleneck_forward.7} parent=39 // pred_check_branch
        %364 = sbr.rel (%p362) target = $region44
      $region43: #{bottleneck_forward.7} parent=39 // pred_region
        %s365 = smul.u32 32, %s15
        %p366 = scmp.lt.s32.totalorder %s365, 63
        %s367 = scalar_select %p366, %s365, 63
        %s368 = smul.addr %s367, 8
        %s369 = scalar_lea.vmem %s3, %s368
      $region44: #{bottleneck_forward.7} parent=39 // pred_fallthru
        _
    $region40: #{bottleneck_forward.7} parent=5 // pred_fallthru
      _
  $region6: #{bottleneck_forward.7} parent=0 // loop_footer
    %s13 = sadd.s32 1, %s9
  $region7: #{bottleneck_forward.7} parent=0 // loop_footer_branch
    %8 = sbr.rel target = $region3
  $region8: #{bottleneck_forward.7} parent=0 // loop_exit
    _

// kernel: bottleneck_forward.6
$region0: #{bottleneck_forward.6}
  #allocation0 [shape = 'u32[]', space=smem, size = 0x4, offset = 0x4, fixed_abs, tag = 'smem constant byte address 0x4 - core index']
  #allocation1 [shape = 'u32[144,128]{1,0:T(1,128)}', space=vmem, size = 0x12000, scoped, tag = 'internal scratch']
  %s0 = inlined_call_operand.vmem [shape: f32[512,128], index: 0, kind: input, shape index: {}]
  %s1 = inlined_call_operand.vmem [shape: f32[1,128], index: 1, kind: input, shape index: {}]
  %s2 = inlined_call_operand.vmem [shape: f32[1,128], index: 2, kind: input, shape index: {}]
  %s3 = inlined_call_operand.vmem [shape: bf16[128,128], index: 3, kind: input, shape index: {}]
  %s4 = inlined_call_operand.vmem [shape: f32[512,128], index: 4, kind: output, shape index: {0}]
  %s5 = inlined_call_operand.vmem [shape: f32[2,8,128], index: 5, kind: output, shape index: {1}]
  %6 = xla_tuple %s4, %s5
  %s7 = sld [smem:[#allocation0]]
  $region57: #{bottleneck_forward.6} parent=0
    _
  %s9 = ssub.s32 1, %s7
  %s10 = scalar_select 0, %s9, %s7
  loop: start=0, step=1, limit=4
  $region2: #{bottleneck_forward.6} parent=0 // loop_pre_header
    _
  $region3: #{bottleneck_forward.6} parent=0 // loop_header
    %s12 = sphi 0, %s16
    %p13 = scmp.ge.s32.totalorder %s12, 4
    %s22 = sphi 0, %s24
    %s25 = sphi 0, %s22
    %s26 = sphi 0, %s25
    %s42 = sphi 0, %s26
    %s46 = sphi 0, %s46
    %s48 = sphi 0, %s46
    %s49 = sphi 0, %s48
    %s63 = sphi 0, %s49
    %s67 = sphi 0, %s67
    %s69 = sphi 0, %s67
    %s70 = sphi 0, %s69
    %s84 = sphi 0, %s70
    %s88 = sphi 0, %s88
    %s90 = sphi 0, %s88
    %s91 = sphi 0, %s90
    %s105 = sphi 0, %s91
    %s111 = sphi 0, %s113
    %s114 = sphi 0, %s111
    %s115 = sphi 0, %s114
    %s131 = sphi 0, %s115
    %s137 = sphi 0, %s139
    %s140 = sphi 0, %s137
    %s141 = sphi 0, %s140
    %s157 = sphi 0, %s141
  $region4: #{bottleneck_forward.6} parent=0 // loop_header_branch
    %15 = sbr.rel (%p13) target = $region8
  $region5: #{bottleneck_forward.6} parent=0 // loop_body
    %s17 = ssub.s32 %s12, 1
    %s18 = ssub.s32 %s12, 2
    %s19 = sadd.s32 %s12, 1
    %s20 = ssub.s32 %s12, %s19
    %p21 = scmp.eq.s32.totalorder %s20, 0
    %s23 = sadd.s32 %s22, 1
    %s24 = scalar_select %p21, %s22, %s23
    %p27 = pneg %p21
    %p28 = scmp.eq.s32.totalorder %s12, 1
    %p29 = por %p27, %p28
    %p30 = scmp.ne.s32.totalorder %s22, %s25
    %p31 = scmp.eq.s32.totalorder %s12, 0
    %p32 = por %p30, %p31
    %p33 = scmp.ne.s32.totalorder %s22, %s25
    %p34 = scmp.eq.s32.totalorder %s17, 1
    %p35 = por %p33, %p34
    %p36 = scmp.ne.s32.totalorder %s25, %s26
    %p37 = scmp.eq.s32.totalorder %s17, 0
    %p38 = por %p36, %p37
    %p39 = scmp.ne.s32.totalorder %s25, %s26
    %p40 = scmp.eq.s32.totalorder %s18, 1
    %p41 = por %p39, %p40
    %p43 = scmp.ne.s32.totalorder %s26, %s42
    %p44 = scmp.eq.s32.totalorder %s18, 0
    %p45 = por %p43, %p44
    %s47 = sadd.s32 %s46, 1
    %p50 = scmp.eq.s32.totalorder %s12, 1
    %p51 = scmp.ne.s32.totalorder %s46, %s48
    %p52 = scmp.eq.s32.totalorder %s12, 0
    %p53 = por %p51, %p52
    %p54 = scmp.ne.s32.totalorder %s46, %s48
    %p55 = scmp.eq.s32.totalorder %s17, 1
    %p56 = por %p54, %p55
    %p57 = scmp.ne.s32.totalorder %s48, %s49
    %p58 = scmp.eq.s32.totalorder %s17, 0
    %p59 = por %p57, %p58
    %p60 = scmp.ne.s32.totalorder %s48, %s49
    %p61 = scmp.eq.s32.totalorder %s18, 1
    %p62 = por %p60, %p61
    %p64 = scmp.ne.s32.totalorder %s49, %s63
    %p65 = scmp.eq.s32.totalorder %s18, 0
    %p66 = por %p64, %p65
    %s68 = sadd.s32 %s67, 1
    %p71 = scmp.eq.s32.totalorder %s12, 1
    %p72 = scmp.ne.s32.totalorder %s67, %s69
    %p73 = scmp.eq.s32.totalorder %s12, 0
    %p74 = por %p72, %p73
    %p75 = scmp.ne.s32.totalorder %s67, %s69
    %p76 = scmp.eq.s32.totalorder %s17, 1
    %p77 = por %p75, %p76
    %p78 = scmp.ne.s32.totalorder %s69, %s70
    %p79 = scmp.eq.s32.totalorder %s17, 0
    %p80 = por %p78, %p79
    %p81 = scmp.ne.s32.totalorder %s69, %s70
    %p82 = scmp.eq.s32.totalorder %s18, 1
    %p83 = por %p81, %p82
    %p85 = scmp.ne.s32.totalorder %s70, %s84
    %p86 = scmp.eq.s32.totalorder %s18, 0
    %p87 = por %p85, %p86
    %s89 = sadd.s32 %s88, 1
    %p92 = scmp.eq.s32.totalorder %s12, 1
    %p93 = scmp.ne.s32.totalorder %s88, %s90
    %p94 = scmp.eq.s32.totalorder %s12, 0
    %p95 = por %p93, %p94
    %p96 = scmp.ne.s32.totalorder %s88, %s90
    %p97 = scmp.eq.s32.totalorder %s17, 1
    %p98 = por %p96, %p97
    %p99 = scmp.ne.s32.totalorder %s90, %s91
    %p100 = scmp.eq.s32.totalorder %s17, 0
    %p101 = por %p99, %p100
    %p102 = scmp.ne.s32.totalorder %s90, %s91
    %p103 = scmp.eq.s32.totalorder %s18, 1
    %p104 = por %p102, %p103
    %p106 = scmp.ne.s32.totalorder %s91, %s105
    %p107 = scmp.eq.s32.totalorder %s18, 0
    %p108 = por %p106, %p107
    %s109 = ssub.s32 %s12, %s19
    %p110 = scmp.eq.s32.totalorder %s109, 0
    %s112 = sadd.s32 %s111, 1
    %s113 = scalar_select %p110, %s111, %s112
    %p116 = pneg %p110
    %p117 = scmp.eq.s32.totalorder %s12, 1
    %p118 = por %p116, %p117
    %p119 = scmp.ne.s32.totalorder %s111, %s114
    %p120 = scmp.eq.s32.totalorder %s12, 0
    %p121 = por %p119, %p120
    %p122 = scmp.ne.s32.totalorder %s111, %s114
    %p123 = scmp.eq.s32.totalorder %s17, 1
    %p124 = por %p122, %p123
    %p125 = scmp.ne.s32.totalorder %s114, %s115
    %p126 = scmp.eq.s32.totalorder %s17, 0
    %p127 = por %p125, %p126
    %p128 = scmp.ne.s32.totalorder %s114, %s115
    %p129 = scmp.eq.s32.totalorder %s18, 1
    %p130 = por %p128, %p129
    %p132 = scmp.ne.s32.totalorder %s115, %s131
    %p133 = scmp.eq.s32.totalorder %s18, 0
    %p134 = por %p132, %p133
    %s135 = ssub.s32 %s12, %s19
    %p136 = scmp.eq.s32.totalorder %s135, 0
    %s138 = sadd.s32 %s137, 1
    %s139 = scalar_select %p136, %s137, %s138
    %p142 = pneg %p136
    %p143 = scmp.eq.s32.totalorder %s12, 1
    %p144 = por %p142, %p143
    %p145 = scmp.ne.s32.totalorder %s137, %s140
    %p146 = scmp.eq.s32.totalorder %s12, 0
    %p147 = por %p145, %p146
    %p148 = scmp.ne.s32.totalorder %s137, %s140
    %p149 = scmp.eq.s32.totalorder %s17, 1
    %p150 = por %p148, %p149
    %p151 = scmp.ne.s32.totalorder %s140, %s141
    %p152 = scmp.eq.s32.totalorder %s17, 0
    %p153 = por %p151, %p152
    %p154 = scmp.ne.s32.totalorder %s140, %s141
    %p155 = scmp.eq.s32.totalorder %s18, 1
    %p156 = por %p154, %p155
    %p158 = scmp.ne.s32.totalorder %s141, %s157
    %p159 = scmp.eq.s32.totalorder %s18, 0
    %p160 = por %p158, %p159
    %p161 = scmp.le.s32.totalorder 1, %s12
    %p162 = scmp.lt.s32.totalorder %s12, 3
    %p163 = pnand %p161, %p162
    %p164 = pneg %p163
    // Predicated region
    $region9: #{bottleneck_forward.6} parent=5 // pred_check
      _
    $region10: #{bottleneck_forward.6} parent=5 // pred_check_branch
      %166 = sbr.rel (%p163) target = $region12
    $region11: #{bottleneck_forward.6} parent=5 // pred_region
      %s167 = ssub.s32 %s12, 1
      // Predicated region
      $region13: #{bottleneck_forward.6} parent=11 // pred_check
        %p168 = pneg %p59
      $region14: #{bottleneck_forward.6} parent=11 // pred_check_branch
        %170 = sbr.rel (%p168) target = $region16
      $region15: #{bottleneck_forward.6} parent=11 // pred_region
        _
      $region16: #{bottleneck_forward.6} parent=11 // pred_fallthru
        _
      // Predicated region
      $region17: #{bottleneck_forward.6} parent=11 // pred_check
        %p171 = pneg %p80
      $region18: #{bottleneck_forward.6} parent=11 // pred_check_branch
        %173 = sbr.rel (%p171) target = $region20
      $region19: #{bottleneck_forward.6} parent=11 // pred_region
        _
      $region20: #{bottleneck_forward.6} parent=11 // pred_fallthru
        _
      // Predicated region
      $region21: #{bottleneck_forward.6} parent=11 // pred_check
        %p174 = pneg %p101
      $region22: #{bottleneck_forward.6} parent=11 // pred_check_branch
        %176 = sbr.rel (%p174) target = $region24
      $region23: #{bottleneck_forward.6} parent=11 // pred_region
        _
      $region24: #{bottleneck_forward.6} parent=11 // pred_fallthru
        _
    $region12: #{bottleneck_forward.6} parent=5 // pred_fallthru
      _
    %p177 = scmp.lt.s32.totalorder %s12, 2
    // Predicated region
    $region25: #{bottleneck_forward.6} parent=5 // pred_check
      %p178 = pneg %p177
    $region26: #{bottleneck_forward.6} parent=5 // pred_check_branch
      %180 = sbr.rel (%p178) target = $region28
    $region27: #{bottleneck_forward.6} parent=5 // pred_region
      // Predicated region
      $region29: #{bottleneck_forward.6} parent=27 // pred_check
        %p181 = pneg %p32
      $region30: #{bottleneck_forward.6} parent=27 // pred_check_branch
        %183 = sbr.rel (%p181) target = $region32
      $region31: #{bottleneck_forward.6} parent=27 // pred_region
        %s184 = smul.u32 32, %s12
        %p185 = scmp.lt.s32.totalorder %s184, 63
        %s186 = scalar_select %p185, %s184, 63
        %s187 = smul.addr %s186, 8
        %s188 = scalar_lea.vmem %s0, %s187
        %s189 = smul.u32 32, %s12
      $region32: #{bottleneck_forward.6} parent=27 // pred_fallthru
        _
    $region28: #{bottleneck_forward.6} parent=5 // pred_fallthru
      _
    %p190 = scmp.le.s32.totalorder 1, %s12
    %p191 = scmp.lt.s32.totalorder %s12, 3
    %p192 = pnand %p190, %p191
    %p193 = pneg %p192
    // Predicated region
    $region33: #{bottleneck_forward.6} parent=5 // pred_check
      _
    $region34: #{bottleneck_forward.6} parent=5 // pred_check_branch
      %195 = sbr.rel (%p192) target = $region36
    $region35: #{bottleneck_forward.6} parent=5 // pred_region
      %s196 = ssub.s32 %s12, 1
      %s197 = smul.u32 32, %s17
      %p198 = scmp.lt.s32.totalorder %s197, 63
      %s199 = scalar_select %p198, %s197, 63
      %s200 = smul.addr %s199, 8
      %s201 = scalar_lea.vmem %s0, %s200
      %p202 = pneg %p38
      %p203 = pneg %p35
      %p204 = pneg %p59
      %p205 = pneg %p56
      %p206 = pneg %p80
      %p207 = pneg %p77
      %p208 = pneg %p101
      %p209 = pneg %p98
      %p210 = pneg %p127
      %p211 = pneg %p124
      %s212 = smul.u32 32, %s17
      %p213 = scmp.lt.s32.totalorder %s212, 63
      %s214 = scalar_select %p213, %s212, 63
      %s215 = smul.addr %s214, 8
      %s216 = scalar_lea.vmem %s4, %s215
      %p217 = pneg %p153
      %p218 = pneg %p150
      %p219 = scmp.lt.s32.totalorder %s17, 1
      %s220 = scalar_select %p219, %s17, 1
      %s221 = smul.addr %s220, 8
      %s222 = scalar_lea.vmem %s5, %s221
      %s223 = smul.u32 32, %s17
      %p224 = scmp.lt.s32.totalorder %s223, 63
      %s225 = scalar_select %p224, %s223, 63
      %s226 = smul.addr %s225, 8
      %s227 = scalar_lea.vmem %s0, %s226
      %s228 = smul.u32 32, %s17
      %s229 = smul.u32 32, %s17
      %p230 = scmp.lt.s32.totalorder %s229, 63
      %s231 = scalar_select %p230, %s229, 63
      %s232 = smul.addr %s231, 8
      %s233 = scalar_lea.vmem %s4, %s232
      %s234 = smul.u32 32, %s17
      %p235 = scmp.lt.s32.totalorder %s17, 1
      %s236 = scalar_select %p235, %s17, 1
      %s237 = smul.addr %s236, 8
      %s238 = scalar_lea.vmem %s5, %s237
      %v240 = vld [vmem:[%s227] sm:$0xff]
      %v241 = vld [vmem:[%s227 + $0x8] sm:$0xff]
      %v242 = vld [vmem:[%s227 + $0x10] sm:$0xff]
      %v243 = vld [vmem:[%s227 + $0x18] sm:$0xff]
      %v244 = vld [vmem:[%s227 + $0x20] sm:$0xff]
      %v245 = vld [vmem:[%s227 + $0x28] sm:$0xff]
      %v246 = vld [vmem:[%s227 + $0x30] sm:$0xff]
      %v247 = vld [vmem:[%s227 + $0x38] sm:$0xff]
      %v248 = vld [vmem:[%s227 + $0x40] sm:$0xff]
      %v249 = vld [vmem:[%s227 + $0x48] sm:$0xff]
      %v250 = vld [vmem:[%s227 + $0x50] sm:$0xff]
      %v251 = vld [vmem:[%s227 + $0x58] sm:$0xff]
      %v252 = vld [vmem:[%s227 + $0x60] sm:$0xff]
      %v253 = vld [vmem:[%s227 + $0x68] sm:$0xff]
      %v254 = vld [vmem:[%s227 + $0x70] sm:$0xff]
      %v255 = vld [vmem:[%s227 + $0x78] sm:$0xff]
      %v256 = vld [vmem:[%s227 + $0x80] sm:$0xff]
      %v257 = vld [vmem:[%s227 + $0x88] sm:$0xff]
      %v258 = vld [vmem:[%s227 + $0x90] sm:$0xff]
      %v259 = vld [vmem:[%s227 + $0x98] sm:$0xff]
      %v260 = vld [vmem:[%s227 + $0xa0] sm:$0xff]
      %v261 = vld [vmem:[%s227 + $0xa8] sm:$0xff]
      %v262 = vld [vmem:[%s227 + $0xb0] sm:$0xff]
      %v263 = vld [vmem:[%s227 + $0xb8] sm:$0xff]
      %v264 = vld [vmem:[%s227 + $0xc0] sm:$0xff]
      %v265 = vld [vmem:[%s227 + $0xc8] sm:$0xff]
      %v266 = vld [vmem:[%s227 + $0xd0] sm:$0xff]
      %v267 = vld [vmem:[%s227 + $0xd8] sm:$0xff]
      %v268 = vld [vmem:[%s227 + $0xe0] sm:$0xff]
      %v269 = vld [vmem:[%s227 + $0xe8] sm:$0xff]
      %v270 = vld [vmem:[%s227 + $0xf0] sm:$0xff]
      %v271 = vld [vmem:[%s227 + $0xf8] sm:$0xff]
      %v272 = vpack.c.bf16 %v241, %v240
      %v273 = vpack.c.bf16 %v243, %v242
      %v274 = vpack.c.bf16 %v245, %v244
      %v275 = vpack.c.bf16 %v247, %v246
      %v276 = vpack.c.bf16 %v249, %v248
      %v277 = vpack.c.bf16 %v251, %v250
      %v278 = vpack.c.bf16 %v253, %v252
      %v279 = vpack.c.bf16 %v255, %v254
      %v280 = vpack.c.bf16 %v257, %v256
      %v281 = vpack.c.bf16 %v259, %v258
      %v282 = vpack.c.bf16 %v261, %v260
      %v283 = vpack.c.bf16 %v263, %v262
      %v284 = vpack.c.bf16 %v265, %v264
      %v285 = vpack.c.bf16 %v267, %v266
      %v286 = vpack.c.bf16 %v269, %v268
      %v287 = vpack.c.bf16 %v271, %v270
      %v288 = vld [vmem:[%s3] sm:$0xf]
      %v289 = vld [vmem:[%s3 + $0x4] sm:$0xf]
      %v290 = vld [vmem:[%s3 + $0x8] sm:$0xf]
      %v291 = vld [vmem:[%s3 + $0xc] sm:$0xf]
      %v292 = vld [vmem:[%s3 + $0x10] sm:$0xf]
      %v293 = vld [vmem:[%s3 + $0x14] sm:$0xf]
      %v294 = vld [vmem:[%s3 + $0x18] sm:$0xf]
      %v295 = vld [vmem:[%s3 + $0x1c] sm:$0xf]
      %v296 = vld [vmem:[%s3 + $0x20] sm:$0xf]
      %v297 = vld [vmem:[%s3 + $0x24] sm:$0xf]
      %v298 = vld [vmem:[%s3 + $0x28] sm:$0xf]
      %v299 = vld [vmem:[%s3 + $0x2c] sm:$0xf]
      %v300 = vld [vmem:[%s3 + $0x30] sm:$0xf]
      %v301 = vld [vmem:[%s3 + $0x34] sm:$0xf]
      %v302 = vld [vmem:[%s3 + $0x38] sm:$0xf]
      %v303 = vld [vmem:[%s3 + $0x3c] sm:$0xf]
      %v320 = vunpack.c.l.b16 %v288
      %v321 = vunpack.c.l.b16 %v289
      %v322 = vunpack.c.l.b16 %v290
      %v323 = vunpack.c.l.b16 %v291
      %v324 = vunpack.c.l.b16 %v292
      %v325 = vunpack.c.l.b16 %v293
      %v326 = vunpack.c.l.b16 %v294
      %v327 = vunpack.c.l.b16 %v295
      %v328 = vunpack.c.l.b16 %v296
      %v329 = vunpack.c.l.b16 %v297
      %v330 = vunpack.c.l.b16 %v298
      %v331 = vunpack.c.l.b16 %v299
      %v332 = vunpack.c.l.b16 %v300
      %v333 = vunpack.c.l.b16 %v301
      %v334 = vunpack.c.l.b16 %v302
      %v335 = vunpack.c.l.b16 %v303
      %v336 = vpack.c.b16 %v321, %v320
      %v337 = vpack.c.b16 %v323, %v322
      %v338 = vpack.c.b16 %v325, %v324
      %v339 = vpack.c.b16 %v327, %v326
      %v340 = vpack.c.b16 %v329, %v328
      %v341 = vpack.c.b16 %v331, %v330
      %v342 = vpack.c.b16 %v333, %v332
      %v343 = vpack.c.b16 %v335, %v334
      %352 = vmatprep.subr.bf16.mxu0 0
      %353 = vmatpush1.bf16.msra.mxu0 %v336
      %354 = vmatprep.subr.bf16.mxu0 0
      %355 = vmatpush1.bf16.msra.mxu0 %v337
      %356 = vmatprep.subr.bf16.mxu0 0
      %357 = vmatpush1.bf16.msra.mxu0 %v338
      %358 = vmatprep.subr.bf16.mxu0 0
      %359 = vmatpush1.bf16.msra.mxu0 %v339
      %360 = vmatprep.subr.bf16.mxu0 0
      %361 = vmatpush1.bf16.msra.mxu0 %v340
      %362 = vmatprep.subr.bf16.mxu0 0
      %363 = vmatpush1.bf16.msra.mxu0 %v341
      %364 = vmatprep.subr.bf16.mxu0 0
      %365 = vmatpush1.bf16.msra.mxu0 %v342
      %366 = vmatprep.subr.bf16.mxu0 0
      %367 = vmatpush1.bf16.msra.mxu0 %v343
      %368 = vmatprep.subr.bf16.mxu0 0
      %369 = vmatpush1.bf16.msra.mxu0 0
      %370 = vmatprep.subr.bf16.mxu0 0
      %371 = vmatpush1.bf16.msra.mxu0 0
      %372 = vmatprep.subr.bf16.mxu0 0
      %373 = vmatpush1.bf16.msra.mxu0 0
      %374 = vmatprep.subr.bf16.mxu0 0
      %375 = vmatpush1.bf16.msra.mxu0 0
      %376 = vmatprep.subr.bf16.mxu0 0
      %377 = vmatpush1.bf16.msra.mxu0 0
      %378 = vmatprep.subr.bf16.mxu0 0
      %379 = vmatpush1.bf16.msra.mxu0 0
      %380 = vmatprep.subr.bf16.mxu0 0
      %381 = vmatpush1.bf16.msra.mxu0 0
      %382 = vmatprep.subr.bf16.mxu0 0
      %383 = vmatpush1.bf16.msra.mxu0 0
      %384 = vmatprep.mubr.bf16.mxu0 0
      %385 = vmatmul.mubr.bf16.gmra.mrb[0].mxu0 %v272
      %v386 = vpop.f32.mrb[0].mxu0
      %v387 = vadd.f32 0.0, %v386
      %v388 = vpop.f32.mrb[0].mxu0
      %v389 = vpop.f32.mrb[0].mxu0
      %v390 = vadd.f32 0.0, %v389
      %v391 = vpop.f32.mrb[0].mxu0
      %392 = vmatprep.mubr.bf16.mxu0 0
      %393 = vmatmul.mubr.bf16.gmra.mrb[0].mxu0 %v273
      %v394 = vpop.f32.mrb[0].mxu0
      %v395 = vadd.f32 0.0, %v394
      %v396 = vpop.f32.mrb[0].mxu0
      %v397 = vpop.f32.mrb[0].mxu0
      %v398 = vadd.f32 0.0, %v397
      %v399 = vpop.f32.mrb[0].mxu0
      %400 = vmatprep.mubr.bf16.mxu0 0
      %401 = vmatmul.mubr.bf16.gmra.mrb[0].mxu0 %v274
      %v402 = vpop.f32.mrb[0].mxu0
      %v403 = vadd.f32 0.0, %v402
      %v404 = vpop.f32.mrb[0].mxu0
      %v405 = vpop.f32.mrb[0].mxu0
      %v406 = vadd.f32 0.0, %v405
      %v407 = vpop.f32.mrb[0].mxu0
      %408 = vmatprep.mubr.bf16.mxu0 0
      %409 = vmatmul.mubr.bf16.gmra.mrb[0].mxu0 %v275
      %v410 = vpop.f32.mrb[0].mxu0
      %v411 = vadd.f32 0.0, %v410
      %v412 = vpop.f32.mrb[0].mxu0
      %v413 = vpop.f32.mrb[0].mxu0
      %v414 = vadd.f32 0.0, %v413
      %v415 = vpop.f32.mrb[0].mxu0
      %416 = vmatprep.mubr.bf16.mxu0 0
      %417 = vmatmul.mubr.bf16.gmra.mrb[0].mxu0 %v276
      %v418 = vpop.f32.mrb[0].mxu0
      %v419 = vadd.f32 0.0, %v418
      %v420 = vpop.f32.mrb[0].mxu0
      %v421 = vpop.f32.mrb[0].mxu0
      %v422 = vadd.f32 0.0, %v421
      %v423 = vpop.f32.mrb[0].mxu0
      %424 = vmatprep.mubr.bf16.mxu0 0
      %425 = vmatmul.mubr.bf16.gmra.mrb[0].mxu0 %v277
      %v426 = vpop.f32.mrb[0].mxu0
      %v427 = vadd.f32 0.0, %v426
      %v428 = vpop.f32.mrb[0].mxu0
      %v429 = vpop.f32.mrb[0].mxu0
      %v430 = vadd.f32 0.0, %v429
      %v431 = vpop.f32.mrb[0].mxu0
      %432 = vmatprep.mubr.bf16.mxu0 0
      %433 = vmatmul.mubr.bf16.gmra.mrb[0].mxu0 %v278
      %v434 = vpop.f32.mrb[0].mxu0
      %v435 = vadd.f32 0.0, %v434
      %v436 = vpop.f32.mrb[0].mxu0
      %v437 = vpop.f32.mrb[0].mxu0
      %v438 = vadd.f32 0.0, %v437
      %v439 = vpop.f32.mrb[0].mxu0
      %440 = vmatprep.mubr.bf16.mxu0 0
      %441 = vmatmul.mubr.bf16.gmra.mrb[0].mxu0 %v279
      %v442 = vpop.f32.mrb[0].mxu0
      %v443 = vadd.f32 0.0, %v442
      %v444 = vpop.f32.mrb[0].mxu0
      %v445 = vpop.f32.mrb[0].mxu0
      %v446 = vadd.f32 0.0, %v445
      %v447 = vpop.f32.mrb[0].mxu0
      %448 = vmatprep.mubr.bf16.mxu0 0
      %449 = vmatmul.mubr.bf16.gmra.mrb[0].mxu0 %v280
      %v450 = vpop.f32.mrb[0].mxu0
      %v451 = vadd.f32 0.0, %v450
      %v452 = vpop.f32.mrb[0].mxu0
      %v453 = vpop.f32.mrb[0].mxu0
      %v454 = vadd.f32 0.0, %v453
      %v455 = vpop.f32.mrb[0].mxu0
      %456 = vmatprep.mubr.bf16.mxu0 0
      %457 = vmatmul.mubr.bf16.gmra.mrb[0].mxu0 %v281
      %v458 = vpop.f32.mrb[0].mxu0
      %v459 = vadd.f32 0.0, %v458
      %v460 = vpop.f32.mrb[0].mxu0
      %v461 = vpop.f32.mrb[0].mxu0
      %v462 = vadd.f32 0.0, %v461
      %v463 = vpop.f32.mrb[0].mxu0
      %464 = vmatprep.mubr.bf16.mxu0 0
      %465 = vmatmul.mubr.bf16.gmra.mrb[0].mxu0 %v282
      %v466 = vpop.f32.mrb[0].mxu0
      %v467 = vadd.f32 0.0, %v466
      %v468 = vpop.f32.mrb[0].mxu0
      %v469 = vpop.f32.mrb[0].mxu0
      %v470 = vadd.f32 0.0, %v469
      %v471 = vpop.f32.mrb[0].mxu0
      %472 = vmatprep.mubr.bf16.mxu0 0
      %473 = vmatmul.mubr.bf16.gmra.mrb[0].mxu0 %v283
      %v474 = vpop.f32.mrb[0].mxu0
      %v475 = vadd.f32 0.0, %v474
      %v476 = vpop.f32.mrb[0].mxu0
      %v477 = vpop.f32.mrb[0].mxu0
      %v478 = vadd.f32 0.0, %v477
      %v479 = vpop.f32.mrb[0].mxu0
      %480 = vmatprep.mubr.bf16.mxu0 0
      %481 = vmatmul.mubr.bf16.gmra.mrb[0].mxu0 %v284
      %v482 = vpop.f32.mrb[0].mxu0
      %v483 = vadd.f32 0.0, %v482
      %v484 = vpop.f32.mrb[0].mxu0
      %v485 = vpop.f32.mrb[0].mxu0
      %v486 = vadd.f32 0.0, %v485
      %v487 = vpop.f32.mrb[0].mxu0
      %488 = vmatprep.mubr.bf16.mxu0 0
      %489 = vmatmul.mubr.bf16.gmra.mrb[0].mxu0 %v285
      %v490 = vpop.f32.mrb[0].mxu0
      %v491 = vadd.f32 0.0, %v490
      %v492 = vpop.f32.mrb[0].mxu0
      %v493 = vpop.f32.mrb[0].mxu0
      %v494 = vadd.f32 0.0, %v493
      %v495 = vpop.f32.mrb[0].mxu0
      %496 = vmatprep.mubr.bf16.mxu0 0
      %497 = vmatmul.mubr.bf16.gmra.mrb[0].mxu0 %v286
      %v498 = vpop.f32.mrb[0].mxu0
      %v499 = vadd.f32 0.0, %v498
      %v500 = vpop.f32.mrb[0].mxu0
      %v501 = vpop.f32.mrb[0].mxu0
      %v502 = vadd.f32 0.0, %v501
      %v503 = vpop.f32.mrb[0].mxu0
      %504 = vmatprep.mubr.bf16.mxu0 0
      %505 = vmatmul.mubr.bf16.gmra.mrb[0].mxu0 %v287
      %v506 = vpop.f32.mrb[0].mxu0
      %v507 = vadd.f32 0.0, %v506
      %v508 = vpop.f32.mrb[0].mxu0
      %v509 = vpop.f32.mrb[0].mxu0
      %v510 = vadd.f32 0.0, %v509
      %v511 = vpop.f32.mrb[0].mxu0
      %512 = vdwg.mxu0
      %513 = vst [vmem:[%s233] sm:$0xff] %v387
      %514 = vst [vmem:[%s233 + $0x8] sm:$0xff] %v390
      %515 = vst [vmem:[%s233 + $0x10] sm:$0xff] %v395
      %516 = vst [vmem:[%s233 + $0x18] sm:$0xff] %v398
      %517 = vst [vmem:[%s233 + $0x20] sm:$0xff] %v403
      %518 = vst [vmem:[%s233 + $0x28] sm:$0xff] %v406
      %519 = vst [vmem:[%s233 + $0x30] sm:$0xff] %v411
      %520 = vst [vmem:[%s233 + $0x38] sm:$0xff] %v414
      %521 = vst [vmem:[%s233 + $0x40] sm:$0xff] %v419
      %522 = vst [vmem:[%s233 + $0x48] sm:$0xff] %v422
      %523 = vst [vmem:[%s233 + $0x50] sm:$0xff] %v427
      %524 = vst [vmem:[%s233 + $0x58] sm:$0xff] %v430
      %525 = vst [vmem:[%s233 + $0x60] sm:$0xff] %v435
      %526 = vst [vmem:[%s233 + $0x68] sm:$0xff] %v438
      %527 = vst [vmem:[%s233 + $0x70] sm:$0xff] %v443
      %528 = vst [vmem:[%s233 + $0x78] sm:$0xff] %v446
      %529 = vst [vmem:[%s233 + $0x80] sm:$0xff] %v451
      %530 = vst [vmem:[%s233 + $0x88] sm:$0xff] %v454
      %531 = vst [vmem:[%s233 + $0x90] sm:$0xff] %v459
      %532 = vst [vmem:[%s233 + $0x98] sm:$0xff] %v462
      %533 = vst [vmem:[%s233 + $0xa0] sm:$0xff] %v467
      %534 = vst [vmem:[%s233 + $0xa8] sm:$0xff] %v470
      %535 = vst [vmem:[%s233 + $0xb0] sm:$0xff] %v475
      %536 = vst [vmem:[%s233 + $0xb8] sm:$0xff] %v478
      %537 = vst [vmem:[%s233 + $0xc0] sm:$0xff] %v483
      %538 = vst [vmem:[%s233 + $0xc8] sm:$0xff] %v486
      %539 = vst [vmem:[%s233 + $0xd0] sm:$0xff] %v491
      %540 = vst [vmem:[%s233 + $0xd8] sm:$0xff] %v494
      %541 = vst [vmem:[%s233 + $0xe0] sm:$0xff] %v499
      %542 = vst [vmem:[%s233 + $0xe8] sm:$0xff] %v502
      %543 = vst [vmem:[%s233 + $0xf0] sm:$0xff] %v507
      %544 = vst [vmem:[%s233 + $0xf8] sm:$0xff] %v510
      %545 = vst [vmem:[%s238] sm:$0xff] 0.0
      %v546 = vadd.f32 %v387, %v390
      %v547 = vadd.f32 %v546, %v395
      %v548 = vadd.f32 %v547, %v398
      %v549 = vadd.f32 %v548, %v403
      %v550 = vadd.f32 %v549, %v406
      %v551 = vadd.f32 %v550, %v411
      %v552 = vadd.f32 %v551, %v414
      %v553 = vadd.f32 %v552, %v419
      %v554 = vadd.f32 %v553, %v422
      %v555 = vadd.f32 %v554, %v427
      %v556 = vadd.f32 %v555, %v430
      %v557 = vadd.f32 %v556, %v435
      %v558 = vadd.f32 %v557, %v438
      %v559 = vadd.f32 %v558, %v443
      %v560 = vadd.f32 %v559, %v446
      %v561 = vadd.f32 %v560, %v451
      %v562 = vadd.f32 %v561, %v454
      %v563 = vadd.f32 %v562, %v459
      %v564 = vadd.f32 %v563, %v462
      %v565 = vadd.f32 %v564, %v467
      %v566 = vadd.f32 %v565, %v470
      %v567 = vadd.f32 %v566, %v475
      %v568 = vadd.f32 %v567, %v478
      %v569 = vadd.f32 %v568, %v483
      %v570 = vadd.f32 %v569, %v486
      %v571 = vadd.f32 %v570, %v491
      %v572 = vadd.f32 %v571, %v494
      %v573 = vadd.f32 %v572, %v499
      %v574 = vadd.f32 %v573, %v502
      %v575 = vadd.f32 %v574, %v507
      %v576 = vadd.f32 %v575, %v510
      %v577 = vrot.slane %v576, 4
      %v578 = vadd.f32 %v576, %v577
      %v579 = vrot.slane %v578, 2
      %v580 = vadd.f32 %v578, %v579
      %v581 = vrot.slane %v580, 1
      %v582 = vadd.f32 %v580, %v581
      %583 = vst [vmem:[%s238] sm:$0x1] %v582
      %v584 = vmul.f32 %v387, %v387
      %v585 = vmul.f32 %v390, %v390
      %v586 = vmul.f32 %v395, %v395
      %v587 = vmul.f32 %v398, %v398
      %v588 = vmul.f32 %v403, %v403
      %v589 = vmul.f32 %v406, %v406
      %v590 = vmul.f32 %v411, %v411
      %v591 = vmul.f32 %v414, %v414
      %v592 = vmul.f32 %v419, %v419
      %v593 = vmul.f32 %v422, %v422
      %v594 = vmul.f32 %v427, %v427
      %v595 = vmul.f32 %v430, %v430
      %v596 = vmul.f32 %v435, %v435
      %v597 = vmul.f32 %v438, %v438
      %v598 = vmul.f32 %v443, %v443
      %v599 = vmul.f32 %v446, %v446
      %v600 = vmul.f32 %v451, %v451
      %v601 = vmul.f32 %v454, %v454
      %v602 = vmul.f32 %v459, %v459
      %v603 = vmul.f32 %v462, %v462
      %v604 = vmul.f32 %v467, %v467
      %v605 = vmul.f32 %v470, %v470
      %v606 = vmul.f32 %v475, %v475
      %v607 = vmul.f32 %v478, %v478
      %v608 = vmul.f32 %v483, %v483
      %v609 = vmul.f32 %v486, %v486
      %v610 = vmul.f32 %v491, %v491
      %v611 = vmul.f32 %v494, %v494
      %v612 = vmul.f32 %v499, %v499
      %v613 = vmul.f32 %v502, %v502
      %v614 = vmul.f32 %v507, %v507
      %v615 = vmul.f32 %v510, %v510
      %v616 = vadd.f32 %v584, %v585
      %v617 = vadd.f32 %v616, %v586
      %v618 = vadd.f32 %v617, %v587
      %v619 = vadd.f32 %v618, %v588
      %v620 = vadd.f32 %v619, %v589
      %v621 = vadd.f32 %v620, %v590
      %v622 = vadd.f32 %v621, %v591
      %v623 = vadd.f32 %v622, %v592
      %v624 = vadd.f32 %v623, %v593
      %v625 = vadd.f32 %v624, %v594
      %v626 = vadd.f32 %v625, %v595
      %v627 = vadd.f32 %v626, %v596
      %v628 = vadd.f32 %v627, %v597
      %v629 = vadd.f32 %v628, %v598
      %v630 = vadd.f32 %v629, %v599
      %v631 = vadd.f32 %v630, %v600
      %v632 = vadd.f32 %v631, %v601
      %v633 = vadd.f32 %v632, %v602
      %v634 = vadd.f32 %v633, %v603
      %v635 = vadd.f32 %v634, %v604
      %v636 = vadd.f32 %v635, %v605
      %v637 = vadd.f32 %v636, %v606
      %v638 = vadd.f32 %v637, %v607
      %v639 = vadd.f32 %v638, %v608
      %v640 = vadd.f32 %v639, %v609
      %v641 = vadd.f32 %v640, %v610
      %v642 = vadd.f32 %v641, %v611
      %v643 = vadd.f32 %v642, %v612
      %v644 = vadd.f32 %v643, %v613
      %v645 = vadd.f32 %v644, %v614
      %v646 = vadd.f32 %v645, %v615
      %v647 = vrot.slane %v646, 4
      %v648 = vadd.f32 %v646, %v647
      %v649 = vrot.slane %v648, 2
      %v650 = vadd.f32 %v648, %v649
      %v651 = vrot.slane %v650, 1
      %v652 = vadd.f32 %v650, %v651
      %653 = vst [vmem:[%s238 + $0x1] sm:$0x1] %v652
      %s654 = smul.u32 32, %s17
      %p655 = scmp.lt.s32.totalorder %s654, 63
      %s656 = scalar_select %p655, %s654, 63
      %s657 = smul.addr %s656, 8
      %s658 = scalar_lea.vmem %s4, %s657
      %p659 = scmp.lt.s32.totalorder %s17, 1
      %s660 = scalar_select %p659, %s17, 1
      %s661 = smul.addr %s660, 8
      %s662 = scalar_lea.vmem %s5, %s661
      // Predicated region
      $region37: #{bottleneck_forward.6} parent=35 // pred_check
        %p663 = pneg %p124
      $region38: #{bottleneck_forward.6} parent=35 // pred_check_branch
        %665 = sbr.rel (%p663) target = $region40
      $region39: #{bottleneck_forward.6} parent=35 // pred_region
        %s666 = smul.u32 32, %s17
      $region40: #{bottleneck_forward.6} parent=35 // pred_fallthru
        _
      // Predicated region
      $region41: #{bottleneck_forward.6} parent=35 // pred_check
        %p667 = pneg %p150
      $region42: #{bottleneck_forward.6} parent=35 // pred_check_branch
        %669 = sbr.rel (%p667) target = $region44
      $region43: #{bottleneck_forward.6} parent=35 // pred_region
        _
      $region44: #{bottleneck_forward.6} parent=35 // pred_fallthru
        _
    $region36: #{bottleneck_forward.6} parent=5 // pred_fallthru
      _
    %p670 = scmp.le.s32.totalorder 2, %s12
    // Predicated region
    $region45: #{bottleneck_forward.6} parent=5 // pred_check
      %p671 = pneg %p670
    $region46: #{bottleneck_forward.6} parent=5 // pred_check_branch
      %673 = sbr.rel (%p671) target = $region48
    $region47: #{bottleneck_forward.6} parent=5 // pred_region
      %s674 = ssub.s32 %s12, 2
      // Predicated region
      $region49: #{bottleneck_forward.6} parent=47 // pred_check
        %p675 = pneg %p130
      $region50: #{bottleneck_forward.6} parent=47 // pred_check_branch
        %677 = sbr.rel (%p675) target = $region52
      $region51: #{bottleneck_forward.6} parent=47 // pred_region
        %s678 = smul.u32 32, %s18
        %p679 = scmp.lt.s32.totalorder %s678, 63
        %s680 = scalar_select %p679, %s678, 63
        %s681 = smul.addr %s680, 8
        %s682 = scalar_lea.vmem %s4, %s681
      $region52: #{bottleneck_forward.6} parent=47 // pred_fallthru
        _
      // Predicated region
      $region53: #{bottleneck_forward.6} parent=47 // pred_check
        %p683 = pneg %p156
      $region54: #{bottleneck_forward.6} parent=47 // pred_check_branch
        %685 = sbr.rel (%p683) target = $region56
      $region55: #{bottleneck_forward.6} parent=47 // pred_region
        %p686 = scmp.lt.s32.totalorder %s18, 1
        %s687 = scalar_select %p686, %s18, 1
        %s688 = smul.addr %s687, 8
        %s689 = scalar_lea.vmem %s5, %s688
      $region56: #{bottleneck_forward.6} parent=47 // pred_fallthru
        _
    $region48: #{bottleneck_forward.6} parent=5 // pred_fallthru
      _
  $region6: #{bottleneck_forward.6} parent=0 // loop_footer
    %s16 = sadd.s32 1, %s12
  $region7: #{bottleneck_forward.6} parent=0 // loop_footer_branch
    %11 = sbr.rel target = $region3
  $region8: #{bottleneck_forward.6} parent=0 // loop_exit
    _

// kernel: bottleneck_forward.9
$region0: #{bottleneck_forward.9}
  #allocation0 [shape = 'u32[]', space=smem, size = 0x4, offset = 0x4, fixed_abs, tag = 'smem constant byte address 0x4 - core index']
  #allocation1 [shape = 'u32[144,128]{1,0:T(1,128)}', space=vmem, size = 0x12000, scoped, tag = 'internal scratch']
  %s0 = inlined_call_operand.vmem [shape: f32[512,128], index: 0, kind: input, shape index: {}]
  %s1 = inlined_call_operand.vmem [shape: f32[1,128], index: 1, kind: input, shape index: {}]
  %s2 = inlined_call_operand.vmem [shape: f32[1,128], index: 2, kind: input, shape index: {}]
  %s3 = inlined_call_operand.vmem [shape: bf16[128,128], index: 3, kind: input, shape index: {}]
  %s4 = inlined_call_operand.vmem [shape: f32[512,128], index: 4, kind: output, shape index: {0}]
  %s5 = inlined_call_operand.vmem [shape: f32[2,8,128], index: 5, kind: output, shape index: {1}]
  %6 = xla_tuple %s4, %s5
  %s7 = sld [smem:[#allocation0]]
  $region57: #{bottleneck_forward.9} parent=0
    _
  %s9 = ssub.s32 1, %s7
  %s10 = scalar_select 0, %s9, %s7
  loop: start=0, step=1, limit=4
  $region2: #{bottleneck_forward.9} parent=0 // loop_pre_header
    _
  $region3: #{bottleneck_forward.9} parent=0 // loop_header
    %s12 = sphi 0, %s16
    %p13 = scmp.ge.s32.totalorder %s12, 4
    %s22 = sphi 0, %s24
    %s25 = sphi 0, %s22
    %s26 = sphi 0, %s25
    %s42 = sphi 0, %s26
    %s46 = sphi 0, %s46
    %s48 = sphi 0, %s46
    %s49 = sphi 0, %s48
    %s63 = sphi 0, %s49
    %s67 = sphi 0, %s67
    %s69 = sphi 0, %s67
    %s70 = sphi 0, %s69
    %s84 = sphi 0, %s70
    %s88 = sphi 0, %s88
    %s90 = sphi 0, %s88
    %s91 = sphi 0, %s90
    %s105 = sphi 0, %s91
    %s111 = sphi 0, %s113
    %s114 = sphi 0, %s111
    %s115 = sphi 0, %s114
    %s131 = sphi 0, %s115
    %s137 = sphi 0, %s139
    %s140 = sphi 0, %s137
    %s141 = sphi 0, %s140
    %s157 = sphi 0, %s141
  $region4: #{bottleneck_forward.9} parent=0 // loop_header_branch
    %15 = sbr.rel (%p13) target = $region8
  $region5: #{bottleneck_forward.9} parent=0 // loop_body
    %s17 = ssub.s32 %s12, 1
    %s18 = ssub.s32 %s12, 2
    %s19 = sadd.s32 %s12, 1
    %s20 = ssub.s32 %s12, %s19
    %p21 = scmp.eq.s32.totalorder %s20, 0
    %s23 = sadd.s32 %s22, 1
    %s24 = scalar_select %p21, %s22, %s23
    %p27 = pneg %p21
    %p28 = scmp.eq.s32.totalorder %s12, 1
    %p29 = por %p27, %p28
    %p30 = scmp.ne.s32.totalorder %s22, %s25
    %p31 = scmp.eq.s32.totalorder %s12, 0
    %p32 = por %p30, %p31
    %p33 = scmp.ne.s32.totalorder %s22, %s25
    %p34 = scmp.eq.s32.totalorder %s17, 1
    %p35 = por %p33, %p34
    %p36 = scmp.ne.s32.totalorder %s25, %s26
    %p37 = scmp.eq.s32.totalorder %s17, 0
    %p38 = por %p36, %p37
    %p39 = scmp.ne.s32.totalorder %s25, %s26
    %p40 = scmp.eq.s32.totalorder %s18, 1
    %p41 = por %p39, %p40
    %p43 = scmp.ne.s32.totalorder %s26, %s42
    %p44 = scmp.eq.s32.totalorder %s18, 0
    %p45 = por %p43, %p44
    %s47 = sadd.s32 %s46, 1
    %p50 = scmp.eq.s32.totalorder %s12, 1
    %p51 = scmp.ne.s32.totalorder %s46, %s48
    %p52 = scmp.eq.s32.totalorder %s12, 0
    %p53 = por %p51, %p52
    %p54 = scmp.ne.s32.totalorder %s46, %s48
    %p55 = scmp.eq.s32.totalorder %s17, 1
    %p56 = por %p54, %p55
    %p57 = scmp.ne.s32.totalorder %s48, %s49
    %p58 = scmp.eq.s32.totalorder %s17, 0
    %p59 = por %p57, %p58
    %p60 = scmp.ne.s32.totalorder %s48, %s49
    %p61 = scmp.eq.s32.totalorder %s18, 1
    %p62 = por %p60, %p61
    %p64 = scmp.ne.s32.totalorder %s49, %s63
    %p65 = scmp.eq.s32.totalorder %s18, 0
    %p66 = por %p64, %p65
    %s68 = sadd.s32 %s67, 1
    %p71 = scmp.eq.s32.totalorder %s12, 1
    %p72 = scmp.ne.s32.totalorder %s67, %s69
    %p73 = scmp.eq.s32.totalorder %s12, 0
    %p74 = por %p72, %p73
    %p75 = scmp.ne.s32.totalorder %s67, %s69
    %p76 = scmp.eq.s32.totalorder %s17, 1
    %p77 = por %p75, %p76
    %p78 = scmp.ne.s32.totalorder %s69, %s70
    %p79 = scmp.eq.s32.totalorder %s17, 0
    %p80 = por %p78, %p79
    %p81 = scmp.ne.s32.totalorder %s69, %s70
    %p82 = scmp.eq.s32.totalorder %s18, 1
    %p83 = por %p81, %p82
    %p85 = scmp.ne.s32.totalorder %s70, %s84
    %p86 = scmp.eq.s32.totalorder %s18, 0
    %p87 = por %p85, %p86
    %s89 = sadd.s32 %s88, 1
    %p92 = scmp.eq.s32.totalorder %s12, 1
    %p93 = scmp.ne.s32.totalorder %s88, %s90
    %p94 = scmp.eq.s32.totalorder %s12, 0
    %p95 = por %p93, %p94
    %p96 = scmp.ne.s32.totalorder %s88, %s90
    %p97 = scmp.eq.s32.totalorder %s17, 1
    %p98 = por %p96, %p97
    %p99 = scmp.ne.s32.totalorder %s90, %s91
    %p100 = scmp.eq.s32.totalorder %s17, 0
    %p101 = por %p99, %p100
    %p102 = scmp.ne.s32.totalorder %s90, %s91
    %p103 = scmp.eq.s32.totalorder %s18, 1
    %p104 = por %p102, %p103
    %p106 = scmp.ne.s32.totalorder %s91, %s105
    %p107 = scmp.eq.s32.totalorder %s18, 0
    %p108 = por %p106, %p107
    %s109 = ssub.s32 %s12, %s19
    %p110 = scmp.eq.s32.totalorder %s109, 0
    %s112 = sadd.s32 %s111, 1
    %s113 = scalar_select %p110, %s111, %s112
    %p116 = pneg %p110
    %p117 = scmp.eq.s32.totalorder %s12, 1
    %p118 = por %p116, %p117
    %p119 = scmp.ne.s32.totalorder %s111, %s114
    %p120 = scmp.eq.s32.totalorder %s12, 0
    %p121 = por %p119, %p120
    %p122 = scmp.ne.s32.totalorder %s111, %s114
    %p123 = scmp.eq.s32.totalorder %s17, 1
    %p124 = por %p122, %p123
    %p125 = scmp.ne.s32.totalorder %s114, %s115
    %p126 = scmp.eq.s32.totalorder %s17, 0
    %p127 = por %p125, %p126
    %p128 = scmp.ne.s32.totalorder %s114, %s115
    %p129 = scmp.eq.s32.totalorder %s18, 1
    %p130 = por %p128, %p129
    %p132 = scmp.ne.s32.totalorder %s115, %s131
    %p133 = scmp.eq.s32.totalorder %s18, 0
    %p134 = por %p132, %p133
    %s135 = ssub.s32 %s12, %s19
    %p136 = scmp.eq.s32.totalorder %s135, 0
    %s138 = sadd.s32 %s137, 1
    %s139 = scalar_select %p136, %s137, %s138
    %p142 = pneg %p136
    %p143 = scmp.eq.s32.totalorder %s12, 1
    %p144 = por %p142, %p143
    %p145 = scmp.ne.s32.totalorder %s137, %s140
    %p146 = scmp.eq.s32.totalorder %s12, 0
    %p147 = por %p145, %p146
    %p148 = scmp.ne.s32.totalorder %s137, %s140
    %p149 = scmp.eq.s32.totalorder %s17, 1
    %p150 = por %p148, %p149
    %p151 = scmp.ne.s32.totalorder %s140, %s141
    %p152 = scmp.eq.s32.totalorder %s17, 0
    %p153 = por %p151, %p152
    %p154 = scmp.ne.s32.totalorder %s140, %s141
    %p155 = scmp.eq.s32.totalorder %s18, 1
    %p156 = por %p154, %p155
    %p158 = scmp.ne.s32.totalorder %s141, %s157
    %p159 = scmp.eq.s32.totalorder %s18, 0
    %p160 = por %p158, %p159
    %p161 = scmp.le.s32.totalorder 1, %s12
    %p162 = scmp.lt.s32.totalorder %s12, 3
    %p163 = pnand %p161, %p162
    %p164 = pneg %p163
    // Predicated region
    $region9: #{bottleneck_forward.9} parent=5 // pred_check
      _
    $region10: #{bottleneck_forward.9} parent=5 // pred_check_branch
      %166 = sbr.rel (%p163) target = $region12
    $region11: #{bottleneck_forward.9} parent=5 // pred_region
      %s167 = ssub.s32 %s12, 1
      // Predicated region
      $region13: #{bottleneck_forward.9} parent=11 // pred_check
        %p168 = pneg %p59
      $region14: #{bottleneck_forward.9} parent=11 // pred_check_branch
        %170 = sbr.rel (%p168) target = $region16
      $region15: #{bottleneck_forward.9} parent=11 // pred_region
        _
      $region16: #{bottleneck_forward.9} parent=11 // pred_fallthru
        _
      // Predicated region
      $region17: #{bottleneck_forward.9} parent=11 // pred_check
        %p171 = pneg %p80
      $region18: #{bottleneck_forward.9} parent=11 // pred_check_branch
        %173 = sbr.rel (%p171) target = $region20
      $region19: #{bottleneck_forward.9} parent=11 // pred_region
        _
      $region20: #{bottleneck_forward.9} parent=11 // pred_fallthru
        _
      // Predicated region
      $region21: #{bottleneck_forward.9} parent=11 // pred_check
        %p174 = pneg %p101
      $region22: #{bottleneck_forward.9} parent=11 // pred_check_branch
        %176 = sbr.rel (%p174) target = $region24
      $region23: #{bottleneck_forward.9} parent=11 // pred_region
        _
      $region24: #{bottleneck_forward.9} parent=11 // pred_fallthru
        _
    $region12: #{bottleneck_forward.9} parent=5 // pred_fallthru
      _
    %p177 = scmp.lt.s32.totalorder %s12, 2
    // Predicated region
    $region25: #{bottleneck_forward.9} parent=5 // pred_check
      %p178 = pneg %p177
    $region26: #{bottleneck_forward.9} parent=5 // pred_check_branch
      %180 = sbr.rel (%p178) target = $region28
    $region27: #{bottleneck_forward.9} parent=5 // pred_region
      // Predicated region
      $region29: #{bottleneck_forward.9} parent=27 // pred_check
        %p181 = pneg %p32
      $region30: #{bottleneck_forward.9} parent=27 // pred_check_branch
        %183 = sbr.rel (%p181) target = $region32
      $region31: #{bottleneck_forward.9} parent=27 // pred_region
        %s184 = smul.u32 32, %s12
        %p185 = scmp.lt.s32.totalorder %s184, 63
        %s186 = scalar_select %p185, %s184, 63
        %s187 = smul.addr %s186, 8
        %s188 = scalar_lea.vmem %s0, %s187
        %s189 = smul.u32 32, %s12
      $region32: #{bottleneck_forward.9} parent=27 // pred_fallthru
        _
    $region28: #{bottleneck_forward.9} parent=5 // pred_fallthru
      _
    %p190 = scmp.le.s32.totalorder 1, %s12
    %p191 = scmp.lt.s32.totalorder %s12, 3
    %p192 = pnand %p190, %p191
    %p193 = pneg %p192
    // Predicated region
    $region33: #{bottleneck_forward.9} parent=5 // pred_check
      _
    $region34: #{bottleneck_forward.9} parent=5 // pred_check_branch
      %195 = sbr.rel (%p192) target = $region36
    $region35: #{bottleneck_forward.9} parent=5 // pred_region
      %s196 = ssub.s32 %s12, 1
      %s197 = smul.u32 32, %s17
      %p198 = scmp.lt.s32.totalorder %s197, 63
      %s199 = scalar_select %p198, %s197, 63
      %s200 = smul.addr %s199, 8
      %s201 = scalar_lea.vmem %s0, %s200
      %p202 = pneg %p38
      %p203 = pneg %p35
      %p204 = pneg %p59
      %p205 = pneg %p56
      %p206 = pneg %p80
      %p207 = pneg %p77
      %p208 = pneg %p101
      %p209 = pneg %p98
      %p210 = pneg %p127
      %p211 = pneg %p124
      %s212 = smul.u32 32, %s17
      %p213 = scmp.lt.s32.totalorder %s212, 63
      %s214 = scalar_select %p213, %s212, 63
      %s215 = smul.addr %s214, 8
      %s216 = scalar_lea.vmem %s4, %s215
      %p217 = pneg %p153
      %p218 = pneg %p150
      %p219 = scmp.lt.s32.totalorder %s17, 1
      %s220 = scalar_select %p219, %s17, 1
      %s221 = smul.addr %s220, 8
      %s222 = scalar_lea.vmem %s5, %s221
      %s223 = smul.u32 32, %s17
      %p224 = scmp.lt.s32.totalorder %s223, 63
      %s225 = scalar_select %p224, %s223, 63
      %s226 = smul.addr %s225, 8
      %s227 = scalar_lea.vmem %s0, %s226
      %s228 = smul.u32 32, %s17
      %s229 = smul.u32 32, %s17
      %p230 = scmp.lt.s32.totalorder %s229, 63
      %s231 = scalar_select %p230, %s229, 63
      %s232 = smul.addr %s231, 8
      %s233 = scalar_lea.vmem %s4, %s232
      %s234 = smul.u32 32, %s17
      %p235 = scmp.lt.s32.totalorder %s17, 1
      %s236 = scalar_select %p235, %s17, 1
      %s237 = smul.addr %s236, 8
      %s238 = scalar_lea.vmem %s5, %s237
      %v240 = vld [vmem:[%s227] sm:$0xff]
      %v241 = vld [vmem:[%s227 + $0x8] sm:$0xff]
      %v242 = vld [vmem:[%s227 + $0x10] sm:$0xff]
      %v243 = vld [vmem:[%s227 + $0x18] sm:$0xff]
      %v244 = vld [vmem:[%s227 + $0x20] sm:$0xff]
      %v245 = vld [vmem:[%s227 + $0x28] sm:$0xff]
      %v246 = vld [vmem:[%s227 + $0x30] sm:$0xff]
      %v247 = vld [vmem:[%s227 + $0x38] sm:$0xff]
      %v248 = vld [vmem:[%s227 + $0x40] sm:$0xff]
      %v249 = vld [vmem:[%s227 + $0x48] sm:$0xff]
      %v250 = vld [vmem:[%s227 + $0x50] sm:$0xff]
      %v251 = vld [vmem:[%s227 + $0x58] sm:$0xff]
      %v252 = vld [vmem:[%s227 + $0x60] sm:$0xff]
      %v253 = vld [vmem:[%s227 + $0x68] sm:$0xff]
      %v254 = vld [vmem:[%s227 + $0x70] sm:$0xff]
      %v255 = vld [vmem:[%s227 + $0x78] sm:$0xff]
      %v256 = vld [vmem:[%s227 + $0x80] sm:$0xff]
      %v257 = vld [vmem:[%s227 + $0x88] sm:$0xff]
      %v258 = vld [vmem:[%s227 + $0x90] sm:$0xff]
      %v259 = vld [vmem:[%s227 + $0x98] sm:$0xff]
      %v260 = vld [vmem:[%s227 + $0xa0] sm:$0xff]
      %v261 = vld [vmem:[%s227 + $0xa8] sm:$0xff]
      %v262 = vld [vmem:[%s227 + $0xb0] sm:$0xff]
      %v263 = vld [vmem:[%s227 + $0xb8] sm:$0xff]
      %v264 = vld [vmem:[%s227 + $0xc0] sm:$0xff]
      %v265 = vld [vmem:[%s227 + $0xc8] sm:$0xff]
      %v266 = vld [vmem:[%s227 + $0xd0] sm:$0xff]
      %v267 = vld [vmem:[%s227 + $0xd8] sm:$0xff]
      %v268 = vld [vmem:[%s227 + $0xe0] sm:$0xff]
      %v269 = vld [vmem:[%s227 + $0xe8] sm:$0xff]
      %v270 = vld [vmem:[%s227 + $0xf0] sm:$0xff]
      %v271 = vld [vmem:[%s227 + $0xf8] sm:$0xff]
      %v272 = vld [vmem:[%s1] sm:$0x1]
      %v274 = vlaneseq
      %v275 = vshrl.u32 %v274, 7
      %v276 = vsub.s32 0, %v275
      %v277 = vrot.slane %v272, %v276
      %v279 = vmul.f32 %v240, %v277
      %v280 = vmul.f32 %v241, %v277
      %v281 = vmul.f32 %v242, %v277
      %v282 = vmul.f32 %v243, %v277
      %v283 = vmul.f32 %v244, %v277
      %v284 = vmul.f32 %v245, %v277
      %v285 = vmul.f32 %v246, %v277
      %v286 = vmul.f32 %v247, %v277
      %v287 = vmul.f32 %v248, %v277
      %v288 = vmul.f32 %v249, %v277
      %v289 = vmul.f32 %v250, %v277
      %v290 = vmul.f32 %v251, %v277
      %v291 = vmul.f32 %v252, %v277
      %v292 = vmul.f32 %v253, %v277
      %v293 = vmul.f32 %v254, %v277
      %v294 = vmul.f32 %v255, %v277
      %v295 = vmul.f32 %v256, %v277
      %v296 = vmul.f32 %v257, %v277
      %v297 = vmul.f32 %v258, %v277
      %v298 = vmul.f32 %v259, %v277
      %v299 = vmul.f32 %v260, %v277
      %v300 = vmul.f32 %v261, %v277
      %v301 = vmul.f32 %v262, %v277
      %v302 = vmul.f32 %v263, %v277
      %v303 = vmul.f32 %v264, %v277
      %v304 = vmul.f32 %v265, %v277
      %v305 = vmul.f32 %v266, %v277
      %v306 = vmul.f32 %v267, %v277
      %v307 = vmul.f32 %v268, %v277
      %v308 = vmul.f32 %v269, %v277
      %v309 = vmul.f32 %v270, %v277
      %v310 = vmul.f32 %v271, %v277
      %v311 = vld [vmem:[%s2] sm:$0x1]
      %v313 = vlaneseq
      %v314 = vshrl.u32 %v313, 7
      %v315 = vsub.s32 0, %v314
      %v316 = vrot.slane %v311, %v315
      %v318 = vadd.f32 %v279, %v316
      %v319 = vadd.f32 %v280, %v316
      %v320 = vadd.f32 %v281, %v316
      %v321 = vadd.f32 %v282, %v316
      %v322 = vadd.f32 %v283, %v316
      %v323 = vadd.f32 %v284, %v316
      %v324 = vadd.f32 %v285, %v316
      %v325 = vadd.f32 %v286, %v316
      %v326 = vadd.f32 %v287, %v316
      %v327 = vadd.f32 %v288, %v316
      %v328 = vadd.f32 %v289, %v316
      %v329 = vadd.f32 %v290, %v316
      %v330 = vadd.f32 %v291, %v316
      %v331 = vadd.f32 %v292, %v316
      %v332 = vadd.f32 %v293, %v316
      %v333 = vadd.f32 %v294, %v316
      %v334 = vadd.f32 %v295, %v316
      %v335 = vadd.f32 %v296, %v316
      %v336 = vadd.f32 %v297, %v316
      %v337 = vadd.f32 %v298, %v316
      %v338 = vadd.f32 %v299, %v316
      %v339 = vadd.f32 %v300, %v316
      %v340 = vadd.f32 %v301, %v316
      %v341 = vadd.f32 %v302, %v316
      %v342 = vadd.f32 %v303, %v316
      %v343 = vadd.f32 %v304, %v316
      %v344 = vadd.f32 %v305, %v316
      %v345 = vadd.f32 %v306, %v316
      %v346 = vadd.f32 %v307, %v316
      %v347 = vadd.f32 %v308, %v316
      %v348 = vadd.f32 %v309, %v316
      %v349 = vadd.f32 %v310, %v316
      %v350 = vmax.f32 %v318, 0.0
      %v351 = vmax.f32 %v319, 0.0
      %v352 = vmax.f32 %v320, 0.0
      %v353 = vmax.f32 %v321, 0.0
      %v354 = vmax.f32 %v322, 0.0
      %v355 = vmax.f32 %v323, 0.0
      %v356 = vmax.f32 %v324, 0.0
      %v357 = vmax.f32 %v325, 0.0
      %v358 = vmax.f32 %v326, 0.0
      %v359 = vmax.f32 %v327, 0.0
      %v360 = vmax.f32 %v328, 0.0
      %v361 = vmax.f32 %v329, 0.0
      %v362 = vmax.f32 %v330, 0.0
      %v363 = vmax.f32 %v331, 0.0
      %v364 = vmax.f32 %v332, 0.0
      %v365 = vmax.f32 %v333, 0.0
      %v366 = vmax.f32 %v334, 0.0
      %v367 = vmax.f32 %v335, 0.0
      %v368 = vmax.f32 %v336, 0.0
      %v369 = vmax.f32 %v337, 0.0
      %v370 = vmax.f32 %v338, 0.0
      %v371 = vmax.f32 %v339, 0.0
      %v372 = vmax.f32 %v340, 0.0
      %v373 = vmax.f32 %v341, 0.0
      %v374 = vmax.f32 %v342, 0.0
      %v375 = vmax.f32 %v343, 0.0
      %v376 = vmax.f32 %v344, 0.0
      %v377 = vmax.f32 %v345, 0.0
      %v378 = vmax.f32 %v346, 0.0
      %v379 = vmax.f32 %v347, 0.0
      %v380 = vmax.f32 %v348, 0.0
      %v381 = vmax.f32 %v349, 0.0
      %v382 = vpack.c.bf16 %v351, %v350
      %v383 = vpack.c.bf16 %v353, %v352
      %v384 = vpack.c.bf16 %v355, %v354
      %v385 = vpack.c.bf16 %v357, %v356
      %v386 = vpack.c.bf16 %v359, %v358
      %v387 = vpack.c.bf16 %v361, %v360
      %v388 = vpack.c.bf16 %v363, %v362
      %v389 = vpack.c.bf16 %v365, %v364
      %v390 = vpack.c.bf16 %v367, %v366
      %v391 = vpack.c.bf16 %v369, %v368
      %v392 = vpack.c.bf16 %v371, %v370
      %v393 = vpack.c.bf16 %v373, %v372
      %v394 = vpack.c.bf16 %v375, %v374
      %v395 = vpack.c.bf16 %v377, %v376
      %v396 = vpack.c.bf16 %v379, %v378
      %v397 = vpack.c.bf16 %v381, %v380
      %v398 = vld [vmem:[%s3] sm:$0xf]
      %v399 = vld [vmem:[%s3 + $0x4] sm:$0xf]
      %v400 = vld [vmem:[%s3 + $0x8] sm:$0xf]
      %v401 = vld [vmem:[%s3 + $0xc] sm:$0xf]
      %v402 = vld [vmem:[%s3 + $0x10] sm:$0xf]
      %v403 = vld [vmem:[%s3 + $0x14] sm:$0xf]
      %v404 = vld [vmem:[%s3 + $0x18] sm:$0xf]
      %v405 = vld [vmem:[%s3 + $0x1c] sm:$0xf]
      %v406 = vld [vmem:[%s3 + $0x20] sm:$0xf]
      %v407 = vld [vmem:[%s3 + $0x24] sm:$0xf]
      %v408 = vld [vmem:[%s3 + $0x28] sm:$0xf]
      %v409 = vld [vmem:[%s3 + $0x2c] sm:$0xf]
      %v410 = vld [vmem:[%s3 + $0x30] sm:$0xf]
      %v411 = vld [vmem:[%s3 + $0x34] sm:$0xf]
      %v412 = vld [vmem:[%s3 + $0x38] sm:$0xf]
      %v413 = vld [vmem:[%s3 + $0x3c] sm:$0xf]
      %v430 = vunpack.c.l.b16 %v398
      %v431 = vunpack.c.l.b16 %v399
      %v432 = vunpack.c.l.b16 %v400
      %v433 = vunpack.c.l.b16 %v401
      %v434 = vunpack.c.l.b16 %v402
      %v435 = vunpack.c.l.b16 %v403
      %v436 = vunpack.c.l.b16 %v404
      %v437 = vunpack.c.l.b16 %v405
      %v438 = vunpack.c.l.b16 %v406
      %v439 = vunpack.c.l.b16 %v407
      %v440 = vunpack.c.l.b16 %v408
      %v441 = vunpack.c.l.b16 %v409
      %v442 = vunpack.c.l.b16 %v410
      %v443 = vunpack.c.l.b16 %v411
      %v444 = vunpack.c.l.b16 %v412
      %v445 = vunpack.c.l.b16 %v413
      %v446 = vpack.c.b16 %v431, %v430
      %v447 = vpack.c.b16 %v433, %v432
      %v448 = vpack.c.b16 %v435, %v434
      %v449 = vpack.c.b16 %v437, %v436
      %v450 = vpack.c.b16 %v439, %v438
      %v451 = vpack.c.b16 %v441, %v440
      %v452 = vpack.c.b16 %v443, %v442
      %v453 = vpack.c.b16 %v445, %v444
      %462 = vmatprep.subr.bf16.mxu0 0
      %463 = vmatpush1.bf16.msra.mxu0 %v446
      %464 = vmatprep.subr.bf16.mxu0 0
      %465 = vmatpush1.bf16.msra.mxu0 %v447
      %466 = vmatprep.subr.bf16.mxu0 0
      %467 = vmatpush1.bf16.msra.mxu0 %v448
      %468 = vmatprep.subr.bf16.mxu0 0
      %469 = vmatpush1.bf16.msra.mxu0 %v449
      %470 = vmatprep.subr.bf16.mxu0 0
      %471 = vmatpush1.bf16.msra.mxu0 %v450
      %472 = vmatprep.subr.bf16.mxu0 0
      %473 = vmatpush1.bf16.msra.mxu0 %v451
      %474 = vmatprep.subr.bf16.mxu0 0
      %475 = vmatpush1.bf16.msra.mxu0 %v452
      %476 = vmatprep.subr.bf16.mxu0 0
      %477 = vmatpush1.bf16.msra.mxu0 %v453
      %478 = vmatprep.subr.bf16.mxu0 0
      %479 = vmatpush1.bf16.msra.mxu0 0
      %480 = vmatprep.subr.bf16.mxu0 0
      %481 = vmatpush1.bf16.msra.mxu0 0
      %482 = vmatprep.subr.bf16.mxu0 0
      %483 = vmatpush1.bf16.msra.mxu0 0
      %484 = vmatprep.subr.bf16.mxu0 0
      %485 = vmatpush1.bf16.msra.mxu0 0
      %486 = vmatprep.subr.bf16.mxu0 0
      %487 = vmatpush1.bf16.msra.mxu0 0
      %488 = vmatprep.subr.bf16.mxu0 0
      %489 = vmatpush1.bf16.msra.mxu0 0
      %490 = vmatprep.subr.bf16.mxu0 0
      %491 = vmatpush1.bf16.msra.mxu0 0
      %492 = vmatprep.subr.bf16.mxu0 0
      %493 = vmatpush1.bf16.msra.mxu0 0
      %494 = vmatprep.mubr.bf16.mxu0 0
      %495 = vmatmul.mubr.bf16.gmra.mrb[0].mxu0 %v382
      %v496 = vpop.f32.mrb[0].mxu0
      %v497 = vadd.f32 0.0, %v496
      %v498 = vpop.f32.mrb[0].mxu0
      %v499 = vpop.f32.mrb[0].mxu0
      %v500 = vadd.f32 0.0, %v499
      %v501 = vpop.f32.mrb[0].mxu0
      %502 = vmatprep.mubr.bf16.mxu0 0
      %503 = vmatmul.mubr.bf16.gmra.mrb[0].mxu0 %v383
      %v504 = vpop.f32.mrb[0].mxu0
      %v505 = vadd.f32 0.0, %v504
      %v506 = vpop.f32.mrb[0].mxu0
      %v507 = vpop.f32.mrb[0].mxu0
      %v508 = vadd.f32 0.0, %v507
      %v509 = vpop.f32.mrb[0].mxu0
      %510 = vmatprep.mubr.bf16.mxu0 0
      %511 = vmatmul.mubr.bf16.gmra.mrb[0].mxu0 %v384
      %v512 = vpop.f32.mrb[0].mxu0
      %v513 = vadd.f32 0.0, %v512
      %v514 = vpop.f32.mrb[0].mxu0
      %v515 = vpop.f32.mrb[0].mxu0
      %v516 = vadd.f32 0.0, %v515
      %v517 = vpop.f32.mrb[0].mxu0
      %518 = vmatprep.mubr.bf16.mxu0 0
      %519 = vmatmul.mubr.bf16.gmra.mrb[0].mxu0 %v385
      %v520 = vpop.f32.mrb[0].mxu0
      %v521 = vadd.f32 0.0, %v520
      %v522 = vpop.f32.mrb[0].mxu0
      %v523 = vpop.f32.mrb[0].mxu0
      %v524 = vadd.f32 0.0, %v523
      %v525 = vpop.f32.mrb[0].mxu0
      %526 = vmatprep.mubr.bf16.mxu0 0
      %527 = vmatmul.mubr.bf16.gmra.mrb[0].mxu0 %v386
      %v528 = vpop.f32.mrb[0].mxu0
      %v529 = vadd.f32 0.0, %v528
      %v530 = vpop.f32.mrb[0].mxu0
      %v531 = vpop.f32.mrb[0].mxu0
      %v532 = vadd.f32 0.0, %v531
      %v533 = vpop.f32.mrb[0].mxu0
      %534 = vmatprep.mubr.bf16.mxu0 0
      %535 = vmatmul.mubr.bf16.gmra.mrb[0].mxu0 %v387
      %v536 = vpop.f32.mrb[0].mxu0
      %v537 = vadd.f32 0.0, %v536
      %v538 = vpop.f32.mrb[0].mxu0
      %v539 = vpop.f32.mrb[0].mxu0
      %v540 = vadd.f32 0.0, %v539
      %v541 = vpop.f32.mrb[0].mxu0
      %542 = vmatprep.mubr.bf16.mxu0 0
      %543 = vmatmul.mubr.bf16.gmra.mrb[0].mxu0 %v388
      %v544 = vpop.f32.mrb[0].mxu0
      %v545 = vadd.f32 0.0, %v544
      %v546 = vpop.f32.mrb[0].mxu0
      %v547 = vpop.f32.mrb[0].mxu0
      %v548 = vadd.f32 0.0, %v547
      %v549 = vpop.f32.mrb[0].mxu0
      %550 = vmatprep.mubr.bf16.mxu0 0
      %551 = vmatmul.mubr.bf16.gmra.mrb[0].mxu0 %v389
      %v552 = vpop.f32.mrb[0].mxu0
      %v553 = vadd.f32 0.0, %v552
      %v554 = vpop.f32.mrb[0].mxu0
      %v555 = vpop.f32.mrb[0].mxu0
      %v556 = vadd.f32 0.0, %v555
      %v557 = vpop.f32.mrb[0].mxu0
      %558 = vmatprep.mubr.bf16.mxu0 0
      %559 = vmatmul.mubr.bf16.gmra.mrb[0].mxu0 %v390
      %v560 = vpop.f32.mrb[0].mxu0
      %v561 = vadd.f32 0.0, %v560
      %v562 = vpop.f32.mrb[0].mxu0
      %v563 = vpop.f32.mrb[0].mxu0
      %v564 = vadd.f32 0.0, %v563
      %v565 = vpop.f32.mrb[0].mxu0
      %566 = vmatprep.mubr.bf16.mxu0 0
      %567 = vmatmul.mubr.bf16.gmra.mrb[0].mxu0 %v391
      %v568 = vpop.f32.mrb[0].mxu0
      %v569 = vadd.f32 0.0, %v568
      %v570 = vpop.f32.mrb[0].mxu0
      %v571 = vpop.f32.mrb[0].mxu0
      %v572 = vadd.f32 0.0, %v571
      %v573 = vpop.f32.mrb[0].mxu0
      %574 = vmatprep.mubr.bf16.mxu0 0
      %575 = vmatmul.mubr.bf16.gmra.mrb[0].mxu0 %v392
      %v576 = vpop.f32.mrb[0].mxu0
      %v577 = vadd.f32 0.0, %v576
      %v578 = vpop.f32.mrb[0].mxu0
      %v579 = vpop.f32.mrb[0].mxu0
      %v580 = vadd.f32 0.0, %v579
      %v581 = vpop.f32.mrb[0].mxu0
      %582 = vmatprep.mubr.bf16.mxu0 0
      %583 = vmatmul.mubr.bf16.gmra.mrb[0].mxu0 %v393
      %v584 = vpop.f32.mrb[0].mxu0
      %v585 = vadd.f32 0.0, %v584
      %v586 = vpop.f32.mrb[0].mxu0
      %v587 = vpop.f32.mrb[0].mxu0
      %v588 = vadd.f32 0.0, %v587
      %v589 = vpop.f32.mrb[0].mxu0
      %590 = vmatprep.mubr.bf16.mxu0 0
      %591 = vmatmul.mubr.bf16.gmra.mrb[0].mxu0 %v394
      %v592 = vpop.f32.mrb[0].mxu0
      %v593 = vadd.f32 0.0, %v592
      %v594 = vpop.f32.mrb[0].mxu0
      %v595 = vpop.f32.mrb[0].mxu0
      %v596 = vadd.f32 0.0, %v595
      %v597 = vpop.f32.mrb[0].mxu0
      %598 = vmatprep.mubr.bf16.mxu0 0
      %599 = vmatmul.mubr.bf16.gmra.mrb[0].mxu0 %v395
      %v600 = vpop.f32.mrb[0].mxu0
      %v601 = vadd.f32 0.0, %v600
      %v602 = vpop.f32.mrb[0].mxu0
      %v603 = vpop.f32.mrb[0].mxu0
      %v604 = vadd.f32 0.0, %v603
      %v605 = vpop.f32.mrb[0].mxu0
      %606 = vmatprep.mubr.bf16.mxu0 0
      %607 = vmatmul.mubr.bf16.gmra.mrb[0].mxu0 %v396
      %v608 = vpop.f32.mrb[0].mxu0
      %v609 = vadd.f32 0.0, %v608
      %v610 = vpop.f32.mrb[0].mxu0
      %v611 = vpop.f32.mrb[0].mxu0
      %v612 = vadd.f32 0.0, %v611
      %v613 = vpop.f32.mrb[0].mxu0
      %614 = vmatprep.mubr.bf16.mxu0 0
      %615 = vmatmul.mubr.bf16.gmra.mrb[0].mxu0 %v397
      %v616 = vpop.f32.mrb[0].mxu0
      %v617 = vadd.f32 0.0, %v616
      %v618 = vpop.f32.mrb[0].mxu0
      %v619 = vpop.f32.mrb[0].mxu0
      %v620 = vadd.f32 0.0, %v619
      %v621 = vpop.f32.mrb[0].mxu0
      %622 = vdwg.mxu0
      %623 = vst [vmem:[%s233] sm:$0xff] %v497
      %624 = vst [vmem:[%s233 + $0x8] sm:$0xff] %v500
      %625 = vst [vmem:[%s233 + $0x10] sm:$0xff] %v505
      %626 = vst [vmem:[%s233 + $0x18] sm:$0xff] %v508
      %627 = vst [vmem:[%s233 + $0x20] sm:$0xff] %v513
      %628 = vst [vmem:[%s233 + $0x28] sm:$0xff] %v516
      %629 = vst [vmem:[%s233 + $0x30] sm:$0xff] %v521
      %630 = vst [vmem:[%s233 + $0x38] sm:$0xff] %v524
      %631 = vst [vmem:[%s233 + $0x40] sm:$0xff] %v529
      %632 = vst [vmem:[%s233 + $0x48] sm:$0xff] %v532
      %633 = vst [vmem:[%s233 + $0x50] sm:$0xff] %v537
      %634 = vst [vmem:[%s233 + $0x58] sm:$0xff] %v540
      %635 = vst [vmem:[%s233 + $0x60] sm:$0xff] %v545
      %636 = vst [vmem:[%s233 + $0x68] sm:$0xff] %v548
      %637 = vst [vmem:[%s233 + $0x70] sm:$0xff] %v553
      %638 = vst [vmem:[%s233 + $0x78] sm:$0xff] %v556
      %639 = vst [vmem:[%s233 + $0x80] sm:$0xff] %v561
      %640 = vst [vmem:[%s233 + $0x88] sm:$0xff] %v564
      %641 = vst [vmem:[%s233 + $0x90] sm:$0xff] %v569
      %642 = vst [vmem:[%s233 + $0x98] sm:$0xff] %v572
      %643 = vst [vmem:[%s233 + $0xa0] sm:$0xff] %v577
      %644 = vst [vmem:[%s233 + $0xa8] sm:$0xff] %v580
      %645 = vst [vmem:[%s233 + $0xb0] sm:$0xff] %v585
      %646 = vst [vmem:[%s233 + $0xb8] sm:$0xff] %v588
      %647 = vst [vmem:[%s233 + $0xc0] sm:$0xff] %v593
      %648 = vst [vmem:[%s233 + $0xc8] sm:$0xff] %v596
      %649 = vst [vmem:[%s233 + $0xd0] sm:$0xff] %v601
      %650 = vst [vmem:[%s233 + $0xd8] sm:$0xff] %v604
      %651 = vst [vmem:[%s233 + $0xe0] sm:$0xff] %v609
      %652 = vst [vmem:[%s233 + $0xe8] sm:$0xff] %v612
      %653 = vst [vmem:[%s233 + $0xf0] sm:$0xff] %v617
      %654 = vst [vmem:[%s233 + $0xf8] sm:$0xff] %v620
      %655 = vst [vmem:[%s238] sm:$0xff] 0.0
      %v656 = vadd.f32 %v497, %v500
      %v657 = vadd.f32 %v656, %v505
      %v658 = vadd.f32 %v657, %v508
      %v659 = vadd.f32 %v658, %v513
      %v660 = vadd.f32 %v659, %v516
      %v661 = vadd.f32 %v660, %v521
      %v662 = vadd.f32 %v661, %v524
      %v663 = vadd.f32 %v662, %v529
      %v664 = vadd.f32 %v663, %v532
      %v665 = vadd.f32 %v664, %v537
      %v666 = vadd.f32 %v665, %v540
      %v667 = vadd.f32 %v666, %v545
      %v668 = vadd.f32 %v667, %v548
      %v669 = vadd.f32 %v668, %v553
      %v670 = vadd.f32 %v669, %v556
      %v671 = vadd.f32 %v670, %v561
      %v672 = vadd.f32 %v671, %v564
      %v673 = vadd.f32 %v672, %v569
      %v674 = vadd.f32 %v673, %v572
      %v675 = vadd.f32 %v674, %v577
      %v676 = vadd.f32 %v675, %v580
      %v677 = vadd.f32 %v676, %v585
      %v678 = vadd.f32 %v677, %v588
      %v679 = vadd.f32 %v678, %v593
      %v680 = vadd.f32 %v679, %v596
      %v681 = vadd.f32 %v680, %v601
      %v682 = vadd.f32 %v681, %v604
      %v683 = vadd.f32 %v682, %v609
      %v684 = vadd.f32 %v683, %v612
      %v685 = vadd.f32 %v684, %v617
      %v686 = vadd.f32 %v685, %v620
      %v687 = vrot.slane %v686, 4
      %v688 = vadd.f32 %v686, %v687
      %v689 = vrot.slane %v688, 2
      %v690 = vadd.f32 %v688, %v689
      %v691 = vrot.slane %v690, 1
      %v692 = vadd.f32 %v690, %v691
      %693 = vst [vmem:[%s238] sm:$0x1] %v692
      %v694 = vmul.f32 %v497, %v497
      %v695 = vmul.f32 %v500, %v500
      %v696 = vmul.f32 %v505, %v505
      %v697 = vmul.f32 %v508, %v508
      %v698 = vmul.f32 %v513, %v513
      %v699 = vmul.f32 %v516, %v516
      %v700 = vmul.f32 %v521, %v521
      %v701 = vmul.f32 %v524, %v524
      %v702 = vmul.f32 %v529, %v529
      %v703 = vmul.f32 %v532, %v532
      %v704 = vmul.f32 %v537, %v537
      %v705 = vmul.f32 %v540, %v540
      %v706 = vmul.f32 %v545, %v545
      %v707 = vmul.f32 %v548, %v548
      %v708 = vmul.f32 %v553, %v553
      %v709 = vmul.f32 %v556, %v556
      %v710 = vmul.f32 %v561, %v561
      %v711 = vmul.f32 %v564, %v564
      %v712 = vmul.f32 %v569, %v569
      %v713 = vmul.f32 %v572, %v572
      %v714 = vmul.f32 %v577, %v577
      %v715 = vmul.f32 %v580, %v580
      %v716 = vmul.f32 %v585, %v585
      %v717 = vmul.f32 %v588, %v588
      %v718 = vmul.f32 %v593, %v593
      %v719 = vmul.f32 %v596, %v596
      %v720 = vmul.f32 %v601, %v601
      %v721 = vmul.f32 %v604, %v604
      %v722 = vmul.f32 %v609, %v609
      %v723 = vmul.f32 %v612, %v612
      %v724 = vmul.f32 %v617, %v617
      %v725 = vmul.f32 %v620, %v620
      %v726 = vadd.f32 %v694, %v695
      %v727 = vadd.f32 %v726, %v696
      %v728 = vadd.f32 %v727, %v697
      %v729 = vadd.f32 %v728, %v698
      %v730 = vadd.f32 %v729, %v699
      %v731 = vadd.f32 %v730, %v700
      %v732 = vadd.f32 %v731, %v701
      %v733 = vadd.f32 %v732, %v702
      %v734 = vadd.f32 %v733, %v703
      %v735 = vadd.f32 %v734, %v704
      %v736 = vadd.f32 %v735, %v705
      %v737 = vadd.f32 %v736, %v706
      %v738 = vadd.f32 %v737, %v707
      %v739 = vadd.f32 %v738, %v708
      %v740 = vadd.f32 %v739, %v709
      %v741 = vadd.f32 %v740, %v710
      %v742 = vadd.f32 %v741, %v711
      %v743 = vadd.f32 %v742, %v712
      %v744 = vadd.f32 %v743, %v713
      %v745 = vadd.f32 %v744, %v714
      %v746 = vadd.f32 %v745, %v715
      %v747 = vadd.f32 %v746, %v716
      %v748 = vadd.f32 %v747, %v717
      %v749 = vadd.f32 %v748, %v718
      %v750 = vadd.f32 %v749, %v719
      %v751 = vadd.f32 %v750, %v720
      %v752 = vadd.f32 %v751, %v721
      %v753 = vadd.f32 %v752, %v722
      %v754 = vadd.f32 %v753, %v723
      %v755 = vadd.f32 %v754, %v724
      %v756 = vadd.f32 %v755, %v725
      %v757 = vrot.slane %v756, 4
      %v758 = vadd.f32 %v756, %v757
      %v759 = vrot.slane %v758, 2
      %v760 = vadd.f32 %v758, %v759
      %v761 = vrot.slane %v760, 1
      %v762 = vadd.f32 %v760, %v761
      %763 = vst [vmem:[%s238 + $0x1] sm:$0x1] %v762
      %s764 = smul.u32 32, %s17
      %p765 = scmp.lt.s32.totalorder %s764, 63
      %s766 = scalar_select %p765, %s764, 63
      %s767 = smul.addr %s766, 8
      %s768 = scalar_lea.vmem %s4, %s767
      %p769 = scmp.lt.s32.totalorder %s17, 1
      %s770 = scalar_select %p769, %s17, 1
      %s771 = smul.addr %s770, 8
      %s772 = scalar_lea.vmem %s5, %s771
      // Predicated region
      $region37: #{bottleneck_forward.9} parent=35 // pred_check
        %p773 = pneg %p124
      $region38: #{bottleneck_forward.9} parent=35 // pred_check_branch
        %775 = sbr.rel (%p773) target = $region40
      $region39: #{bottleneck_forward.9} parent=35 // pred_region
        %s776 = smul.u32 32, %s17
      $region40: #{bottleneck_forward.9} parent=35 // pred_fallthru
        _
      // Predicated region
      $region41: #{bottleneck_forward.9} parent=35 // pred_check
        %p777 = pneg %p150
      $region42: #{bottleneck_forward.9} parent=35 // pred_check_branch
        %779 = sbr.rel (%p777) target = $region44
      $region43: #{bottleneck_forward.9} parent=35 // pred_region
        _
      $region44: #{bottleneck_forward.9} parent=35 // pred_fallthru
        _
    $region36: #{bottleneck_forward.9} parent=5 // pred_fallthru
      _
    %p780 = scmp.le.s32.totalorder 2, %s12
    // Predicated region
    $region45: #{bottleneck_forward.9} parent=5 // pred_check
      %p781 = pneg %p780
    $region46: #{bottleneck_forward.9} parent=5 // pred_check_branch
      %783 = sbr.rel (%p781) target = $region48
    $region47: #{bottleneck_forward.9} parent=5 // pred_region
      %s784 = ssub.s32 %s12, 2
      // Predicated region
      $region49: #{bottleneck_forward.9} parent=47 // pred_check
        %p785 = pneg %p130
      $region50: #{bottleneck_forward.9} parent=47 // pred_check_branch
        %787 = sbr.rel (%p785) target = $region52
      $region51: #{bottleneck_forward.9} parent=47 // pred_region
        %s788 = smul.u32 32, %s18
        %p789 = scmp.lt.s32.totalorder %s788, 63
        %s790 = scalar_select %p789, %s788, 63
        %s791 = smul.addr %s790, 8
        %s792 = scalar_lea.vmem %s4, %s791
      $region52: #{bottleneck_forward.9} parent=47 // pred_fallthru
        _
      // Predicated region
      $region53: #{bottleneck_forward.9} parent=47 // pred_check
        %p793 = pneg %p156
      $region54: #{bottleneck_forward.9} parent=47 // pred_check_branch
        %795 = sbr.rel (%p793) target = $region56
      $region55: #{bottleneck_forward.9} parent=47 // pred_region
        %p796 = scmp.lt.s32.totalorder %s18, 1
        %s797 = scalar_select %p796, %s18, 1
        %s798 = smul.addr %s797, 8
        %s799 = scalar_lea.vmem %s5, %s798
      $region56: #{bottleneck_forward.9} parent=47 // pred_fallthru
        _
    $region48: #{bottleneck_forward.9} parent=5 // pred_fallthru
      _
  $region6: #{bottleneck_forward.9} parent=0 // loop_footer
    %s16 = sadd.s32 1, %s12
  $region7: #{bottleneck_forward.9} parent=0 // loop_footer_branch
    %11 = sbr.rel target = $region3
  $region8: #{bottleneck_forward.9} parent=0 // loop_exit
    _

// kernel: bottleneck_forward.11
$region0: #{bottleneck_forward.11}
  #allocation0 [shape = 'u32[]', space=smem, size = 0x4, offset = 0x4, fixed_abs, tag = 'smem constant byte address 0x4 - core index']
  #allocation1 [shape = 'u32[144,128]{1,0:T(1,128)}', space=vmem, size = 0x12000, scoped, tag = 'internal scratch']
  %s0 = inlined_call_operand.vmem [shape: f32[512,128], index: 0, kind: input, shape index: {}]
  %s1 = inlined_call_operand.vmem [shape: f32[512,128], index: 1, kind: input, shape index: {}]
  %s2 = inlined_call_operand.vmem [shape: f32[1,128], index: 2, kind: input, shape index: {}]
  %s3 = inlined_call_operand.vmem [shape: f32[1,128], index: 3, kind: input, shape index: {}]
  %s4 = inlined_call_operand.vmem [shape: f32[1,128], index: 4, kind: input, shape index: {}]
  %s5 = inlined_call_operand.vmem [shape: f32[1,128], index: 5, kind: input, shape index: {}]
  %s6 = inlined_call_operand.vmem [shape: f32[512,128], index: 6, kind: output, shape index: {}]
  %s7 = sld [smem:[#allocation0]]
  $region57: #{bottleneck_forward.11} parent=0
    _
  %s9 = ssub.s32 1, %s7
  %s10 = scalar_select 0, %s9, %s7
  loop: start=0, step=1, limit=4
  $region2: #{bottleneck_forward.11} parent=0 // loop_pre_header
    _
  $region3: #{bottleneck_forward.11} parent=0 // loop_header
    %s12 = sphi 0, %s16
    %p13 = scmp.ge.s32.totalorder %s12, 4
    %s22 = sphi 0, %s24
    %s25 = sphi 0, %s22
    %s26 = sphi 0, %s25
    %s42 = sphi 0, %s26
    %s48 = sphi 0, %s50
    %s51 = sphi 0, %s48
    %s52 = sphi 0, %s51
    %s68 = sphi 0, %s52
    %s72 = sphi 0, %s72
    %s74 = sphi 0, %s72
    %s75 = sphi 0, %s74
    %s89 = sphi 0, %s75
    %s93 = sphi 0, %s93
    %s95 = sphi 0, %s93
    %s96 = sphi 0, %s95
    %s110 = sphi 0, %s96
    %s114 = sphi 0, %s114
    %s116 = sphi 0, %s114
    %s117 = sphi 0, %s116
    %s131 = sphi 0, %s117
    %s135 = sphi 0, %s135
    %s137 = sphi 0, %s135
    %s138 = sphi 0, %s137
    %s152 = sphi 0, %s138
    %s158 = sphi 0, %s160
    %s161 = sphi 0, %s158
    %s162 = sphi 0, %s161
    %s178 = sphi 0, %s162
  $region4: #{bottleneck_forward.11} parent=0 // loop_header_branch
    %15 = sbr.rel (%p13) target = $region8
  $region5: #{bottleneck_forward.11} parent=0 // loop_body
    %s17 = ssub.s32 %s12, 1
    %s18 = ssub.s32 %s12, 2
    %s19 = sadd.s32 %s12, 1
    %s20 = ssub.s32 %s12, %s19
    %p21 = scmp.eq.s32.totalorder %s20, 0
    %s23 = sadd.s32 %s22, 1
    %s24 = scalar_select %p21, %s22, %s23
    %p27 = pneg %p21
    %p28 = scmp.eq.s32.totalorder %s12, 1
    %p29 = por %p27, %p28
    %p30 = scmp.ne.s32.totalorder %s22, %s25
    %p31 = scmp.eq.s32.totalorder %s12, 0
    %p32 = por %p30, %p31
    %p33 = scmp.ne.s32.totalorder %s22, %s25
    %p34 = scmp.eq.s32.totalorder %s17, 1
    %p35 = por %p33, %p34
    %p36 = scmp.ne.s32.totalorder %s25, %s26
    %p37 = scmp.eq.s32.totalorder %s17, 0
    %p38 = por %p36, %p37
    %p39 = scmp.ne.s32.totalorder %s25, %s26
    %p40 = scmp.eq.s32.totalorder %s18, 1
    %p41 = por %p39, %p40
    %p43 = scmp.ne.s32.totalorder %s26, %s42
    %p44 = scmp.eq.s32.totalorder %s18, 0
    %p45 = por %p43, %p44
    %s46 = ssub.s32 %s12, %s19
    %p47 = scmp.eq.s32.totalorder %s46, 0
    %s49 = sadd.s32 %s48, 1
    %s50 = scalar_select %p47, %s48, %s49
    %p53 = pneg %p47
    %p54 = scmp.eq.s32.totalorder %s12, 1
    %p55 = por %p53, %p54
    %p56 = scmp.ne.s32.totalorder %s48, %s51
    %p57 = scmp.eq.s32.totalorder %s12, 0
    %p58 = por %p56, %p57
    %p59 = scmp.ne.s32.totalorder %s48, %s51
    %p60 = scmp.eq.s32.totalorder %s17, 1
    %p61 = por %p59, %p60
    %p62 = scmp.ne.s32.totalorder %s51, %s52
    %p63 = scmp.eq.s32.totalorder %s17, 0
    %p64 = por %p62, %p63
    %p65 = scmp.ne.s32.totalorder %s51, %s52
    %p66 = scmp.eq.s32.totalorder %s18, 1
    %p67 = por %p65, %p66
    %p69 = scmp.ne.s32.totalorder %s52, %s68
    %p70 = scmp.eq.s32.totalorder %s18, 0
    %p71 = por %p69, %p70
    %s73 = sadd.s32 %s72, 1
    %p76 = scmp.eq.s32.totalorder %s12, 1
    %p77 = scmp.ne.s32.totalorder %s72, %s74
    %p78 = scmp.eq.s32.totalorder %s12, 0
    %p79 = por %p77, %p78
    %p80 = scmp.ne.s32.totalorder %s72, %s74
    %p81 = scmp.eq.s32.totalorder %s17, 1
    %p82 = por %p80, %p81
    %p83 = scmp.ne.s32.totalorder %s74, %s75
    %p84 = scmp.eq.s32.totalorder %s17, 0
    %p85 = por %p83, %p84
    %p86 = scmp.ne.s32.totalorder %s74, %s75
    %p87 = scmp.eq.s32.totalorder %s18, 1
    %p88 = por %p86, %p87
    %p90 = scmp.ne.s32.totalorder %s75, %s89
    %p91 = scmp.eq.s32.totalorder %s18, 0
    %p92 = por %p90, %p91
    %s94 = sadd.s32 %s93, 1
    %p97 = scmp.eq.s32.totalorder %s12, 1
    %p98 = scmp.ne.s32.totalorder %s93, %s95
    %p99 = scmp.eq.s32.totalorder %s12, 0
    %p100 = por %p98, %p99
    %p101 = scmp.ne.s32.totalorder %s93, %s95
    %p102 = scmp.eq.s32.totalorder %s17, 1
    %p103 = por %p101, %p102
    %p104 = scmp.ne.s32.totalorder %s95, %s96
    %p105 = scmp.eq.s32.totalorder %s17, 0
    %p106 = por %p104, %p105
    %p107 = scmp.ne.s32.totalorder %s95, %s96
    %p108 = scmp.eq.s32.totalorder %s18, 1
    %p109 = por %p107, %p108
    %p111 = scmp.ne.s32.totalorder %s96, %s110
    %p112 = scmp.eq.s32.totalorder %s18, 0
    %p113 = por %p111, %p112
    %s115 = sadd.s32 %s114, 1
    %p118 = scmp.eq.s32.totalorder %s12, 1
    %p119 = scmp.ne.s32.totalorder %s114, %s116
    %p120 = scmp.eq.s32.totalorder %s12, 0
    %p121 = por %p119, %p120
    %p122 = scmp.ne.s32.totalorder %s114, %s116
    %p123 = scmp.eq.s32.totalorder %s17, 1
    %p124 = por %p122, %p123
    %p125 = scmp.ne.s32.totalorder %s116, %s117
    %p126 = scmp.eq.s32.totalorder %s17, 0
    %p127 = por %p125, %p126
    %p128 = scmp.ne.s32.totalorder %s116, %s117
    %p129 = scmp.eq.s32.totalorder %s18, 1
    %p130 = por %p128, %p129
    %p132 = scmp.ne.s32.totalorder %s117, %s131
    %p133 = scmp.eq.s32.totalorder %s18, 0
    %p134 = por %p132, %p133
    %s136 = sadd.s32 %s135, 1
    %p139 = scmp.eq.s32.totalorder %s12, 1
    %p140 = scmp.ne.s32.totalorder %s135, %s137
    %p141 = scmp.eq.s32.totalorder %s12, 0
    %p142 = por %p140, %p141
    %p143 = scmp.ne.s32.totalorder %s135, %s137
    %p144 = scmp.eq.s32.totalorder %s17, 1
    %p145 = por %p143, %p144
    %p146 = scmp.ne.s32.totalorder %s137, %s138
    %p147 = scmp.eq.s32.totalorder %s17, 0
    %p148 = por %p146, %p147
    %p149 = scmp.ne.s32.totalorder %s137, %s138
    %p150 = scmp.eq.s32.totalorder %s18, 1
    %p151 = por %p149, %p150
    %p153 = scmp.ne.s32.totalorder %s138, %s152
    %p154 = scmp.eq.s32.totalorder %s18, 0
    %p155 = por %p153, %p154
    %s156 = ssub.s32 %s12, %s19
    %p157 = scmp.eq.s32.totalorder %s156, 0
    %s159 = sadd.s32 %s158, 1
    %s160 = scalar_select %p157, %s158, %s159
    %p163 = pneg %p157
    %p164 = scmp.eq.s32.totalorder %s12, 1
    %p165 = por %p163, %p164
    %p166 = scmp.ne.s32.totalorder %s158, %s161
    %p167 = scmp.eq.s32.totalorder %s12, 0
    %p168 = por %p166, %p167
    %p169 = scmp.ne.s32.totalorder %s158, %s161
    %p170 = scmp.eq.s32.totalorder %s17, 1
    %p171 = por %p169, %p170
    %p172 = scmp.ne.s32.totalorder %s161, %s162
    %p173 = scmp.eq.s32.totalorder %s17, 0
    %p174 = por %p172, %p173
    %p175 = scmp.ne.s32.totalorder %s161, %s162
    %p176 = scmp.eq.s32.totalorder %s18, 1
    %p177 = por %p175, %p176
    %p179 = scmp.ne.s32.totalorder %s162, %s178
    %p180 = scmp.eq.s32.totalorder %s18, 0
    %p181 = por %p179, %p180
    %p182 = scmp.le.s32.totalorder 1, %s12
    %p183 = scmp.lt.s32.totalorder %s12, 3
    %p184 = pnand %p182, %p183
    %p185 = pneg %p184
    // Predicated region
    $region9: #{bottleneck_forward.11} parent=5 // pred_check
      _
    $region10: #{bottleneck_forward.11} parent=5 // pred_check_branch
      %187 = sbr.rel (%p184) target = $region12
    $region11: #{bottleneck_forward.11} parent=5 // pred_region
      %s188 = ssub.s32 %s12, 1
      // Predicated region
      $region13: #{bottleneck_forward.11} parent=11 // pred_check
        %p189 = pneg %p85
      $region14: #{bottleneck_forward.11} parent=11 // pred_check_branch
        %191 = sbr.rel (%p189) target = $region16
      $region15: #{bottleneck_forward.11} parent=11 // pred_region
        _
      $region16: #{bottleneck_forward.11} parent=11 // pred_fallthru
        _
      // Predicated region
      $region17: #{bottleneck_forward.11} parent=11 // pred_check
        %p192 = pneg %p106
      $region18: #{bottleneck_forward.11} parent=11 // pred_check_branch
        %194 = sbr.rel (%p192) target = $region20
      $region19: #{bottleneck_forward.11} parent=11 // pred_region
        _
      $region20: #{bottleneck_forward.11} parent=11 // pred_fallthru
        _
      // Predicated region
      $region21: #{bottleneck_forward.11} parent=11 // pred_check
        %p195 = pneg %p127
      $region22: #{bottleneck_forward.11} parent=11 // pred_check_branch
        %197 = sbr.rel (%p195) target = $region24
      $region23: #{bottleneck_forward.11} parent=11 // pred_region
        _
      $region24: #{bottleneck_forward.11} parent=11 // pred_fallthru
        _
      // Predicated region
      $region25: #{bottleneck_forward.11} parent=11 // pred_check
        %p198 = pneg %p148
      $region26: #{bottleneck_forward.11} parent=11 // pred_check_branch
        %200 = sbr.rel (%p198) target = $region28
      $region27: #{bottleneck_forward.11} parent=11 // pred_region
        _
      $region28: #{bottleneck_forward.11} parent=11 // pred_fallthru
        _
    $region12: #{bottleneck_forward.11} parent=5 // pred_fallthru
      _
    %p201 = scmp.lt.s32.totalorder %s12, 2
    // Predicated region
    $region29: #{bottleneck_forward.11} parent=5 // pred_check
      %p202 = pneg %p201
    $region30: #{bottleneck_forward.11} parent=5 // pred_check_branch
      %204 = sbr.rel (%p202) target = $region32
    $region31: #{bottleneck_forward.11} parent=5 // pred_region
      // Predicated region
      $region33: #{bottleneck_forward.11} parent=31 // pred_check
        %p205 = pneg %p32
      $region34: #{bottleneck_forward.11} parent=31 // pred_check_branch
        %207 = sbr.rel (%p205) target = $region36
      $region35: #{bottleneck_forward.11} parent=31 // pred_region
        %s208 = smul.u32 32, %s12
        %p209 = scmp.lt.s32.totalorder %s208, 63
        %s210 = scalar_select %p209, %s208, 63
        %s211 = smul.addr %s210, 8
        %s212 = scalar_lea.vmem %s0, %s211
        %s213 = smul.u32 32, %s12
      $region36: #{bottleneck_forward.11} parent=31 // pred_fallthru
        _
      // Predicated region
      $region37: #{bottleneck_forward.11} parent=31 // pred_check
        %p214 = pneg %p58
      $region38: #{bottleneck_forward.11} parent=31 // pred_check_branch
        %216 = sbr.rel (%p214) target = $region40
      $region39: #{bottleneck_forward.11} parent=31 // pred_region
        %s217 = smul.u32 32, %s12
        %p218 = scmp.lt.s32.totalorder %s217, 63
        %s219 = scalar_select %p218, %s217, 63
        %s220 = smul.addr %s219, 8
        %s221 = scalar_lea.vmem %s1, %s220
        %s222 = smul.u32 32, %s12
      $region40: #{bottleneck_forward.11} parent=31 // pred_fallthru
        _
    $region32: #{bottleneck_forward.11} parent=5 // pred_fallthru
      _
    %p223 = scmp.le.s32.totalorder 1, %s12
    %p224 = scmp.lt.s32.totalorder %s12, 3
    %p225 = pnand %p223, %p224
    %p226 = pneg %p225
    // Predicated region
    $region41: #{bottleneck_forward.11} parent=5 // pred_check
      _
    $region42: #{bottleneck_forward.11} parent=5 // pred_check_branch
      %228 = sbr.rel (%p225) target = $region44
    $region43: #{bottleneck_forward.11} parent=5 // pred_region
      %s229 = ssub.s32 %s12, 1
      %s230 = smul.u32 32, %s17
      %p231 = scmp.lt.s32.totalorder %s230, 63
      %s232 = scalar_select %p231, %s230, 63
      %s233 = smul.addr %s232, 8
      %s234 = scalar_lea.vmem %s0, %s233
      %p235 = pneg %p38
      %p236 = pneg %p35
      %s237 = smul.u32 32, %s17
      %p238 = scmp.lt.s32.totalorder %s237, 63
      %s239 = scalar_select %p238, %s237, 63
      %s240 = smul.addr %s239, 8
      %s241 = scalar_lea.vmem %s1, %s240
      %p242 = pneg %p64
      %p243 = pneg %p61
      %p244 = pneg %p85
      %p245 = pneg %p82
      %p246 = pneg %p106
      %p247 = pneg %p103
      %p248 = pneg %p127
      %p249 = pneg %p124
      %p250 = pneg %p148
      %p251 = pneg %p145
      %p252 = pneg %p174
      %p253 = pneg %p171
      %s254 = smul.u32 32, %s17
      %p255 = scmp.lt.s32.totalorder %s254, 63
      %s256 = scalar_select %p255, %s254, 63
      %s257 = smul.addr %s256, 8
      %s258 = scalar_lea.vmem %s6, %s257
      %s259 = smul.u32 32, %s17
      %p260 = scmp.lt.s32.totalorder %s259, 63
      %s261 = scalar_select %p260, %s259, 63
      %s262 = smul.addr %s261, 8
      %s263 = scalar_lea.vmem %s0, %s262
      %s264 = smul.u32 32, %s17
      %s265 = smul.u32 32, %s17
      %p266 = scmp.lt.s32.totalorder %s265, 63
      %s267 = scalar_select %p266, %s265, 63
      %s268 = smul.addr %s267, 8
      %s269 = scalar_lea.vmem %s1, %s268
      %s270 = smul.u32 32, %s17
      %s271 = smul.u32 32, %s17
      %p272 = scmp.lt.s32.totalorder %s271, 63
      %s273 = scalar_select %p272, %s271, 63
      %s274 = smul.addr %s273, 8
      %s275 = scalar_lea.vmem %s6, %s274
      %s276 = smul.u32 32, %s17
      %v277 = vld [vmem:[%s263] sm:$0xff]
      %v278 = vld [vmem:[%s263 + $0x8] sm:$0xff]
      %v279 = vld [vmem:[%s263 + $0x10] sm:$0xff]
      %v280 = vld [vmem:[%s263 + $0x18] sm:$0xff]
      %v281 = vld [vmem:[%s263 + $0x20] sm:$0xff]
      %v282 = vld [vmem:[%s263 + $0x28] sm:$0xff]
      %v283 = vld [vmem:[%s263 + $0x30] sm:$0xff]
      %v284 = vld [vmem:[%s263 + $0x38] sm:$0xff]
      %v285 = vld [vmem:[%s263 + $0x40] sm:$0xff]
      %v286 = vld [vmem:[%s263 + $0x48] sm:$0xff]
      %v287 = vld [vmem:[%s263 + $0x50] sm:$0xff]
      %v288 = vld [vmem:[%s263 + $0x58] sm:$0xff]
      %v289 = vld [vmem:[%s263 + $0x60] sm:$0xff]
      %v290 = vld [vmem:[%s263 + $0x68] sm:$0xff]
      %v291 = vld [vmem:[%s263 + $0x70] sm:$0xff]
      %v292 = vld [vmem:[%s263 + $0x78] sm:$0xff]
      %v293 = vld [vmem:[%s263 + $0x80] sm:$0xff]
      %v294 = vld [vmem:[%s263 + $0x88] sm:$0xff]
      %v295 = vld [vmem:[%s263 + $0x90] sm:$0xff]
      %v296 = vld [vmem:[%s263 + $0x98] sm:$0xff]
      %v297 = vld [vmem:[%s263 + $0xa0] sm:$0xff]
      %v298 = vld [vmem:[%s263 + $0xa8] sm:$0xff]
      %v299 = vld [vmem:[%s263 + $0xb0] sm:$0xff]
      %v300 = vld [vmem:[%s263 + $0xb8] sm:$0xff]
      %v301 = vld [vmem:[%s263 + $0xc0] sm:$0xff]
      %v302 = vld [vmem:[%s263 + $0xc8] sm:$0xff]
      %v303 = vld [vmem:[%s263 + $0xd0] sm:$0xff]
      %v304 = vld [vmem:[%s263 + $0xd8] sm:$0xff]
      %v305 = vld [vmem:[%s263 + $0xe0] sm:$0xff]
      %v306 = vld [vmem:[%s263 + $0xe8] sm:$0xff]
      %v307 = vld [vmem:[%s263 + $0xf0] sm:$0xff]
      %v308 = vld [vmem:[%s263 + $0xf8] sm:$0xff]
      %v309 = vld [vmem:[%s2] sm:$0x1]
      %v311 = vlaneseq
      %v312 = vshrl.u32 %v311, 7
      %v313 = vsub.s32 0, %v312
      %v314 = vrot.slane %v309, %v313
      %v316 = vmul.f32 %v277, %v314
      %v317 = vmul.f32 %v278, %v314
      %v318 = vmul.f32 %v279, %v314
      %v319 = vmul.f32 %v280, %v314
      %v320 = vmul.f32 %v281, %v314
      %v321 = vmul.f32 %v282, %v314
      %v322 = vmul.f32 %v283, %v314
      %v323 = vmul.f32 %v284, %v314
      %v324 = vmul.f32 %v285, %v314
      %v325 = vmul.f32 %v286, %v314
      %v326 = vmul.f32 %v287, %v314
      %v327 = vmul.f32 %v288, %v314
      %v328 = vmul.f32 %v289, %v314
      %v329 = vmul.f32 %v290, %v314
      %v330 = vmul.f32 %v291, %v314
      %v331 = vmul.f32 %v292, %v314
      %v332 = vmul.f32 %v293, %v314
      %v333 = vmul.f32 %v294, %v314
      %v334 = vmul.f32 %v295, %v314
      %v335 = vmul.f32 %v296, %v314
      %v336 = vmul.f32 %v297, %v314
      %v337 = vmul.f32 %v298, %v314
      %v338 = vmul.f32 %v299, %v314
      %v339 = vmul.f32 %v300, %v314
      %v340 = vmul.f32 %v301, %v314
      %v341 = vmul.f32 %v302, %v314
      %v342 = vmul.f32 %v303, %v314
      %v343 = vmul.f32 %v304, %v314
      %v344 = vmul.f32 %v305, %v314
      %v345 = vmul.f32 %v306, %v314
      %v346 = vmul.f32 %v307, %v314
      %v347 = vmul.f32 %v308, %v314
      %v348 = vld [vmem:[%s3] sm:$0x1]
      %v350 = vlaneseq
      %v351 = vshrl.u32 %v350, 7
      %v352 = vsub.s32 0, %v351
      %v353 = vrot.slane %v348, %v352
      %v355 = vadd.f32 %v316, %v353
      %v356 = vadd.f32 %v317, %v353
      %v357 = vadd.f32 %v318, %v353
      %v358 = vadd.f32 %v319, %v353
      %v359 = vadd.f32 %v320, %v353
      %v360 = vadd.f32 %v321, %v353
      %v361 = vadd.f32 %v322, %v353
      %v362 = vadd.f32 %v323, %v353
      %v363 = vadd.f32 %v324, %v353
      %v364 = vadd.f32 %v325, %v353
      %v365 = vadd.f32 %v326, %v353
      %v366 = vadd.f32 %v327, %v353
      %v367 = vadd.f32 %v328, %v353
      %v368 = vadd.f32 %v329, %v353
      %v369 = vadd.f32 %v330, %v353
      %v370 = vadd.f32 %v331, %v353
      %v371 = vadd.f32 %v332, %v353
      %v372 = vadd.f32 %v333, %v353
      %v373 = vadd.f32 %v334, %v353
      %v374 = vadd.f32 %v335, %v353
      %v375 = vadd.f32 %v336, %v353
      %v376 = vadd.f32 %v337, %v353
      %v377 = vadd.f32 %v338, %v353
      %v378 = vadd.f32 %v339, %v353
      %v379 = vadd.f32 %v340, %v353
      %v380 = vadd.f32 %v341, %v353
      %v381 = vadd.f32 %v342, %v353
      %v382 = vadd.f32 %v343, %v353
      %v383 = vadd.f32 %v344, %v353
      %v384 = vadd.f32 %v345, %v353
      %v385 = vadd.f32 %v346, %v353
      %v386 = vadd.f32 %v347, %v353
      %v387 = vld [vmem:[%s269] sm:$0xff]
      %v388 = vld [vmem:[%s269 + $0x8] sm:$0xff]
      %v389 = vld [vmem:[%s269 + $0x10] sm:$0xff]
      %v390 = vld [vmem:[%s269 + $0x18] sm:$0xff]
      %v391 = vld [vmem:[%s269 + $0x20] sm:$0xff]
      %v392 = vld [vmem:[%s269 + $0x28] sm:$0xff]
      %v393 = vld [vmem:[%s269 + $0x30] sm:$0xff]
      %v394 = vld [vmem:[%s269 + $0x38] sm:$0xff]
      %v395 = vld [vmem:[%s269 + $0x40] sm:$0xff]
      %v396 = vld [vmem:[%s269 + $0x48] sm:$0xff]
      %v397 = vld [vmem:[%s269 + $0x50] sm:$0xff]
      %v398 = vld [vmem:[%s269 + $0x58] sm:$0xff]
      %v399 = vld [vmem:[%s269 + $0x60] sm:$0xff]
      %v400 = vld [vmem:[%s269 + $0x68] sm:$0xff]
      %v401 = vld [vmem:[%s269 + $0x70] sm:$0xff]
      %v402 = vld [vmem:[%s269 + $0x78] sm:$0xff]
      %v403 = vld [vmem:[%s269 + $0x80] sm:$0xff]
      %v404 = vld [vmem:[%s269 + $0x88] sm:$0xff]
      %v405 = vld [vmem:[%s269 + $0x90] sm:$0xff]
      %v406 = vld [vmem:[%s269 + $0x98] sm:$0xff]
      %v407 = vld [vmem:[%s269 + $0xa0] sm:$0xff]
      %v408 = vld [vmem:[%s269 + $0xa8] sm:$0xff]
      %v409 = vld [vmem:[%s269 + $0xb0] sm:$0xff]
      %v410 = vld [vmem:[%s269 + $0xb8] sm:$0xff]
      %v411 = vld [vmem:[%s269 + $0xc0] sm:$0xff]
      %v412 = vld [vmem:[%s269 + $0xc8] sm:$0xff]
      %v413 = vld [vmem:[%s269 + $0xd0] sm:$0xff]
      %v414 = vld [vmem:[%s269 + $0xd8] sm:$0xff]
      %v415 = vld [vmem:[%s269 + $0xe0] sm:$0xff]
      %v416 = vld [vmem:[%s269 + $0xe8] sm:$0xff]
      %v417 = vld [vmem:[%s269 + $0xf0] sm:$0xff]
      %v418 = vld [vmem:[%s269 + $0xf8] sm:$0xff]
      %v419 = vld [vmem:[%s4] sm:$0x1]
      %v421 = vlaneseq
      %v422 = vshrl.u32 %v421, 7
      %v423 = vsub.s32 0, %v422
      %v424 = vrot.slane %v419, %v423
      %v426 = vmul.f32 %v387, %v424
      %v427 = vmul.f32 %v388, %v424
      %v428 = vmul.f32 %v389, %v424
      %v429 = vmul.f32 %v390, %v424
      %v430 = vmul.f32 %v391, %v424
      %v431 = vmul.f32 %v392, %v424
      %v432 = vmul.f32 %v393, %v424
      %v433 = vmul.f32 %v394, %v424
      %v434 = vmul.f32 %v395, %v424
      %v435 = vmul.f32 %v396, %v424
      %v436 = vmul.f32 %v397, %v424
      %v437 = vmul.f32 %v398, %v424
      %v438 = vmul.f32 %v399, %v424
      %v439 = vmul.f32 %v400, %v424
      %v440 = vmul.f32 %v401, %v424
      %v441 = vmul.f32 %v402, %v424
      %v442 = vmul.f32 %v403, %v424
      %v443 = vmul.f32 %v404, %v424
      %v444 = vmul.f32 %v405, %v424
      %v445 = vmul.f32 %v406, %v424
      %v446 = vmul.f32 %v407, %v424
      %v447 = vmul.f32 %v408, %v424
      %v448 = vmul.f32 %v409, %v424
      %v449 = vmul.f32 %v410, %v424
      %v450 = vmul.f32 %v411, %v424
      %v451 = vmul.f32 %v412, %v424
      %v452 = vmul.f32 %v413, %v424
      %v453 = vmul.f32 %v414, %v424
      %v454 = vmul.f32 %v415, %v424
      %v455 = vmul.f32 %v416, %v424
      %v456 = vmul.f32 %v417, %v424
      %v457 = vmul.f32 %v418, %v424
      %v458 = vadd.f32 %v355, %v426
      %v459 = vadd.f32 %v356, %v427
      %v460 = vadd.f32 %v357, %v428
      %v461 = vadd.f32 %v358, %v429
      %v462 = vadd.f32 %v359, %v430
      %v463 = vadd.f32 %v360, %v431
      %v464 = vadd.f32 %v361, %v432
      %v465 = vadd.f32 %v362, %v433
      %v466 = vadd.f32 %v363, %v434
      %v467 = vadd.f32 %v364, %v435
      %v468 = vadd.f32 %v365, %v436
      %v469 = vadd.f32 %v366, %v437
      %v470 = vadd.f32 %v367, %v438
      %v471 = vadd.f32 %v368, %v439
      %v472 = vadd.f32 %v369, %v440
      %v473 = vadd.f32 %v370, %v441
      %v474 = vadd.f32 %v371, %v442
      %v475 = vadd.f32 %v372, %v443
      %v476 = vadd.f32 %v373, %v444
      %v477 = vadd.f32 %v374, %v445
      %v478 = vadd.f32 %v375, %v446
      %v479 = vadd.f32 %v376, %v447
      %v480 = vadd.f32 %v377, %v448
      %v481 = vadd.f32 %v378, %v449
      %v482 = vadd.f32 %v379, %v450
      %v483 = vadd.f32 %v380, %v451
      %v484 = vadd.f32 %v381, %v452
      %v485 = vadd.f32 %v382, %v453
      %v486 = vadd.f32 %v383, %v454
      %v487 = vadd.f32 %v384, %v455
      %v488 = vadd.f32 %v385, %v456
      %v489 = vadd.f32 %v386, %v457
      %v490 = vld [vmem:[%s5] sm:$0x1]
      %v492 = vlaneseq
      %v493 = vshrl.u32 %v492, 7
      %v494 = vsub.s32 0, %v493
      %v495 = vrot.slane %v490, %v494
      %v497 = vadd.f32 %v458, %v495
      %v498 = vadd.f32 %v459, %v495
      %v499 = vadd.f32 %v460, %v495
      %v500 = vadd.f32 %v461, %v495
      %v501 = vadd.f32 %v462, %v495
      %v502 = vadd.f32 %v463, %v495
      %v503 = vadd.f32 %v464, %v495
      %v504 = vadd.f32 %v465, %v495
      %v505 = vadd.f32 %v466, %v495
      %v506 = vadd.f32 %v467, %v495
      %v507 = vadd.f32 %v468, %v495
      %v508 = vadd.f32 %v469, %v495
      %v509 = vadd.f32 %v470, %v495
      %v510 = vadd.f32 %v471, %v495
      %v511 = vadd.f32 %v472, %v495
      %v512 = vadd.f32 %v473, %v495
      %v513 = vadd.f32 %v474, %v495
      %v514 = vadd.f32 %v475, %v495
      %v515 = vadd.f32 %v476, %v495
      %v516 = vadd.f32 %v477, %v495
      %v517 = vadd.f32 %v478, %v495
      %v518 = vadd.f32 %v479, %v495
      %v519 = vadd.f32 %v480, %v495
      %v520 = vadd.f32 %v481, %v495
      %v521 = vadd.f32 %v482, %v495
      %v522 = vadd.f32 %v483, %v495
      %v523 = vadd.f32 %v484, %v495
      %v524 = vadd.f32 %v485, %v495
      %v525 = vadd.f32 %v486, %v495
      %v526 = vadd.f32 %v487, %v495
      %v527 = vadd.f32 %v488, %v495
      %v528 = vadd.f32 %v489, %v495
      %v529 = vmax.f32 %v497, 0.0
      %v530 = vmax.f32 %v498, 0.0
      %v531 = vmax.f32 %v499, 0.0
      %v532 = vmax.f32 %v500, 0.0
      %v533 = vmax.f32 %v501, 0.0
      %v534 = vmax.f32 %v502, 0.0
      %v535 = vmax.f32 %v503, 0.0
      %v536 = vmax.f32 %v504, 0.0
      %v537 = vmax.f32 %v505, 0.0
      %v538 = vmax.f32 %v506, 0.0
      %v539 = vmax.f32 %v507, 0.0
      %v540 = vmax.f32 %v508, 0.0
      %v541 = vmax.f32 %v509, 0.0
      %v542 = vmax.f32 %v510, 0.0
      %v543 = vmax.f32 %v511, 0.0
      %v544 = vmax.f32 %v512, 0.0
      %v545 = vmax.f32 %v513, 0.0
      %v546 = vmax.f32 %v514, 0.0
      %v547 = vmax.f32 %v515, 0.0
      %v548 = vmax.f32 %v516, 0.0
      %v549 = vmax.f32 %v517, 0.0
      %v550 = vmax.f32 %v518, 0.0
      %v551 = vmax.f32 %v519, 0.0
      %v552 = vmax.f32 %v520, 0.0
      %v553 = vmax.f32 %v521, 0.0
      %v554 = vmax.f32 %v522, 0.0
      %v555 = vmax.f32 %v523, 0.0
      %v556 = vmax.f32 %v524, 0.0
      %v557 = vmax.f32 %v525, 0.0
      %v558 = vmax.f32 %v526, 0.0
      %v559 = vmax.f32 %v527, 0.0
      %v560 = vmax.f32 %v528, 0.0
      %561 = vst [vmem:[%s275] sm:$0xff] %v529
      %562 = vst [vmem:[%s275 + $0x8] sm:$0xff] %v530
      %563 = vst [vmem:[%s275 + $0x10] sm:$0xff] %v531
      %564 = vst [vmem:[%s275 + $0x18] sm:$0xff] %v532
      %565 = vst [vmem:[%s275 + $0x20] sm:$0xff] %v533
      %566 = vst [vmem:[%s275 + $0x28] sm:$0xff] %v534
      %567 = vst [vmem:[%s275 + $0x30] sm:$0xff] %v535
      %568 = vst [vmem:[%s275 + $0x38] sm:$0xff] %v536
      %569 = vst [vmem:[%s275 + $0x40] sm:$0xff] %v537
      %570 = vst [vmem:[%s275 + $0x48] sm:$0xff] %v538
      %571 = vst [vmem:[%s275 + $0x50] sm:$0xff] %v539
      %572 = vst [vmem:[%s275 + $0x58] sm:$0xff] %v540
      %573 = vst [vmem:[%s275 + $0x60] sm:$0xff] %v541
      %574 = vst [vmem:[%s275 + $0x68] sm:$0xff] %v542
      %575 = vst [vmem:[%s275 + $0x70] sm:$0xff] %v543
      %576 = vst [vmem:[%s275 + $0x78] sm:$0xff] %v544
      %577 = vst [vmem:[%s275 + $0x80] sm:$0xff] %v545
      %578 = vst [vmem:[%s275 + $0x88] sm:$0xff] %v546
      %579 = vst [vmem:[%s275 + $0x90] sm:$0xff] %v547
      %580 = vst [vmem:[%s275 + $0x98] sm:$0xff] %v548
      %581 = vst [vmem:[%s275 + $0xa0] sm:$0xff] %v549
      %582 = vst [vmem:[%s275 + $0xa8] sm:$0xff] %v550
      %583 = vst [vmem:[%s275 + $0xb0] sm:$0xff] %v551
      %584 = vst [vmem:[%s275 + $0xb8] sm:$0xff] %v552
      %585 = vst [vmem:[%s275 + $0xc0] sm:$0xff] %v553
      %586 = vst [vmem:[%s275 + $0xc8] sm:$0xff] %v554
      %587 = vst [vmem:[%s275 + $0xd0] sm:$0xff] %v555
      %588 = vst [vmem:[%s275 + $0xd8] sm:$0xff] %v556
      %589 = vst [vmem:[%s275 + $0xe0] sm:$0xff] %v557
      %590 = vst [vmem:[%s275 + $0xe8] sm:$0xff] %v558
      %591 = vst [vmem:[%s275 + $0xf0] sm:$0xff] %v559
      %592 = vst [vmem:[%s275 + $0xf8] sm:$0xff] %v560
      %s593 = smul.u32 32, %s17
      %p594 = scmp.lt.s32.totalorder %s593, 63
      %s595 = scalar_select %p594, %s593, 63
      %s596 = smul.addr %s595, 8
      %s597 = scalar_lea.vmem %s6, %s596
      // Predicated region
      $region45: #{bottleneck_forward.11} parent=43 // pred_check
        %p598 = pneg %p171
      $region46: #{bottleneck_forward.11} parent=43 // pred_check_branch
        %600 = sbr.rel (%p598) target = $region48
      $region47: #{bottleneck_forward.11} parent=43 // pred_region
        %s601 = smul.u32 32, %s17
      $region48: #{bottleneck_forward.11} parent=43 // pred_fallthru
        _
    $region44: #{bottleneck_forward.11} parent=5 // pred_fallthru
      _
    %p602 = scmp.le.s32.totalorder 2, %s12
    // Predicated region
    $region49: #{bottleneck_forward.11} parent=5 // pred_check
      %p603 = pneg %p602
    $region50: #{bottleneck_forward.11} parent=5 // pred_check_branch
      %605 = sbr.rel (%p603) target = $region52
    $region51: #{bottleneck_forward.11} parent=5 // pred_region
      %s606 = ssub.s32 %s12, 2
      // Predicated region
      $region53: #{bottleneck_forward.11} parent=51 // pred_check
        %p607 = pneg %p177
      $region54: #{bottleneck_forward.11} parent=51 // pred_check_branch
        %609 = sbr.rel (%p607) target = $region56
      $region55: #{bottleneck_forward.11} parent=51 // pred_region
        %s610 = smul.u32 32, %s18
        %p611 = scmp.lt.s32.totalorder %s610, 63
        %s612 = scalar_select %p611, %s610, 63
        %s613 = smul.addr %s612, 8
        %s614 = scalar_lea.vmem %s6, %s613
      $region56: #{bottleneck_forward.11} parent=51 // pred_fallthru
        _
    $region52: #{bottleneck_forward.11} parent=5 // pred_fallthru
      _
  $region6: #{bottleneck_forward.11} parent=0 // loop_footer
    %s16 = sadd.s32 1, %s12
  $region7: #{bottleneck_forward.11} parent=0 // loop_footer_branch
    %11 = sbr.rel target = $region3
  $region8: #{bottleneck_forward.11} parent=0 // loop_exit
    _

// kernel: bottleneck_forward.8
$region0: #{bottleneck_forward.8}
  #allocation0 [shape = 'u32[]', space=smem, size = 0x4, offset = 0x4, fixed_abs, tag = 'smem constant byte address 0x4 - core index']
  #allocation1 [shape = 'u32[144,128]{1,0:T(1,128)}', space=vmem, size = 0x12000, scoped, tag = 'internal scratch']
  %s0 = inlined_call_operand.vmem [shape: f32[2,18,18,128], index: 0, kind: input, shape index: {}]
  %s1 = inlined_call_operand.vmem [shape: bf16[3,3,128,128], index: 1, kind: input, shape index: {}]
  %s2 = inlined_call_operand.vmem [shape: f32[512,128], index: 2, kind: output, shape index: {0}]
  %s3 = inlined_call_operand.vmem [shape: f32[2,8,128], index: 3, kind: output, shape index: {1}]
  %4 = xla_tuple %s2, %s3
  %s5 = sld [smem:[#allocation0]]
  $region49: #{bottleneck_forward.8} parent=0
    _
  %s7 = ssub.s32 1, %s5
  %s8 = scalar_select 0, %s7, %s5
  loop: start=0, step=1, limit=4
  $region2: #{bottleneck_forward.8} parent=0 // loop_pre_header
    _
  $region3: #{bottleneck_forward.8} parent=0 // loop_header
    %s10 = sphi 0, %s14
    %p11 = scmp.ge.s32.totalorder %s10, 4
    %s20 = sphi 0, %s22
    %s23 = sphi 0, %s20
    %s24 = sphi 0, %s23
    %s40 = sphi 0, %s24
    %s44 = sphi 0, %s44
    %s46 = sphi 0, %s44
    %s47 = sphi 0, %s46
    %s61 = sphi 0, %s47
    %s67 = sphi 0, %s69
    %s70 = sphi 0, %s67
    %s71 = sphi 0, %s70
    %s87 = sphi 0, %s71
    %s93 = sphi 0, %s95
    %s96 = sphi 0, %s93
    %s97 = sphi 0, %s96
    %s113 = sphi 0, %s97
  $region4: #{bottleneck_forward.8} parent=0 // loop_header_branch
    %13 = sbr.rel (%p11) target = $region8
  $region5: #{bottleneck_forward.8} parent=0 // loop_body
    %s15 = ssub.s32 %s10, 1
    %s16 = ssub.s32 %s10, 2
    %s17 = sadd.s32 %s10, 1
    %s18 = ssub.s32 %s10, %s17
    %p19 = scmp.eq.s32.totalorder %s18, 0
    %s21 = sadd.s32 %s20, 1
    %s22 = scalar_select %p19, %s20, %s21
    %p25 = pneg %p19
    %p26 = scmp.eq.s32.totalorder %s10, 1
    %p27 = por %p25, %p26
    %p28 = scmp.ne.s32.totalorder %s20, %s23
    %p29 = scmp.eq.s32.totalorder %s10, 0
    %p30 = por %p28, %p29
    %p31 = scmp.ne.s32.totalorder %s20, %s23
    %p32 = scmp.eq.s32.totalorder %s15, 1
    %p33 = por %p31, %p32
    %p34 = scmp.ne.s32.totalorder %s23, %s24
    %p35 = scmp.eq.s32.totalorder %s15, 0
    %p36 = por %p34, %p35
    %p37 = scmp.ne.s32.totalorder %s23, %s24
    %p38 = scmp.eq.s32.totalorder %s16, 1
    %p39 = por %p37, %p38
    %p41 = scmp.ne.s32.totalorder %s24, %s40
    %p42 = scmp.eq.s32.totalorder %s16, 0
    %p43 = por %p41, %p42
    %s45 = sadd.s32 %s44, 1
    %p48 = scmp.eq.s32.totalorder %s10, 1
    %p49 = scmp.ne.s32.totalorder %s44, %s46
    %p50 = scmp.eq.s32.totalorder %s10, 0
    %p51 = por %p49, %p50
    %p52 = scmp.ne.s32.totalorder %s44, %s46
    %p53 = scmp.eq.s32.totalorder %s15, 1
    %p54 = por %p52, %p53
    %p55 = scmp.ne.s32.totalorder %s46, %s47
    %p56 = scmp.eq.s32.totalorder %s15, 0
    %p57 = por %p55, %p56
    %p58 = scmp.ne.s32.totalorder %s46, %s47
    %p59 = scmp.eq.s32.totalorder %s16, 1
    %p60 = por %p58, %p59
    %p62 = scmp.ne.s32.totalorder %s47, %s61
    %p63 = scmp.eq.s32.totalorder %s16, 0
    %p64 = por %p62, %p63
    %s65 = ssub.s32 %s10, %s17
    %p66 = scmp.eq.s32.totalorder %s65, 0
    %s68 = sadd.s32 %s67, 1
    %s69 = scalar_select %p66, %s67, %s68
    %p72 = pneg %p66
    %p73 = scmp.eq.s32.totalorder %s10, 1
    %p74 = por %p72, %p73
    %p75 = scmp.ne.s32.totalorder %s67, %s70
    %p76 = scmp.eq.s32.totalorder %s10, 0
    %p77 = por %p75, %p76
    %p78 = scmp.ne.s32.totalorder %s67, %s70
    %p79 = scmp.eq.s32.totalorder %s15, 1
    %p80 = por %p78, %p79
    %p81 = scmp.ne.s32.totalorder %s70, %s71
    %p82 = scmp.eq.s32.totalorder %s15, 0
    %p83 = por %p81, %p82
    %p84 = scmp.ne.s32.totalorder %s70, %s71
    %p85 = scmp.eq.s32.totalorder %s16, 1
    %p86 = por %p84, %p85
    %p88 = scmp.ne.s32.totalorder %s71, %s87
    %p89 = scmp.eq.s32.totalorder %s16, 0
    %p90 = por %p88, %p89
    %s91 = ssub.s32 %s10, %s17
    %p92 = scmp.eq.s32.totalorder %s91, 0
    %s94 = sadd.s32 %s93, 1
    %s95 = scalar_select %p92, %s93, %s94
    %p98 = pneg %p92
    %p99 = scmp.eq.s32.totalorder %s10, 1
    %p100 = por %p98, %p99
    %p101 = scmp.ne.s32.totalorder %s93, %s96
    %p102 = scmp.eq.s32.totalorder %s10, 0
    %p103 = por %p101, %p102
    %p104 = scmp.ne.s32.totalorder %s93, %s96
    %p105 = scmp.eq.s32.totalorder %s15, 1
    %p106 = por %p104, %p105
    %p107 = scmp.ne.s32.totalorder %s96, %s97
    %p108 = scmp.eq.s32.totalorder %s15, 0
    %p109 = por %p107, %p108
    %p110 = scmp.ne.s32.totalorder %s96, %s97
    %p111 = scmp.eq.s32.totalorder %s16, 1
    %p112 = por %p110, %p111
    %p114 = scmp.ne.s32.totalorder %s97, %s113
    %p115 = scmp.eq.s32.totalorder %s16, 0
    %p116 = por %p114, %p115
    %p117 = scmp.le.s32.totalorder 1, %s10
    %p118 = scmp.lt.s32.totalorder %s10, 3
    %p119 = pnand %p117, %p118
    %p120 = pneg %p119
    // Predicated region
    $region9: #{bottleneck_forward.8} parent=5 // pred_check
      _
    $region10: #{bottleneck_forward.8} parent=5 // pred_check_branch
      %122 = sbr.rel (%p119) target = $region12
    $region11: #{bottleneck_forward.8} parent=5 // pred_region
      %s123 = ssub.s32 %s10, 1
      // Predicated region
      $region13: #{bottleneck_forward.8} parent=11 // pred_check
        %p124 = pneg %p57
      $region14: #{bottleneck_forward.8} parent=11 // pred_check_branch
        %126 = sbr.rel (%p124) target = $region16
      $region15: #{bottleneck_forward.8} parent=11 // pred_region
        _
      $region16: #{bottleneck_forward.8} parent=11 // pred_fallthru
        _
    $region12: #{bottleneck_forward.8} parent=5 // pred_fallthru
      _
    %p127 = scmp.lt.s32.totalorder %s10, 2
    // Predicated region
    $region17: #{bottleneck_forward.8} parent=5 // pred_check
      %p128 = pneg %p127
    $region18: #{bottleneck_forward.8} parent=5 // pred_check_branch
      %130 = sbr.rel (%p128) target = $region20
    $region19: #{bottleneck_forward.8} parent=5 // pred_region
      // Predicated region
      $region21: #{bottleneck_forward.8} parent=19 // pred_check
        %p131 = pneg %p30
      $region22: #{bottleneck_forward.8} parent=19 // pred_check_branch
        %133 = sbr.rel (%p131) target = $region24
      $region23: #{bottleneck_forward.8} parent=19 // pred_region
        %p134 = scmp.lt.s32.totalorder %s10, 1
        %s135 = scalar_select %p134, %s10, 1
        %s136 = smul.addr %s135, 54
        %s137 = smul.addr %s136, 8
        %s138 = scalar_lea.vmem %s0, %s137
      $region24: #{bottleneck_forward.8} parent=19 // pred_fallthru
        _
    $region20: #{bottleneck_forward.8} parent=5 // pred_fallthru
      _
    %p139 = scmp.le.s32.totalorder 1, %s10
    %p140 = scmp.lt.s32.totalorder %s10, 3
    %p141 = pnand %p139, %p140
    %p142 = pneg %p141
    // Predicated region
    $region25: #{bottleneck_forward.8} parent=5 // pred_check
      _
    $region26: #{bottleneck_forward.8} parent=5 // pred_check_branch
      %144 = sbr.rel (%p141) target = $region28
    $region27: #{bottleneck_forward.8} parent=5 // pred_region
      %s145 = ssub.s32 %s10, 1
      %p146 = scmp.lt.s32.totalorder %s15, 1
      %s147 = scalar_select %p146, %s15, 1
      %s148 = smul.addr %s147, 54
      %s149 = smul.addr %s148, 8
      %s150 = scalar_lea.vmem %s0, %s149
      %p151 = pneg %p36
      %p152 = pneg %p33
      %p153 = pneg %p57
      %p154 = pneg %p54
      %p155 = pneg %p83
      %p156 = pneg %p80
      %s157 = smul.u32 32, %s15
      %p158 = scmp.lt.s32.totalorder %s157, 63
      %s159 = scalar_select %p158, %s157, 63
      %s160 = smul.addr %s159, 8
      %s161 = scalar_lea.vmem %s2, %s160
      %p162 = pneg %p109
      %p163 = pneg %p106
      %p164 = scmp.lt.s32.totalorder %s15, 1
      %s165 = scalar_select %p164, %s15, 1
      %s166 = smul.addr %s165, 8
      %s167 = scalar_lea.vmem %s3, %s166
      %p168 = scmp.lt.s32.totalorder %s15, 1
      %s169 = scalar_select %p168, %s15, 1
      %s170 = smul.addr %s169, 54
      %s171 = smul.addr %s170, 8
      %s172 = scalar_lea.vmem %s0, %s171
      %s173 = smul.u32 32, %s15
      %p174 = scmp.lt.s32.totalorder %s173, 63
      %s175 = scalar_select %p174, %s173, 63
      %s176 = smul.addr %s175, 8
      %s177 = scalar_lea.vmem %s2, %s176
      %s178 = smul.u32 32, %s15
      %p179 = scmp.lt.s32.totalorder %s15, 1
      %s180 = scalar_select %p179, %s15, 1
      %s181 = smul.addr %s180, 8
      %s182 = scalar_lea.vmem %s3, %s181
      %184 = vst [vmem:[%s177] sm:$0xff] 0.0
      %185 = vst [vmem:[%s177 + $0x8] sm:$0xff] 0.0
      %186 = vst [vmem:[%s177 + $0x10] sm:$0xff] 0.0
      %187 = vst [vmem:[%s177 + $0x18] sm:$0xff] 0.0
      %188 = vst [vmem:[%s177 + $0x20] sm:$0xff] 0.0
      %189 = vst [vmem:[%s177 + $0x28] sm:$0xff] 0.0
      %190 = vst [vmem:[%s177 + $0x30] sm:$0xff] 0.0
      %191 = vst [vmem:[%s177 + $0x38] sm:$0xff] 0.0
      %192 = vst [vmem:[%s177 + $0x40] sm:$0xff] 0.0
      %193 = vst [vmem:[%s177 + $0x48] sm:$0xff] 0.0
      %194 = vst [vmem:[%s177 + $0x50] sm:$0xff] 0.0
      %195 = vst [vmem:[%s177 + $0x58] sm:$0xff] 0.0
      %196 = vst [vmem:[%s177 + $0x60] sm:$0xff] 0.0
      %197 = vst [vmem:[%s177 + $0x68] sm:$0xff] 0.0
      %198 = vst [vmem:[%s177 + $0x70] sm:$0xff] 0.0
      %199 = vst [vmem:[%s177 + $0x78] sm:$0xff] 0.0
      %200 = vst [vmem:[%s177 + $0x80] sm:$0xff] 0.0
      %201 = vst [vmem:[%s177 + $0x88] sm:$0xff] 0.0
      %202 = vst [vmem:[%s177 + $0x90] sm:$0xff] 0.0
      %203 = vst [vmem:[%s177 + $0x98] sm:$0xff] 0.0
      %204 = vst [vmem:[%s177 + $0xa0] sm:$0xff] 0.0
      %205 = vst [vmem:[%s177 + $0xa8] sm:$0xff] 0.0
      %206 = vst [vmem:[%s177 + $0xb0] sm:$0xff] 0.0
      %207 = vst [vmem:[%s177 + $0xb8] sm:$0xff] 0.0
      %208 = vst [vmem:[%s177 + $0xc0] sm:$0xff] 0.0
      %209 = vst [vmem:[%s177 + $0xc8] sm:$0xff] 0.0
      %210 = vst [vmem:[%s177 + $0xd0] sm:$0xff] 0.0
      %211 = vst [vmem:[%s177 + $0xd8] sm:$0xff] 0.0
      %212 = vst [vmem:[%s177 + $0xe0] sm:$0xff] 0.0
      %213 = vst [vmem:[%s177 + $0xe8] sm:$0xff] 0.0
      %214 = vst [vmem:[%s177 + $0xf0] sm:$0xff] 0.0
      %215 = vst [vmem:[%s177 + $0xf8] sm:$0xff] 0.0
      %v216 = vld [vmem:[%s172] sm:$0xff]
      %v217 = vld [vmem:[%s172 + $0x8] sm:$0xff]
      %v218 = vld [vmem:[%s172 + $0x18] sm:$0xff]
      %v219 = vld [vmem:[%s172 + $0x20] sm:$0xff]
      %v220 = vld [vmem:[%s172 + $0x30] sm:$0xff]
      %v221 = vld [vmem:[%s172 + $0x38] sm:$0xff]
      %v222 = vld [vmem:[%s172 + $0x48] sm:$0xff]
      %v223 = vld [vmem:[%s172 + $0x50] sm:$0xff]
      %v224 = vld [vmem:[%s172 + $0x60] sm:$0xff]
      %v225 = vld [vmem:[%s172 + $0x68] sm:$0xff]
      %v226 = vld [vmem:[%s172 + $0x78] sm:$0xff]
      %v227 = vld [vmem:[%s172 + $0x80] sm:$0xff]
      %v228 = vld [vmem:[%s172 + $0x90] sm:$0xff]
      %v229 = vld [vmem:[%s172 + $0x98] sm:$0xff]
      %v230 = vld [vmem:[%s172 + $0xa8] sm:$0xff]
      %v231 = vld [vmem:[%s172 + $0xb0] sm:$0xff]
      %v232 = vld [vmem:[%s172 + $0xc0] sm:$0xff]
      %v233 = vld [vmem:[%s172 + $0xc8] sm:$0xff]
      %v234 = vld [vmem:[%s172 + $0xd8] sm:$0xff]
      %v235 = vld [vmem:[%s172 + $0xe0] sm:$0xff]
      %v236 = vld [vmem:[%s172 + $0xf0] sm:$0xff]
      %v237 = vld [vmem:[%s172 + $0xf8] sm:$0xff]
      %v238 = vld [vmem:[%s172 + $0x108] sm:$0xff]
      %v239 = vld [vmem:[%s172 + $0x110] sm:$0xff]
      %v240 = vld [vmem:[%s172 + $0x120] sm:$0xff]
      %v241 = vld [vmem:[%s172 + $0x128] sm:$0xff]
      %v242 = vld [vmem:[%s172 + $0x138] sm:$0xff]
      %v243 = vld [vmem:[%s172 + $0x140] sm:$0xff]
      %v244 = vld [vmem:[%s172 + $0x150] sm:$0xff]
      %v245 = vld [vmem:[%s172 + $0x158] sm:$0xff]
      %v246 = vld [vmem:[%s172 + $0x168] sm:$0xff]
      %v247 = vld [vmem:[%s172 + $0x170] sm:$0xff]
      %v248 = vpack.c.bf16 %v217, %v216
      %v249 = vpack.c.bf16 %v219, %v218
      %v250 = vpack.c.bf16 %v221, %v220
      %v251 = vpack.c.bf16 %v223, %v222
      %v252 = vpack.c.bf16 %v225, %v224
      %v253 = vpack.c.bf16 %v227, %v226
      %v254 = vpack.c.bf16 %v229, %v228
      %v255 = vpack.c.bf16 %v231, %v230
      %v256 = vpack.c.bf16 %v233, %v232
      %v257 = vpack.c.bf16 %v235, %v234
      %v258 = vpack.c.bf16 %v237, %v236
      %v259 = vpack.c.bf16 %v239, %v238
      %v260 = vpack.c.bf16 %v241, %v240
      %v261 = vpack.c.bf16 %v243, %v242
      %v262 = vpack.c.bf16 %v245, %v244
      %v263 = vpack.c.bf16 %v247, %v246
      %v264 = vld [vmem:[%s177] sm:$0xff]
      %v265 = vld [vmem:[%s177 + $0x8] sm:$0xff]
      %v266 = vld [vmem:[%s177 + $0x10] sm:$0xff]
      %v267 = vld [vmem:[%s177 + $0x18] sm:$0xff]
      %v268 = vld [vmem:[%s177 + $0x20] sm:$0xff]
      %v269 = vld [vmem:[%s177 + $0x28] sm:$0xff]
      %v270 = vld [vmem:[%s177 + $0x30] sm:$0xff]
      %v271 = vld [vmem:[%s177 + $0x38] sm:$0xff]
      %v272 = vld [vmem:[%s177 + $0x40] sm:$0xff]
      %v273 = vld [vmem:[%s177 + $0x48] sm:$0xff]
      %v274 = vld [vmem:[%s177 + $0x50] sm:$0xff]
      %v275 = vld [vmem:[%s177 + $0x58] sm:$0xff]
      %v276 = vld [vmem:[%s177 + $0x60] sm:$0xff]
      %v277 = vld [vmem:[%s177 + $0x68] sm:$0xff]
      %v278 = vld [vmem:[%s177 + $0x70] sm:$0xff]
      %v279 = vld [vmem:[%s177 + $0x78] sm:$0xff]
      %v280 = vld [vmem:[%s177 + $0x80] sm:$0xff]
      %v281 = vld [vmem:[%s177 + $0x88] sm:$0xff]
      %v282 = vld [vmem:[%s177 + $0x90] sm:$0xff]
      %v283 = vld [vmem:[%s177 + $0x98] sm:$0xff]
      %v284 = vld [vmem:[%s177 + $0xa0] sm:$0xff]
      %v285 = vld [vmem:[%s177 + $0xa8] sm:$0xff]
      %v286 = vld [vmem:[%s177 + $0xb0] sm:$0xff]
      %v287 = vld [vmem:[%s177 + $0xb8] sm:$0xff]
      %v288 = vld [vmem:[%s177 + $0xc0] sm:$0xff]
      %v289 = vld [vmem:[%s177 + $0xc8] sm:$0xff]
      %v290 = vld [vmem:[%s177 + $0xd0] sm:$0xff]
      %v291 = vld [vmem:[%s177 + $0xd8] sm:$0xff]
      %v292 = vld [vmem:[%s177 + $0xe0] sm:$0xff]
      %v293 = vld [vmem:[%s177 + $0xe8] sm:$0xff]
      %v294 = vld [vmem:[%s177 + $0xf0] sm:$0xff]
      %v295 = vld [vmem:[%s177 + $0xf8] sm:$0xff]
      %v296 = vld [vmem:[%s1] sm:$0xf]
      %v297 = vld [vmem:[%s1 + $0x4] sm:$0xf]
      %v298 = vld [vmem:[%s1 + $0x8] sm:$0xf]
      %v299 = vld [vmem:[%s1 + $0xc] sm:$0xf]
      %v300 = vld [vmem:[%s1 + $0x10] sm:$0xf]
      %v301 = vld [vmem:[%s1 + $0x14] sm:$0xf]
      %v302 = vld [vmem:[%s1 + $0x18] sm:$0xf]
      %v303 = vld [vmem:[%s1 + $0x1c] sm:$0xf]
      %v304 = vld [vmem:[%s1 + $0x20] sm:$0xf]
      %v305 = vld [vmem:[%s1 + $0x24] sm:$0xf]
      %v306 = vld [vmem:[%s1 + $0x28] sm:$0xf]
      %v307 = vld [vmem:[%s1 + $0x2c] sm:$0xf]
      %v308 = vld [vmem:[%s1 + $0x30] sm:$0xf]
      %v309 = vld [vmem:[%s1 + $0x34] sm:$0xf]
      %v310 = vld [vmem:[%s1 + $0x38] sm:$0xf]
      %v311 = vld [vmem:[%s1 + $0x3c] sm:$0xf]
      %v328 = vunpack.c.l.b16 %v296
      %v329 = vunpack.c.l.b16 %v297
      %v330 = vunpack.c.l.b16 %v298
      %v331 = vunpack.c.l.b16 %v299
      %v332 = vunpack.c.l.b16 %v300
      %v333 = vunpack.c.l.b16 %v301
      %v334 = vunpack.c.l.b16 %v302
      %v335 = vunpack.c.l.b16 %v303
      %v336 = vunpack.c.l.b16 %v304
      %v337 = vunpack.c.l.b16 %v305
      %v338 = vunpack.c.l.b16 %v306
      %v339 = vunpack.c.l.b16 %v307
      %v340 = vunpack.c.l.b16 %v308
      %v341 = vunpack.c.l.b16 %v309
      %v342 = vunpack.c.l.b16 %v310
      %v343 = vunpack.c.l.b16 %v311
      %v344 = vpack.c.b16 %v329, %v328
      %v345 = vpack.c.b16 %v331, %v330
      %v346 = vpack.c.b16 %v333, %v332
      %v347 = vpack.c.b16 %v335, %v334
      %v348 = vpack.c.b16 %v337, %v336
      %v349 = vpack.c.b16 %v339, %v338
      %v350 = vpack.c.b16 %v341, %v340
      %v351 = vpack.c.b16 %v343, %v342
      %360 = vmatprep.subr.bf16.mxu0 0
      %361 = vmatpush1.bf16.msra.mxu0 %v344
      %362 = vmatprep.subr.bf16.mxu0 0
      %363 = vmatpush1.bf16.msra.mxu0 %v345
      %364 = vmatprep.subr.bf16.mxu0 0
      %365 = vmatpush1.bf16.msra.mxu0 %v346
      %366 = vmatprep.subr.bf16.mxu0 0
      %367 = vmatpush1.bf16.msra.mxu0 %v347
      %368 = vmatprep.subr.bf16.mxu0 0
      %369 = vmatpush1.bf16.msra.mxu0 %v348
      %370 = vmatprep.subr.bf16.mxu0 0
      %371 = vmatpush1.bf16.msra.mxu0 %v349
      %372 = vmatprep.subr.bf16.mxu0 0
      %373 = vmatpush1.bf16.msra.mxu0 %v350
      %374 = vmatprep.subr.bf16.mxu0 0
      %375 = vmatpush1.bf16.msra.mxu0 %v351
      %376 = vmatprep.subr.bf16.mxu0 0
      %377 = vmatpush1.bf16.msra.mxu0 0
      %378 = vmatprep.subr.bf16.mxu0 0
      %379 = vmatpush1.bf16.msra.mxu0 0
      %380 = vmatprep.subr.bf16.mxu0 0
      %381 = vmatpush1.bf16.msra.mxu0 0
      %382 = vmatprep.subr.bf16.mxu0 0
      %383 = vmatpush1.bf16.msra.mxu0 0
      %384 = vmatprep.subr.bf16.mxu0 0
      %385 = vmatpush1.bf16.msra.mxu0 0
      %386 = vmatprep.subr.bf16.mxu0 0
      %387 = vmatpush1.bf16.msra.mxu0 0
      %388 = vmatprep.subr.bf16.mxu0 0
      %389 = vmatpush1.bf16.msra.mxu0 0
      %390 = vmatprep.subr.bf16.mxu0 0
      %391 = vmatpush1.bf16.msra.mxu0 0
      %392 = vmatprep.mubr.bf16.mxu0 0
      %393 = vmatmul.mubr.bf16.gmra.mrb[0].mxu0 %v248
      %v394 = vpop.f32.mrb[0].mxu0
      %v395 = vadd.f32 0.0, %v394
      %v396 = vpop.f32.mrb[0].mxu0
      %v397 = vpop.f32.mrb[0].mxu0
      %v398 = vadd.f32 0.0, %v397
      %v399 = vpop.f32.mrb[0].mxu0
      %400 = vmatprep.mubr.bf16.mxu0 0
      %401 = vmatmul.mubr.bf16.gmra.mrb[0].mxu0 %v249
      %v402 = vpop.f32.mrb[0].mxu0
      %v403 = vadd.f32 0.0, %v402
      %v404 = vpop.f32.mrb[0].mxu0
      %v405 = vpop.f32.mrb[0].mxu0
      %v406 = vadd.f32 0.0, %v405
      %v407 = vpop.f32.mrb[0].mxu0
      %408 = vmatprep.mubr.bf16.mxu0 0
      %409 = vmatmul.mubr.bf16.gmra.mrb[0].mxu0 %v250
      %v410 = vpop.f32.mrb[0].mxu0
      %v411 = vadd.f32 0.0, %v410
      %v412 = vpop.f32.mrb[0].mxu0
      %v413 = vpop.f32.mrb[0].mxu0
      %v414 = vadd.f32 0.0, %v413
      %v415 = vpop.f32.mrb[0].mxu0
      %416 = vmatprep.mubr.bf16.mxu0 0
      %417 = vmatmul.mubr.bf16.gmra.mrb[0].mxu0 %v251
      %v418 = vpop.f32.mrb[0].mxu0
      %v419 = vadd.f32 0.0, %v418
      %v420 = vpop.f32.mrb[0].mxu0
      %v421 = vpop.f32.mrb[0].mxu0
      %v422 = vadd.f32 0.0, %v421
      %v423 = vpop.f32.mrb[0].mxu0
      %424 = vmatprep.mubr.bf16.mxu0 0
      %425 = vmatmul.mubr.bf16.gmra.mrb[0].mxu0 %v252
      %v426 = vpop.f32.mrb[0].mxu0
      %v427 = vadd.f32 0.0, %v426
      %v428 = vpop.f32.mrb[0].mxu0
      %v429 = vpop.f32.mrb[0].mxu0
      %v430 = vadd.f32 0.0, %v429
      %v431 = vpop.f32.mrb[0].mxu0
      %432 = vmatprep.mubr.bf16.mxu0 0
      %433 = vmatmul.mubr.bf16.gmra.mrb[0].mxu0 %v253
      %v434 = vpop.f32.mrb[0].mxu0
      %v435 = vadd.f32 0.0, %v434
      %v436 = vpop.f32.mrb[0].mxu0
      %v437 = vpop.f32.mrb[0].mxu0
      %v438 = vadd.f32 0.0, %v437
      %v439 = vpop.f32.mrb[0].mxu0
      %440 = vmatprep.mubr.bf16.mxu0 0
      %441 = vmatmul.mubr.bf16.gmra.mrb[0].mxu0 %v254
      %v442 = vpop.f32.mrb[0].mxu0
      %v443 = vadd.f32 0.0, %v442
      %v444 = vpop.f32.mrb[0].mxu0
      %v445 = vpop.f32.mrb[0].mxu0
      %v446 = vadd.f32 0.0, %v445
      %v447 = vpop.f32.mrb[0].mxu0
      %448 = vmatprep.mubr.bf16.mxu0 0
      %449 = vmatmul.mubr.bf16.gmra.mrb[0].mxu0 %v255
      %v450 = vpop.f32.mrb[0].mxu0
      %v451 = vadd.f32 0.0, %v450
      %v452 = vpop.f32.mrb[0].mxu0
      %v453 = vpop.f32.mrb[0].mxu0
      %v454 = vadd.f32 0.0, %v453
      %v455 = vpop.f32.mrb[0].mxu0
      %456 = vmatprep.mubr.bf16.mxu0 0
      %457 = vmatmul.mubr.bf16.gmra.mrb[0].mxu0 %v256
      %v458 = vpop.f32.mrb[0].mxu0
      %v459 = vadd.f32 0.0, %v458
      %v460 = vpop.f32.mrb[0].mxu0
      %v461 = vpop.f32.mrb[0].mxu0
      %v462 = vadd.f32 0.0, %v461
      %v463 = vpop.f32.mrb[0].mxu0
      %464 = vmatprep.mubr.bf16.mxu0 0
      %465 = vmatmul.mubr.bf16.gmra.mrb[0].mxu0 %v257
      %v466 = vpop.f32.mrb[0].mxu0
      %v467 = vadd.f32 0.0, %v466
      %v468 = vpop.f32.mrb[0].mxu0
      %v469 = vpop.f32.mrb[0].mxu0
      %v470 = vadd.f32 0.0, %v469
      %v471 = vpop.f32.mrb[0].mxu0
      %472 = vmatprep.mubr.bf16.mxu0 0
      %473 = vmatmul.mubr.bf16.gmra.mrb[0].mxu0 %v258
      %v474 = vpop.f32.mrb[0].mxu0
      %v475 = vadd.f32 0.0, %v474
      %v476 = vpop.f32.mrb[0].mxu0
      %v477 = vpop.f32.mrb[0].mxu0
      %v478 = vadd.f32 0.0, %v477
      %v479 = vpop.f32.mrb[0].mxu0
      %480 = vmatprep.mubr.bf16.mxu0 0
      %481 = vmatmul.mubr.bf16.gmra.mrb[0].mxu0 %v259
      %v482 = vpop.f32.mrb[0].mxu0
      %v483 = vadd.f32 0.0, %v482
      %v484 = vpop.f32.mrb[0].mxu0
      %v485 = vpop.f32.mrb[0].mxu0
      %v486 = vadd.f32 0.0, %v485
      %v487 = vpop.f32.mrb[0].mxu0
      %488 = vmatprep.mubr.bf16.mxu0 0
      %489 = vmatmul.mubr.bf16.gmra.mrb[0].mxu0 %v260
      %v490 = vpop.f32.mrb[0].mxu0
      %v491 = vadd.f32 0.0, %v490
      %v492 = vpop.f32.mrb[0].mxu0
      %v493 = vpop.f32.mrb[0].mxu0
      %v494 = vadd.f32 0.0, %v493
      %v495 = vpop.f32.mrb[0].mxu0
      %496 = vmatprep.mubr.bf16.mxu0 0
      %497 = vmatmul.mubr.bf16.gmra.mrb[0].mxu0 %v261
      %v498 = vpop.f32.mrb[0].mxu0
      %v499 = vadd.f32 0.0, %v498
      %v500 = vpop.f32.mrb[0].mxu0
      %v501 = vpop.f32.mrb[0].mxu0
      %v502 = vadd.f32 0.0, %v501
      %v503 = vpop.f32.mrb[0].mxu0
      %504 = vmatprep.mubr.bf16.mxu0 0
      %505 = vmatmul.mubr.bf16.gmra.mrb[0].mxu0 %v262
      %v506 = vpop.f32.mrb[0].mxu0
      %v507 = vadd.f32 0.0, %v506
      %v508 = vpop.f32.mrb[0].mxu0
      %v509 = vpop.f32.mrb[0].mxu0
      %v510 = vadd.f32 0.0, %v509
      %v511 = vpop.f32.mrb[0].mxu0
      %512 = vmatprep.mubr.bf16.mxu0 0
      %513 = vmatmul.mubr.bf16.gmra.mrb[0].mxu0 %v263
      %v514 = vpop.f32.mrb[0].mxu0
      %v515 = vadd.f32 0.0, %v514
      %v516 = vpop.f32.mrb[0].mxu0
      %v517 = vpop.f32.mrb[0].mxu0
      %v518 = vadd.f32 0.0, %v517
      %v519 = vpop.f32.mrb[0].mxu0
      %520 = vdwg.mxu0
      %v521 = vadd.f32 %v264, %v395
      %v522 = vadd.f32 %v265, %v398
      %v523 = vadd.f32 %v266, %v403
      %v524 = vadd.f32 %v267, %v406
      %v525 = vadd.f32 %v268, %v411
      %v526 = vadd.f32 %v269, %v414
      %v527 = vadd.f32 %v270, %v419
      %v528 = vadd.f32 %v271, %v422
      %v529 = vadd.f32 %v272, %v427
      %v530 = vadd.f32 %v273, %v430
      %v531 = vadd.f32 %v274, %v435
      %v532 = vadd.f32 %v275, %v438
      %v533 = vadd.f32 %v276, %v443
      %v534 = vadd.f32 %v277, %v446
      %v535 = vadd.f32 %v278, %v451
      %v536 = vadd.f32 %v279, %v454
      %v537 = vadd.f32 %v280, %v459
      %v538 = vadd.f32 %v281, %v462
      %v539 = vadd.f32 %v282, %v467
      %v540 = vadd.f32 %v283, %v470
      %v541 = vadd.f32 %v284, %v475
      %v542 = vadd.f32 %v285, %v478
      %v543 = vadd.f32 %v286, %v483
      %v544 = vadd.f32 %v287, %v486
      %v545 = vadd.f32 %v288, %v491
      %v546 = vadd.f32 %v289, %v494
      %v547 = vadd.f32 %v290, %v499
      %v548 = vadd.f32 %v291, %v502
      %v549 = vadd.f32 %v292, %v507
      %v550 = vadd.f32 %v293, %v510
      %v551 = vadd.f32 %v294, %v515
      %v552 = vadd.f32 %v295, %v518
      %553 = vst [vmem:[%s177] sm:$0xff] %v521
      %554 = vst [vmem:[%s177 + $0x8] sm:$0xff] %v522
      %555 = vst [vmem:[%s177 + $0x10] sm:$0xff] %v523
      %556 = vst [vmem:[%s177 + $0x18] sm:$0xff] %v524
      %557 = vst [vmem:[%s177 + $0x20] sm:$0xff] %v525
      %558 = vst [vmem:[%s177 + $0x28] sm:$0xff] %v526
      %559 = vst [vmem:[%s177 + $0x30] sm:$0xff] %v527
      %560 = vst [vmem:[%s177 + $0x38] sm:$0xff] %v528
      %561 = vst [vmem:[%s177 + $0x40] sm:$0xff] %v529
      %562 = vst [vmem:[%s177 + $0x48] sm:$0xff] %v530
      %563 = vst [vmem:[%s177 + $0x50] sm:$0xff] %v531
      %564 = vst [vmem:[%s177 + $0x58] sm:$0xff] %v532
      %565 = vst [vmem:[%s177 + $0x60] sm:$0xff] %v533
      %566 = vst [vmem:[%s177 + $0x68] sm:$0xff] %v534
      %567 = vst [vmem:[%s177 + $0x70] sm:$0xff] %v535
      %568 = vst [vmem:[%s177 + $0x78] sm:$0xff] %v536
      %569 = vst [vmem:[%s177 + $0x80] sm:$0xff] %v537
      %570 = vst [vmem:[%s177 + $0x88] sm:$0xff] %v538
      %571 = vst [vmem:[%s177 + $0x90] sm:$0xff] %v539
      %572 = vst [vmem:[%s177 + $0x98] sm:$0xff] %v540
      %573 = vst [vmem:[%s177 + $0xa0] sm:$0xff] %v541
      %574 = vst [vmem:[%s177 + $0xa8] sm:$0xff] %v542
      %575 = vst [vmem:[%s177 + $0xb0] sm:$0xff] %v543
      %576 = vst [vmem:[%s177 + $0xb8] sm:$0xff] %v544
      %577 = vst [vmem:[%s177 + $0xc0] sm:$0xff] %v545
      %578 = vst [vmem:[%s177 + $0xc8] sm:$0xff] %v546
      %579 = vst [vmem:[%s177 + $0xd0] sm:$0xff] %v547
      %580 = vst [vmem:[%s177 + $0xd8] sm:$0xff] %v548
      %581 = vst [vmem:[%s177 + $0xe0] sm:$0xff] %v549
      %582 = vst [vmem:[%s177 + $0xe8] sm:$0xff] %v550
      %583 = vst [vmem:[%s177 + $0xf0] sm:$0xff] %v551
      %584 = vst [vmem:[%s177 + $0xf8] sm:$0xff] %v552
      %v585 = vld [vmem:[%s172 + $0x1] sm:$0xff]
      %v586 = vld [vmem:[%s172 + $0x9] sm:$0xff]
      %v587 = vld [vmem:[%s172 + $0x19] sm:$0xff]
      %v588 = vld [vmem:[%s172 + $0x21] sm:$0xff]
      %v589 = vld [vmem:[%s172 + $0x31] sm:$0xff]
      %v590 = vld [vmem:[%s172 + $0x39] sm:$0xff]
      %v591 = vld [vmem:[%s172 + $0x49] sm:$0xff]
      %v592 = vld [vmem:[%s172 + $0x51] sm:$0xff]
      %v593 = vld [vmem:[%s172 + $0x61] sm:$0xff]
      %v594 = vld [vmem:[%s172 + $0x69] sm:$0xff]
      %v595 = vld [vmem:[%s172 + $0x79] sm:$0xff]
      %v596 = vld [vmem:[%s172 + $0x81] sm:$0xff]
      %v597 = vld [vmem:[%s172 + $0x91] sm:$0xff]
      %v598 = vld [vmem:[%s172 + $0x99] sm:$0xff]
      %v599 = vld [vmem:[%s172 + $0xa9] sm:$0xff]
      %v600 = vld [vmem:[%s172 + $0xb1] sm:$0xff]
      %v601 = vld [vmem:[%s172 + $0xc1] sm:$0xff]
      %v602 = vld [vmem:[%s172 + $0xc9] sm:$0xff]
      %v603 = vld [vmem:[%s172 + $0xd9] sm:$0xff]
      %v604 = vld [vmem:[%s172 + $0xe1] sm:$0xff]
      %v605 = vld [vmem:[%s172 + $0xf1] sm:$0xff]
      %v606 = vld [vmem:[%s172 + $0xf9] sm:$0xff]
      %v607 = vld [vmem:[%s172 + $0x109] sm:$0xff]
      %v608 = vld [vmem:[%s172 + $0x111] sm:$0xff]
      %v609 = vld [vmem:[%s172 + $0x121] sm:$0xff]
      %v610 = vld [vmem:[%s172 + $0x129] sm:$0xff]
      %v611 = vld [vmem:[%s172 + $0x139] sm:$0xff]
      %v612 = vld [vmem:[%s172 + $0x141] sm:$0xff]
      %v613 = vld [vmem:[%s172 + $0x151] sm:$0xff]
      %v614 = vld [vmem:[%s172 + $0x159] sm:$0xff]
      %v615 = vld [vmem:[%s172 + $0x169] sm:$0xff]
      %v616 = vld [vmem:[%s172 + $0x171] sm:$0xff]
      %v617 = vpack.c.bf16 %v586, %v585
      %v618 = vpack.c.bf16 %v588, %v587
      %v619 = vpack.c.bf16 %v590, %v589
      %v620 = vpack.c.bf16 %v592, %v591
      %v621 = vpack.c.bf16 %v594, %v593
      %v622 = vpack.c.bf16 %v596, %v595
      %v623 = vpack.c.bf16 %v598, %v597
      %v624 = vpack.c.bf16 %v600, %v599
      %v625 = vpack.c.bf16 %v602, %v601
      %v626 = vpack.c.bf16 %v604, %v603
      %v627 = vpack.c.bf16 %v606, %v605
      %v628 = vpack.c.bf16 %v608, %v607
      %v629 = vpack.c.bf16 %v610, %v609
      %v630 = vpack.c.bf16 %v612, %v611
      %v631 = vpack.c.bf16 %v614, %v613
      %v632 = vpack.c.bf16 %v616, %v615
      %v633 = vld [vmem:[%s177] sm:$0xff]
      %v634 = vld [vmem:[%s177 + $0x8] sm:$0xff]
      %v635 = vld [vmem:[%s177 + $0x10] sm:$0xff]
      %v636 = vld [vmem:[%s177 + $0x18] sm:$0xff]
      %v637 = vld [vmem:[%s177 + $0x20] sm:$0xff]
      %v638 = vld [vmem:[%s177 + $0x28] sm:$0xff]
      %v639 = vld [vmem:[%s177 + $0x30] sm:$0xff]
      %v640 = vld [vmem:[%s177 + $0x38] sm:$0xff]
      %v641 = vld [vmem:[%s177 + $0x40] sm:$0xff]
      %v642 = vld [vmem:[%s177 + $0x48] sm:$0xff]
      %v643 = vld [vmem:[%s177 + $0x50] sm:$0xff]
      %v644 = vld [vmem:[%s177 + $0x58] sm:$0xff]
      %v645 = vld [vmem:[%s177 + $0x60] sm:$0xff]
      %v646 = vld [vmem:[%s177 + $0x68] sm:$0xff]
      %v647 = vld [vmem:[%s177 + $0x70] sm:$0xff]
      %v648 = vld [vmem:[%s177 + $0x78] sm:$0xff]
      %v649 = vld [vmem:[%s177 + $0x80] sm:$0xff]
      %v650 = vld [vmem:[%s177 + $0x88] sm:$0xff]
      %v651 = vld [vmem:[%s177 + $0x90] sm:$0xff]
      %v652 = vld [vmem:[%s177 + $0x98] sm:$0xff]
      %v653 = vld [vmem:[%s177 + $0xa0] sm:$0xff]
      %v654 = vld [vmem:[%s177 + $0xa8] sm:$0xff]
      %v655 = vld [vmem:[%s177 + $0xb0] sm:$0xff]
      %v656 = vld [vmem:[%s177 + $0xb8] sm:$0xff]
      %v657 = vld [vmem:[%s177 + $0xc0] sm:$0xff]
      %v658 = vld [vmem:[%s177 + $0xc8] sm:$0xff]
      %v659 = vld [vmem:[%s177 + $0xd0] sm:$0xff]
      %v660 = vld [vmem:[%s177 + $0xd8] sm:$0xff]
      %v661 = vld [vmem:[%s177 + $0xe0] sm:$0xff]
      %v662 = vld [vmem:[%s177 + $0xe8] sm:$0xff]
      %v663 = vld [vmem:[%s177 + $0xf0] sm:$0xff]
      %v664 = vld [vmem:[%s177 + $0xf8] sm:$0xff]
      %s665 = scalar_lea.vmem %s1, 64
      %v666 = vld [vmem:[%s665] sm:$0xf]
      %v667 = vld [vmem:[%s665 + $0x4] sm:$0xf]
      %v668 = vld [vmem:[%s665 + $0x8] sm:$0xf]
      %v669 = vld [vmem:[%s665 + $0xc] sm:$0xf]
      %v670 = vld [vmem:[%s665 + $0x10] sm:$0xf]
      %v671 = vld [vmem:[%s665 + $0x14] sm:$0xf]
      %v672 = vld [vmem:[%s665 + $0x18] sm:$0xf]
      %v673 = vld [vmem:[%s665 + $0x1c] sm:$0xf]
      %v674 = vld [vmem:[%s665 + $0x20] sm:$0xf]
      %v675 = vld [vmem:[%s665 + $0x24] sm:$0xf]
      %v676 = vld [vmem:[%s665 + $0x28] sm:$0xf]
      %v677 = vld [vmem:[%s665 + $0x2c] sm:$0xf]
      %v678 = vld [vmem:[%s665 + $0x30] sm:$0xf]
      %v679 = vld [vmem:[%s665 + $0x34] sm:$0xf]
      %v680 = vld [vmem:[%s665 + $0x38] sm:$0xf]
      %v681 = vld [vmem:[%s665 + $0x3c] sm:$0xf]
      %v698 = vunpack.c.l.b16 %v666
      %v699 = vunpack.c.l.b16 %v667
      %v700 = vunpack.c.l.b16 %v668
      %v701 = vunpack.c.l.b16 %v669
      %v702 = vunpack.c.l.b16 %v670
      %v703 = vunpack.c.l.b16 %v671
      %v704 = vunpack.c.l.b16 %v672
      %v705 = vunpack.c.l.b16 %v673
      %v706 = vunpack.c.l.b16 %v674
      %v707 = vunpack.c.l.b16 %v675
      %v708 = vunpack.c.l.b16 %v676
      %v709 = vunpack.c.l.b16 %v677
      %v710 = vunpack.c.l.b16 %v678
      %v711 = vunpack.c.l.b16 %v679
      %v712 = vunpack.c.l.b16 %v680
      %v713 = vunpack.c.l.b16 %v681
      %v714 = vpack.c.b16 %v699, %v698
      %v715 = vpack.c.b16 %v701, %v700
      %v716 = vpack.c.b16 %v703, %v702
      %v717 = vpack.c.b16 %v705, %v704
      %v718 = vpack.c.b16 %v707, %v706
      %v719 = vpack.c.b16 %v709, %v708
      %v720 = vpack.c.b16 %v711, %v710
      %v721 = vpack.c.b16 %v713, %v712
      %730 = vmatprep.subr.bf16.mxu0 0
      %731 = vmatpush1.bf16.msra.mxu0 %v714
      %732 = vmatprep.subr.bf16.mxu0 0
      %733 = vmatpush1.bf16.msra.mxu0 %v715
      %734 = vmatprep.subr.bf16.mxu0 0
      %735 = vmatpush1.bf16.msra.mxu0 %v716
      %736 = vmatprep.subr.bf16.mxu0 0
      %737 = vmatpush1.bf16.msra.mxu0 %v717
      %738 = vmatprep.subr.bf16.mxu0 0
      %739 = vmatpush1.bf16.msra.mxu0 %v718
      %740 = vmatprep.subr.bf16.mxu0 0
      %741 = vmatpush1.bf16.msra.mxu0 %v719
      %742 = vmatprep.subr.bf16.mxu0 0
      %743 = vmatpush1.bf16.msra.mxu0 %v720
      %744 = vmatprep.subr.bf16.mxu0 0
      %745 = vmatpush1.bf16.msra.mxu0 %v721
      %746 = vmatprep.subr.bf16.mxu0 0
      %747 = vmatpush1.bf16.msra.mxu0 0
      %748 = vmatprep.subr.bf16.mxu0 0
      %749 = vmatpush1.bf16.msra.mxu0 0
      %750 = vmatprep.subr.bf16.mxu0 0
      %751 = vmatpush1.bf16.msra.mxu0 0
      %752 = vmatprep.subr.bf16.mxu0 0
      %753 = vmatpush1.bf16.msra.mxu0 0
      %754 = vmatprep.subr.bf16.mxu0 0
      %755 = vmatpush1.bf16.msra.mxu0 0
      %756 = vmatprep.subr.bf16.mxu0 0
      %757 = vmatpush1.bf16.msra.mxu0 0
      %758 = vmatprep.subr.bf16.mxu0 0
      %759 = vmatpush1.bf16.msra.mxu0 0
      %760 = vmatprep.subr.bf16.mxu0 0
      %761 = vmatpush1.bf16.msra.mxu0 0
      %762 = vmatprep.mubr.bf16.mxu0 0
      %763 = vmatmul.mubr.bf16.gmra.mrb[0].mxu0 %v617
      %v764 = vpop.f32.mrb[0].mxu0
      %v765 = vadd.f32 0.0, %v764
      %v766 = vpop.f32.mrb[0].mxu0
      %v767 = vpop.f32.mrb[0].mxu0
      %v768 = vadd.f32 0.0, %v767
      %v769 = vpop.f32.mrb[0].mxu0
      %770 = vmatprep.mubr.bf16.mxu0 0
      %771 = vmatmul.mubr.bf16.gmra.mrb[0].mxu0 %v618
      %v772 = vpop.f32.mrb[0].mxu0
      %v773 = vadd.f32 0.0, %v772
      %v774 = vpop.f32.mrb[0].mxu0
      %v775 = vpop.f32.mrb[0].mxu0
      %v776 = vadd.f32 0.0, %v775
      %v777 = vpop.f32.mrb[0].mxu0
      %778 = vmatprep.mubr.bf16.mxu0 0
      %779 = vmatmul.mubr.bf16.gmra.mrb[0].mxu0 %v619
      %v780 = vpop.f32.mrb[0].mxu0
      %v781 = vadd.f32 0.0, %v780
      %v782 = vpop.f32.mrb[0].mxu0
      %v783 = vpop.f32.mrb[0].mxu0
      %v784 = vadd.f32 0.0, %v783
      %v785 = vpop.f32.mrb[0].mxu0
      %786 = vmatprep.mubr.bf16.mxu0 0
      %787 = vmatmul.mubr.bf16.gmra.mrb[0].mxu0 %v620
      %v788 = vpop.f32.mrb[0].mxu0
      %v789 = vadd.f32 0.0, %v788
      %v790 = vpop.f32.mrb[0].mxu0
      %v791 = vpop.f32.mrb[0].mxu0
      %v792 = vadd.f32 0.0, %v791
      %v793 = vpop.f32.mrb[0].mxu0
      %794 = vmatprep.mubr.bf16.mxu0 0
      %795 = vmatmul.mubr.bf16.gmra.mrb[0].mxu0 %v621
      %v796 = vpop.f32.mrb[0].mxu0
      %v797 = vadd.f32 0.0, %v796
      %v798 = vpop.f32.mrb[0].mxu0
      %v799 = vpop.f32.mrb[0].mxu0
      %v800 = vadd.f32 0.0, %v799
      %v801 = vpop.f32.mrb[0].mxu0
      %802 = vmatprep.mubr.bf16.mxu0 0
      %803 = vmatmul.mubr.bf16.gmra.mrb[0].mxu0 %v622
      %v804 = vpop.f32.mrb[0].mxu0
      %v805 = vadd.f32 0.0, %v804
      %v806 = vpop.f32.mrb[0].mxu0
      %v807 = vpop.f32.mrb[0].mxu0
      %v808 = vadd.f32 0.0, %v807
      %v809 = vpop.f32.mrb[0].mxu0
      %810 = vmatprep.mubr.bf16.mxu0 0
      %811 = vmatmul.mubr.bf16.gmra.mrb[0].mxu0 %v623
      %v812 = vpop.f32.mrb[0].mxu0
      %v813 = vadd.f32 0.0, %v812
      %v814 = vpop.f32.mrb[0].mxu0
      %v815 = vpop.f32.mrb[0].mxu0
      %v816 = vadd.f32 0.0, %v815
      %v817 = vpop.f32.mrb[0].mxu0
      %818 = vmatprep.mubr.bf16.mxu0 0
      %819 = vmatmul.mubr.bf16.gmra.mrb[0].mxu0 %v624
      %v820 = vpop.f32.mrb[0].mxu0
      %v821 = vadd.f32 0.0, %v820
      %v822 = vpop.f32.mrb[0].mxu0
      %v823 = vpop.f32.mrb[0].mxu0
      %v824 = vadd.f32 0.0, %v823
      %v825 = vpop.f32.mrb[0].mxu0
      %826 = vmatprep.mubr.bf16.mxu0 0
      %827 = vmatmul.mubr.bf16.gmra.mrb[0].mxu0 %v625
      %v828 = vpop.f32.mrb[0].mxu0
      %v829 = vadd.f32 0.0, %v828
      %v830 = vpop.f32.mrb[0].mxu0
      %v831 = vpop.f32.mrb[0].mxu0
      %v832 = vadd.f32 0.0, %v831
      %v833 = vpop.f32.mrb[0].mxu0
      %834 = vmatprep.mubr.bf16.mxu0 0
      %835 = vmatmul.mubr.bf16.gmra.mrb[0].mxu0 %v626
      %v836 = vpop.f32.mrb[0].mxu0
      %v837 = vadd.f32 0.0, %v836
      %v838 = vpop.f32.mrb[0].mxu0
      %v839 = vpop.f32.mrb[0].mxu0
      %v840 = vadd.f32 0.0, %v839
      %v841 = vpop.f32.mrb[0].mxu0
      %842 = vmatprep.mubr.bf16.mxu0 0
      %843 = vmatmul.mubr.bf16.gmra.mrb[0].mxu0 %v627
      %v844 = vpop.f32.mrb[0].mxu0
      %v845 = vadd.f32 0.0, %v844
      %v846 = vpop.f32.mrb[0].mxu0
      %v847 = vpop.f32.mrb[0].mxu0
      %v848 = vadd.f32 0.0, %v847
      %v849 = vpop.f32.mrb[0].mxu0
      %850 = vmatprep.mubr.bf16.mxu0 0
      %851 = vmatmul.mubr.bf16.gmra.mrb[0].mxu0 %v628
      %v852 = vpop.f32.mrb[0].mxu0
      %v853 = vadd.f32 0.0, %v852
      %v854 = vpop.f32.mrb[0].mxu0
      %v855 = vpop.f32.mrb[0].mxu0
      %v856 = vadd.f32 0.0, %v855
      %v857 = vpop.f32.mrb[0].mxu0
      %858 = vmatprep.mubr.bf16.mxu0 0
      %859 = vmatmul.mubr.bf16.gmra.mrb[0].mxu0 %v629
      %v860 = vpop.f32.mrb[0].mxu0
      %v861 = vadd.f32 0.0, %v860
      %v862 = vpop.f32.mrb[0].mxu0
      %v863 = vpop.f32.mrb[0].mxu0
      %v864 = vadd.f32 0.0, %v863
      %v865 = vpop.f32.mrb[0].mxu0
      %866 = vmatprep.mubr.bf16.mxu0 0
      %867 = vmatmul.mubr.bf16.gmra.mrb[0].mxu0 %v630
      %v868 = vpop.f32.mrb[0].mxu0
      %v869 = vadd.f32 0.0, %v868
      %v870 = vpop.f32.mrb[0].mxu0
      %v871 = vpop.f32.mrb[0].mxu0
      %v872 = vadd.f32 0.0, %v871
      %v873 = vpop.f32.mrb[0].mxu0
      %874 = vmatprep.mubr.bf16.mxu0 0
      %875 = vmatmul.mubr.bf16.gmra.mrb[0].mxu0 %v631
      %v876 = vpop.f32.mrb[0].mxu0
      %v877 = vadd.f32 0.0, %v876
      %v878 = vpop.f32.mrb[0].mxu0
      %v879 = vpop.f32.mrb[0].mxu0
      %v880 = vadd.f32 0.0, %v879
      %v881 = vpop.f32.mrb[0].mxu0
      %882 = vmatprep.mubr.bf16.mxu0 0
      %883 = vmatmul.mubr.bf16.gmra.mrb[0].mxu0 %v632
      %v884 = vpop.f32.mrb[0].mxu0
      %v885 = vadd.f32 0.0, %v884
      %v886 = vpop.f32.mrb[0].mxu0
      %v887 = vpop.f32.mrb[0].mxu0
      %v888 = vadd.f32 0.0, %v887
      %v889 = vpop.f32.mrb[0].mxu0
      %890 = vdwg.mxu0
      %v891 = vadd.f32 %v633, %v765
      %v892 = vadd.f32 %v634, %v768
      %v893 = vadd.f32 %v635, %v773
      %v894 = vadd.f32 %v636, %v776
      %v895 = vadd.f32 %v637, %v781
      %v896 = vadd.f32 %v638, %v784
      %v897 = vadd.f32 %v639, %v789
      %v898 = vadd.f32 %v640, %v792
      %v899 = vadd.f32 %v641, %v797
      %v900 = vadd.f32 %v642, %v800
      %v901 = vadd.f32 %v643, %v805
      %v902 = vadd.f32 %v644, %v808
      %v903 = vadd.f32 %v645, %v813
      %v904 = vadd.f32 %v646, %v816
      %v905 = vadd.f32 %v647, %v821
      %v906 = vadd.f32 %v648, %v824
      %v907 = vadd.f32 %v649, %v829
      %v908 = vadd.f32 %v650, %v832
      %v909 = vadd.f32 %v651, %v837
      %v910 = vadd.f32 %v652, %v840
      %v911 = vadd.f32 %v653, %v845
      %v912 = vadd.f32 %v654, %v848
      %v913 = vadd.f32 %v655, %v853
      %v914 = vadd.f32 %v656, %v856
      %v915 = vadd.f32 %v657, %v861
      %v916 = vadd.f32 %v658, %v864
      %v917 = vadd.f32 %v659, %v869
      %v918 = vadd.f32 %v660, %v872
      %v919 = vadd.f32 %v661, %v877
      %v920 = vadd.f32 %v662, %v880
      %v921 = vadd.f32 %v663, %v885
      %v922 = vadd.f32 %v664, %v888
      %923 = vst [vmem:[%s177] sm:$0xff] %v891
      %924 = vst [vmem:[%s177 + $0x8] sm:$0xff] %v892
      %925 = vst [vmem:[%s177 + $0x10] sm:$0xff] %v893
      %926 = vst [vmem:[%s177 + $0x18] sm:$0xff] %v894
      %927 = vst [vmem:[%s177 + $0x20] sm:$0xff] %v895
      %928 = vst [vmem:[%s177 + $0x28] sm:$0xff] %v896
      %929 = vst [vmem:[%s177 + $0x30] sm:$0xff] %v897
      %930 = vst [vmem:[%s177 + $0x38] sm:$0xff] %v898
      %931 = vst [vmem:[%s177 + $0x40] sm:$0xff] %v899
      %932 = vst [vmem:[%s177 + $0x48] sm:$0xff] %v900
      %933 = vst [vmem:[%s177 + $0x50] sm:$0xff] %v901
      %934 = vst [vmem:[%s177 + $0x58] sm:$0xff] %v902
      %935 = vst [vmem:[%s177 + $0x60] sm:$0xff] %v903
      %936 = vst [vmem:[%s177 + $0x68] sm:$0xff] %v904
      %937 = vst [vmem:[%s177 + $0x70] sm:$0xff] %v905
      %938 = vst [vmem:[%s177 + $0x78] sm:$0xff] %v906
      %939 = vst [vmem:[%s177 + $0x80] sm:$0xff] %v907
      %940 = vst [vmem:[%s177 + $0x88] sm:$0xff] %v908
      %941 = vst [vmem:[%s177 + $0x90] sm:$0xff] %v909
      %942 = vst [vmem:[%s177 + $0x98] sm:$0xff] %v910
      %943 = vst [vmem:[%s177 + $0xa0] sm:$0xff] %v911
      %944 = vst [vmem:[%s177 + $0xa8] sm:$0xff] %v912
      %945 = vst [vmem:[%s177 + $0xb0] sm:$0xff] %v913
      %946 = vst [vmem:[%s177 + $0xb8] sm:$0xff] %v914
      %947 = vst [vmem:[%s177 + $0xc0] sm:$0xff] %v915
      %948 = vst [vmem:[%s177 + $0xc8] sm:$0xff] %v916
      %949 = vst [vmem:[%s177 + $0xd0] sm:$0xff] %v917
      %950 = vst [vmem:[%s177 + $0xd8] sm:$0xff] %v918
      %951 = vst [vmem:[%s177 + $0xe0] sm:$0xff] %v919
      %952 = vst [vmem:[%s177 + $0xe8] sm:$0xff] %v920
      %953 = vst [vmem:[%s177 + $0xf0] sm:$0xff] %v921
      %954 = vst [vmem:[%s177 + $0xf8] sm:$0xff] %v922
      %v955 = vld [vmem:[%s172 + $0x2] sm:$0xff]
      %v956 = vld [vmem:[%s172 + $0xa] sm:$0xff]
      %v957 = vld [vmem:[%s172 + $0x1a] sm:$0xff]
      %v958 = vld [vmem:[%s172 + $0x22] sm:$0xff]
      %v959 = vld [vmem:[%s172 + $0x32] sm:$0xff]
      %v960 = vld [vmem:[%s172 + $0x3a] sm:$0xff]
      %v961 = vld [vmem:[%s172 + $0x4a] sm:$0xff]
      %v962 = vld [vmem:[%s172 + $0x52] sm:$0xff]
      %v963 = vld [vmem:[%s172 + $0x62] sm:$0xff]
      %v964 = vld [vmem:[%s172 + $0x6a] sm:$0xff]
      %v965 = vld [vmem:[%s172 + $0x7a] sm:$0xff]
      %v966 = vld [vmem:[%s172 + $0x82] sm:$0xff]
      %v967 = vld [vmem:[%s172 + $0x92] sm:$0xff]
      %v968 = vld [vmem:[%s172 + $0x9a] sm:$0xff]
      %v969 = vld [vmem:[%s172 + $0xaa] sm:$0xff]
      %v970 = vld [vmem:[%s172 + $0xb2] sm:$0xff]
      %v971 = vld [vmem:[%s172 + $0xc2] sm:$0xff]
      %v972 = vld [vmem:[%s172 + $0xca] sm:$0xff]
      %v973 = vld [vmem:[%s172 + $0xda] sm:$0xff]
      %v974 = vld [vmem:[%s172 + $0xe2] sm:$0xff]
      %v975 = vld [vmem:[%s172 + $0xf2] sm:$0xff]
      %v976 = vld [vmem:[%s172 + $0xfa] sm:$0xff]
      %v977 = vld [vmem:[%s172 + $0x10a] sm:$0xff]
      %v978 = vld [vmem:[%s172 + $0x112] sm:$0xff]
      %v979 = vld [vmem:[%s172 + $0x122] sm:$0xff]
      %v980 = vld [vmem:[%s172 + $0x12a] sm:$0xff]
      %v981 = vld [vmem:[%s172 + $0x13a] sm:$0xff]
      %v982 = vld [vmem:[%s172 + $0x142] sm:$0xff]
      %v983 = vld [vmem:[%s172 + $0x152] sm:$0xff]
      %v984 = vld [vmem:[%s172 + $0x15a] sm:$0xff]
      %v985 = vld [vmem:[%s172 + $0x16a] sm:$0xff]
      %v986 = vld [vmem:[%s172 + $0x172] sm:$0xff]
      %v987 = vpack.c.bf16 %v956, %v955
      %v988 = vpack.c.bf16 %v958, %v957
      %v989 = vpack.c.bf16 %v960, %v959
      %v990 = vpack.c.bf16 %v962, %v961
      %v991 = vpack.c.bf16 %v964, %v963
      %v992 = vpack.c.bf16 %v966, %v965
      %v993 = vpack.c.bf16 %v968, %v967
      %v994 = vpack.c.bf16 %v970, %v969
      %v995 = vpack.c.bf16 %v972, %v971
      %v996 = vpack.c.bf16 %v974, %v973
      %v997 = vpack.c.bf16 %v976, %v975
      %v998 = vpack.c.bf16 %v978, %v977
      %v999 = vpack.c.bf16 %v980, %v979
      %v1000 = vpack.c.bf16 %v982, %v981
      %v1001 = vpack.c.bf16 %v984, %v983
      %v1002 = vpack.c.bf16 %v986, %v985
      %v1003 = vld [vmem:[%s177] sm:$0xff]
      %v1004 = vld [vmem:[%s177 + $0x8] sm:$0xff]
      %v1005 = vld [vmem:[%s177 + $0x10] sm:$0xff]
      %v1006 = vld [vmem:[%s177 + $0x18] sm:$0xff]
      %v1007 = vld [vmem:[%s177 + $0x20] sm:$0xff]
      %v1008 = vld [vmem:[%s177 + $0x28] sm:$0xff]
      %v1009 = vld [vmem:[%s177 + $0x30] sm:$0xff]
      %v1010 = vld [vmem:[%s177 + $0x38] sm:$0xff]
      %v1011 = vld [vmem:[%s177 + $0x40] sm:$0xff]
      %v1012 = vld [vmem:[%s177 + $0x48] sm:$0xff]
      %v1013 = vld [vmem:[%s177 + $0x50] sm:$0xff]
      %v1014 = vld [vmem:[%s177 + $0x58] sm:$0xff]
      %v1015 = vld [vmem:[%s177 + $0x60] sm:$0xff]
      %v1016 = vld [vmem:[%s177 + $0x68] sm:$0xff]
      %v1017 = vld [vmem:[%s177 + $0x70] sm:$0xff]
      %v1018 = vld [vmem:[%s177 + $0x78] sm:$0xff]
      %v1019 = vld [vmem:[%s177 + $0x80] sm:$0xff]
      %v1020 = vld [vmem:[%s177 + $0x88] sm:$0xff]
      %v1021 = vld [vmem:[%s177 + $0x90] sm:$0xff]
      %v1022 = vld [vmem:[%s177 + $0x98] sm:$0xff]
      %v1023 = vld [vmem:[%s177 + $0xa0] sm:$0xff]
      %v1024 = vld [vmem:[%s177 + $0xa8] sm:$0xff]
      %v1025 = vld [vmem:[%s177 + $0xb0] sm:$0xff]
      %v1026 = vld [vmem:[%s177 + $0xb8] sm:$0xff]
      %v1027 = vld [vmem:[%s177 + $0xc0] sm:$0xff]
      %v1028 = vld [vmem:[%s177 + $0xc8] sm:$0xff]
      %v1029 = vld [vmem:[%s177 + $0xd0] sm:$0xff]
      %v1030 = vld [vmem:[%s177 + $0xd8] sm:$0xff]
      %v1031 = vld [vmem:[%s177 + $0xe0] sm:$0xff]
      %v1032 = vld [vmem:[%s177 + $0xe8] sm:$0xff]
      %v1033 = vld [vmem:[%s177 + $0xf0] sm:$0xff]
      %v1034 = vld [vmem:[%s177 + $0xf8] sm:$0xff]
      %s1035 = scalar_lea.vmem %s1, 128
      %v1036 = vld [vmem:[%s1035] sm:$0xf]
      %v1037 = vld [vmem:[%s1035 + $0x4] sm:$0xf]
      %v1038 = vld [vmem:[%s1035 + $0x8] sm:$0xf]
      %v1039 = vld [vmem:[%s1035 + $0xc] sm:$0xf]
      %v1040 = vld [vmem:[%s1035 + $0x10] sm:$0xf]
      %v1041 = vld [vmem:[%s1035 + $0x14] sm:$0xf]
      %v1042 = vld [vmem:[%s1035 + $0x18] sm:$0xf]
      %v1043 = vld [vmem:[%s1035 + $0x1c] sm:$0xf]
      %v1044 = vld [vmem:[%s1035 + $0x20] sm:$0xf]
      %v1045 = vld [vmem:[%s1035 + $0x24] sm:$0xf]
      %v1046 = vld [vmem:[%s1035 + $0x28] sm:$0xf]
      %v1047 = vld [vmem:[%s1035 + $0x2c] sm:$0xf]
      %v1048 = vld [vmem:[%s1035 + $0x30] sm:$0xf]
      %v1049 = vld [vmem:[%s1035 + $0x34] sm:$0xf]
      %v1050 = vld [vmem:[%s1035 + $0x38] sm:$0xf]
      %v1051 = vld [vmem:[%s1035 + $0x3c] sm:$0xf]
      %v1068 = vunpack.c.l.b16 %v1036
      %v1069 = vunpack.c.l.b16 %v1037
      %v1070 = vunpack.c.l.b16 %v1038
      %v1071 = vunpack.c.l.b16 %v1039
      %v1072 = vunpack.c.l.b16 %v1040
      %v1073 = vunpack.c.l.b16 %v1041
      %v1074 = vunpack.c.l.b16 %v1042
      %v1075 = vunpack.c.l.b16 %v1043
      %v1076 = vunpack.c.l.b16 %v1044
      %v1077 = vunpack.c.l.b16 %v1045
      %v1078 = vunpack.c.l.b16 %v1046
      %v1079 = vunpack.c.l.b16 %v1047
      %v1080 = vunpack.c.l.b16 %v1048
      %v1081 = vunpack.c.l.b16 %v1049
      %v1082 = vunpack.c.l.b16 %v1050
      %v1083 = vunpack.c.l.b16 %v1051
      %v1084 = vpack.c.b16 %v1069, %v1068
      %v1085 = vpack.c.b16 %v1071, %v1070
      %v1086 = vpack.c.b16 %v1073, %v1072
      %v1087 = vpack.c.b16 %v1075, %v1074
      %v1088 = vpack.c.b16 %v1077, %v1076
      %v1089 = vpack.c.b16 %v1079, %v1078
      %v1090 = vpack.c.b16 %v1081, %v1080
      %v1091 = vpack.c.b16 %v1083, %v1082
      %1100 = vmatprep.subr.bf16.mxu0 0
      %1101 = vmatpush1.bf16.msra.mxu0 %v1084
      %1102 = vmatprep.subr.bf16.mxu0 0
      %1103 = vmatpush1.bf16.msra.mxu0 %v1085
      %1104 = vmatprep.subr.bf16.mxu0 0
      %1105 = vmatpush1.bf16.msra.mxu0 %v1086
      %1106 = vmatprep.subr.bf16.mxu0 0
      %1107 = vmatpush1.bf16.msra.mxu0 %v1087
      %1108 = vmatprep.subr.bf16.mxu0 0
      %1109 = vmatpush1.bf16.msra.mxu0 %v1088
      %1110 = vmatprep.subr.bf16.mxu0 0
      %1111 = vmatpush1.bf16.msra.mxu0 %v1089
      %1112 = vmatprep.subr.bf16.mxu0 0
      %1113 = vmatpush1.bf16.msra.mxu0 %v1090
      %1114 = vmatprep.subr.bf16.mxu0 0
      %1115 = vmatpush1.bf16.msra.mxu0 %v1091
      %1116 = vmatprep.subr.bf16.mxu0 0
      %1117 = vmatpush1.bf16.msra.mxu0 0
      %1118 = vmatprep.subr.bf16.mxu0 0
      %1119 = vmatpush1.bf16.msra.mxu0 0
      %1120 = vmatprep.subr.bf16.mxu0 0
      %1121 = vmatpush1.bf16.msra.mxu0 0
      %1122 = vmatprep.subr.bf16.mxu0 0
      %1123 = vmatpush1.bf16.msra.mxu0 0
      %1124 = vmatprep.subr.bf16.mxu0 0
      %1125 = vmatpush1.bf16.msra.mxu0 0
      %1126 = vmatprep.subr.bf16.mxu0 0
      %1127 = vmatpush1.bf16.msra.mxu0 0
      %1128 = vmatprep.subr.bf16.mxu0 0
      %1129 = vmatpush1.bf16.msra.mxu0 0
      %1130 = vmatprep.subr.bf16.mxu0 0
      %1131 = vmatpush1.bf16.msra.mxu0 0
      %1132 = vmatprep.mubr.bf16.mxu0 0
      %1133 = vmatmul.mubr.bf16.gmra.mrb[0].mxu0 %v987
      %v1134 = vpop.f32.mrb[0].mxu0
      %v1135 = vadd.f32 0.0, %v1134
      %v1136 = vpop.f32.mrb[0].mxu0
      %v1137 = vpop.f32.mrb[0].mxu0
      %v1138 = vadd.f32 0.0, %v1137
      %v1139 = vpop.f32.mrb[0].mxu0
      %1140 = vmatprep.mubr.bf16.mxu0 0
      %1141 = vmatmul.mubr.bf16.gmra.mrb[0].mxu0 %v988
      %v1142 = vpop.f32.mrb[0].mxu0
      %v1143 = vadd.f32 0.0, %v1142
      %v1144 = vpop.f32.mrb[0].mxu0
      %v1145 = vpop.f32.mrb[0].mxu0
      %v1146 = vadd.f32 0.0, %v1145
      %v1147 = vpop.f32.mrb[0].mxu0
      %1148 = vmatprep.mubr.bf16.mxu0 0
      %1149 = vmatmul.mubr.bf16.gmra.mrb[0].mxu0 %v989
      %v1150 = vpop.f32.mrb[0].mxu0
      %v1151 = vadd.f32 0.0, %v1150
      %v1152 = vpop.f32.mrb[0].mxu0
      %v1153 = vpop.f32.mrb[0].mxu0
      %v1154 = vadd.f32 0.0, %v1153
      %v1155 = vpop.f32.mrb[0].mxu0
      %1156 = vmatprep.mubr.bf16.mxu0 0
      %1157 = vmatmul.mubr.bf16.gmra.mrb[0].mxu0 %v990
      %v1158 = vpop.f32.mrb[0].mxu0
      %v1159 = vadd.f32 0.0, %v1158
      %v1160 = vpop.f32.mrb[0].mxu0
      %v1161 = vpop.f32.mrb[0].mxu0
      %v1162 = vadd.f32 0.0, %v1161
      %v1163 = vpop.f32.mrb[0].mxu0
      %1164 = vmatprep.mubr.bf16.mxu0 0
      %1165 = vmatmul.mubr.bf16.gmra.mrb[0].mxu0 %v991
      %v1166 = vpop.f32.mrb[0].mxu0
      %v1167 = vadd.f32 0.0, %v1166
      %v1168 = vpop.f32.mrb[0].mxu0
      %v1169 = vpop.f32.mrb[0].mxu0
      %v1170 = vadd.f32 0.0, %v1169
      %v1171 = vpop.f32.mrb[0].mxu0
      %1172 = vmatprep.mubr.bf16.mxu0 0
      %1173 = vmatmul.mubr.bf16.gmra.mrb[0].mxu0 %v992
      %v1174 = vpop.f32.mrb[0].mxu0
      %v1175 = vadd.f32 0.0, %v1174
      %v1176 = vpop.f32.mrb[0].mxu0
      %v1177 = vpop.f32.mrb[0].mxu0
      %v1178 = vadd.f32 0.0, %v1177
      %v1179 = vpop.f32.mrb[0].mxu0
      %1180 = vmatprep.mubr.bf16.mxu0 0
      %1181 = vmatmul.mubr.bf16.gmra.mrb[0].mxu0 %v993
      %v1182 = vpop.f32.mrb[0].mxu0
      %v1183 = vadd.f32 0.0, %v1182
      %v1184 = vpop.f32.mrb[0].mxu0
      %v1185 = vpop.f32.mrb[0].mxu0
      %v1186 = vadd.f32 0.0, %v1185
      %v1187 = vpop.f32.mrb[0].mxu0
      %1188 = vmatprep.mubr.bf16.mxu0 0
      %1189 = vmatmul.mubr.bf16.gmra.mrb[0].mxu0 %v994
      %v1190 = vpop.f32.mrb[0].mxu0
      %v1191 = vadd.f32 0.0, %v1190
      %v1192 = vpop.f32.mrb[0].mxu0
      %v1193 = vpop.f32.mrb[0].mxu0
      %v1194 = vadd.f32 0.0, %v1193
      %v1195 = vpop.f32.mrb[0].mxu0
      %1196 = vmatprep.mubr.bf16.mxu0 0
      %1197 = vmatmul.mubr.bf16.gmra.mrb[0].mxu0 %v995
      %v1198 = vpop.f32.mrb[0].mxu0
      %v1199 = vadd.f32 0.0, %v1198
      %v1200 = vpop.f32.mrb[0].mxu0
      %v1201 = vpop.f32.mrb[0].mxu0
      %v1202 = vadd.f32 0.0, %v1201
      %v1203 = vpop.f32.mrb[0].mxu0
      %1204 = vmatprep.mubr.bf16.mxu0 0
      %1205 = vmatmul.mubr.bf16.gmra.mrb[0].mxu0 %v996
      %v1206 = vpop.f32.mrb[0].mxu0
      %v1207 = vadd.f32 0.0, %v1206
      %v1208 = vpop.f32.mrb[0].mxu0
      %v1209 = vpop.f32.mrb[0].mxu0
      %v1210 = vadd.f32 0.0, %v1209
      %v1211 = vpop.f32.mrb[0].mxu0
      %1212 = vmatprep.mubr.bf16.mxu0 0
      %1213 = vmatmul.mubr.bf16.gmra.mrb[0].mxu0 %v997
      %v1214 = vpop.f32.mrb[0].mxu0
      %v1215 = vadd.f32 0.0, %v1214
      %v1216 = vpop.f32.mrb[0].mxu0
      %v1217 = vpop.f32.mrb[0].mxu0
      %v1218 = vadd.f32 0.0, %v1217
      %v1219 = vpop.f32.mrb[0].mxu0
      %1220 = vmatprep.mubr.bf16.mxu0 0
      %1221 = vmatmul.mubr.bf16.gmra.mrb[0].mxu0 %v998
      %v1222 = vpop.f32.mrb[0].mxu0
      %v1223 = vadd.f32 0.0, %v1222
      %v1224 = vpop.f32.mrb[0].mxu0
      %v1225 = vpop.f32.mrb[0].mxu0
      %v1226 = vadd.f32 0.0, %v1225
      %v1227 = vpop.f32.mrb[0].mxu0
      %1228 = vmatprep.mubr.bf16.mxu0 0
      %1229 = vmatmul.mubr.bf16.gmra.mrb[0].mxu0 %v999
      %v1230 = vpop.f32.mrb[0].mxu0
      %v1231 = vadd.f32 0.0, %v1230
      %v1232 = vpop.f32.mrb[0].mxu0
      %v1233 = vpop.f32.mrb[0].mxu0
      %v1234 = vadd.f32 0.0, %v1233
      %v1235 = vpop.f32.mrb[0].mxu0
      %1236 = vmatprep.mubr.bf16.mxu0 0
      %1237 = vmatmul.mubr.bf16.gmra.mrb[0].mxu0 %v1000
      %v1238 = vpop.f32.mrb[0].mxu0
      %v1239 = vadd.f32 0.0, %v1238
      %v1240 = vpop.f32.mrb[0].mxu0
      %v1241 = vpop.f32.mrb[0].mxu0
      %v1242 = vadd.f32 0.0, %v1241
      %v1243 = vpop.f32.mrb[0].mxu0
      %1244 = vmatprep.mubr.bf16.mxu0 0
      %1245 = vmatmul.mubr.bf16.gmra.mrb[0].mxu0 %v1001
      %v1246 = vpop.f32.mrb[0].mxu0
      %v1247 = vadd.f32 0.0, %v1246
      %v1248 = vpop.f32.mrb[0].mxu0
      %v1249 = vpop.f32.mrb[0].mxu0
      %v1250 = vadd.f32 0.0, %v1249
      %v1251 = vpop.f32.mrb[0].mxu0
      %1252 = vmatprep.mubr.bf16.mxu0 0
      %1253 = vmatmul.mubr.bf16.gmra.mrb[0].mxu0 %v1002
      %v1254 = vpop.f32.mrb[0].mxu0
      %v1255 = vadd.f32 0.0, %v1254
      %v1256 = vpop.f32.mrb[0].mxu0
      %v1257 = vpop.f32.mrb[0].mxu0
      %v1258 = vadd.f32 0.0, %v1257
      %v1259 = vpop.f32.mrb[0].mxu0
      %1260 = vdwg.mxu0
      %v1261 = vadd.f32 %v1003, %v1135
      %v1262 = vadd.f32 %v1004, %v1138
      %v1263 = vadd.f32 %v1005, %v1143
      %v1264 = vadd.f32 %v1006, %v1146
      %v1265 = vadd.f32 %v1007, %v1151
      %v1266 = vadd.f32 %v1008, %v1154
      %v1267 = vadd.f32 %v1009, %v1159
      %v1268 = vadd.f32 %v1010, %v1162
      %v1269 = vadd.f32 %v1011, %v1167
      %v1270 = vadd.f32 %v1012, %v1170
      %v1271 = vadd.f32 %v1013, %v1175
      %v1272 = vadd.f32 %v1014, %v1178
      %v1273 = vadd.f32 %v1015, %v1183
      %v1274 = vadd.f32 %v1016, %v1186
      %v1275 = vadd.f32 %v1017, %v1191
      %v1276 = vadd.f32 %v1018, %v1194
      %v1277 = vadd.f32 %v1019, %v1199
      %v1278 = vadd.f32 %v1020, %v1202
      %v1279 = vadd.f32 %v1021, %v1207
      %v1280 = vadd.f32 %v1022, %v1210
      %v1281 = vadd.f32 %v1023, %v1215
      %v1282 = vadd.f32 %v1024, %v1218
      %v1283 = vadd.f32 %v1025, %v1223
      %v1284 = vadd.f32 %v1026, %v1226
      %v1285 = vadd.f32 %v1027, %v1231
      %v1286 = vadd.f32 %v1028, %v1234
      %v1287 = vadd.f32 %v1029, %v1239
      %v1288 = vadd.f32 %v1030, %v1242
      %v1289 = vadd.f32 %v1031, %v1247
      %v1290 = vadd.f32 %v1032, %v1250
      %v1291 = vadd.f32 %v1033, %v1255
      %v1292 = vadd.f32 %v1034, %v1258
      %1293 = vst [vmem:[%s177] sm:$0xff] %v1261
      %1294 = vst [vmem:[%s177 + $0x8] sm:$0xff] %v1262
      %1295 = vst [vmem:[%s177 + $0x10] sm:$0xff] %v1263
      %1296 = vst [vmem:[%s177 + $0x18] sm:$0xff] %v1264
      %1297 = vst [vmem:[%s177 + $0x20] sm:$0xff] %v1265
      %1298 = vst [vmem:[%s177 + $0x28] sm:$0xff] %v1266
      %1299 = vst [vmem:[%s177 + $0x30] sm:$0xff] %v1267
      %1300 = vst [vmem:[%s177 + $0x38] sm:$0xff] %v1268
      %1301 = vst [vmem:[%s177 + $0x40] sm:$0xff] %v1269
      %1302 = vst [vmem:[%s177 + $0x48] sm:$0xff] %v1270
      %1303 = vst [vmem:[%s177 + $0x50] sm:$0xff] %v1271
      %1304 = vst [vmem:[%s177 + $0x58] sm:$0xff] %v1272
      %1305 = vst [vmem:[%s177 + $0x60] sm:$0xff] %v1273
      %1306 = vst [vmem:[%s177 + $0x68] sm:$0xff] %v1274
      %1307 = vst [vmem:[%s177 + $0x70] sm:$0xff] %v1275
      %1308 = vst [vmem:[%s177 + $0x78] sm:$0xff] %v1276
      %1309 = vst [vmem:[%s177 + $0x80] sm:$0xff] %v1277
      %1310 = vst [vmem:[%s177 + $0x88] sm:$0xff] %v1278
      %1311 = vst [vmem:[%s177 + $0x90] sm:$0xff] %v1279
      %1312 = vst [vmem:[%s177 + $0x98] sm:$0xff] %v1280
      %1313 = vst [vmem:[%s177 + $0xa0] sm:$0xff] %v1281
      %1314 = vst [vmem:[%s177 + $0xa8] sm:$0xff] %v1282
      %1315 = vst [vmem:[%s177 + $0xb0] sm:$0xff] %v1283
      %1316 = vst [vmem:[%s177 + $0xb8] sm:$0xff] %v1284
      %1317 = vst [vmem:[%s177 + $0xc0] sm:$0xff] %v1285
      %1318 = vst [vmem:[%s177 + $0xc8] sm:$0xff] %v1286
      %1319 = vst [vmem:[%s177 + $0xd0] sm:$0xff] %v1287
      %1320 = vst [vmem:[%s177 + $0xd8] sm:$0xff] %v1288
      %1321 = vst [vmem:[%s177 + $0xe0] sm:$0xff] %v1289
      %1322 = vst [vmem:[%s177 + $0xe8] sm:$0xff] %v1290
      %1323 = vst [vmem:[%s177 + $0xf0] sm:$0xff] %v1291
      %1324 = vst [vmem:[%s177 + $0xf8] sm:$0xff] %v1292
      %s1325 = scalar_lea.vmem %s172, 24
      %v1326 = vld [vmem:[%s1325] sm:$0xff]
      %v1327 = vld [vmem:[%s1325 + $0x8] sm:$0xff]
      %v1328 = vld [vmem:[%s1325 + $0x18] sm:$0xff]
      %v1329 = vld [vmem:[%s1325 + $0x20] sm:$0xff]
      %v1330 = vld [vmem:[%s1325 + $0x30] sm:$0xff]
      %v1331 = vld [vmem:[%s1325 + $0x38] sm:$0xff]
      %v1332 = vld [vmem:[%s1325 + $0x48] sm:$0xff]
      %v1333 = vld [vmem:[%s1325 + $0x50] sm:$0xff]
      %v1334 = vld [vmem:[%s1325 + $0x60] sm:$0xff]
      %v1335 = vld [vmem:[%s1325 + $0x68] sm:$0xff]
      %v1336 = vld [vmem:[%s1325 + $0x78] sm:$0xff]
      %v1337 = vld [vmem:[%s1325 + $0x80] sm:$0xff]
      %v1338 = vld [vmem:[%s1325 + $0x90] sm:$0xff]
      %v1339 = vld [vmem:[%s1325 + $0x98] sm:$0xff]
      %v1340 = vld [vmem:[%s1325 + $0xa8] sm:$0xff]
      %v1341 = vld [vmem:[%s1325 + $0xb0] sm:$0xff]
      %v1342 = vld [vmem:[%s1325 + $0xc0] sm:$0xff]
      %v1343 = vld [vmem:[%s1325 + $0xc8] sm:$0xff]
      %v1344 = vld [vmem:[%s1325 + $0xd8] sm:$0xff]
      %v1345 = vld [vmem:[%s1325 + $0xe0] sm:$0xff]
      %v1346 = vld [vmem:[%s1325 + $0xf0] sm:$0xff]
      %v1347 = vld [vmem:[%s1325 + $0xf8] sm:$0xff]
      %v1348 = vld [vmem:[%s1325 + $0x108] sm:$0xff]
      %v1349 = vld [vmem:[%s1325 + $0x110] sm:$0xff]
      %v1350 = vld [vmem:[%s1325 + $0x120] sm:$0xff]
      %v1351 = vld [vmem:[%s1325 + $0x128] sm:$0xff]
      %v1352 = vld [vmem:[%s1325 + $0x138] sm:$0xff]
      %v1353 = vld [vmem:[%s1325 + $0x140] sm:$0xff]
      %v1354 = vld [vmem:[%s1325 + $0x150] sm:$0xff]
      %v1355 = vld [vmem:[%s1325 + $0x158] sm:$0xff]
      %v1356 = vld [vmem:[%s1325 + $0x168] sm:$0xff]
      %v1357 = vld [vmem:[%s1325 + $0x170] sm:$0xff]
      %v1358 = vpack.c.bf16 %v1327, %v1326
      %v1359 = vpack.c.bf16 %v1329, %v1328
      %v1360 = vpack.c.bf16 %v1331, %v1330
      %v1361 = vpack.c.bf16 %v1333, %v1332
      %v1362 = vpack.c.bf16 %v1335, %v1334
      %v1363 = vpack.c.bf16 %v1337, %v1336
      %v1364 = vpack.c.bf16 %v1339, %v1338
      %v1365 = vpack.c.bf16 %v1341, %v1340
      %v1366 = vpack.c.bf16 %v1343, %v1342
      %v1367 = vpack.c.bf16 %v1345, %v1344
      %v1368 = vpack.c.bf16 %v1347, %v1346
      %v1369 = vpack.c.bf16 %v1349, %v1348
      %v1370 = vpack.c.bf16 %v1351, %v1350
      %v1371 = vpack.c.bf16 %v1353, %v1352
      %v1372 = vpack.c.bf16 %v1355, %v1354
      %v1373 = vpack.c.bf16 %v1357, %v1356
      %v1374 = vld [vmem:[%s177] sm:$0xff]
      %v1375 = vld [vmem:[%s177 + $0x8] sm:$0xff]
      %v1376 = vld [vmem:[%s177 + $0x10] sm:$0xff]
      %v1377 = vld [vmem:[%s177 + $0x18] sm:$0xff]
      %v1378 = vld [vmem:[%s177 + $0x20] sm:$0xff]
      %v1379 = vld [vmem:[%s177 + $0x28] sm:$0xff]
      %v1380 = vld [vmem:[%s177 + $0x30] sm:$0xff]
      %v1381 = vld [vmem:[%s177 + $0x38] sm:$0xff]
      %v1382 = vld [vmem:[%s177 + $0x40] sm:$0xff]
      %v1383 = vld [vmem:[%s177 + $0x48] sm:$0xff]
      %v1384 = vld [vmem:[%s177 + $0x50] sm:$0xff]
      %v1385 = vld [vmem:[%s177 + $0x58] sm:$0xff]
      %v1386 = vld [vmem:[%s177 + $0x60] sm:$0xff]
      %v1387 = vld [vmem:[%s177 + $0x68] sm:$0xff]
      %v1388 = vld [vmem:[%s177 + $0x70] sm:$0xff]
      %v1389 = vld [vmem:[%s177 + $0x78] sm:$0xff]
      %v1390 = vld [vmem:[%s177 + $0x80] sm:$0xff]
      %v1391 = vld [vmem:[%s177 + $0x88] sm:$0xff]
      %v1392 = vld [vmem:[%s177 + $0x90] sm:$0xff]
      %v1393 = vld [vmem:[%s177 + $0x98] sm:$0xff]
      %v1394 = vld [vmem:[%s177 + $0xa0] sm:$0xff]
      %v1395 = vld [vmem:[%s177 + $0xa8] sm:$0xff]
      %v1396 = vld [vmem:[%s177 + $0xb0] sm:$0xff]
      %v1397 = vld [vmem:[%s177 + $0xb8] sm:$0xff]
      %v1398 = vld [vmem:[%s177 + $0xc0] sm:$0xff]
      %v1399 = vld [vmem:[%s177 + $0xc8] sm:$0xff]
      %v1400 = vld [vmem:[%s177 + $0xd0] sm:$0xff]
      %v1401 = vld [vmem:[%s177 + $0xd8] sm:$0xff]
      %v1402 = vld [vmem:[%s177 + $0xe0] sm:$0xff]
      %v1403 = vld [vmem:[%s177 + $0xe8] sm:$0xff]
      %v1404 = vld [vmem:[%s177 + $0xf0] sm:$0xff]
      %v1405 = vld [vmem:[%s177 + $0xf8] sm:$0xff]
      %s1406 = scalar_lea.vmem %s1, 192
      %v1407 = vld [vmem:[%s1406] sm:$0xf]
      %v1408 = vld [vmem:[%s1406 + $0x4] sm:$0xf]
      %v1409 = vld [vmem:[%s1406 + $0x8] sm:$0xf]
      %v1410 = vld [vmem:[%s1406 + $0xc] sm:$0xf]
      %v1411 = vld [vmem:[%s1406 + $0x10] sm:$0xf]
      %v1412 = vld [vmem:[%s1406 + $0x14] sm:$0xf]
      %v1413 = vld [vmem:[%s1406 + $0x18] sm:$0xf]
      %v1414 = vld [vmem:[%s1406 + $0x1c] sm:$0xf]
      %v1415 = vld [vmem:[%s1406 + $0x20] sm:$0xf]
      %v1416 = vld [vmem:[%s1406 + $0x24] sm:$0xf]
      %v1417 = vld [vmem:[%s1406 + $0x28] sm:$0xf]
      %v1418 = vld [vmem:[%s1406 + $0x2c] sm:$0xf]
      %v1419 = vld [vmem:[%s1406 + $0x30] sm:$0xf]
      %v1420 = vld [vmem:[%s1406 + $0x34] sm:$0xf]
      %v1421 = vld [vmem:[%s1406 + $0x38] sm:$0xf]
      %v1422 = vld [vmem:[%s1406 + $0x3c] sm:$0xf]
      %v1439 = vunpack.c.l.b16 %v1407
      %v1440 = vunpack.c.l.b16 %v1408
      %v1441 = vunpack.c.l.b16 %v1409
      %v1442 = vunpack.c.l.b16 %v1410
      %v1443 = vunpack.c.l.b16 %v1411
      %v1444 = vunpack.c.l.b16 %v1412
      %v1445 = vunpack.c.l.b16 %v1413
      %v1446 = vunpack.c.l.b16 %v1414
      %v1447 = vunpack.c.l.b16 %v1415
      %v1448 = vunpack.c.l.b16 %v1416
      %v1449 = vunpack.c.l.b16 %v1417
      %v1450 = vunpack.c.l.b16 %v1418
      %v1451 = vunpack.c.l.b16 %v1419
      %v1452 = vunpack.c.l.b16 %v1420
      %v1453 = vunpack.c.l.b16 %v1421
      %v1454 = vunpack.c.l.b16 %v1422
      %v1455 = vpack.c.b16 %v1440, %v1439
      %v1456 = vpack.c.b16 %v1442, %v1441
      %v1457 = vpack.c.b16 %v1444, %v1443
      %v1458 = vpack.c.b16 %v1446, %v1445
      %v1459 = vpack.c.b16 %v1448, %v1447
      %v1460 = vpack.c.b16 %v1450, %v1449
      %v1461 = vpack.c.b16 %v1452, %v1451
      %v1462 = vpack.c.b16 %v1454, %v1453
      %1471 = vmatprep.subr.bf16.mxu0 0
      %1472 = vmatpush1.bf16.msra.mxu0 %v1455
      %1473 = vmatprep.subr.bf16.mxu0 0
      %1474 = vmatpush1.bf16.msra.mxu0 %v1456
      %1475 = vmatprep.subr.bf16.mxu0 0
      %1476 = vmatpush1.bf16.msra.mxu0 %v1457
      %1477 = vmatprep.subr.bf16.mxu0 0
      %1478 = vmatpush1.bf16.msra.mxu0 %v1458
      %1479 = vmatprep.subr.bf16.mxu0 0
      %1480 = vmatpush1.bf16.msra.mxu0 %v1459
      %1481 = vmatprep.subr.bf16.mxu0 0
      %1482 = vmatpush1.bf16.msra.mxu0 %v1460
      %1483 = vmatprep.subr.bf16.mxu0 0
      %1484 = vmatpush1.bf16.msra.mxu0 %v1461
      %1485 = vmatprep.subr.bf16.mxu0 0
      %1486 = vmatpush1.bf16.msra.mxu0 %v1462
      %1487 = vmatprep.subr.bf16.mxu0 0
      %1488 = vmatpush1.bf16.msra.mxu0 0
      %1489 = vmatprep.subr.bf16.mxu0 0
      %1490 = vmatpush1.bf16.msra.mxu0 0
      %1491 = vmatprep.subr.bf16.mxu0 0
      %1492 = vmatpush1.bf16.msra.mxu0 0
      %1493 = vmatprep.subr.bf16.mxu0 0
      %1494 = vmatpush1.bf16.msra.mxu0 0
      %1495 = vmatprep.subr.bf16.mxu0 0
      %1496 = vmatpush1.bf16.msra.mxu0 0
      %1497 = vmatprep.subr.bf16.mxu0 0
      %1498 = vmatpush1.bf16.msra.mxu0 0
      %1499 = vmatprep.subr.bf16.mxu0 0
      %1500 = vmatpush1.bf16.msra.mxu0 0
      %1501 = vmatprep.subr.bf16.mxu0 0
      %1502 = vmatpush1.bf16.msra.mxu0 0
      %1503 = vmatprep.mubr.bf16.mxu0 0
      %1504 = vmatmul.mubr.bf16.gmra.mrb[0].mxu0 %v1358
      %v1505 = vpop.f32.mrb[0].mxu0
      %v1506 = vadd.f32 0.0, %v1505
      %v1507 = vpop.f32.mrb[0].mxu0
      %v1508 = vpop.f32.mrb[0].mxu0
      %v1509 = vadd.f32 0.0, %v1508
      %v1510 = vpop.f32.mrb[0].mxu0
      %1511 = vmatprep.mubr.bf16.mxu0 0
      %1512 = vmatmul.mubr.bf16.gmra.mrb[0].mxu0 %v1359
      %v1513 = vpop.f32.mrb[0].mxu0
      %v1514 = vadd.f32 0.0, %v1513
      %v1515 = vpop.f32.mrb[0].mxu0
      %v1516 = vpop.f32.mrb[0].mxu0
      %v1517 = vadd.f32 0.0, %v1516
      %v1518 = vpop.f32.mrb[0].mxu0
      %1519 = vmatprep.mubr.bf16.mxu0 0
      %1520 = vmatmul.mubr.bf16.gmra.mrb[0].mxu0 %v1360
      %v1521 = vpop.f32.mrb[0].mxu0
      %v1522 = vadd.f32 0.0, %v1521
      %v1523 = vpop.f32.mrb[0].mxu0
      %v1524 = vpop.f32.mrb[0].mxu0
      %v1525 = vadd.f32 0.0, %v1524
      %v1526 = vpop.f32.mrb[0].mxu0
      %1527 = vmatprep.mubr.bf16.mxu0 0
      %1528 = vmatmul.mubr.bf16.gmra.mrb[0].mxu0 %v1361
      %v1529 = vpop.f32.mrb[0].mxu0
      %v1530 = vadd.f32 0.0, %v1529
      %v1531 = vpop.f32.mrb[0].mxu0
      %v1532 = vpop.f32.mrb[0].mxu0
      %v1533 = vadd.f32 0.0, %v1532
      %v1534 = vpop.f32.mrb[0].mxu0
      %1535 = vmatprep.mubr.bf16.mxu0 0
      %1536 = vmatmul.mubr.bf16.gmra.mrb[0].mxu0 %v1362
      %v1537 = vpop.f32.mrb[0].mxu0
      %v1538 = vadd.f32 0.0, %v1537
      %v1539 = vpop.f32.mrb[0].mxu0
      %v1540 = vpop.f32.mrb[0].mxu0
      %v1541 = vadd.f32 0.0, %v1540
      %v1542 = vpop.f32.mrb[0].mxu0
      %1543 = vmatprep.mubr.bf16.mxu0 0
      %1544 = vmatmul.mubr.bf16.gmra.mrb[0].mxu0 %v1363
      %v1545 = vpop.f32.mrb[0].mxu0
      %v1546 = vadd.f32 0.0, %v1545
      %v1547 = vpop.f32.mrb[0].mxu0
      %v1548 = vpop.f32.mrb[0].mxu0
      %v1549 = vadd.f32 0.0, %v1548
      %v1550 = vpop.f32.mrb[0].mxu0
      %1551 = vmatprep.mubr.bf16.mxu0 0
      %1552 = vmatmul.mubr.bf16.gmra.mrb[0].mxu0 %v1364
      %v1553 = vpop.f32.mrb[0].mxu0
      %v1554 = vadd.f32 0.0, %v1553
      %v1555 = vpop.f32.mrb[0].mxu0
      %v1556 = vpop.f32.mrb[0].mxu0
      %v1557 = vadd.f32 0.0, %v1556
      %v1558 = vpop.f32.mrb[0].mxu0
      %1559 = vmatprep.mubr.bf16.mxu0 0
      %1560 = vmatmul.mubr.bf16.gmra.mrb[0].mxu0 %v1365
      %v1561 = vpop.f32.mrb[0].mxu0
      %v1562 = vadd.f32 0.0, %v1561
      %v1563 = vpop.f32.mrb[0].mxu0
      %v1564 = vpop.f32.mrb[0].mxu0
      %v1565 = vadd.f32 0.0, %v1564
      %v1566 = vpop.f32.mrb[0].mxu0
      %1567 = vmatprep.mubr.bf16.mxu0 0
      %1568 = vmatmul.mubr.bf16.gmra.mrb[0].mxu0 %v1366
      %v1569 = vpop.f32.mrb[0].mxu0
      %v1570 = vadd.f32 0.0, %v1569
      %v1571 = vpop.f32.mrb[0].mxu0
      %v1572 = vpop.f32.mrb[0].mxu0
      %v1573 = vadd.f32 0.0, %v1572
      %v1574 = vpop.f32.mrb[0].mxu0
      %1575 = vmatprep.mubr.bf16.mxu0 0
      %1576 = vmatmul.mubr.bf16.gmra.mrb[0].mxu0 %v1367
      %v1577 = vpop.f32.mrb[0].mxu0
      %v1578 = vadd.f32 0.0, %v1577
      %v1579 = vpop.f32.mrb[0].mxu0
      %v1580 = vpop.f32.mrb[0].mxu0
      %v1581 = vadd.f32 0.0, %v1580
      %v1582 = vpop.f32.mrb[0].mxu0
      %1583 = vmatprep.mubr.bf16.mxu0 0
      %1584 = vmatmul.mubr.bf16.gmra.mrb[0].mxu0 %v1368
      %v1585 = vpop.f32.mrb[0].mxu0
      %v1586 = vadd.f32 0.0, %v1585
      %v1587 = vpop.f32.mrb[0].mxu0
      %v1588 = vpop.f32.mrb[0].mxu0
      %v1589 = vadd.f32 0.0, %v1588
      %v1590 = vpop.f32.mrb[0].mxu0
      %1591 = vmatprep.mubr.bf16.mxu0 0
      %1592 = vmatmul.mubr.bf16.gmra.mrb[0].mxu0 %v1369
      %v1593 = vpop.f32.mrb[0].mxu0
      %v1594 = vadd.f32 0.0, %v1593
      %v1595 = vpop.f32.mrb[0].mxu0
      %v1596 = vpop.f32.mrb[0].mxu0
      %v1597 = vadd.f32 0.0, %v1596
      %v1598 = vpop.f32.mrb[0].mxu0
      %1599 = vmatprep.mubr.bf16.mxu0 0
      %1600 = vmatmul.mubr.bf16.gmra.mrb[0].mxu0 %v1370
      %v1601 = vpop.f32.mrb[0].mxu0
      %v1602 = vadd.f32 0.0, %v1601
      %v1603 = vpop.f32.mrb[0].mxu0
      %v1604 = vpop.f32.mrb[0].mxu0
      %v1605 = vadd.f32 0.0, %v1604
      %v1606 = vpop.f32.mrb[0].mxu0
      %1607 = vmatprep.mubr.bf16.mxu0 0
      %1608 = vmatmul.mubr.bf16.gmra.mrb[0].mxu0 %v1371
      %v1609 = vpop.f32.mrb[0].mxu0
      %v1610 = vadd.f32 0.0, %v1609
      %v1611 = vpop.f32.mrb[0].mxu0
      %v1612 = vpop.f32.mrb[0].mxu0
      %v1613 = vadd.f32 0.0, %v1612
      %v1614 = vpop.f32.mrb[0].mxu0
      %1615 = vmatprep.mubr.bf16.mxu0 0
      %1616 = vmatmul.mubr.bf16.gmra.mrb[0].mxu0 %v1372
      %v1617 = vpop.f32.mrb[0].mxu0
      %v1618 = vadd.f32 0.0, %v1617
      %v1619 = vpop.f32.mrb[0].mxu0
      %v1620 = vpop.f32.mrb[0].mxu0
      %v1621 = vadd.f32 0.0, %v1620
      %v1622 = vpop.f32.mrb[0].mxu0
      %1623 = vmatprep.mubr.bf16.mxu0 0
      %1624 = vmatmul.mubr.bf16.gmra.mrb[0].mxu0 %v1373
      %v1625 = vpop.f32.mrb[0].mxu0
      %v1626 = vadd.f32 0.0, %v1625
      %v1627 = vpop.f32.mrb[0].mxu0
      %v1628 = vpop.f32.mrb[0].mxu0
      %v1629 = vadd.f32 0.0, %v1628
      %v1630 = vpop.f32.mrb[0].mxu0
      %1631 = vdwg.mxu0
      %v1632 = vadd.f32 %v1374, %v1506
      %v1633 = vadd.f32 %v1375, %v1509
      %v1634 = vadd.f32 %v1376, %v1514
      %v1635 = vadd.f32 %v1377, %v1517
      %v1636 = vadd.f32 %v1378, %v1522
      %v1637 = vadd.f32 %v1379, %v1525
      %v1638 = vadd.f32 %v1380, %v1530
      %v1639 = vadd.f32 %v1381, %v1533
      %v1640 = vadd.f32 %v1382, %v1538
      %v1641 = vadd.f32 %v1383, %v1541
      %v1642 = vadd.f32 %v1384, %v1546
      %v1643 = vadd.f32 %v1385, %v1549
      %v1644 = vadd.f32 %v1386, %v1554
      %v1645 = vadd.f32 %v1387, %v1557
      %v1646 = vadd.f32 %v1388, %v1562
      %v1647 = vadd.f32 %v1389, %v1565
      %v1648 = vadd.f32 %v1390, %v1570
      %v1649 = vadd.f32 %v1391, %v1573
      %v1650 = vadd.f32 %v1392, %v1578
      %v1651 = vadd.f32 %v1393, %v1581
      %v1652 = vadd.f32 %v1394, %v1586
      %v1653 = vadd.f32 %v1395, %v1589
      %v1654 = vadd.f32 %v1396, %v1594
      %v1655 = vadd.f32 %v1397, %v1597
      %v1656 = vadd.f32 %v1398, %v1602
      %v1657 = vadd.f32 %v1399, %v1605
      %v1658 = vadd.f32 %v1400, %v1610
      %v1659 = vadd.f32 %v1401, %v1613
      %v1660 = vadd.f32 %v1402, %v1618
      %v1661 = vadd.f32 %v1403, %v1621
      %v1662 = vadd.f32 %v1404, %v1626
      %v1663 = vadd.f32 %v1405, %v1629
      %1664 = vst [vmem:[%s177] sm:$0xff] %v1632
      %1665 = vst [vmem:[%s177 + $0x8] sm:$0xff] %v1633
      %1666 = vst [vmem:[%s177 + $0x10] sm:$0xff] %v1634
      %1667 = vst [vmem:[%s177 + $0x18] sm:$0xff] %v1635
      %1668 = vst [vmem:[%s177 + $0x20] sm:$0xff] %v1636
      %1669 = vst [vmem:[%s177 + $0x28] sm:$0xff] %v1637
      %1670 = vst [vmem:[%s177 + $0x30] sm:$0xff] %v1638
      %1671 = vst [vmem:[%s177 + $0x38] sm:$0xff] %v1639
      %1672 = vst [vmem:[%s177 + $0x40] sm:$0xff] %v1640
      %1673 = vst [vmem:[%s177 + $0x48] sm:$0xff] %v1641
      %1674 = vst [vmem:[%s177 + $0x50] sm:$0xff] %v1642
      %1675 = vst [vmem:[%s177 + $0x58] sm:$0xff] %v1643
      %1676 = vst [vmem:[%s177 + $0x60] sm:$0xff] %v1644
      %1677 = vst [vmem:[%s177 + $0x68] sm:$0xff] %v1645
      %1678 = vst [vmem:[%s177 + $0x70] sm:$0xff] %v1646
      %1679 = vst [vmem:[%s177 + $0x78] sm:$0xff] %v1647
      %1680 = vst [vmem:[%s177 + $0x80] sm:$0xff] %v1648
      %1681 = vst [vmem:[%s177 + $0x88] sm:$0xff] %v1649
      %1682 = vst [vmem:[%s177 + $0x90] sm:$0xff] %v1650
      %1683 = vst [vmem:[%s177 + $0x98] sm:$0xff] %v1651
      %1684 = vst [vmem:[%s177 + $0xa0] sm:$0xff] %v1652
      %1685 = vst [vmem:[%s177 + $0xa8] sm:$0xff] %v1653
      %1686 = vst [vmem:[%s177 + $0xb0] sm:$0xff] %v1654
      %1687 = vst [vmem:[%s177 + $0xb8] sm:$0xff] %v1655
      %1688 = vst [vmem:[%s177 + $0xc0] sm:$0xff] %v1656
      %1689 = vst [vmem:[%s177 + $0xc8] sm:$0xff] %v1657
      %1690 = vst [vmem:[%s177 + $0xd0] sm:$0xff] %v1658
      %1691 = vst [vmem:[%s177 + $0xd8] sm:$0xff] %v1659
      %1692 = vst [vmem:[%s177 + $0xe0] sm:$0xff] %v1660
      %1693 = vst [vmem:[%s177 + $0xe8] sm:$0xff] %v1661
      %1694 = vst [vmem:[%s177 + $0xf0] sm:$0xff] %v1662
      %1695 = vst [vmem:[%s177 + $0xf8] sm:$0xff] %v1663
      %v1696 = vld [vmem:[%s1325 + $0x1] sm:$0xff]
      %v1697 = vld [vmem:[%s1325 + $0x9] sm:$0xff]
      %v1698 = vld [vmem:[%s1325 + $0x19] sm:$0xff]
      %v1699 = vld [vmem:[%s1325 + $0x21] sm:$0xff]
      %v1700 = vld [vmem:[%s1325 + $0x31] sm:$0xff]
      %v1701 = vld [vmem:[%s1325 + $0x39] sm:$0xff]
      %v1702 = vld [vmem:[%s1325 + $0x49] sm:$0xff]
      %v1703 = vld [vmem:[%s1325 + $0x51] sm:$0xff]
      %v1704 = vld [vmem:[%s1325 + $0x61] sm:$0xff]
      %v1705 = vld [vmem:[%s1325 + $0x69] sm:$0xff]
      %v1706 = vld [vmem:[%s1325 + $0x79] sm:$0xff]
      %v1707 = vld [vmem:[%s1325 + $0x81] sm:$0xff]
      %v1708 = vld [vmem:[%s1325 + $0x91] sm:$0xff]
      %v1709 = vld [vmem:[%s1325 + $0x99] sm:$0xff]
      %v1710 = vld [vmem:[%s1325 + $0xa9] sm:$0xff]
      %v1711 = vld [vmem:[%s1325 + $0xb1] sm:$0xff]
      %v1712 = vld [vmem:[%s1325 + $0xc1] sm:$0xff]
      %v1713 = vld [vmem:[%s1325 + $0xc9] sm:$0xff]
      %v1714 = vld [vmem:[%s1325 + $0xd9] sm:$0xff]
      %v1715 = vld [vmem:[%s1325 + $0xe1] sm:$0xff]
      %v1716 = vld [vmem:[%s1325 + $0xf1] sm:$0xff]
      %v1717 = vld [vmem:[%s1325 + $0xf9] sm:$0xff]
      %v1718 = vld [vmem:[%s1325 + $0x109] sm:$0xff]
      %v1719 = vld [vmem:[%s1325 + $0x111] sm:$0xff]
      %v1720 = vld [vmem:[%s1325 + $0x121] sm:$0xff]
      %v1721 = vld [vmem:[%s1325 + $0x129] sm:$0xff]
      %v1722 = vld [vmem:[%s1325 + $0x139] sm:$0xff]
      %v1723 = vld [vmem:[%s1325 + $0x141] sm:$0xff]
      %v1724 = vld [vmem:[%s1325 + $0x151] sm:$0xff]
      %v1725 = vld [vmem:[%s1325 + $0x159] sm:$0xff]
      %v1726 = vld [vmem:[%s1325 + $0x169] sm:$0xff]
      %v1727 = vld [vmem:[%s1325 + $0x171] sm:$0xff]
      %v1728 = vpack.c.bf16 %v1697, %v1696
      %v1729 = vpack.c.bf16 %v1699, %v1698
      %v1730 = vpack.c.bf16 %v1701, %v1700
      %v1731 = vpack.c.bf16 %v1703, %v1702
      %v1732 = vpack.c.bf16 %v1705, %v1704
      %v1733 = vpack.c.bf16 %v1707, %v1706
      %v1734 = vpack.c.bf16 %v1709, %v1708
      %v1735 = vpack.c.bf16 %v1711, %v1710
      %v1736 = vpack.c.bf16 %v1713, %v1712
      %v1737 = vpack.c.bf16 %v1715, %v1714
      %v1738 = vpack.c.bf16 %v1717, %v1716
      %v1739 = vpack.c.bf16 %v1719, %v1718
      %v1740 = vpack.c.bf16 %v1721, %v1720
      %v1741 = vpack.c.bf16 %v1723, %v1722
      %v1742 = vpack.c.bf16 %v1725, %v1724
      %v1743 = vpack.c.bf16 %v1727, %v1726
      %v1744 = vld [vmem:[%s177] sm:$0xff]
      %v1745 = vld [vmem:[%s177 + $0x8] sm:$0xff]
      %v1746 = vld [vmem:[%s177 + $0x10] sm:$0xff]
      %v1747 = vld [vmem:[%s177 + $0x18] sm:$0xff]
      %v1748 = vld [vmem:[%s177 + $0x20] sm:$0xff]
      %v1749 = vld [vmem:[%s177 + $0x28] sm:$0xff]
      %v1750 = vld [vmem:[%s177 + $0x30] sm:$0xff]
      %v1751 = vld [vmem:[%s177 + $0x38] sm:$0xff]
      %v1752 = vld [vmem:[%s177 + $0x40] sm:$0xff]
      %v1753 = vld [vmem:[%s177 + $0x48] sm:$0xff]
      %v1754 = vld [vmem:[%s177 + $0x50] sm:$0xff]
      %v1755 = vld [vmem:[%s177 + $0x58] sm:$0xff]
      %v1756 = vld [vmem:[%s177 + $0x60] sm:$0xff]
      %v1757 = vld [vmem:[%s177 + $0x68] sm:$0xff]
      %v1758 = vld [vmem:[%s177 + $0x70] sm:$0xff]
      %v1759 = vld [vmem:[%s177 + $0x78] sm:$0xff]
      %v1760 = vld [vmem:[%s177 + $0x80] sm:$0xff]
      %v1761 = vld [vmem:[%s177 + $0x88] sm:$0xff]
      %v1762 = vld [vmem:[%s177 + $0x90] sm:$0xff]
      %v1763 = vld [vmem:[%s177 + $0x98] sm:$0xff]
      %v1764 = vld [vmem:[%s177 + $0xa0] sm:$0xff]
      %v1765 = vld [vmem:[%s177 + $0xa8] sm:$0xff]
      %v1766 = vld [vmem:[%s177 + $0xb0] sm:$0xff]
      %v1767 = vld [vmem:[%s177 + $0xb8] sm:$0xff]
      %v1768 = vld [vmem:[%s177 + $0xc0] sm:$0xff]
      %v1769 = vld [vmem:[%s177 + $0xc8] sm:$0xff]
      %v1770 = vld [vmem:[%s177 + $0xd0] sm:$0xff]
      %v1771 = vld [vmem:[%s177 + $0xd8] sm:$0xff]
      %v1772 = vld [vmem:[%s177 + $0xe0] sm:$0xff]
      %v1773 = vld [vmem:[%s177 + $0xe8] sm:$0xff]
      %v1774 = vld [vmem:[%s177 + $0xf0] sm:$0xff]
      %v1775 = vld [vmem:[%s177 + $0xf8] sm:$0xff]
      %s1776 = scalar_lea.vmem %s1, 256
      %v1777 = vld [vmem:[%s1776] sm:$0xf]
      %v1778 = vld [vmem:[%s1776 + $0x4] sm:$0xf]
      %v1779 = vld [vmem:[%s1776 + $0x8] sm:$0xf]
      %v1780 = vld [vmem:[%s1776 + $0xc] sm:$0xf]
      %v1781 = vld [vmem:[%s1776 + $0x10] sm:$0xf]
      %v1782 = vld [vmem:[%s1776 + $0x14] sm:$0xf]
      %v1783 = vld [vmem:[%s1776 + $0x18] sm:$0xf]
      %v1784 = vld [vmem:[%s1776 + $0x1c] sm:$0xf]
      %v1785 = vld [vmem:[%s1776 + $0x20] sm:$0xf]
      %v1786 = vld [vmem:[%s1776 + $0x24] sm:$0xf]
      %v1787 = vld [vmem:[%s1776 + $0x28] sm:$0xf]
      %v1788 = vld [vmem:[%s1776 + $0x2c] sm:$0xf]
      %v1789 = vld [vmem:[%s1776 + $0x30] sm:$0xf]
      %v1790 = vld [vmem:[%s1776 + $0x34] sm:$0xf]
      %v1791 = vld [vmem:[%s1776 + $0x38] sm:$0xf]
      %v1792 = vld [vmem:[%s1776 + $0x3c] sm:$0xf]
      %v1809 = vunpack.c.l.b16 %v1777
      %v1810 = vunpack.c.l.b16 %v1778
      %v1811 = vunpack.c.l.b16 %v1779
      %v1812 = vunpack.c.l.b16 %v1780
      %v1813 = vunpack.c.l.b16 %v1781
      %v1814 = vunpack.c.l.b16 %v1782
      %v1815 = vunpack.c.l.b16 %v1783
      %v1816 = vunpack.c.l.b16 %v1784
      %v1817 = vunpack.c.l.b16 %v1785
      %v1818 = vunpack.c.l.b16 %v1786
      %v1819 = vunpack.c.l.b16 %v1787
      %v1820 = vunpack.c.l.b16 %v1788
      %v1821 = vunpack.c.l.b16 %v1789
      %v1822 = vunpack.c.l.b16 %v1790
      %v1823 = vunpack.c.l.b16 %v1791
      %v1824 = vunpack.c.l.b16 %v1792
      %v1825 = vpack.c.b16 %v1810, %v1809
      %v1826 = vpack.c.b16 %v1812, %v1811
      %v1827 = vpack.c.b16 %v1814, %v1813
      %v1828 = vpack.c.b16 %v1816, %v1815
      %v1829 = vpack.c.b16 %v1818, %v1817
      %v1830 = vpack.c.b16 %v1820, %v1819
      %v1831 = vpack.c.b16 %v1822, %v1821
      %v1832 = vpack.c.b16 %v1824, %v1823
      %1841 = vmatprep.subr.bf16.mxu0 0
      %1842 = vmatpush1.bf16.msra.mxu0 %v1825
      %1843 = vmatprep.subr.bf16.mxu0 0
      %1844 = vmatpush1.bf16.msra.mxu0 %v1826
      %1845 = vmatprep.subr.bf16.mxu0 0
      %1846 = vmatpush1.bf16.msra.mxu0 %v1827
      %1847 = vmatprep.subr.bf16.mxu0 0
      %1848 = vmatpush1.bf16.msra.mxu0 %v1828
      %1849 = vmatprep.subr.bf16.mxu0 0
      %1850 = vmatpush1.bf16.msra.mxu0 %v1829
      %1851 = vmatprep.subr.bf16.mxu0 0
      %1852 = vmatpush1.bf16.msra.mxu0 %v1830
      %1853 = vmatprep.subr.bf16.mxu0 0
      %1854 = vmatpush1.bf16.msra.mxu0 %v1831
      %1855 = vmatprep.subr.bf16.mxu0 0
      %1856 = vmatpush1.bf16.msra.mxu0 %v1832
      %1857 = vmatprep.subr.bf16.mxu0 0
      %1858 = vmatpush1.bf16.msra.mxu0 0
      %1859 = vmatprep.subr.bf16.mxu0 0
      %1860 = vmatpush1.bf16.msra.mxu0 0
      %1861 = vmatprep.subr.bf16.mxu0 0
      %1862 = vmatpush1.bf16.msra.mxu0 0
      %1863 = vmatprep.subr.bf16.mxu0 0
      %1864 = vmatpush1.bf16.msra.mxu0 0
      %1865 = vmatprep.subr.bf16.mxu0 0
      %1866 = vmatpush1.bf16.msra.mxu0 0
      %1867 = vmatprep.subr.bf16.mxu0 0
      %1868 = vmatpush1.bf16.msra.mxu0 0
      %1869 = vmatprep.subr.bf16.mxu0 0
      %1870 = vmatpush1.bf16.msra.mxu0 0
      %1871 = vmatprep.subr.bf16.mxu0 0
      %1872 = vmatpush1.bf16.msra.mxu0 0
      %1873 = vmatprep.mubr.bf16.mxu0 0
      %1874 = vmatmul.mubr.bf16.gmra.mrb[0].mxu0 %v1728
      %v1875 = vpop.f32.mrb[0].mxu0
      %v1876 = vadd.f32 0.0, %v1875
      %v1877 = vpop.f32.mrb[0].mxu0
      %v1878 = vpop.f32.mrb[0].mxu0
      %v1879 = vadd.f32 0.0, %v1878
      %v1880 = vpop.f32.mrb[0].mxu0
      %1881 = vmatprep.mubr.bf16.mxu0 0
      %1882 = vmatmul.mubr.bf16.gmra.mrb[0].mxu0 %v1729
      %v1883 = vpop.f32.mrb[0].mxu0
      %v1884 = vadd.f32 0.0, %v1883
      %v1885 = vpop.f32.mrb[0].mxu0
      %v1886 = vpop.f32.mrb[0].mxu0
      %v1887 = vadd.f32 0.0, %v1886
      %v1888 = vpop.f32.mrb[0].mxu0
      %1889 = vmatprep.mubr.bf16.mxu0 0
      %1890 = vmatmul.mubr.bf16.gmra.mrb[0].mxu0 %v1730
      %v1891 = vpop.f32.mrb[0].mxu0
      %v1892 = vadd.f32 0.0, %v1891
      %v1893 = vpop.f32.mrb[0].mxu0
      %v1894 = vpop.f32.mrb[0].mxu0
      %v1895 = vadd.f32 0.0, %v1894
      %v1896 = vpop.f32.mrb[0].mxu0
      %1897 = vmatprep.mubr.bf16.mxu0 0
      %1898 = vmatmul.mubr.bf16.gmra.mrb[0].mxu0 %v1731
      %v1899 = vpop.f32.mrb[0].mxu0
      %v1900 = vadd.f32 0.0, %v1899
      %v1901 = vpop.f32.mrb[0].mxu0
      %v1902 = vpop.f32.mrb[0].mxu0
      %v1903 = vadd.f32 0.0, %v1902
      %v1904 = vpop.f32.mrb[0].mxu0
      %1905 = vmatprep.mubr.bf16.mxu0 0
      %1906 = vmatmul.mubr.bf16.gmra.mrb[0].mxu0 %v1732
      %v1907 = vpop.f32.mrb[0].mxu0
      %v1908 = vadd.f32 0.0, %v1907
      %v1909 = vpop.f32.mrb[0].mxu0
      %v1910 = vpop.f32.mrb[0].mxu0
      %v1911 = vadd.f32 0.0, %v1910
      %v1912 = vpop.f32.mrb[0].mxu0
      %1913 = vmatprep.mubr.bf16.mxu0 0
      %1914 = vmatmul.mubr.bf16.gmra.mrb[0].mxu0 %v1733
      %v1915 = vpop.f32.mrb[0].mxu0
      %v1916 = vadd.f32 0.0, %v1915
      %v1917 = vpop.f32.mrb[0].mxu0
      %v1918 = vpop.f32.mrb[0].mxu0
      %v1919 = vadd.f32 0.0, %v1918
      %v1920 = vpop.f32.mrb[0].mxu0
      %1921 = vmatprep.mubr.bf16.mxu0 0
      %1922 = vmatmul.mubr.bf16.gmra.mrb[0].mxu0 %v1734
      %v1923 = vpop.f32.mrb[0].mxu0
      %v1924 = vadd.f32 0.0, %v1923
      %v1925 = vpop.f32.mrb[0].mxu0
      %v1926 = vpop.f32.mrb[0].mxu0
      %v1927 = vadd.f32 0.0, %v1926
      %v1928 = vpop.f32.mrb[0].mxu0
      %1929 = vmatprep.mubr.bf16.mxu0 0
      %1930 = vmatmul.mubr.bf16.gmra.mrb[0].mxu0 %v1735
      %v1931 = vpop.f32.mrb[0].mxu0
      %v1932 = vadd.f32 0.0, %v1931
      %v1933 = vpop.f32.mrb[0].mxu0
      %v1934 = vpop.f32.mrb[0].mxu0
      %v1935 = vadd.f32 0.0, %v1934
      %v1936 = vpop.f32.mrb[0].mxu0
      %1937 = vmatprep.mubr.bf16.mxu0 0
      %1938 = vmatmul.mubr.bf16.gmra.mrb[0].mxu0 %v1736
      %v1939 = vpop.f32.mrb[0].mxu0
      %v1940 = vadd.f32 0.0, %v1939
      %v1941 = vpop.f32.mrb[0].mxu0
      %v1942 = vpop.f32.mrb[0].mxu0
      %v1943 = vadd.f32 0.0, %v1942
      %v1944 = vpop.f32.mrb[0].mxu0
      %1945 = vmatprep.mubr.bf16.mxu0 0
      %1946 = vmatmul.mubr.bf16.gmra.mrb[0].mxu0 %v1737
      %v1947 = vpop.f32.mrb[0].mxu0
      %v1948 = vadd.f32 0.0, %v1947
      %v1949 = vpop.f32.mrb[0].mxu0
      %v1950 = vpop.f32.mrb[0].mxu0
      %v1951 = vadd.f32 0.0, %v1950
      %v1952 = vpop.f32.mrb[0].mxu0
      %1953 = vmatprep.mubr.bf16.mxu0 0
      %1954 = vmatmul.mubr.bf16.gmra.mrb[0].mxu0 %v1738
      %v1955 = vpop.f32.mrb[0].mxu0
      %v1956 = vadd.f32 0.0, %v1955
      %v1957 = vpop.f32.mrb[0].mxu0
      %v1958 = vpop.f32.mrb[0].mxu0
      %v1959 = vadd.f32 0.0, %v1958
      %v1960 = vpop.f32.mrb[0].mxu0
      %1961 = vmatprep.mubr.bf16.mxu0 0
      %1962 = vmatmul.mubr.bf16.gmra.mrb[0].mxu0 %v1739
      %v1963 = vpop.f32.mrb[0].mxu0
      %v1964 = vadd.f32 0.0, %v1963
      %v1965 = vpop.f32.mrb[0].mxu0
      %v1966 = vpop.f32.mrb[0].mxu0
      %v1967 = vadd.f32 0.0, %v1966
      %v1968 = vpop.f32.mrb[0].mxu0
      %1969 = vmatprep.mubr.bf16.mxu0 0
      %1970 = vmatmul.mubr.bf16.gmra.mrb[0].mxu0 %v1740
      %v1971 = vpop.f32.mrb[0].mxu0
      %v1972 = vadd.f32 0.0, %v1971
      %v1973 = vpop.f32.mrb[0].mxu0
      %v1974 = vpop.f32.mrb[0].mxu0
      %v1975 = vadd.f32 0.0, %v1974
      %v1976 = vpop.f32.mrb[0].mxu0
      %1977 = vmatprep.mubr.bf16.mxu0 0
      %1978 = vmatmul.mubr.bf16.gmra.mrb[0].mxu0 %v1741
      %v1979 = vpop.f32.mrb[0].mxu0
      %v1980 = vadd.f32 0.0, %v1979
      %v1981 = vpop.f32.mrb[0].mxu0
      %v1982 = vpop.f32.mrb[0].mxu0
      %v1983 = vadd.f32 0.0, %v1982
      %v1984 = vpop.f32.mrb[0].mxu0
      %1985 = vmatprep.mubr.bf16.mxu0 0
      %1986 = vmatmul.mubr.bf16.gmra.mrb[0].mxu0 %v1742
      %v1987 = vpop.f32.mrb[0].mxu0
      %v1988 = vadd.f32 0.0, %v1987
      %v1989 = vpop.f32.mrb[0].mxu0
      %v1990 = vpop.f32.mrb[0].mxu0
      %v1991 = vadd.f32 0.0, %v1990
      %v1992 = vpop.f32.mrb[0].mxu0
      %1993 = vmatprep.mubr.bf16.mxu0 0
      %1994 = vmatmul.mubr.bf16.gmra.mrb[0].mxu0 %v1743
      %v1995 = vpop.f32.mrb[0].mxu0
      %v1996 = vadd.f32 0.0, %v1995
      %v1997 = vpop.f32.mrb[0].mxu0
      %v1998 = vpop.f32.mrb[0].mxu0
      %v1999 = vadd.f32 0.0, %v1998
      %v2000 = vpop.f32.mrb[0].mxu0
      %2001 = vdwg.mxu0
      %v2002 = vadd.f32 %v1744, %v1876
      %v2003 = vadd.f32 %v1745, %v1879
      %v2004 = vadd.f32 %v1746, %v1884
      %v2005 = vadd.f32 %v1747, %v1887
      %v2006 = vadd.f32 %v1748, %v1892
      %v2007 = vadd.f32 %v1749, %v1895
      %v2008 = vadd.f32 %v1750, %v1900
      %v2009 = vadd.f32 %v1751, %v1903
      %v2010 = vadd.f32 %v1752, %v1908
      %v2011 = vadd.f32 %v1753, %v1911
      %v2012 = vadd.f32 %v1754, %v1916
      %v2013 = vadd.f32 %v1755, %v1919
      %v2014 = vadd.f32 %v1756, %v1924
      %v2015 = vadd.f32 %v1757, %v1927
      %v2016 = vadd.f32 %v1758, %v1932
      %v2017 = vadd.f32 %v1759, %v1935
      %v2018 = vadd.f32 %v1760, %v1940
      %v2019 = vadd.f32 %v1761, %v1943
      %v2020 = vadd.f32 %v1762, %v1948
      %v2021 = vadd.f32 %v1763, %v1951
      %v2022 = vadd.f32 %v1764, %v1956
      %v2023 = vadd.f32 %v1765, %v1959
      %v2024 = vadd.f32 %v1766, %v1964
      %v2025 = vadd.f32 %v1767, %v1967
      %v2026 = vadd.f32 %v1768, %v1972
      %v2027 = vadd.f32 %v1769, %v1975
      %v2028 = vadd.f32 %v1770, %v1980
      %v2029 = vadd.f32 %v1771, %v1983
      %v2030 = vadd.f32 %v1772, %v1988
      %v2031 = vadd.f32 %v1773, %v1991
      %v2032 = vadd.f32 %v1774, %v1996
      %v2033 = vadd.f32 %v1775, %v1999
      %2034 = vst [vmem:[%s177] sm:$0xff] %v2002
      %2035 = vst [vmem:[%s177 + $0x8] sm:$0xff] %v2003
      %2036 = vst [vmem:[%s177 + $0x10] sm:$0xff] %v2004
      %2037 = vst [vmem:[%s177 + $0x18] sm:$0xff] %v2005
      %2038 = vst [vmem:[%s177 + $0x20] sm:$0xff] %v2006
      %2039 = vst [vmem:[%s177 + $0x28] sm:$0xff] %v2007
      %2040 = vst [vmem:[%s177 + $0x30] sm:$0xff] %v2008
      %2041 = vst [vmem:[%s177 + $0x38] sm:$0xff] %v2009
      %2042 = vst [vmem:[%s177 + $0x40] sm:$0xff] %v2010
      %2043 = vst [vmem:[%s177 + $0x48] sm:$0xff] %v2011
      %2044 = vst [vmem:[%s177 + $0x50] sm:$0xff] %v2012
      %2045 = vst [vmem:[%s177 + $0x58] sm:$0xff] %v2013
      %2046 = vst [vmem:[%s177 + $0x60] sm:$0xff] %v2014
      %2047 = vst [vmem:[%s177 + $0x68] sm:$0xff] %v2015
      %2048 = vst [vmem:[%s177 + $0x70] sm:$0xff] %v2016
      %2049 = vst [vmem:[%s177 + $0x78] sm:$0xff] %v2017
      %2050 = vst [vmem:[%s177 + $0x80] sm:$0xff] %v2018
      %2051 = vst [vmem:[%s177 + $0x88] sm:$0xff] %v2019
      %2052 = vst [vmem:[%s177 + $0x90] sm:$0xff] %v2020
      %2053 = vst [vmem:[%s177 + $0x98] sm:$0xff] %v2021
      %2054 = vst [vmem:[%s177 + $0xa0] sm:$0xff] %v2022
      %2055 = vst [vmem:[%s177 + $0xa8] sm:$0xff] %v2023
      %2056 = vst [vmem:[%s177 + $0xb0] sm:$0xff] %v2024
      %2057 = vst [vmem:[%s177 + $0xb8] sm:$0xff] %v2025
      %2058 = vst [vmem:[%s177 + $0xc0] sm:$0xff] %v2026
      %2059 = vst [vmem:[%s177 + $0xc8] sm:$0xff] %v2027
      %2060 = vst [vmem:[%s177 + $0xd0] sm:$0xff] %v2028
      %2061 = vst [vmem:[%s177 + $0xd8] sm:$0xff] %v2029
      %2062 = vst [vmem:[%s177 + $0xe0] sm:$0xff] %v2030
      %2063 = vst [vmem:[%s177 + $0xe8] sm:$0xff] %v2031
      %2064 = vst [vmem:[%s177 + $0xf0] sm:$0xff] %v2032
      %2065 = vst [vmem:[%s177 + $0xf8] sm:$0xff] %v2033
      %v2066 = vld [vmem:[%s1325 + $0x2] sm:$0xff]
      %v2067 = vld [vmem:[%s1325 + $0xa] sm:$0xff]
      %v2068 = vld [vmem:[%s1325 + $0x1a] sm:$0xff]
      %v2069 = vld [vmem:[%s1325 + $0x22] sm:$0xff]
      %v2070 = vld [vmem:[%s1325 + $0x32] sm:$0xff]
      %v2071 = vld [vmem:[%s1325 + $0x3a] sm:$0xff]
      %v2072 = vld [vmem:[%s1325 + $0x4a] sm:$0xff]
      %v2073 = vld [vmem:[%s1325 + $0x52] sm:$0xff]
      %v2074 = vld [vmem:[%s1325 + $0x62] sm:$0xff]
      %v2075 = vld [vmem:[%s1325 + $0x6a] sm:$0xff]
      %v2076 = vld [vmem:[%s1325 + $0x7a] sm:$0xff]
      %v2077 = vld [vmem:[%s1325 + $0x82] sm:$0xff]
      %v2078 = vld [vmem:[%s1325 + $0x92] sm:$0xff]
      %v2079 = vld [vmem:[%s1325 + $0x9a] sm:$0xff]
      %v2080 = vld [vmem:[%s1325 + $0xaa] sm:$0xff]
      %v2081 = vld [vmem:[%s1325 + $0xb2] sm:$0xff]
      %v2082 = vld [vmem:[%s1325 + $0xc2] sm:$0xff]
      %v2083 = vld [vmem:[%s1325 + $0xca] sm:$0xff]
      %v2084 = vld [vmem:[%s1325 + $0xda] sm:$0xff]
      %v2085 = vld [vmem:[%s1325 + $0xe2] sm:$0xff]
      %v2086 = vld [vmem:[%s1325 + $0xf2] sm:$0xff]
      %v2087 = vld [vmem:[%s1325 + $0xfa] sm:$0xff]
      %v2088 = vld [vmem:[%s1325 + $0x10a] sm:$0xff]
      %v2089 = vld [vmem:[%s1325 + $0x112] sm:$0xff]
      %v2090 = vld [vmem:[%s1325 + $0x122] sm:$0xff]
      %v2091 = vld [vmem:[%s1325 + $0x12a] sm:$0xff]
      %v2092 = vld [vmem:[%s1325 + $0x13a] sm:$0xff]
      %v2093 = vld [vmem:[%s1325 + $0x142] sm:$0xff]
      %v2094 = vld [vmem:[%s1325 + $0x152] sm:$0xff]
      %v2095 = vld [vmem:[%s1325 + $0x15a] sm:$0xff]
      %v2096 = vld [vmem:[%s1325 + $0x16a] sm:$0xff]
      %v2097 = vld [vmem:[%s1325 + $0x172] sm:$0xff]
      %v2098 = vpack.c.bf16 %v2067, %v2066
      %v2099 = vpack.c.bf16 %v2069, %v2068
      %v2100 = vpack.c.bf16 %v2071, %v2070
      %v2101 = vpack.c.bf16 %v2073, %v2072
      %v2102 = vpack.c.bf16 %v2075, %v2074
      %v2103 = vpack.c.bf16 %v2077, %v2076
      %v2104 = vpack.c.bf16 %v2079, %v2078
      %v2105 = vpack.c.bf16 %v2081, %v2080
      %v2106 = vpack.c.bf16 %v2083, %v2082
      %v2107 = vpack.c.bf16 %v2085, %v2084
      %v2108 = vpack.c.bf16 %v2087, %v2086
      %v2109 = vpack.c.bf16 %v2089, %v2088
      %v2110 = vpack.c.bf16 %v2091, %v2090
      %v2111 = vpack.c.bf16 %v2093, %v2092
      %v2112 = vpack.c.bf16 %v2095, %v2094
      %v2113 = vpack.c.bf16 %v2097, %v2096
      %v2114 = vld [vmem:[%s177] sm:$0xff]
      %v2115 = vld [vmem:[%s177 + $0x8] sm:$0xff]
      %v2116 = vld [vmem:[%s177 + $0x10] sm:$0xff]
      %v2117 = vld [vmem:[%s177 + $0x18] sm:$0xff]
      %v2118 = vld [vmem:[%s177 + $0x20] sm:$0xff]
      %v2119 = vld [vmem:[%s177 + $0x28] sm:$0xff]
      %v2120 = vld [vmem:[%s177 + $0x30] sm:$0xff]
      %v2121 = vld [vmem:[%s177 + $0x38] sm:$0xff]
      %v2122 = vld [vmem:[%s177 + $0x40] sm:$0xff]
      %v2123 = vld [vmem:[%s177 + $0x48] sm:$0xff]
      %v2124 = vld [vmem:[%s177 + $0x50] sm:$0xff]
      %v2125 = vld [vmem:[%s177 + $0x58] sm:$0xff]
      %v2126 = vld [vmem:[%s177 + $0x60] sm:$0xff]
      %v2127 = vld [vmem:[%s177 + $0x68] sm:$0xff]
      %v2128 = vld [vmem:[%s177 + $0x70] sm:$0xff]
      %v2129 = vld [vmem:[%s177 + $0x78] sm:$0xff]
      %v2130 = vld [vmem:[%s177 + $0x80] sm:$0xff]
      %v2131 = vld [vmem:[%s177 + $0x88] sm:$0xff]
      %v2132 = vld [vmem:[%s177 + $0x90] sm:$0xff]
      %v2133 = vld [vmem:[%s177 + $0x98] sm:$0xff]
      %v2134 = vld [vmem:[%s177 + $0xa0] sm:$0xff]
      %v2135 = vld [vmem:[%s177 + $0xa8] sm:$0xff]
      %v2136 = vld [vmem:[%s177 + $0xb0] sm:$0xff]
      %v2137 = vld [vmem:[%s177 + $0xb8] sm:$0xff]
      %v2138 = vld [vmem:[%s177 + $0xc0] sm:$0xff]
      %v2139 = vld [vmem:[%s177 + $0xc8] sm:$0xff]
      %v2140 = vld [vmem:[%s177 + $0xd0] sm:$0xff]
      %v2141 = vld [vmem:[%s177 + $0xd8] sm:$0xff]
      %v2142 = vld [vmem:[%s177 + $0xe0] sm:$0xff]
      %v2143 = vld [vmem:[%s177 + $0xe8] sm:$0xff]
      %v2144 = vld [vmem:[%s177 + $0xf0] sm:$0xff]
      %v2145 = vld [vmem:[%s177 + $0xf8] sm:$0xff]
      %s2146 = scalar_lea.vmem %s1, 320
      %v2147 = vld [vmem:[%s2146] sm:$0xf]
      %v2148 = vld [vmem:[%s2146 + $0x4] sm:$0xf]
      %v2149 = vld [vmem:[%s2146 + $0x8] sm:$0xf]
      %v2150 = vld [vmem:[%s2146 + $0xc] sm:$0xf]
      %v2151 = vld [vmem:[%s2146 + $0x10] sm:$0xf]
      %v2152 = vld [vmem:[%s2146 + $0x14] sm:$0xf]
      %v2153 = vld [vmem:[%s2146 + $0x18] sm:$0xf]
      %v2154 = vld [vmem:[%s2146 + $0x1c] sm:$0xf]
      %v2155 = vld [vmem:[%s2146 + $0x20] sm:$0xf]
      %v2156 = vld [vmem:[%s2146 + $0x24] sm:$0xf]
      %v2157 = vld [vmem:[%s2146 + $0x28] sm:$0xf]
      %v2158 = vld [vmem:[%s2146 + $0x2c] sm:$0xf]
      %v2159 = vld [vmem:[%s2146 + $0x30] sm:$0xf]
      %v2160 = vld [vmem:[%s2146 + $0x34] sm:$0xf]
      %v2161 = vld [vmem:[%s2146 + $0x38] sm:$0xf]
      %v2162 = vld [vmem:[%s2146 + $0x3c] sm:$0xf]
      %v2179 = vunpack.c.l.b16 %v2147
      %v2180 = vunpack.c.l.b16 %v2148
      %v2181 = vunpack.c.l.b16 %v2149
      %v2182 = vunpack.c.l.b16 %v2150
      %v2183 = vunpack.c.l.b16 %v2151
      %v2184 = vunpack.c.l.b16 %v2152
      %v2185 = vunpack.c.l.b16 %v2153
      %v2186 = vunpack.c.l.b16 %v2154
      %v2187 = vunpack.c.l.b16 %v2155
      %v2188 = vunpack.c.l.b16 %v2156
      %v2189 = vunpack.c.l.b16 %v2157
      %v2190 = vunpack.c.l.b16 %v2158
      %v2191 = vunpack.c.l.b16 %v2159
      %v2192 = vunpack.c.l.b16 %v2160
      %v2193 = vunpack.c.l.b16 %v2161
      %v2194 = vunpack.c.l.b16 %v2162
      %v2195 = vpack.c.b16 %v2180, %v2179
      %v2196 = vpack.c.b16 %v2182, %v2181
      %v2197 = vpack.c.b16 %v2184, %v2183
      %v2198 = vpack.c.b16 %v2186, %v2185
      %v2199 = vpack.c.b16 %v2188, %v2187
      %v2200 = vpack.c.b16 %v2190, %v2189
      %v2201 = vpack.c.b16 %v2192, %v2191
      %v2202 = vpack.c.b16 %v2194, %v2193
      %2211 = vmatprep.subr.bf16.mxu0 0
      %2212 = vmatpush1.bf16.msra.mxu0 %v2195
      %2213 = vmatprep.subr.bf16.mxu0 0
      %2214 = vmatpush1.bf16.msra.mxu0 %v2196
      %2215 = vmatprep.subr.bf16.mxu0 0
      %2216 = vmatpush1.bf16.msra.mxu0 %v2197
      %2217 = vmatprep.subr.bf16.mxu0 0
      %2218 = vmatpush1.bf16.msra.mxu0 %v2198
      %2219 = vmatprep.subr.bf16.mxu0 0
      %2220 = vmatpush1.bf16.msra.mxu0 %v2199
      %2221 = vmatprep.subr.bf16.mxu0 0
      %2222 = vmatpush1.bf16.msra.mxu0 %v2200
      %2223 = vmatprep.subr.bf16.mxu0 0
      %2224 = vmatpush1.bf16.msra.mxu0 %v2201
      %2225 = vmatprep.subr.bf16.mxu0 0
      %2226 = vmatpush1.bf16.msra.mxu0 %v2202
      %2227 = vmatprep.subr.bf16.mxu0 0
      %2228 = vmatpush1.bf16.msra.mxu0 0
      %2229 = vmatprep.subr.bf16.mxu0 0
      %2230 = vmatpush1.bf16.msra.mxu0 0
      %2231 = vmatprep.subr.bf16.mxu0 0
      %2232 = vmatpush1.bf16.msra.mxu0 0
      %2233 = vmatprep.subr.bf16.mxu0 0
      %2234 = vmatpush1.bf16.msra.mxu0 0
      %2235 = vmatprep.subr.bf16.mxu0 0
      %2236 = vmatpush1.bf16.msra.mxu0 0
      %2237 = vmatprep.subr.bf16.mxu0 0
      %2238 = vmatpush1.bf16.msra.mxu0 0
      %2239 = vmatprep.subr.bf16.mxu0 0
      %2240 = vmatpush1.bf16.msra.mxu0 0
      %2241 = vmatprep.subr.bf16.mxu0 0
      %2242 = vmatpush1.bf16.msra.mxu0 0
      %2243 = vmatprep.mubr.bf16.mxu0 0
      %2244 = vmatmul.mubr.bf16.gmra.mrb[0].mxu0 %v2098
      %v2245 = vpop.f32.mrb[0].mxu0
      %v2246 = vadd.f32 0.0, %v2245
      %v2247 = vpop.f32.mrb[0].mxu0
      %v2248 = vpop.f32.mrb[0].mxu0
      %v2249 = vadd.f32 0.0, %v2248
      %v2250 = vpop.f32.mrb[0].mxu0
      %2251 = vmatprep.mubr.bf16.mxu0 0
      %2252 = vmatmul.mubr.bf16.gmra.mrb[0].mxu0 %v2099
      %v2253 = vpop.f32.mrb[0].mxu0
      %v2254 = vadd.f32 0.0, %v2253
      %v2255 = vpop.f32.mrb[0].mxu0
      %v2256 = vpop.f32.mrb[0].mxu0
      %v2257 = vadd.f32 0.0, %v2256
      %v2258 = vpop.f32.mrb[0].mxu0
      %2259 = vmatprep.mubr.bf16.mxu0 0
      %2260 = vmatmul.mubr.bf16.gmra.mrb[0].mxu0 %v2100
      %v2261 = vpop.f32.mrb[0].mxu0
      %v2262 = vadd.f32 0.0, %v2261
      %v2263 = vpop.f32.mrb[0].mxu0
      %v2264 = vpop.f32.mrb[0].mxu0
      %v2265 = vadd.f32 0.0, %v2264
      %v2266 = vpop.f32.mrb[0].mxu0
      %2267 = vmatprep.mubr.bf16.mxu0 0
      %2268 = vmatmul.mubr.bf16.gmra.mrb[0].mxu0 %v2101
      %v2269 = vpop.f32.mrb[0].mxu0
      %v2270 = vadd.f32 0.0, %v2269
      %v2271 = vpop.f32.mrb[0].mxu0
      %v2272 = vpop.f32.mrb[0].mxu0
      %v2273 = vadd.f32 0.0, %v2272
      %v2274 = vpop.f32.mrb[0].mxu0
      %2275 = vmatprep.mubr.bf16.mxu0 0
      %2276 = vmatmul.mubr.bf16.gmra.mrb[0].mxu0 %v2102
      %v2277 = vpop.f32.mrb[0].mxu0
      %v2278 = vadd.f32 0.0, %v2277
      %v2279 = vpop.f32.mrb[0].mxu0
      %v2280 = vpop.f32.mrb[0].mxu0
      %v2281 = vadd.f32 0.0, %v2280
      %v2282 = vpop.f32.mrb[0].mxu0
      %2283 = vmatprep.mubr.bf16.mxu0 0
      %2284 = vmatmul.mubr.bf16.gmra.mrb[0].mxu0 %v2103
      %v2285 = vpop.f32.mrb[0].mxu0
      %v2286 = vadd.f32 0.0, %v2285
      %v2287 = vpop.f32.mrb[0].mxu0
      %v2288 = vpop.f32.mrb[0].mxu0
      %v2289 = vadd.f32 0.0, %v2288
      %v2290 = vpop.f32.mrb[0].mxu0
      %2291 = vmatprep.mubr.bf16.mxu0 0
      %2292 = vmatmul.mubr.bf16.gmra.mrb[0].mxu0 %v2104
      %v2293 = vpop.f32.mrb[0].mxu0
      %v2294 = vadd.f32 0.0, %v2293
      %v2295 = vpop.f32.mrb[0].mxu0
      %v2296 = vpop.f32.mrb[0].mxu0
      %v2297 = vadd.f32 0.0, %v2296
      %v2298 = vpop.f32.mrb[0].mxu0
      %2299 = vmatprep.mubr.bf16.mxu0 0
      %2300 = vmatmul.mubr.bf16.gmra.mrb[0].mxu0 %v2105
      %v2301 = vpop.f32.mrb[0].mxu0
      %v2302 = vadd.f32 0.0, %v2301
      %v2303 = vpop.f32.mrb[0].mxu0
      %v2304 = vpop.f32.mrb[0].mxu0
      %v2305 = vadd.f32 0.0, %v2304
      %v2306 = vpop.f32.mrb[0].mxu0
      %2307 = vmatprep.mubr.bf16.mxu0 0
      %2308 = vmatmul.mubr.bf16.gmra.mrb[0].mxu0 %v2106
      %v2309 = vpop.f32.mrb[0].mxu0
      %v2310 = vadd.f32 0.0, %v2309
      %v2311 = vpop.f32.mrb[0].mxu0
      %v2312 = vpop.f32.mrb[0].mxu0
      %v2313 = vadd.f32 0.0, %v2312
      %v2314 = vpop.f32.mrb[0].mxu0
      %2315 = vmatprep.mubr.bf16.mxu0 0
      %2316 = vmatmul.mubr.bf16.gmra.mrb[0].mxu0 %v2107
      %v2317 = vpop.f32.mrb[0].mxu0
      %v2318 = vadd.f32 0.0, %v2317
      %v2319 = vpop.f32.mrb[0].mxu0
      %v2320 = vpop.f32.mrb[0].mxu0
      %v2321 = vadd.f32 0.0, %v2320
      %v2322 = vpop.f32.mrb[0].mxu0
      %2323 = vmatprep.mubr.bf16.mxu0 0
      %2324 = vmatmul.mubr.bf16.gmra.mrb[0].mxu0 %v2108
      %v2325 = vpop.f32.mrb[0].mxu0
      %v2326 = vadd.f32 0.0, %v2325
      %v2327 = vpop.f32.mrb[0].mxu0
      %v2328 = vpop.f32.mrb[0].mxu0
      %v2329 = vadd.f32 0.0, %v2328
      %v2330 = vpop.f32.mrb[0].mxu0
      %2331 = vmatprep.mubr.bf16.mxu0 0
      %2332 = vmatmul.mubr.bf16.gmra.mrb[0].mxu0 %v2109
      %v2333 = vpop.f32.mrb[0].mxu0
      %v2334 = vadd.f32 0.0, %v2333
      %v2335 = vpop.f32.mrb[0].mxu0
      %v2336 = vpop.f32.mrb[0].mxu0
      %v2337 = vadd.f32 0.0, %v2336
      %v2338 = vpop.f32.mrb[0].mxu0
      %2339 = vmatprep.mubr.bf16.mxu0 0
      %2340 = vmatmul.mubr.bf16.gmra.mrb[0].mxu0 %v2110
      %v2341 = vpop.f32.mrb[0].mxu0
      %v2342 = vadd.f32 0.0, %v2341
      %v2343 = vpop.f32.mrb[0].mxu0
      %v2344 = vpop.f32.mrb[0].mxu0
      %v2345 = vadd.f32 0.0, %v2344
      %v2346 = vpop.f32.mrb[0].mxu0
      %2347 = vmatprep.mubr.bf16.mxu0 0
      %2348 = vmatmul.mubr.bf16.gmra.mrb[0].mxu0 %v2111
      %v2349 = vpop.f32.mrb[0].mxu0
      %v2350 = vadd.f32 0.0, %v2349
      %v2351 = vpop.f32.mrb[0].mxu0
      %v2352 = vpop.f32.mrb[0].mxu0
      %v2353 = vadd.f32 0.0, %v2352
      %v2354 = vpop.f32.mrb[0].mxu0
      %2355 = vmatprep.mubr.bf16.mxu0 0
      %2356 = vmatmul.mubr.bf16.gmra.mrb[0].mxu0 %v2112
      %v2357 = vpop.f32.mrb[0].mxu0
      %v2358 = vadd.f32 0.0, %v2357
      %v2359 = vpop.f32.mrb[0].mxu0
      %v2360 = vpop.f32.mrb[0].mxu0
      %v2361 = vadd.f32 0.0, %v2360
      %v2362 = vpop.f32.mrb[0].mxu0
      %2363 = vmatprep.mubr.bf16.mxu0 0
      %2364 = vmatmul.mubr.bf16.gmra.mrb[0].mxu0 %v2113
      %v2365 = vpop.f32.mrb[0].mxu0
      %v2366 = vadd.f32 0.0, %v2365
      %v2367 = vpop.f32.mrb[0].mxu0
      %v2368 = vpop.f32.mrb[0].mxu0
      %v2369 = vadd.f32 0.0, %v2368
      %v2370 = vpop.f32.mrb[0].mxu0
      %2371 = vdwg.mxu0
      %v2372 = vadd.f32 %v2114, %v2246
      %v2373 = vadd.f32 %v2115, %v2249
      %v2374 = vadd.f32 %v2116, %v2254
      %v2375 = vadd.f32 %v2117, %v2257
      %v2376 = vadd.f32 %v2118, %v2262
      %v2377 = vadd.f32 %v2119, %v2265
      %v2378 = vadd.f32 %v2120, %v2270
      %v2379 = vadd.f32 %v2121, %v2273
      %v2380 = vadd.f32 %v2122, %v2278
      %v2381 = vadd.f32 %v2123, %v2281
      %v2382 = vadd.f32 %v2124, %v2286
      %v2383 = vadd.f32 %v2125, %v2289
      %v2384 = vadd.f32 %v2126, %v2294
      %v2385 = vadd.f32 %v2127, %v2297
      %v2386 = vadd.f32 %v2128, %v2302
      %v2387 = vadd.f32 %v2129, %v2305
      %v2388 = vadd.f32 %v2130, %v2310
      %v2389 = vadd.f32 %v2131, %v2313
      %v2390 = vadd.f32 %v2132, %v2318
      %v2391 = vadd.f32 %v2133, %v2321
      %v2392 = vadd.f32 %v2134, %v2326
      %v2393 = vadd.f32 %v2135, %v2329
      %v2394 = vadd.f32 %v2136, %v2334
      %v2395 = vadd.f32 %v2137, %v2337
      %v2396 = vadd.f32 %v2138, %v2342
      %v2397 = vadd.f32 %v2139, %v2345
      %v2398 = vadd.f32 %v2140, %v2350
      %v2399 = vadd.f32 %v2141, %v2353
      %v2400 = vadd.f32 %v2142, %v2358
      %v2401 = vadd.f32 %v2143, %v2361
      %v2402 = vadd.f32 %v2144, %v2366
      %v2403 = vadd.f32 %v2145, %v2369
      %2404 = vst [vmem:[%s177] sm:$0xff] %v2372
      %2405 = vst [vmem:[%s177 + $0x8] sm:$0xff] %v2373
      %2406 = vst [vmem:[%s177 + $0x10] sm:$0xff] %v2374
      %2407 = vst [vmem:[%s177 + $0x18] sm:$0xff] %v2375
      %2408 = vst [vmem:[%s177 + $0x20] sm:$0xff] %v2376
      %2409 = vst [vmem:[%s177 + $0x28] sm:$0xff] %v2377
      %2410 = vst [vmem:[%s177 + $0x30] sm:$0xff] %v2378
      %2411 = vst [vmem:[%s177 + $0x38] sm:$0xff] %v2379
      %2412 = vst [vmem:[%s177 + $0x40] sm:$0xff] %v2380
      %2413 = vst [vmem:[%s177 + $0x48] sm:$0xff] %v2381
      %2414 = vst [vmem:[%s177 + $0x50] sm:$0xff] %v2382
      %2415 = vst [vmem:[%s177 + $0x58] sm:$0xff] %v2383
      %2416 = vst [vmem:[%s177 + $0x60] sm:$0xff] %v2384
      %2417 = vst [vmem:[%s177 + $0x68] sm:$0xff] %v2385
      %2418 = vst [vmem:[%s177 + $0x70] sm:$0xff] %v2386
      %2419 = vst [vmem:[%s177 + $0x78] sm:$0xff] %v2387
      %2420 = vst [vmem:[%s177 + $0x80] sm:$0xff] %v2388
      %2421 = vst [vmem:[%s177 + $0x88] sm:$0xff] %v2389
      %2422 = vst [vmem:[%s177 + $0x90] sm:$0xff] %v2390
      %2423 = vst [vmem:[%s177 + $0x98] sm:$0xff] %v2391
      %2424 = vst [vmem:[%s177 + $0xa0] sm:$0xff] %v2392
      %2425 = vst [vmem:[%s177 + $0xa8] sm:$0xff] %v2393
      %2426 = vst [vmem:[%s177 + $0xb0] sm:$0xff] %v2394
      %2427 = vst [vmem:[%s177 + $0xb8] sm:$0xff] %v2395
      %2428 = vst [vmem:[%s177 + $0xc0] sm:$0xff] %v2396
      %2429 = vst [vmem:[%s177 + $0xc8] sm:$0xff] %v2397
      %2430 = vst [vmem:[%s177 + $0xd0] sm:$0xff] %v2398
      %2431 = vst [vmem:[%s177 + $0xd8] sm:$0xff] %v2399
      %2432 = vst [vmem:[%s177 + $0xe0] sm:$0xff] %v2400
      %2433 = vst [vmem:[%s177 + $0xe8] sm:$0xff] %v2401
      %2434 = vst [vmem:[%s177 + $0xf0] sm:$0xff] %v2402
      %2435 = vst [vmem:[%s177 + $0xf8] sm:$0xff] %v2403
      %s2436 = scalar_lea.vmem %s172, 48
      %v2437 = vld [vmem:[%s2436] sm:$0xff]
      %v2438 = vld [vmem:[%s2436 + $0x8] sm:$0xff]
      %v2439 = vld [vmem:[%s2436 + $0x18] sm:$0xff]
      %v2440 = vld [vmem:[%s2436 + $0x20] sm:$0xff]
      %v2441 = vld [vmem:[%s2436 + $0x30] sm:$0xff]
      %v2442 = vld [vmem:[%s2436 + $0x38] sm:$0xff]
      %v2443 = vld [vmem:[%s2436 + $0x48] sm:$0xff]
      %v2444 = vld [vmem:[%s2436 + $0x50] sm:$0xff]
      %v2445 = vld [vmem:[%s2436 + $0x60] sm:$0xff]
      %v2446 = vld [vmem:[%s2436 + $0x68] sm:$0xff]
      %v2447 = vld [vmem:[%s2436 + $0x78] sm:$0xff]
      %v2448 = vld [vmem:[%s2436 + $0x80] sm:$0xff]
      %v2449 = vld [vmem:[%s2436 + $0x90] sm:$0xff]
      %v2450 = vld [vmem:[%s2436 + $0x98] sm:$0xff]
      %v2451 = vld [vmem:[%s2436 + $0xa8] sm:$0xff]
      %v2452 = vld [vmem:[%s2436 + $0xb0] sm:$0xff]
      %v2453 = vld [vmem:[%s2436 + $0xc0] sm:$0xff]
      %v2454 = vld [vmem:[%s2436 + $0xc8] sm:$0xff]
      %v2455 = vld [vmem:[%s2436 + $0xd8] sm:$0xff]
      %v2456 = vld [vmem:[%s2436 + $0xe0] sm:$0xff]
      %v2457 = vld [vmem:[%s2436 + $0xf0] sm:$0xff]
      %v2458 = vld [vmem:[%s2436 + $0xf8] sm:$0xff]
      %v2459 = vld [vmem:[%s2436 + $0x108] sm:$0xff]
      %v2460 = vld [vmem:[%s2436 + $0x110] sm:$0xff]
      %v2461 = vld [vmem:[%s2436 + $0x120] sm:$0xff]
      %v2462 = vld [vmem:[%s2436 + $0x128] sm:$0xff]
      %v2463 = vld [vmem:[%s2436 + $0x138] sm:$0xff]
      %v2464 = vld [vmem:[%s2436 + $0x140] sm:$0xff]
      %v2465 = vld [vmem:[%s2436 + $0x150] sm:$0xff]
      %v2466 = vld [vmem:[%s2436 + $0x158] sm:$0xff]
      %v2467 = vld [vmem:[%s2436 + $0x168] sm:$0xff]
      %v2468 = vld [vmem:[%s2436 + $0x170] sm:$0xff]
      %v2469 = vpack.c.bf16 %v2438, %v2437
      %v2470 = vpack.c.bf16 %v2440, %v2439
      %v2471 = vpack.c.bf16 %v2442, %v2441
      %v2472 = vpack.c.bf16 %v2444, %v2443
      %v2473 = vpack.c.bf16 %v2446, %v2445
      %v2474 = vpack.c.bf16 %v2448, %v2447
      %v2475 = vpack.c.bf16 %v2450, %v2449
      %v2476 = vpack.c.bf16 %v2452, %v2451
      %v2477 = vpack.c.bf16 %v2454, %v2453
      %v2478 = vpack.c.bf16 %v2456, %v2455
      %v2479 = vpack.c.bf16 %v2458, %v2457
      %v2480 = vpack.c.bf16 %v2460, %v2459
      %v2481 = vpack.c.bf16 %v2462, %v2461
      %v2482 = vpack.c.bf16 %v2464, %v2463
      %v2483 = vpack.c.bf16 %v2466, %v2465
      %v2484 = vpack.c.bf16 %v2468, %v2467
      %v2485 = vld [vmem:[%s177] sm:$0xff]
      %v2486 = vld [vmem:[%s177 + $0x8] sm:$0xff]
      %v2487 = vld [vmem:[%s177 + $0x10] sm:$0xff]
      %v2488 = vld [vmem:[%s177 + $0x18] sm:$0xff]
      %v2489 = vld [vmem:[%s177 + $0x20] sm:$0xff]
      %v2490 = vld [vmem:[%s177 + $0x28] sm:$0xff]
      %v2491 = vld [vmem:[%s177 + $0x30] sm:$0xff]
      %v2492 = vld [vmem:[%s177 + $0x38] sm:$0xff]
      %v2493 = vld [vmem:[%s177 + $0x40] sm:$0xff]
      %v2494 = vld [vmem:[%s177 + $0x48] sm:$0xff]
      %v2495 = vld [vmem:[%s177 + $0x50] sm:$0xff]
      %v2496 = vld [vmem:[%s177 + $0x58] sm:$0xff]
      %v2497 = vld [vmem:[%s177 + $0x60] sm:$0xff]
      %v2498 = vld [vmem:[%s177 + $0x68] sm:$0xff]
      %v2499 = vld [vmem:[%s177 + $0x70] sm:$0xff]
      %v2500 = vld [vmem:[%s177 + $0x78] sm:$0xff]
      %v2501 = vld [vmem:[%s177 + $0x80] sm:$0xff]
      %v2502 = vld [vmem:[%s177 + $0x88] sm:$0xff]
      %v2503 = vld [vmem:[%s177 + $0x90] sm:$0xff]
      %v2504 = vld [vmem:[%s177 + $0x98] sm:$0xff]
      %v2505 = vld [vmem:[%s177 + $0xa0] sm:$0xff]
      %v2506 = vld [vmem:[%s177 + $0xa8] sm:$0xff]
      %v2507 = vld [vmem:[%s177 + $0xb0] sm:$0xff]
      %v2508 = vld [vmem:[%s177 + $0xb8] sm:$0xff]
      %v2509 = vld [vmem:[%s177 + $0xc0] sm:$0xff]
      %v2510 = vld [vmem:[%s177 + $0xc8] sm:$0xff]
      %v2511 = vld [vmem:[%s177 + $0xd0] sm:$0xff]
      %v2512 = vld [vmem:[%s177 + $0xd8] sm:$0xff]
      %v2513 = vld [vmem:[%s177 + $0xe0] sm:$0xff]
      %v2514 = vld [vmem:[%s177 + $0xe8] sm:$0xff]
      %v2515 = vld [vmem:[%s177 + $0xf0] sm:$0xff]
      %v2516 = vld [vmem:[%s177 + $0xf8] sm:$0xff]
      %s2517 = scalar_lea.vmem %s1, 384
      %v2518 = vld [vmem:[%s2517] sm:$0xf]
      %v2519 = vld [vmem:[%s2517 + $0x4] sm:$0xf]
      %v2520 = vld [vmem:[%s2517 + $0x8] sm:$0xf]
      %v2521 = vld [vmem:[%s2517 + $0xc] sm:$0xf]
      %v2522 = vld [vmem:[%s2517 + $0x10] sm:$0xf]
      %v2523 = vld [vmem:[%s2517 + $0x14] sm:$0xf]
      %v2524 = vld [vmem:[%s2517 + $0x18] sm:$0xf]
      %v2525 = vld [vmem:[%s2517 + $0x1c] sm:$0xf]
      %v2526 = vld [vmem:[%s2517 + $0x20] sm:$0xf]
      %v2527 = vld [vmem:[%s2517 + $0x24] sm:$0xf]
      %v2528 = vld [vmem:[%s2517 + $0x28] sm:$0xf]
      %v2529 = vld [vmem:[%s2517 + $0x2c] sm:$0xf]
      %v2530 = vld [vmem:[%s2517 + $0x30] sm:$0xf]
      %v2531 = vld [vmem:[%s2517 + $0x34] sm:$0xf]
      %v2532 = vld [vmem:[%s2517 + $0x38] sm:$0xf]
      %v2533 = vld [vmem:[%s2517 + $0x3c] sm:$0xf]
      %v2550 = vunpack.c.l.b16 %v2518
      %v2551 = vunpack.c.l.b16 %v2519
      %v2552 = vunpack.c.l.b16 %v2520
      %v2553 = vunpack.c.l.b16 %v2521
      %v2554 = vunpack.c.l.b16 %v2522
      %v2555 = vunpack.c.l.b16 %v2523
      %v2556 = vunpack.c.l.b16 %v2524
      %v2557 = vunpack.c.l.b16 %v2525
      %v2558 = vunpack.c.l.b16 %v2526
      %v2559 = vunpack.c.l.b16 %v2527
      %v2560 = vunpack.c.l.b16 %v2528
      %v2561 = vunpack.c.l.b16 %v2529
      %v2562 = vunpack.c.l.b16 %v2530
      %v2563 = vunpack.c.l.b16 %v2531
      %v2564 = vunpack.c.l.b16 %v2532
      %v2565 = vunpack.c.l.b16 %v2533
      %v2566 = vpack.c.b16 %v2551, %v2550
      %v2567 = vpack.c.b16 %v2553, %v2552
      %v2568 = vpack.c.b16 %v2555, %v2554
      %v2569 = vpack.c.b16 %v2557, %v2556
      %v2570 = vpack.c.b16 %v2559, %v2558
      %v2571 = vpack.c.b16 %v2561, %v2560
      %v2572 = vpack.c.b16 %v2563, %v2562
      %v2573 = vpack.c.b16 %v2565, %v2564
      %2582 = vmatprep.subr.bf16.mxu0 0
      %2583 = vmatpush1.bf16.msra.mxu0 %v2566
      %2584 = vmatprep.subr.bf16.mxu0 0
      %2585 = vmatpush1.bf16.msra.mxu0 %v2567
      %2586 = vmatprep.subr.bf16.mxu0 0
      %2587 = vmatpush1.bf16.msra.mxu0 %v2568
      %2588 = vmatprep.subr.bf16.mxu0 0
      %2589 = vmatpush1.bf16.msra.mxu0 %v2569
      %2590 = vmatprep.subr.bf16.mxu0 0
      %2591 = vmatpush1.bf16.msra.mxu0 %v2570
      %2592 = vmatprep.subr.bf16.mxu0 0
      %2593 = vmatpush1.bf16.msra.mxu0 %v2571
      %2594 = vmatprep.subr.bf16.mxu0 0
      %2595 = vmatpush1.bf16.msra.mxu0 %v2572
      %2596 = vmatprep.subr.bf16.mxu0 0
      %2597 = vmatpush1.bf16.msra.mxu0 %v2573
      %2598 = vmatprep.subr.bf16.mxu0 0
      %2599 = vmatpush1.bf16.msra.mxu0 0
      %2600 = vmatprep.subr.bf16.mxu0 0
      %2601 = vmatpush1.bf16.msra.mxu0 0
      %2602 = vmatprep.subr.bf16.mxu0 0
      %2603 = vmatpush1.bf16.msra.mxu0 0
      %2604 = vmatprep.subr.bf16.mxu0 0
      %2605 = vmatpush1.bf16.msra.mxu0 0
      %2606 = vmatprep.subr.bf16.mxu0 0
      %2607 = vmatpush1.bf16.msra.mxu0 0
      %2608 = vmatprep.subr.bf16.mxu0 0
      %2609 = vmatpush1.bf16.msra.mxu0 0
      %2610 = vmatprep.subr.bf16.mxu0 0
      %2611 = vmatpush1.bf16.msra.mxu0 0
      %2612 = vmatprep.subr.bf16.mxu0 0
      %2613 = vmatpush1.bf16.msra.mxu0 0
      %2614 = vmatprep.mubr.bf16.mxu0 0
      %2615 = vmatmul.mubr.bf16.gmra.mrb[0].mxu0 %v2469
      %v2616 = vpop.f32.mrb[0].mxu0
      %v2617 = vadd.f32 0.0, %v2616
      %v2618 = vpop.f32.mrb[0].mxu0
      %v2619 = vpop.f32.mrb[0].mxu0
      %v2620 = vadd.f32 0.0, %v2619
      %v2621 = vpop.f32.mrb[0].mxu0
      %2622 = vmatprep.mubr.bf16.mxu0 0
      %2623 = vmatmul.mubr.bf16.gmra.mrb[0].mxu0 %v2470
      %v2624 = vpop.f32.mrb[0].mxu0
      %v2625 = vadd.f32 0.0, %v2624
      %v2626 = vpop.f32.mrb[0].mxu0
      %v2627 = vpop.f32.mrb[0].mxu0
      %v2628 = vadd.f32 0.0, %v2627
      %v2629 = vpop.f32.mrb[0].mxu0
      %2630 = vmatprep.mubr.bf16.mxu0 0
      %2631 = vmatmul.mubr.bf16.gmra.mrb[0].mxu0 %v2471
      %v2632 = vpop.f32.mrb[0].mxu0
      %v2633 = vadd.f32 0.0, %v2632
      %v2634 = vpop.f32.mrb[0].mxu0
      %v2635 = vpop.f32.mrb[0].mxu0
      %v2636 = vadd.f32 0.0, %v2635
      %v2637 = vpop.f32.mrb[0].mxu0
      %2638 = vmatprep.mubr.bf16.mxu0 0
      %2639 = vmatmul.mubr.bf16.gmra.mrb[0].mxu0 %v2472
      %v2640 = vpop.f32.mrb[0].mxu0
      %v2641 = vadd.f32 0.0, %v2640
      %v2642 = vpop.f32.mrb[0].mxu0
      %v2643 = vpop.f32.mrb[0].mxu0
      %v2644 = vadd.f32 0.0, %v2643
      %v2645 = vpop.f32.mrb[0].mxu0
      %2646 = vmatprep.mubr.bf16.mxu0 0
      %2647 = vmatmul.mubr.bf16.gmra.mrb[0].mxu0 %v2473
      %v2648 = vpop.f32.mrb[0].mxu0
      %v2649 = vadd.f32 0.0, %v2648
      %v2650 = vpop.f32.mrb[0].mxu0
      %v2651 = vpop.f32.mrb[0].mxu0
      %v2652 = vadd.f32 0.0, %v2651
      %v2653 = vpop.f32.mrb[0].mxu0
      %2654 = vmatprep.mubr.bf16.mxu0 0
      %2655 = vmatmul.mubr.bf16.gmra.mrb[0].mxu0 %v2474
      %v2656 = vpop.f32.mrb[0].mxu0
      %v2657 = vadd.f32 0.0, %v2656
      %v2658 = vpop.f32.mrb[0].mxu0
      %v2659 = vpop.f32.mrb[0].mxu0
      %v2660 = vadd.f32 0.0, %v2659
      %v2661 = vpop.f32.mrb[0].mxu0
      %2662 = vmatprep.mubr.bf16.mxu0 0
      %2663 = vmatmul.mubr.bf16.gmra.mrb[0].mxu0 %v2475
      %v2664 = vpop.f32.mrb[0].mxu0
      %v2665 = vadd.f32 0.0, %v2664
      %v2666 = vpop.f32.mrb[0].mxu0
      %v2667 = vpop.f32.mrb[0].mxu0
      %v2668 = vadd.f32 0.0, %v2667
      %v2669 = vpop.f32.mrb[0].mxu0
      %2670 = vmatprep.mubr.bf16.mxu0 0
      %2671 = vmatmul.mubr.bf16.gmra.mrb[0].mxu0 %v2476
      %v2672 = vpop.f32.mrb[0].mxu0
      %v2673 = vadd.f32 0.0, %v2672
      %v2674 = vpop.f32.mrb[0].mxu0
      %v2675 = vpop.f32.mrb[0].mxu0
      %v2676 = vadd.f32 0.0, %v2675
      %v2677 = vpop.f32.mrb[0].mxu0
      %2678 = vmatprep.mubr.bf16.mxu0 0
      %2679 = vmatmul.mubr.bf16.gmra.mrb[0].mxu0 %v2477
      %v2680 = vpop.f32.mrb[0].mxu0
      %v2681 = vadd.f32 0.0, %v2680
      %v2682 = vpop.f32.mrb[0].mxu0
      %v2683 = vpop.f32.mrb[0].mxu0
      %v2684 = vadd.f32 0.0, %v2683
      %v2685 = vpop.f32.mrb[0].mxu0
      %2686 = vmatprep.mubr.bf16.mxu0 0
      %2687 = vmatmul.mubr.bf16.gmra.mrb[0].mxu0 %v2478
      %v2688 = vpop.f32.mrb[0].mxu0
      %v2689 = vadd.f32 0.0, %v2688
      %v2690 = vpop.f32.mrb[0].mxu0
      %v2691 = vpop.f32.mrb[0].mxu0
      %v2692 = vadd.f32 0.0, %v2691
      %v2693 = vpop.f32.mrb[0].mxu0
      %2694 = vmatprep.mubr.bf16.mxu0 0
      %2695 = vmatmul.mubr.bf16.gmra.mrb[0].mxu0 %v2479
      %v2696 = vpop.f32.mrb[0].mxu0
      %v2697 = vadd.f32 0.0, %v2696
      %v2698 = vpop.f32.mrb[0].mxu0
      %v2699 = vpop.f32.mrb[0].mxu0
      %v2700 = vadd.f32 0.0, %v2699
      %v2701 = vpop.f32.mrb[0].mxu0
      %2702 = vmatprep.mubr.bf16.mxu0 0
      %2703 = vmatmul.mubr.bf16.gmra.mrb[0].mxu0 %v2480
      %v2704 = vpop.f32.mrb[0].mxu0
      %v2705 = vadd.f32 0.0, %v2704
      %v2706 = vpop.f32.mrb[0].mxu0
      %v2707 = vpop.f32.mrb[0].mxu0
      %v2708 = vadd.f32 0.0, %v2707
      %v2709 = vpop.f32.mrb[0].mxu0
      %2710 = vmatprep.mubr.bf16.mxu0 0
      %2711 = vmatmul.mubr.bf16.gmra.mrb[0].mxu0 %v2481
      %v2712 = vpop.f32.mrb[0].mxu0
      %v2713 = vadd.f32 0.0, %v2712
      %v2714 = vpop.f32.mrb[0].mxu0
      %v2715 = vpop.f32.mrb[0].mxu0
      %v2716 = vadd.f32 0.0, %v2715
      %v2717 = vpop.f32.mrb[0].mxu0
      %2718 = vmatprep.mubr.bf16.mxu0 0
      %2719 = vmatmul.mubr.bf16.gmra.mrb[0].mxu0 %v2482
      %v2720 = vpop.f32.mrb[0].mxu0
      %v2721 = vadd.f32 0.0, %v2720
      %v2722 = vpop.f32.mrb[0].mxu0
      %v2723 = vpop.f32.mrb[0].mxu0
      %v2724 = vadd.f32 0.0, %v2723
      %v2725 = vpop.f32.mrb[0].mxu0
      %2726 = vmatprep.mubr.bf16.mxu0 0
      %2727 = vmatmul.mubr.bf16.gmra.mrb[0].mxu0 %v2483
      %v2728 = vpop.f32.mrb[0].mxu0
      %v2729 = vadd.f32 0.0, %v2728
      %v2730 = vpop.f32.mrb[0].mxu0
      %v2731 = vpop.f32.mrb[0].mxu0
      %v2732 = vadd.f32 0.0, %v2731
      %v2733 = vpop.f32.mrb[0].mxu0
      %2734 = vmatprep.mubr.bf16.mxu0 0
      %2735 = vmatmul.mubr.bf16.gmra.mrb[0].mxu0 %v2484
      %v2736 = vpop.f32.mrb[0].mxu0
      %v2737 = vadd.f32 0.0, %v2736
      %v2738 = vpop.f32.mrb[0].mxu0
      %v2739 = vpop.f32.mrb[0].mxu0
      %v2740 = vadd.f32 0.0, %v2739
      %v2741 = vpop.f32.mrb[0].mxu0
      %2742 = vdwg.mxu0
      %v2743 = vadd.f32 %v2485, %v2617
      %v2744 = vadd.f32 %v2486, %v2620
      %v2745 = vadd.f32 %v2487, %v2625
      %v2746 = vadd.f32 %v2488, %v2628
      %v2747 = vadd.f32 %v2489, %v2633
      %v2748 = vadd.f32 %v2490, %v2636
      %v2749 = vadd.f32 %v2491, %v2641
      %v2750 = vadd.f32 %v2492, %v2644
      %v2751 = vadd.f32 %v2493, %v2649
      %v2752 = vadd.f32 %v2494, %v2652
      %v2753 = vadd.f32 %v2495, %v2657
      %v2754 = vadd.f32 %v2496, %v2660
      %v2755 = vadd.f32 %v2497, %v2665
      %v2756 = vadd.f32 %v2498, %v2668
      %v2757 = vadd.f32 %v2499, %v2673
      %v2758 = vadd.f32 %v2500, %v2676
      %v2759 = vadd.f32 %v2501, %v2681
      %v2760 = vadd.f32 %v2502, %v2684
      %v2761 = vadd.f32 %v2503, %v2689
      %v2762 = vadd.f32 %v2504, %v2692
      %v2763 = vadd.f32 %v2505, %v2697
      %v2764 = vadd.f32 %v2506, %v2700
      %v2765 = vadd.f32 %v2507, %v2705
      %v2766 = vadd.f32 %v2508, %v2708
      %v2767 = vadd.f32 %v2509, %v2713
      %v2768 = vadd.f32 %v2510, %v2716
      %v2769 = vadd.f32 %v2511, %v2721
      %v2770 = vadd.f32 %v2512, %v2724
      %v2771 = vadd.f32 %v2513, %v2729
      %v2772 = vadd.f32 %v2514, %v2732
      %v2773 = vadd.f32 %v2515, %v2737
      %v2774 = vadd.f32 %v2516, %v2740
      %2775 = vst [vmem:[%s177] sm:$0xff] %v2743
      %2776 = vst [vmem:[%s177 + $0x8] sm:$0xff] %v2744
      %2777 = vst [vmem:[%s177 + $0x10] sm:$0xff] %v2745
      %2778 = vst [vmem:[%s177 + $0x18] sm:$0xff] %v2746
      %2779 = vst [vmem:[%s177 + $0x20] sm:$0xff] %v2747
      %2780 = vst [vmem:[%s177 + $0x28] sm:$0xff] %v2748
      %2781 = vst [vmem:[%s177 + $0x30] sm:$0xff] %v2749
      %2782 = vst [vmem:[%s177 + $0x38] sm:$0xff] %v2750
      %2783 = vst [vmem:[%s177 + $0x40] sm:$0xff] %v2751
      %2784 = vst [vmem:[%s177 + $0x48] sm:$0xff] %v2752
      %2785 = vst [vmem:[%s177 + $0x50] sm:$0xff] %v2753
      %2786 = vst [vmem:[%s177 + $0x58] sm:$0xff] %v2754
      %2787 = vst [vmem:[%s177 + $0x60] sm:$0xff] %v2755
      %2788 = vst [vmem:[%s177 + $0x68] sm:$0xff] %v2756
      %2789 = vst [vmem:[%s177 + $0x70] sm:$0xff] %v2757
      %2790 = vst [vmem:[%s177 + $0x78] sm:$0xff] %v2758
      %2791 = vst [vmem:[%s177 + $0x80] sm:$0xff] %v2759
      %2792 = vst [vmem:[%s177 + $0x88] sm:$0xff] %v2760
      %2793 = vst [vmem:[%s177 + $0x90] sm:$0xff] %v2761
      %2794 = vst [vmem:[%s177 + $0x98] sm:$0xff] %v2762
      %2795 = vst [vmem:[%s177 + $0xa0] sm:$0xff] %v2763
      %2796 = vst [vmem:[%s177 + $0xa8] sm:$0xff] %v2764
      %2797 = vst [vmem:[%s177 + $0xb0] sm:$0xff] %v2765
      %2798 = vst [vmem:[%s177 + $0xb8] sm:$0xff] %v2766
      %2799 = vst [vmem:[%s177 + $0xc0] sm:$0xff] %v2767
      %2800 = vst [vmem:[%s177 + $0xc8] sm:$0xff] %v2768
      %2801 = vst [vmem:[%s177 + $0xd0] sm:$0xff] %v2769
      %2802 = vst [vmem:[%s177 + $0xd8] sm:$0xff] %v2770
      %2803 = vst [vmem:[%s177 + $0xe0] sm:$0xff] %v2771
      %2804 = vst [vmem:[%s177 + $0xe8] sm:$0xff] %v2772
      %2805 = vst [vmem:[%s177 + $0xf0] sm:$0xff] %v2773
      %2806 = vst [vmem:[%s177 + $0xf8] sm:$0xff] %v2774
      %v2807 = vld [vmem:[%s2436 + $0x1] sm:$0xff]
      %v2808 = vld [vmem:[%s2436 + $0x9] sm:$0xff]
      %v2809 = vld [vmem:[%s2436 + $0x19] sm:$0xff]
      %v2810 = vld [vmem:[%s2436 + $0x21] sm:$0xff]
      %v2811 = vld [vmem:[%s2436 + $0x31] sm:$0xff]
      %v2812 = vld [vmem:[%s2436 + $0x39] sm:$0xff]
      %v2813 = vld [vmem:[%s2436 + $0x49] sm:$0xff]
      %v2814 = vld [vmem:[%s2436 + $0x51] sm:$0xff]
      %v2815 = vld [vmem:[%s2436 + $0x61] sm:$0xff]
      %v2816 = vld [vmem:[%s2436 + $0x69] sm:$0xff]
      %v2817 = vld [vmem:[%s2436 + $0x79] sm:$0xff]
      %v2818 = vld [vmem:[%s2436 + $0x81] sm:$0xff]
      %v2819 = vld [vmem:[%s2436 + $0x91] sm:$0xff]
      %v2820 = vld [vmem:[%s2436 + $0x99] sm:$0xff]
      %v2821 = vld [vmem:[%s2436 + $0xa9] sm:$0xff]
      %v2822 = vld [vmem:[%s2436 + $0xb1] sm:$0xff]
      %v2823 = vld [vmem:[%s2436 + $0xc1] sm:$0xff]
      %v2824 = vld [vmem:[%s2436 + $0xc9] sm:$0xff]
      %v2825 = vld [vmem:[%s2436 + $0xd9] sm:$0xff]
      %v2826 = vld [vmem:[%s2436 + $0xe1] sm:$0xff]
      %v2827 = vld [vmem:[%s2436 + $0xf1] sm:$0xff]
      %v2828 = vld [vmem:[%s2436 + $0xf9] sm:$0xff]
      %v2829 = vld [vmem:[%s2436 + $0x109] sm:$0xff]
      %v2830 = vld [vmem:[%s2436 + $0x111] sm:$0xff]
      %v2831 = vld [vmem:[%s2436 + $0x121] sm:$0xff]
      %v2832 = vld [vmem:[%s2436 + $0x129] sm:$0xff]
      %v2833 = vld [vmem:[%s2436 + $0x139] sm:$0xff]
      %v2834 = vld [vmem:[%s2436 + $0x141] sm:$0xff]
      %v2835 = vld [vmem:[%s2436 + $0x151] sm:$0xff]
      %v2836 = vld [vmem:[%s2436 + $0x159] sm:$0xff]
      %v2837 = vld [vmem:[%s2436 + $0x169] sm:$0xff]
      %v2838 = vld [vmem:[%s2436 + $0x171] sm:$0xff]
      %v2839 = vpack.c.bf16 %v2808, %v2807
      %v2840 = vpack.c.bf16 %v2810, %v2809
      %v2841 = vpack.c.bf16 %v2812, %v2811
      %v2842 = vpack.c.bf16 %v2814, %v2813
      %v2843 = vpack.c.bf16 %v2816, %v2815
      %v2844 = vpack.c.bf16 %v2818, %v2817
      %v2845 = vpack.c.bf16 %v2820, %v2819
      %v2846 = vpack.c.bf16 %v2822, %v2821
      %v2847 = vpack.c.bf16 %v2824, %v2823
      %v2848 = vpack.c.bf16 %v2826, %v2825
      %v2849 = vpack.c.bf16 %v2828, %v2827
      %v2850 = vpack.c.bf16 %v2830, %v2829
      %v2851 = vpack.c.bf16 %v2832, %v2831
      %v2852 = vpack.c.bf16 %v2834, %v2833
      %v2853 = vpack.c.bf16 %v2836, %v2835
      %v2854 = vpack.c.bf16 %v2838, %v2837
      %v2855 = vld [vmem:[%s177] sm:$0xff]
      %v2856 = vld [vmem:[%s177 + $0x8] sm:$0xff]
      %v2857 = vld [vmem:[%s177 + $0x10] sm:$0xff]
      %v2858 = vld [vmem:[%s177 + $0x18] sm:$0xff]
      %v2859 = vld [vmem:[%s177 + $0x20] sm:$0xff]
      %v2860 = vld [vmem:[%s177 + $0x28] sm:$0xff]
      %v2861 = vld [vmem:[%s177 + $0x30] sm:$0xff]
      %v2862 = vld [vmem:[%s177 + $0x38] sm:$0xff]
      %v2863 = vld [vmem:[%s177 + $0x40] sm:$0xff]
      %v2864 = vld [vmem:[%s177 + $0x48] sm:$0xff]
      %v2865 = vld [vmem:[%s177 + $0x50] sm:$0xff]
      %v2866 = vld [vmem:[%s177 + $0x58] sm:$0xff]
      %v2867 = vld [vmem:[%s177 + $0x60] sm:$0xff]
      %v2868 = vld [vmem:[%s177 + $0x68] sm:$0xff]
      %v2869 = vld [vmem:[%s177 + $0x70] sm:$0xff]
      %v2870 = vld [vmem:[%s177 + $0x78] sm:$0xff]
      %v2871 = vld [vmem:[%s177 + $0x80] sm:$0xff]
      %v2872 = vld [vmem:[%s177 + $0x88] sm:$0xff]
      %v2873 = vld [vmem:[%s177 + $0x90] sm:$0xff]
      %v2874 = vld [vmem:[%s177 + $0x98] sm:$0xff]
      %v2875 = vld [vmem:[%s177 + $0xa0] sm:$0xff]
      %v2876 = vld [vmem:[%s177 + $0xa8] sm:$0xff]
      %v2877 = vld [vmem:[%s177 + $0xb0] sm:$0xff]
      %v2878 = vld [vmem:[%s177 + $0xb8] sm:$0xff]
      %v2879 = vld [vmem:[%s177 + $0xc0] sm:$0xff]
      %v2880 = vld [vmem:[%s177 + $0xc8] sm:$0xff]
      %v2881 = vld [vmem:[%s177 + $0xd0] sm:$0xff]
      %v2882 = vld [vmem:[%s177 + $0xd8] sm:$0xff]
      %v2883 = vld [vmem:[%s177 + $0xe0] sm:$0xff]
      %v2884 = vld [vmem:[%s177 + $0xe8] sm:$0xff]
      %v2885 = vld [vmem:[%s177 + $0xf0] sm:$0xff]
      %v2886 = vld [vmem:[%s177 + $0xf8] sm:$0xff]
      %s2887 = scalar_lea.vmem %s1, 448
      %v2888 = vld [vmem:[%s2887] sm:$0xf]
      %v2889 = vld [vmem:[%s2887 + $0x4] sm:$0xf]
      %v2890 = vld [vmem:[%s2887 + $0x8] sm:$0xf]
      %v2891 = vld [vmem:[%s2887 + $0xc] sm:$0xf]
      %v2892 = vld [vmem:[%s2887 + $0x10] sm:$0xf]
      %v2893 = vld [vmem:[%s2887 + $0x14] sm:$0xf]
      %v2894 = vld [vmem:[%s2887 + $0x18] sm:$0xf]
      %v2895 = vld [vmem:[%s2887 + $0x1c] sm:$0xf]
      %v2896 = vld [vmem:[%s2887 + $0x20] sm:$0xf]
      %v2897 = vld [vmem:[%s2887 + $0x24] sm:$0xf]
      %v2898 = vld [vmem:[%s2887 + $0x28] sm:$0xf]
      %v2899 = vld [vmem:[%s2887 + $0x2c] sm:$0xf]
      %v2900 = vld [vmem:[%s2887 + $0x30] sm:$0xf]
      %v2901 = vld [vmem:[%s2887 + $0x34] sm:$0xf]
      %v2902 = vld [vmem:[%s2887 + $0x38] sm:$0xf]
      %v2903 = vld [vmem:[%s2887 + $0x3c] sm:$0xf]
      %v2920 = vunpack.c.l.b16 %v2888
      %v2921 = vunpack.c.l.b16 %v2889
      %v2922 = vunpack.c.l.b16 %v2890
      %v2923 = vunpack.c.l.b16 %v2891
      %v2924 = vunpack.c.l.b16 %v2892
      %v2925 = vunpack.c.l.b16 %v2893
      %v2926 = vunpack.c.l.b16 %v2894
      %v2927 = vunpack.c.l.b16 %v2895
      %v2928 = vunpack.c.l.b16 %v2896
      %v2929 = vunpack.c.l.b16 %v2897
      %v2930 = vunpack.c.l.b16 %v2898
      %v2931 = vunpack.c.l.b16 %v2899
      %v2932 = vunpack.c.l.b16 %v2900
      %v2933 = vunpack.c.l.b16 %v2901
      %v2934 = vunpack.c.l.b16 %v2902
      %v2935 = vunpack.c.l.b16 %v2903
      %v2936 = vpack.c.b16 %v2921, %v2920
      %v2937 = vpack.c.b16 %v2923, %v2922
      %v2938 = vpack.c.b16 %v2925, %v2924
      %v2939 = vpack.c.b16 %v2927, %v2926
      %v2940 = vpack.c.b16 %v2929, %v2928
      %v2941 = vpack.c.b16 %v2931, %v2930
      %v2942 = vpack.c.b16 %v2933, %v2932
      %v2943 = vpack.c.b16 %v2935, %v2934
      %2952 = vmatprep.subr.bf16.mxu0 0
      %2953 = vmatpush1.bf16.msra.mxu0 %v2936
      %2954 = vmatprep.subr.bf16.mxu0 0
      %2955 = vmatpush1.bf16.msra.mxu0 %v2937
      %2956 = vmatprep.subr.bf16.mxu0 0
      %2957 = vmatpush1.bf16.msra.mxu0 %v2938
      %2958 = vmatprep.subr.bf16.mxu0 0
      %2959 = vmatpush1.bf16.msra.mxu0 %v2939
      %2960 = vmatprep.subr.bf16.mxu0 0
      %2961 = vmatpush1.bf16.msra.mxu0 %v2940
      %2962 = vmatprep.subr.bf16.mxu0 0
      %2963 = vmatpush1.bf16.msra.mxu0 %v2941
      %2964 = vmatprep.subr.bf16.mxu0 0
      %2965 = vmatpush1.bf16.msra.mxu0 %v2942
      %2966 = vmatprep.subr.bf16.mxu0 0
      %2967 = vmatpush1.bf16.msra.mxu0 %v2943
      %2968 = vmatprep.subr.bf16.mxu0 0
      %2969 = vmatpush1.bf16.msra.mxu0 0
      %2970 = vmatprep.subr.bf16.mxu0 0
      %2971 = vmatpush1.bf16.msra.mxu0 0
      %2972 = vmatprep.subr.bf16.mxu0 0
      %2973 = vmatpush1.bf16.msra.mxu0 0
      %2974 = vmatprep.subr.bf16.mxu0 0
      %2975 = vmatpush1.bf16.msra.mxu0 0
      %2976 = vmatprep.subr.bf16.mxu0 0
      %2977 = vmatpush1.bf16.msra.mxu0 0
      %2978 = vmatprep.subr.bf16.mxu0 0
      %2979 = vmatpush1.bf16.msra.mxu0 0
      %2980 = vmatprep.subr.bf16.mxu0 0
      %2981 = vmatpush1.bf16.msra.mxu0 0
      %2982 = vmatprep.subr.bf16.mxu0 0
      %2983 = vmatpush1.bf16.msra.mxu0 0
      %2984 = vmatprep.mubr.bf16.mxu0 0
      %2985 = vmatmul.mubr.bf16.gmra.mrb[0].mxu0 %v2839
      %v2986 = vpop.f32.mrb[0].mxu0
      %v2987 = vadd.f32 0.0, %v2986
      %v2988 = vpop.f32.mrb[0].mxu0
      %v2989 = vpop.f32.mrb[0].mxu0
      %v2990 = vadd.f32 0.0, %v2989
      %v2991 = vpop.f32.mrb[0].mxu0
      %2992 = vmatprep.mubr.bf16.mxu0 0
      %2993 = vmatmul.mubr.bf16.gmra.mrb[0].mxu0 %v2840
      %v2994 = vpop.f32.mrb[0].mxu0
      %v2995 = vadd.f32 0.0, %v2994
      %v2996 = vpop.f32.mrb[0].mxu0
      %v2997 = vpop.f32.mrb[0].mxu0
      %v2998 = vadd.f32 0.0, %v2997
      %v2999 = vpop.f32.mrb[0].mxu0
      %3000 = vmatprep.mubr.bf16.mxu0 0
      %3001 = vmatmul.mubr.bf16.gmra.mrb[0].mxu0 %v2841
      %v3002 = vpop.f32.mrb[0].mxu0
      %v3003 = vadd.f32 0.0, %v3002
      %v3004 = vpop.f32.mrb[0].mxu0
      %v3005 = vpop.f32.mrb[0].mxu0
      %v3006 = vadd.f32 0.0, %v3005
      %v3007 = vpop.f32.mrb[0].mxu0
      %3008 = vmatprep.mubr.bf16.mxu0 0
      %3009 = vmatmul.mubr.bf16.gmra.mrb[0].mxu0 %v2842
      %v3010 = vpop.f32.mrb[0].mxu0
      %v3011 = vadd.f32 0.0, %v3010
      %v3012 = vpop.f32.mrb[0].mxu0
      %v3013 = vpop.f32.mrb[0].mxu0
      %v3014 = vadd.f32 0.0, %v3013
      %v3015 = vpop.f32.mrb[0].mxu0
      %3016 = vmatprep.mubr.bf16.mxu0 0
      %3017 = vmatmul.mubr.bf16.gmra.mrb[0].mxu0 %v2843
      %v3018 = vpop.f32.mrb[0].mxu0
      %v3019 = vadd.f32 0.0, %v3018
      %v3020 = vpop.f32.mrb[0].mxu0
      %v3021 = vpop.f32.mrb[0].mxu0
      %v3022 = vadd.f32 0.0, %v3021
      %v3023 = vpop.f32.mrb[0].mxu0
      %3024 = vmatprep.mubr.bf16.mxu0 0
      %3025 = vmatmul.mubr.bf16.gmra.mrb[0].mxu0 %v2844
      %v3026 = vpop.f32.mrb[0].mxu0
      %v3027 = vadd.f32 0.0, %v3026
      %v3028 = vpop.f32.mrb[0].mxu0
      %v3029 = vpop.f32.mrb[0].mxu0
      %v3030 = vadd.f32 0.0, %v3029
      %v3031 = vpop.f32.mrb[0].mxu0
      %3032 = vmatprep.mubr.bf16.mxu0 0
      %3033 = vmatmul.mubr.bf16.gmra.mrb[0].mxu0 %v2845
      %v3034 = vpop.f32.mrb[0].mxu0
      %v3035 = vadd.f32 0.0, %v3034
      %v3036 = vpop.f32.mrb[0].mxu0
      %v3037 = vpop.f32.mrb[0].mxu0
      %v3038 = vadd.f32 0.0, %v3037
      %v3039 = vpop.f32.mrb[0].mxu0
      %3040 = vmatprep.mubr.bf16.mxu0 0
      %3041 = vmatmul.mubr.bf16.gmra.mrb[0].mxu0 %v2846
      %v3042 = vpop.f32.mrb[0].mxu0
      %v3043 = vadd.f32 0.0, %v3042
      %v3044 = vpop.f32.mrb[0].mxu0
      %v3045 = vpop.f32.mrb[0].mxu0
      %v3046 = vadd.f32 0.0, %v3045
      %v3047 = vpop.f32.mrb[0].mxu0
      %3048 = vmatprep.mubr.bf16.mxu0 0
      %3049 = vmatmul.mubr.bf16.gmra.mrb[0].mxu0 %v2847
      %v3050 = vpop.f32.mrb[0].mxu0
      %v3051 = vadd.f32 0.0, %v3050
      %v3052 = vpop.f32.mrb[0].mxu0
      %v3053 = vpop.f32.mrb[0].mxu0
      %v3054 = vadd.f32 0.0, %v3053
      %v3055 = vpop.f32.mrb[0].mxu0
      %3056 = vmatprep.mubr.bf16.mxu0 0
      %3057 = vmatmul.mubr.bf16.gmra.mrb[0].mxu0 %v2848
      %v3058 = vpop.f32.mrb[0].mxu0
      %v3059 = vadd.f32 0.0, %v3058
      %v3060 = vpop.f32.mrb[0].mxu0
      %v3061 = vpop.f32.mrb[0].mxu0
      %v3062 = vadd.f32 0.0, %v3061
      %v3063 = vpop.f32.mrb[0].mxu0
      %3064 = vmatprep.mubr.bf16.mxu0 0
      %3065 = vmatmul.mubr.bf16.gmra.mrb[0].mxu0 %v2849
      %v3066 = vpop.f32.mrb[0].mxu0
      %v3067 = vadd.f32 0.0, %v3066
      %v3068 = vpop.f32.mrb[0].mxu0
      %v3069 = vpop.f32.mrb[0].mxu0
      %v3070 = vadd.f32 0.0, %v3069
      %v3071 = vpop.f32.mrb[0].mxu0
      %3072 = vmatprep.mubr.bf16.mxu0 0
      %3073 = vmatmul.mubr.bf16.gmra.mrb[0].mxu0 %v2850
      %v3074 = vpop.f32.mrb[0].mxu0
      %v3075 = vadd.f32 0.0, %v3074
      %v3076 = vpop.f32.mrb[0].mxu0
      %v3077 = vpop.f32.mrb[0].mxu0
      %v3078 = vadd.f32 0.0, %v3077
      %v3079 = vpop.f32.mrb[0].mxu0
      %3080 = vmatprep.mubr.bf16.mxu0 0
      %3081 = vmatmul.mubr.bf16.gmra.mrb[0].mxu0 %v2851
      %v3082 = vpop.f32.mrb[0].mxu0
      %v3083 = vadd.f32 0.0, %v3082
      %v3084 = vpop.f32.mrb[0].mxu0
      %v3085 = vpop.f32.mrb[0].mxu0
      %v3086 = vadd.f32 0.0, %v3085
      %v3087 = vpop.f32.mrb[0].mxu0
      %3088 = vmatprep.mubr.bf16.mxu0 0
      %3089 = vmatmul.mubr.bf16.gmra.mrb[0].mxu0 %v2852
      %v3090 = vpop.f32.mrb[0].mxu0
      %v3091 = vadd.f32 0.0, %v3090
      %v3092 = vpop.f32.mrb[0].mxu0
      %v3093 = vpop.f32.mrb[0].mxu0
      %v3094 = vadd.f32 0.0, %v3093
      %v3095 = vpop.f32.mrb[0].mxu0
      %3096 = vmatprep.mubr.bf16.mxu0 0
      %3097 = vmatmul.mubr.bf16.gmra.mrb[0].mxu0 %v2853
      %v3098 = vpop.f32.mrb[0].mxu0
      %v3099 = vadd.f32 0.0, %v3098
      %v3100 = vpop.f32.mrb[0].mxu0
      %v3101 = vpop.f32.mrb[0].mxu0
      %v3102 = vadd.f32 0.0, %v3101
      %v3103 = vpop.f32.mrb[0].mxu0
      %3104 = vmatprep.mubr.bf16.mxu0 0
      %3105 = vmatmul.mubr.bf16.gmra.mrb[0].mxu0 %v2854
      %v3106 = vpop.f32.mrb[0].mxu0
      %v3107 = vadd.f32 0.0, %v3106
      %v3108 = vpop.f32.mrb[0].mxu0
      %v3109 = vpop.f32.mrb[0].mxu0
      %v3110 = vadd.f32 0.0, %v3109
      %v3111 = vpop.f32.mrb[0].mxu0
      %3112 = vdwg.mxu0
      %v3113 = vadd.f32 %v2855, %v2987
      %v3114 = vadd.f32 %v2856, %v2990
      %v3115 = vadd.f32 %v2857, %v2995
      %v3116 = vadd.f32 %v2858, %v2998
      %v3117 = vadd.f32 %v2859, %v3003
      %v3118 = vadd.f32 %v2860, %v3006
      %v3119 = vadd.f32 %v2861, %v3011
      %v3120 = vadd.f32 %v2862, %v3014
      %v3121 = vadd.f32 %v2863, %v3019
      %v3122 = vadd.f32 %v2864, %v3022
      %v3123 = vadd.f32 %v2865, %v3027
      %v3124 = vadd.f32 %v2866, %v3030
      %v3125 = vadd.f32 %v2867, %v3035
      %v3126 = vadd.f32 %v2868, %v3038
      %v3127 = vadd.f32 %v2869, %v3043
      %v3128 = vadd.f32 %v2870, %v3046
      %v3129 = vadd.f32 %v2871, %v3051
      %v3130 = vadd.f32 %v2872, %v3054
      %v3131 = vadd.f32 %v2873, %v3059
      %v3132 = vadd.f32 %v2874, %v3062
      %v3133 = vadd.f32 %v2875, %v3067
      %v3134 = vadd.f32 %v2876, %v3070
      %v3135 = vadd.f32 %v2877, %v3075
      %v3136 = vadd.f32 %v2878, %v3078
      %v3137 = vadd.f32 %v2879, %v3083
      %v3138 = vadd.f32 %v2880, %v3086
      %v3139 = vadd.f32 %v2881, %v3091
      %v3140 = vadd.f32 %v2882, %v3094
      %v3141 = vadd.f32 %v2883, %v3099
      %v3142 = vadd.f32 %v2884, %v3102
      %v3143 = vadd.f32 %v2885, %v3107
      %v3144 = vadd.f32 %v2886, %v3110
      %3145 = vst [vmem:[%s177] sm:$0xff] %v3113
      %3146 = vst [vmem:[%s177 + $0x8] sm:$0xff] %v3114
      %3147 = vst [vmem:[%s177 + $0x10] sm:$0xff] %v3115
      %3148 = vst [vmem:[%s177 + $0x18] sm:$0xff] %v3116
      %3149 = vst [vmem:[%s177 + $0x20] sm:$0xff] %v3117
      %3150 = vst [vmem:[%s177 + $0x28] sm:$0xff] %v3118
      %3151 = vst [vmem:[%s177 + $0x30] sm:$0xff] %v3119
      %3152 = vst [vmem:[%s177 + $0x38] sm:$0xff] %v3120
      %3153 = vst [vmem:[%s177 + $0x40] sm:$0xff] %v3121
      %3154 = vst [vmem:[%s177 + $0x48] sm:$0xff] %v3122
      %3155 = vst [vmem:[%s177 + $0x50] sm:$0xff] %v3123
      %3156 = vst [vmem:[%s177 + $0x58] sm:$0xff] %v3124
      %3157 = vst [vmem:[%s177 + $0x60] sm:$0xff] %v3125
      %3158 = vst [vmem:[%s177 + $0x68] sm:$0xff] %v3126
      %3159 = vst [vmem:[%s177 + $0x70] sm:$0xff] %v3127
      %3160 = vst [vmem:[%s177 + $0x78] sm:$0xff] %v3128
      %3161 = vst [vmem:[%s177 + $0x80] sm:$0xff] %v3129
      %3162 = vst [vmem:[%s177 + $0x88] sm:$0xff] %v3130
      %3163 = vst [vmem:[%s177 + $0x90] sm:$0xff] %v3131
      %3164 = vst [vmem:[%s177 + $0x98] sm:$0xff] %v3132
      %3165 = vst [vmem:[%s177 + $0xa0] sm:$0xff] %v3133
      %3166 = vst [vmem:[%s177 + $0xa8] sm:$0xff] %v3134
      %3167 = vst [vmem:[%s177 + $0xb0] sm:$0xff] %v3135
      %3168 = vst [vmem:[%s177 + $0xb8] sm:$0xff] %v3136
      %3169 = vst [vmem:[%s177 + $0xc0] sm:$0xff] %v3137
      %3170 = vst [vmem:[%s177 + $0xc8] sm:$0xff] %v3138
      %3171 = vst [vmem:[%s177 + $0xd0] sm:$0xff] %v3139
      %3172 = vst [vmem:[%s177 + $0xd8] sm:$0xff] %v3140
      %3173 = vst [vmem:[%s177 + $0xe0] sm:$0xff] %v3141
      %3174 = vst [vmem:[%s177 + $0xe8] sm:$0xff] %v3142
      %3175 = vst [vmem:[%s177 + $0xf0] sm:$0xff] %v3143
      %3176 = vst [vmem:[%s177 + $0xf8] sm:$0xff] %v3144
      %v3177 = vld [vmem:[%s2436 + $0x2] sm:$0xff]
      %v3178 = vld [vmem:[%s2436 + $0xa] sm:$0xff]
      %v3179 = vld [vmem:[%s2436 + $0x1a] sm:$0xff]
      %v3180 = vld [vmem:[%s2436 + $0x22] sm:$0xff]
      %v3181 = vld [vmem:[%s2436 + $0x32] sm:$0xff]
      %v3182 = vld [vmem:[%s2436 + $0x3a] sm:$0xff]
      %v3183 = vld [vmem:[%s2436 + $0x4a] sm:$0xff]
      %v3184 = vld [vmem:[%s2436 + $0x52] sm:$0xff]
      %v3185 = vld [vmem:[%s2436 + $0x62] sm:$0xff]
      %v3186 = vld [vmem:[%s2436 + $0x6a] sm:$0xff]
      %v3187 = vld [vmem:[%s2436 + $0x7a] sm:$0xff]
      %v3188 = vld [vmem:[%s2436 + $0x82] sm:$0xff]
      %v3189 = vld [vmem:[%s2436 + $0x92] sm:$0xff]
      %v3190 = vld [vmem:[%s2436 + $0x9a] sm:$0xff]
      %v3191 = vld [vmem:[%s2436 + $0xaa] sm:$0xff]
      %v3192 = vld [vmem:[%s2436 + $0xb2] sm:$0xff]
      %v3193 = vld [vmem:[%s2436 + $0xc2] sm:$0xff]
      %v3194 = vld [vmem:[%s2436 + $0xca] sm:$0xff]
      %v3195 = vld [vmem:[%s2436 + $0xda] sm:$0xff]
      %v3196 = vld [vmem:[%s2436 + $0xe2] sm:$0xff]
      %v3197 = vld [vmem:[%s2436 + $0xf2] sm:$0xff]
      %v3198 = vld [vmem:[%s2436 + $0xfa] sm:$0xff]
      %v3199 = vld [vmem:[%s2436 + $0x10a] sm:$0xff]
      %v3200 = vld [vmem:[%s2436 + $0x112] sm:$0xff]
      %v3201 = vld [vmem:[%s2436 + $0x122] sm:$0xff]
      %v3202 = vld [vmem:[%s2436 + $0x12a] sm:$0xff]
      %v3203 = vld [vmem:[%s2436 + $0x13a] sm:$0xff]
      %v3204 = vld [vmem:[%s2436 + $0x142] sm:$0xff]
      %v3205 = vld [vmem:[%s2436 + $0x152] sm:$0xff]
      %v3206 = vld [vmem:[%s2436 + $0x15a] sm:$0xff]
      %v3207 = vld [vmem:[%s2436 + $0x16a] sm:$0xff]
      %v3208 = vld [vmem:[%s2436 + $0x172] sm:$0xff]
      %v3209 = vpack.c.bf16 %v3178, %v3177
      %v3210 = vpack.c.bf16 %v3180, %v3179
      %v3211 = vpack.c.bf16 %v3182, %v3181
      %v3212 = vpack.c.bf16 %v3184, %v3183
      %v3213 = vpack.c.bf16 %v3186, %v3185
      %v3214 = vpack.c.bf16 %v3188, %v3187
      %v3215 = vpack.c.bf16 %v3190, %v3189
      %v3216 = vpack.c.bf16 %v3192, %v3191
      %v3217 = vpack.c.bf16 %v3194, %v3193
      %v3218 = vpack.c.bf16 %v3196, %v3195
      %v3219 = vpack.c.bf16 %v3198, %v3197
      %v3220 = vpack.c.bf16 %v3200, %v3199
      %v3221 = vpack.c.bf16 %v3202, %v3201
      %v3222 = vpack.c.bf16 %v3204, %v3203
      %v3223 = vpack.c.bf16 %v3206, %v3205
      %v3224 = vpack.c.bf16 %v3208, %v3207
      %v3225 = vld [vmem:[%s177] sm:$0xff]
      %v3226 = vld [vmem:[%s177 + $0x8] sm:$0xff]
      %v3227 = vld [vmem:[%s177 + $0x10] sm:$0xff]
      %v3228 = vld [vmem:[%s177 + $0x18] sm:$0xff]
      %v3229 = vld [vmem:[%s177 + $0x20] sm:$0xff]
      %v3230 = vld [vmem:[%s177 + $0x28] sm:$0xff]
      %v3231 = vld [vmem:[%s177 + $0x30] sm:$0xff]
      %v3232 = vld [vmem:[%s177 + $0x38] sm:$0xff]
      %v3233 = vld [vmem:[%s177 + $0x40] sm:$0xff]
      %v3234 = vld [vmem:[%s177 + $0x48] sm:$0xff]
      %v3235 = vld [vmem:[%s177 + $0x50] sm:$0xff]
      %v3236 = vld [vmem:[%s177 + $0x58] sm:$0xff]
      %v3237 = vld [vmem:[%s177 + $0x60] sm:$0xff]
      %v3238 = vld [vmem:[%s177 + $0x68] sm:$0xff]
      %v3239 = vld [vmem:[%s177 + $0x70] sm:$0xff]
      %v3240 = vld [vmem:[%s177 + $0x78] sm:$0xff]
      %v3241 = vld [vmem:[%s177 + $0x80] sm:$0xff]
      %v3242 = vld [vmem:[%s177 + $0x88] sm:$0xff]
      %v3243 = vld [vmem:[%s177 + $0x90] sm:$0xff]
      %v3244 = vld [vmem:[%s177 + $0x98] sm:$0xff]
      %v3245 = vld [vmem:[%s177 + $0xa0] sm:$0xff]
      %v3246 = vld [vmem:[%s177 + $0xa8] sm:$0xff]
      %v3247 = vld [vmem:[%s177 + $0xb0] sm:$0xff]
      %v3248 = vld [vmem:[%s177 + $0xb8] sm:$0xff]
      %v3249 = vld [vmem:[%s177 + $0xc0] sm:$0xff]
      %v3250 = vld [vmem:[%s177 + $0xc8] sm:$0xff]
      %v3251 = vld [vmem:[%s177 + $0xd0] sm:$0xff]
      %v3252 = vld [vmem:[%s177 + $0xd8] sm:$0xff]
      %v3253 = vld [vmem:[%s177 + $0xe0] sm:$0xff]
      %v3254 = vld [vmem:[%s177 + $0xe8] sm:$0xff]
      %v3255 = vld [vmem:[%s177 + $0xf0] sm:$0xff]
      %v3256 = vld [vmem:[%s177 + $0xf8] sm:$0xff]
      %s3257 = scalar_lea.vmem %s1, 512
      %v3258 = vld [vmem:[%s3257] sm:$0xf]
      %v3259 = vld [vmem:[%s3257 + $0x4] sm:$0xf]
      %v3260 = vld [vmem:[%s3257 + $0x8] sm:$0xf]
      %v3261 = vld [vmem:[%s3257 + $0xc] sm:$0xf]
      %v3262 = vld [vmem:[%s3257 + $0x10] sm:$0xf]
      %v3263 = vld [vmem:[%s3257 + $0x14] sm:$0xf]
      %v3264 = vld [vmem:[%s3257 + $0x18] sm:$0xf]
      %v3265 = vld [vmem:[%s3257 + $0x1c] sm:$0xf]
      %v3266 = vld [vmem:[%s3257 + $0x20] sm:$0xf]
      %v3267 = vld [vmem:[%s3257 + $0x24] sm:$0xf]
      %v3268 = vld [vmem:[%s3257 + $0x28] sm:$0xf]
      %v3269 = vld [vmem:[%s3257 + $0x2c] sm:$0xf]
      %v3270 = vld [vmem:[%s3257 + $0x30] sm:$0xf]
      %v3271 = vld [vmem:[%s3257 + $0x34] sm:$0xf]
      %v3272 = vld [vmem:[%s3257 + $0x38] sm:$0xf]
      %v3273 = vld [vmem:[%s3257 + $0x3c] sm:$0xf]
      %v3290 = vunpack.c.l.b16 %v3258
      %v3291 = vunpack.c.l.b16 %v3259
      %v3292 = vunpack.c.l.b16 %v3260
      %v3293 = vunpack.c.l.b16 %v3261
      %v3294 = vunpack.c.l.b16 %v3262
      %v3295 = vunpack.c.l.b16 %v3263
      %v3296 = vunpack.c.l.b16 %v3264
      %v3297 = vunpack.c.l.b16 %v3265
      %v3298 = vunpack.c.l.b16 %v3266
      %v3299 = vunpack.c.l.b16 %v3267
      %v3300 = vunpack.c.l.b16 %v3268
      %v3301 = vunpack.c.l.b16 %v3269
      %v3302 = vunpack.c.l.b16 %v3270
      %v3303 = vunpack.c.l.b16 %v3271
      %v3304 = vunpack.c.l.b16 %v3272
      %v3305 = vunpack.c.l.b16 %v3273
      %v3306 = vpack.c.b16 %v3291, %v3290
      %v3307 = vpack.c.b16 %v3293, %v3292
      %v3308 = vpack.c.b16 %v3295, %v3294
      %v3309 = vpack.c.b16 %v3297, %v3296
      %v3310 = vpack.c.b16 %v3299, %v3298
      %v3311 = vpack.c.b16 %v3301, %v3300
      %v3312 = vpack.c.b16 %v3303, %v3302
      %v3313 = vpack.c.b16 %v3305, %v3304
      %3322 = vmatprep.subr.bf16.mxu0 0
      %3323 = vmatpush1.bf16.msra.mxu0 %v3306
      %3324 = vmatprep.subr.bf16.mxu0 0
      %3325 = vmatpush1.bf16.msra.mxu0 %v3307
      %3326 = vmatprep.subr.bf16.mxu0 0
      %3327 = vmatpush1.bf16.msra.mxu0 %v3308
      %3328 = vmatprep.subr.bf16.mxu0 0
      %3329 = vmatpush1.bf16.msra.mxu0 %v3309
      %3330 = vmatprep.subr.bf16.mxu0 0
      %3331 = vmatpush1.bf16.msra.mxu0 %v3310
      %3332 = vmatprep.subr.bf16.mxu0 0
      %3333 = vmatpush1.bf16.msra.mxu0 %v3311
      %3334 = vmatprep.subr.bf16.mxu0 0
      %3335 = vmatpush1.bf16.msra.mxu0 %v3312
      %3336 = vmatprep.subr.bf16.mxu0 0
      %3337 = vmatpush1.bf16.msra.mxu0 %v3313
      %3338 = vmatprep.subr.bf16.mxu0 0
      %3339 = vmatpush1.bf16.msra.mxu0 0
      %3340 = vmatprep.subr.bf16.mxu0 0
      %3341 = vmatpush1.bf16.msra.mxu0 0
      %3342 = vmatprep.subr.bf16.mxu0 0
      %3343 = vmatpush1.bf16.msra.mxu0 0
      %3344 = vmatprep.subr.bf16.mxu0 0
      %3345 = vmatpush1.bf16.msra.mxu0 0
      %3346 = vmatprep.subr.bf16.mxu0 0
      %3347 = vmatpush1.bf16.msra.mxu0 0
      %3348 = vmatprep.subr.bf16.mxu0 0
      %3349 = vmatpush1.bf16.msra.mxu0 0
      %3350 = vmatprep.subr.bf16.mxu0 0
      %3351 = vmatpush1.bf16.msra.mxu0 0
      %3352 = vmatprep.subr.bf16.mxu0 0
      %3353 = vmatpush1.bf16.msra.mxu0 0
      %3354 = vmatprep.mubr.bf16.mxu0 0
      %3355 = vmatmul.mubr.bf16.gmra.mrb[0].mxu0 %v3209
      %v3356 = vpop.f32.mrb[0].mxu0
      %v3357 = vadd.f32 0.0, %v3356
      %v3358 = vpop.f32.mrb[0].mxu0
      %v3359 = vpop.f32.mrb[0].mxu0
      %v3360 = vadd.f32 0.0, %v3359
      %v3361 = vpop.f32.mrb[0].mxu0
      %3362 = vmatprep.mubr.bf16.mxu0 0
      %3363 = vmatmul.mubr.bf16.gmra.mrb[0].mxu0 %v3210
      %v3364 = vpop.f32.mrb[0].mxu0
      %v3365 = vadd.f32 0.0, %v3364
      %v3366 = vpop.f32.mrb[0].mxu0
      %v3367 = vpop.f32.mrb[0].mxu0
      %v3368 = vadd.f32 0.0, %v3367
      %v3369 = vpop.f32.mrb[0].mxu0
      %3370 = vmatprep.mubr.bf16.mxu0 0
      %3371 = vmatmul.mubr.bf16.gmra.mrb[0].mxu0 %v3211
      %v3372 = vpop.f32.mrb[0].mxu0
      %v3373 = vadd.f32 0.0, %v3372
      %v3374 = vpop.f32.mrb[0].mxu0
      %v3375 = vpop.f32.mrb[0].mxu0
      %v3376 = vadd.f32 0.0, %v3375
      %v3377 = vpop.f32.mrb[0].mxu0
      %3378 = vmatprep.mubr.bf16.mxu0 0
      %3379 = vmatmul.mubr.bf16.gmra.mrb[0].mxu0 %v3212
      %v3380 = vpop.f32.mrb[0].mxu0
      %v3381 = vadd.f32 0.0, %v3380
      %v3382 = vpop.f32.mrb[0].mxu0
      %v3383 = vpop.f32.mrb[0].mxu0
      %v3384 = vadd.f32 0.0, %v3383
      %v3385 = vpop.f32.mrb[0].mxu0
      %3386 = vmatprep.mubr.bf16.mxu0 0
      %3387 = vmatmul.mubr.bf16.gmra.mrb[0].mxu0 %v3213
      %v3388 = vpop.f32.mrb[0].mxu0
      %v3389 = vadd.f32 0.0, %v3388
      %v3390 = vpop.f32.mrb[0].mxu0
      %v3391 = vpop.f32.mrb[0].mxu0
      %v3392 = vadd.f32 0.0, %v3391
      %v3393 = vpop.f32.mrb[0].mxu0
      %3394 = vmatprep.mubr.bf16.mxu0 0
      %3395 = vmatmul.mubr.bf16.gmra.mrb[0].mxu0 %v3214
      %v3396 = vpop.f32.mrb[0].mxu0
      %v3397 = vadd.f32 0.0, %v3396
      %v3398 = vpop.f32.mrb[0].mxu0
      %v3399 = vpop.f32.mrb[0].mxu0
      %v3400 = vadd.f32 0.0, %v3399
      %v3401 = vpop.f32.mrb[0].mxu0
      %3402 = vmatprep.mubr.bf16.mxu0 0
      %3403 = vmatmul.mubr.bf16.gmra.mrb[0].mxu0 %v3215
      %v3404 = vpop.f32.mrb[0].mxu0
      %v3405 = vadd.f32 0.0, %v3404
      %v3406 = vpop.f32.mrb[0].mxu0
      %v3407 = vpop.f32.mrb[0].mxu0
      %v3408 = vadd.f32 0.0, %v3407
      %v3409 = vpop.f32.mrb[0].mxu0
      %3410 = vmatprep.mubr.bf16.mxu0 0
      %3411 = vmatmul.mubr.bf16.gmra.mrb[0].mxu0 %v3216
      %v3412 = vpop.f32.mrb[0].mxu0
      %v3413 = vadd.f32 0.0, %v3412
      %v3414 = vpop.f32.mrb[0].mxu0
      %v3415 = vpop.f32.mrb[0].mxu0
      %v3416 = vadd.f32 0.0, %v3415
      %v3417 = vpop.f32.mrb[0].mxu0
      %3418 = vmatprep.mubr.bf16.mxu0 0
      %3419 = vmatmul.mubr.bf16.gmra.mrb[0].mxu0 %v3217
      %v3420 = vpop.f32.mrb[0].mxu0
      %v3421 = vadd.f32 0.0, %v3420
      %v3422 = vpop.f32.mrb[0].mxu0
      %v3423 = vpop.f32.mrb[0].mxu0
      %v3424 = vadd.f32 0.0, %v3423
      %v3425 = vpop.f32.mrb[0].mxu0
      %3426 = vmatprep.mubr.bf16.mxu0 0
      %3427 = vmatmul.mubr.bf16.gmra.mrb[0].mxu0 %v3218
      %v3428 = vpop.f32.mrb[0].mxu0
      %v3429 = vadd.f32 0.0, %v3428
      %v3430 = vpop.f32.mrb[0].mxu0
      %v3431 = vpop.f32.mrb[0].mxu0
      %v3432 = vadd.f32 0.0, %v3431
      %v3433 = vpop.f32.mrb[0].mxu0
      %3434 = vmatprep.mubr.bf16.mxu0 0
      %3435 = vmatmul.mubr.bf16.gmra.mrb[0].mxu0 %v3219
      %v3436 = vpop.f32.mrb[0].mxu0
      %v3437 = vadd.f32 0.0, %v3436
      %v3438 = vpop.f32.mrb[0].mxu0
      %v3439 = vpop.f32.mrb[0].mxu0
      %v3440 = vadd.f32 0.0, %v3439
      %v3441 = vpop.f32.mrb[0].mxu0
      %3442 = vmatprep.mubr.bf16.mxu0 0
      %3443 = vmatmul.mubr.bf16.gmra.mrb[0].mxu0 %v3220
      %v3444 = vpop.f32.mrb[0].mxu0
      %v3445 = vadd.f32 0.0, %v3444
      %v3446 = vpop.f32.mrb[0].mxu0
      %v3447 = vpop.f32.mrb[0].mxu0
      %v3448 = vadd.f32 0.0, %v3447
      %v3449 = vpop.f32.mrb[0].mxu0
      %3450 = vmatprep.mubr.bf16.mxu0 0
      %3451 = vmatmul.mubr.bf16.gmra.mrb[0].mxu0 %v3221
      %v3452 = vpop.f32.mrb[0].mxu0
      %v3453 = vadd.f32 0.0, %v3452
      %v3454 = vpop.f32.mrb[0].mxu0
      %v3455 = vpop.f32.mrb[0].mxu0
      %v3456 = vadd.f32 0.0, %v3455
      %v3457 = vpop.f32.mrb[0].mxu0
      %3458 = vmatprep.mubr.bf16.mxu0 0
      %3459 = vmatmul.mubr.bf16.gmra.mrb[0].mxu0 %v3222
      %v3460 = vpop.f32.mrb[0].mxu0
      %v3461 = vadd.f32 0.0, %v3460
      %v3462 = vpop.f32.mrb[0].mxu0
      %v3463 = vpop.f32.mrb[0].mxu0
      %v3464 = vadd.f32 0.0, %v3463
      %v3465 = vpop.f32.mrb[0].mxu0
      %3466 = vmatprep.mubr.bf16.mxu0 0
      %3467 = vmatmul.mubr.bf16.gmra.mrb[0].mxu0 %v3223
      %v3468 = vpop.f32.mrb[0].mxu0
      %v3469 = vadd.f32 0.0, %v3468
      %v3470 = vpop.f32.mrb[0].mxu0
      %v3471 = vpop.f32.mrb[0].mxu0
      %v3472 = vadd.f32 0.0, %v3471
      %v3473 = vpop.f32.mrb[0].mxu0
      %3474 = vmatprep.mubr.bf16.mxu0 0
      %3475 = vmatmul.mubr.bf16.gmra.mrb[0].mxu0 %v3224
      %v3476 = vpop.f32.mrb[0].mxu0
      %v3477 = vadd.f32 0.0, %v3476
      %v3478 = vpop.f32.mrb[0].mxu0
      %v3479 = vpop.f32.mrb[0].mxu0
      %v3480 = vadd.f32 0.0, %v3479
      %v3481 = vpop.f32.mrb[0].mxu0
      %3482 = vdwg.mxu0
      %v3483 = vadd.f32 %v3225, %v3357
      %v3484 = vadd.f32 %v3226, %v3360
      %v3485 = vadd.f32 %v3227, %v3365
      %v3486 = vadd.f32 %v3228, %v3368
      %v3487 = vadd.f32 %v3229, %v3373
      %v3488 = vadd.f32 %v3230, %v3376
      %v3489 = vadd.f32 %v3231, %v3381
      %v3490 = vadd.f32 %v3232, %v3384
      %v3491 = vadd.f32 %v3233, %v3389
      %v3492 = vadd.f32 %v3234, %v3392
      %v3493 = vadd.f32 %v3235, %v3397
      %v3494 = vadd.f32 %v3236, %v3400
      %v3495 = vadd.f32 %v3237, %v3405
      %v3496 = vadd.f32 %v3238, %v3408
      %v3497 = vadd.f32 %v3239, %v3413
      %v3498 = vadd.f32 %v3240, %v3416
      %v3499 = vadd.f32 %v3241, %v3421
      %v3500 = vadd.f32 %v3242, %v3424
      %v3501 = vadd.f32 %v3243, %v3429
      %v3502 = vadd.f32 %v3244, %v3432
      %v3503 = vadd.f32 %v3245, %v3437
      %v3504 = vadd.f32 %v3246, %v3440
      %v3505 = vadd.f32 %v3247, %v3445
      %v3506 = vadd.f32 %v3248, %v3448
      %v3507 = vadd.f32 %v3249, %v3453
      %v3508 = vadd.f32 %v3250, %v3456
      %v3509 = vadd.f32 %v3251, %v3461
      %v3510 = vadd.f32 %v3252, %v3464
      %v3511 = vadd.f32 %v3253, %v3469
      %v3512 = vadd.f32 %v3254, %v3472
      %v3513 = vadd.f32 %v3255, %v3477
      %v3514 = vadd.f32 %v3256, %v3480
      %3515 = vst [vmem:[%s177] sm:$0xff] %v3483
      %3516 = vst [vmem:[%s177 + $0x8] sm:$0xff] %v3484
      %3517 = vst [vmem:[%s177 + $0x10] sm:$0xff] %v3485
      %3518 = vst [vmem:[%s177 + $0x18] sm:$0xff] %v3486
      %3519 = vst [vmem:[%s177 + $0x20] sm:$0xff] %v3487
      %3520 = vst [vmem:[%s177 + $0x28] sm:$0xff] %v3488
      %3521 = vst [vmem:[%s177 + $0x30] sm:$0xff] %v3489
      %3522 = vst [vmem:[%s177 + $0x38] sm:$0xff] %v3490
      %3523 = vst [vmem:[%s177 + $0x40] sm:$0xff] %v3491
      %3524 = vst [vmem:[%s177 + $0x48] sm:$0xff] %v3492
      %3525 = vst [vmem:[%s177 + $0x50] sm:$0xff] %v3493
      %3526 = vst [vmem:[%s177 + $0x58] sm:$0xff] %v3494
      %3527 = vst [vmem:[%s177 + $0x60] sm:$0xff] %v3495
      %3528 = vst [vmem:[%s177 + $0x68] sm:$0xff] %v3496
      %3529 = vst [vmem:[%s177 + $0x70] sm:$0xff] %v3497
      %3530 = vst [vmem:[%s177 + $0x78] sm:$0xff] %v3498
      %3531 = vst [vmem:[%s177 + $0x80] sm:$0xff] %v3499
      %3532 = vst [vmem:[%s177 + $0x88] sm:$0xff] %v3500
      %3533 = vst [vmem:[%s177 + $0x90] sm:$0xff] %v3501
      %3534 = vst [vmem:[%s177 + $0x98] sm:$0xff] %v3502
      %3535 = vst [vmem:[%s177 + $0xa0] sm:$0xff] %v3503
      %3536 = vst [vmem:[%s177 + $0xa8] sm:$0xff] %v3504
      %3537 = vst [vmem:[%s177 + $0xb0] sm:$0xff] %v3505
      %3538 = vst [vmem:[%s177 + $0xb8] sm:$0xff] %v3506
      %3539 = vst [vmem:[%s177 + $0xc0] sm:$0xff] %v3507
      %3540 = vst [vmem:[%s177 + $0xc8] sm:$0xff] %v3508
      %3541 = vst [vmem:[%s177 + $0xd0] sm:$0xff] %v3509
      %3542 = vst [vmem:[%s177 + $0xd8] sm:$0xff] %v3510
      %3543 = vst [vmem:[%s177 + $0xe0] sm:$0xff] %v3511
      %3544 = vst [vmem:[%s177 + $0xe8] sm:$0xff] %v3512
      %3545 = vst [vmem:[%s177 + $0xf0] sm:$0xff] %v3513
      %3546 = vst [vmem:[%s177 + $0xf8] sm:$0xff] %v3514
      %v3547 = vld [vmem:[%s177] sm:$0xff]
      %v3548 = vld [vmem:[%s177 + $0x8] sm:$0xff]
      %v3549 = vld [vmem:[%s177 + $0x10] sm:$0xff]
      %v3550 = vld [vmem:[%s177 + $0x18] sm:$0xff]
      %v3551 = vld [vmem:[%s177 + $0x20] sm:$0xff]
      %v3552 = vld [vmem:[%s177 + $0x28] sm:$0xff]
      %v3553 = vld [vmem:[%s177 + $0x30] sm:$0xff]
      %v3554 = vld [vmem:[%s177 + $0x38] sm:$0xff]
      %v3555 = vld [vmem:[%s177 + $0x40] sm:$0xff]
      %v3556 = vld [vmem:[%s177 + $0x48] sm:$0xff]
      %v3557 = vld [vmem:[%s177 + $0x50] sm:$0xff]
      %v3558 = vld [vmem:[%s177 + $0x58] sm:$0xff]
      %v3559 = vld [vmem:[%s177 + $0x60] sm:$0xff]
      %v3560 = vld [vmem:[%s177 + $0x68] sm:$0xff]
      %v3561 = vld [vmem:[%s177 + $0x70] sm:$0xff]
      %v3562 = vld [vmem:[%s177 + $0x78] sm:$0xff]
      %v3563 = vld [vmem:[%s177 + $0x80] sm:$0xff]
      %v3564 = vld [vmem:[%s177 + $0x88] sm:$0xff]
      %v3565 = vld [vmem:[%s177 + $0x90] sm:$0xff]
      %v3566 = vld [vmem:[%s177 + $0x98] sm:$0xff]
      %v3567 = vld [vmem:[%s177 + $0xa0] sm:$0xff]
      %v3568 = vld [vmem:[%s177 + $0xa8] sm:$0xff]
      %v3569 = vld [vmem:[%s177 + $0xb0] sm:$0xff]
      %v3570 = vld [vmem:[%s177 + $0xb8] sm:$0xff]
      %v3571 = vld [vmem:[%s177 + $0xc0] sm:$0xff]
      %v3572 = vld [vmem:[%s177 + $0xc8] sm:$0xff]
      %v3573 = vld [vmem:[%s177 + $0xd0] sm:$0xff]
      %v3574 = vld [vmem:[%s177 + $0xd8] sm:$0xff]
      %v3575 = vld [vmem:[%s177 + $0xe0] sm:$0xff]
      %v3576 = vld [vmem:[%s177 + $0xe8] sm:$0xff]
      %v3577 = vld [vmem:[%s177 + $0xf0] sm:$0xff]
      %v3578 = vld [vmem:[%s177 + $0xf8] sm:$0xff]
      %3579 = vst [vmem:[%s182] sm:$0xff] 0.0
      %v3580 = vadd.f32 %v3547, %v3548
      %v3581 = vadd.f32 %v3580, %v3549
      %v3582 = vadd.f32 %v3581, %v3550
      %v3583 = vadd.f32 %v3582, %v3551
      %v3584 = vadd.f32 %v3583, %v3552
      %v3585 = vadd.f32 %v3584, %v3553
      %v3586 = vadd.f32 %v3585, %v3554
      %v3587 = vadd.f32 %v3586, %v3555
      %v3588 = vadd.f32 %v3587, %v3556
      %v3589 = vadd.f32 %v3588, %v3557
      %v3590 = vadd.f32 %v3589, %v3558
      %v3591 = vadd.f32 %v3590, %v3559
      %v3592 = vadd.f32 %v3591, %v3560
      %v3593 = vadd.f32 %v3592, %v3561
      %v3594 = vadd.f32 %v3593, %v3562
      %v3595 = vadd.f32 %v3594, %v3563
      %v3596 = vadd.f32 %v3595, %v3564
      %v3597 = vadd.f32 %v3596, %v3565
      %v3598 = vadd.f32 %v3597, %v3566
      %v3599 = vadd.f32 %v3598, %v3567
      %v3600 = vadd.f32 %v3599, %v3568
      %v3601 = vadd.f32 %v3600, %v3569
      %v3602 = vadd.f32 %v3601, %v3570
      %v3603 = vadd.f32 %v3602, %v3571
      %v3604 = vadd.f32 %v3603, %v3572
      %v3605 = vadd.f32 %v3604, %v3573
      %v3606 = vadd.f32 %v3605, %v3574
      %v3607 = vadd.f32 %v3606, %v3575
      %v3608 = vadd.f32 %v3607, %v3576
      %v3609 = vadd.f32 %v3608, %v3577
      %v3610 = vadd.f32 %v3609, %v3578
      %v3611 = vrot.slane %v3610, 4
      %v3612 = vadd.f32 %v3610, %v3611
      %v3613 = vrot.slane %v3612, 2
      %v3614 = vadd.f32 %v3612, %v3613
      %v3615 = vrot.slane %v3614, 1
      %v3616 = vadd.f32 %v3614, %v3615
      %3617 = vst [vmem:[%s182] sm:$0x1] %v3616
      %v3618 = vmul.f32 %v3547, %v3547
      %v3619 = vmul.f32 %v3548, %v3548
      %v3620 = vmul.f32 %v3549, %v3549
      %v3621 = vmul.f32 %v3550, %v3550
      %v3622 = vmul.f32 %v3551, %v3551
      %v3623 = vmul.f32 %v3552, %v3552
      %v3624 = vmul.f32 %v3553, %v3553
      %v3625 = vmul.f32 %v3554, %v3554
      %v3626 = vmul.f32 %v3555, %v3555
      %v3627 = vmul.f32 %v3556, %v3556
      %v3628 = vmul.f32 %v3557, %v3557
      %v3629 = vmul.f32 %v3558, %v3558
      %v3630 = vmul.f32 %v3559, %v3559
      %v3631 = vmul.f32 %v3560, %v3560
      %v3632 = vmul.f32 %v3561, %v3561
      %v3633 = vmul.f32 %v3562, %v3562
      %v3634 = vmul.f32 %v3563, %v3563
      %v3635 = vmul.f32 %v3564, %v3564
      %v3636 = vmul.f32 %v3565, %v3565
      %v3637 = vmul.f32 %v3566, %v3566
      %v3638 = vmul.f32 %v3567, %v3567
      %v3639 = vmul.f32 %v3568, %v3568
      %v3640 = vmul.f32 %v3569, %v3569
      %v3641 = vmul.f32 %v3570, %v3570
      %v3642 = vmul.f32 %v3571, %v3571
      %v3643 = vmul.f32 %v3572, %v3572
      %v3644 = vmul.f32 %v3573, %v3573
      %v3645 = vmul.f32 %v3574, %v3574
      %v3646 = vmul.f32 %v3575, %v3575
      %v3647 = vmul.f32 %v3576, %v3576
      %v3648 = vmul.f32 %v3577, %v3577
      %v3649 = vmul.f32 %v3578, %v3578
      %v3650 = vadd.f32 %v3618, %v3619
      %v3651 = vadd.f32 %v3650, %v3620
      %v3652 = vadd.f32 %v3651, %v3621
      %v3653 = vadd.f32 %v3652, %v3622
      %v3654 = vadd.f32 %v3653, %v3623
      %v3655 = vadd.f32 %v3654, %v3624
      %v3656 = vadd.f32 %v3655, %v3625
      %v3657 = vadd.f32 %v3656, %v3626
      %v3658 = vadd.f32 %v3657, %v3627
      %v3659 = vadd.f32 %v3658, %v3628
      %v3660 = vadd.f32 %v3659, %v3629
      %v3661 = vadd.f32 %v3660, %v3630
      %v3662 = vadd.f32 %v3661, %v3631
      %v3663 = vadd.f32 %v3662, %v3632
      %v3664 = vadd.f32 %v3663, %v3633
      %v3665 = vadd.f32 %v3664, %v3634
      %v3666 = vadd.f32 %v3665, %v3635
      %v3667 = vadd.f32 %v3666, %v3636
      %v3668 = vadd.f32 %v3667, %v3637
      %v3669 = vadd.f32 %v3668, %v3638
      %v3670 = vadd.f32 %v3669, %v3639
      %v3671 = vadd.f32 %v3670, %v3640
      %v3672 = vadd.f32 %v3671, %v3641
      %v3673 = vadd.f32 %v3672, %v3642
      %v3674 = vadd.f32 %v3673, %v3643
      %v3675 = vadd.f32 %v3674, %v3644
      %v3676 = vadd.f32 %v3675, %v3645
      %v3677 = vadd.f32 %v3676, %v3646
      %v3678 = vadd.f32 %v3677, %v3647
      %v3679 = vadd.f32 %v3678, %v3648
      %v3680 = vadd.f32 %v3679, %v3649
      %v3681 = vrot.slane %v3680, 4
      %v3682 = vadd.f32 %v3680, %v3681
      %v3683 = vrot.slane %v3682, 2
      %v3684 = vadd.f32 %v3682, %v3683
      %v3685 = vrot.slane %v3684, 1
      %v3686 = vadd.f32 %v3684, %v3685
      %3687 = vst [vmem:[%s182 + $0x1] sm:$0x1] %v3686
      %s3688 = smul.u32 32, %s15
      %p3689 = scmp.lt.s32.totalorder %s3688, 63
      %s3690 = scalar_select %p3689, %s3688, 63
      %s3691 = smul.addr %s3690, 8
      %s3692 = scalar_lea.vmem %s2, %s3691
      %p3693 = scmp.lt.s32.totalorder %s15, 1
      %s3694 = scalar_select %p3693, %s15, 1
      %s3695 = smul.addr %s3694, 8
      %s3696 = scalar_lea.vmem %s3, %s3695
      // Predicated region
      $region29: #{bottleneck_forward.8} parent=27 // pred_check
        %p3697 = pneg %p80
      $region30: #{bottleneck_forward.8} parent=27 // pred_check_branch
        %3699 = sbr.rel (%p3697) target = $region32
      $region31: #{bottleneck_forward.8} parent=27 // pred_region
        %s3700 = smul.u32 32, %s15
      $region32: #{bottleneck_forward.8} parent=27 // pred_fallthru
        _
      // Predicated region
      $region33: #{bottleneck_forward.8} parent=27 // pred_check
        %p3701 = pneg %p106
      $region34: #{bottleneck_forward.8} parent=27 // pred_check_branch
        %3703 = sbr.rel (%p3701) target = $region36
      $region35: #{bottleneck_forward.8} parent=27 // pred_region
        _
      $region36: #{bottleneck_forward.8} parent=27 // pred_fallthru
        _
    $region28: #{bottleneck_forward.8} parent=5 // pred_fallthru
      _
    %p3704 = scmp.le.s32.totalorder 2, %s10
    // Predicated region
    $region37: #{bottleneck_forward.8} parent=5 // pred_check
      %p3705 = pneg %p3704
    $region38: #{bottleneck_forward.8} parent=5 // pred_check_branch
      %3707 = sbr.rel (%p3705) target = $region40
    $region39: #{bottleneck_forward.8} parent=5 // pred_region
      %s3708 = ssub.s32 %s10, 2
      // Predicated region
      $region41: #{bottleneck_forward.8} parent=39 // pred_check
        %p3709 = pneg %p86
      $region42: #{bottleneck_forward.8} parent=39 // pred_check_branch
        %3711 = sbr.rel (%p3709) target = $region44
      $region43: #{bottleneck_forward.8} parent=39 // pred_region
        %s3712 = smul.u32 32, %s16
        %p3713 = scmp.lt.s32.totalorder %s3712, 63
        %s3714 = scalar_select %p3713, %s3712, 63
        %s3715 = smul.addr %s3714, 8
        %s3716 = scalar_lea.vmem %s2, %s3715
      $region44: #{bottleneck_forward.8} parent=39 // pred_fallthru
        _
      // Predicated region
      $region45: #{bottleneck_forward.8} parent=39 // pred_check
        %p3717 = pneg %p112
      $region46: #{bottleneck_forward.8} parent=39 // pred_check_branch
        %3719 = sbr.rel (%p3717) target = $region48
      $region47: #{bottleneck_forward.8} parent=39 // pred_region
        %p3720 = scmp.lt.s32.totalorder %s16, 1
        %s3721 = scalar_select %p3720, %s16, 1
        %s3722 = smul.addr %s3721, 8
        %s3723 = scalar_lea.vmem %s3, %s3722
      $region48: #{bottleneck_forward.8} parent=39 // pred_fallthru
        _
    $region40: #{bottleneck_forward.8} parent=5 // pred_fallthru
      _
  $region6: #{bottleneck_forward.8} parent=0 // loop_footer
    %s14 = sadd.s32 1, %s10
  $region7: #{bottleneck_forward.8} parent=0 // loop_footer_branch
    %9 = sbr.rel target = $region3
  $region8: #{bottleneck_forward.8} parent=0 // loop_exit
    _

</llo_original>
